<compile_context>
chip_gen: v7x
topology: tpu7x:2x2x1
jax: 0.10.0
libtpu: 0.0.40
codegen_flags: <defaults>
</compile_context>

<pallas_src>
import jax
import jax.numpy as jnp
from jax.experimental import pallas as pl
from jax.experimental.pallas import tpu as pltpu

C_IN = 3
C_OUT = 97
KERNEL = 9616
STRIDE = 4
PADDING = 142

ROWS_PER_GROUP = 16  # bf16 sublane packing: 16 rows per vreg


def _round_up(v, m):
    return (v + m - 1) // m * m


def pack_weight(weight):
    """One-time weight transform: (Cout, Cin, K) f32 -> (Cin, STRIDE*QPAD, Cout) bf16.

    Rows within a channel are ordered (r, q) with k = STRIDE*q + r, and q is
    zero-padded from Q = K/STRIDE to QPAD (multiple of 128).
    """
    Cout, Cin, K = weight.shape
    assert K % STRIDE == 0
    Q = K // STRIDE                                   # 2404
    QPAD = _round_up(Q, 128)                          # 2432
    w = weight.reshape(Cout, Cin, Q, STRIDE)          # [cout, ci, q, r]; k = 4q + r
    w = jnp.pad(w, ((0, 0), (0, 0), (0, QPAD - Q), (0, 0)))
    w = jnp.transpose(w, (1, 3, 2, 0))                # (Cin, STRIDE, QPAD, Cout)
    return w.reshape(Cin, STRIDE * QPAD, Cout).astype(jnp.bfloat16)


def conv1d_tanh(x, w_packed, bias, *, stride=STRIDE, padding=PADDING, kernel=KERNEL):
    """Conv1d (PyTorch NCL semantics) + tanh.  w_packed = pack_weight(weight)."""
    B, Cin, L = x.shape
    Cin_w, KQ, Cout = w_packed.shape
    assert Cin == Cin_w
    Q = kernel // stride
    QPAD = _round_up(Q, 128)
    assert KQ == stride * QPAD

    L_out = (L + 2 * padding - kernel) // stride + 1
    assert L_out > 0, "input too short for this kernel/padding/stride"

    T_pad = _round_up(L_out, ROWS_PER_GROUP)          # padded rows per batch (80)
    G = T_pad // ROWS_PER_GROUP                       # 16-row groups per batch (5)
    MP = B * T_pad                                    # padded M (160)

    # Per-phase stream length (lane axis of the pre-shifted input).
    LP4 = _round_up(ROWS_PER_GROUP * (G - 1) + QPAD, 128)   # 2560
    Z_LEN = LP4 + ROWS_PER_GROUP                             # 2576
    LPP = stride * Z_LEN                                     # 10304
    assert LPP >= L + 2 * padding

    # ---- tiny input prep (~2 MB bf16): stride-phase + 16-shift decomposition ----
    # x_pre[ci, r, b, d, m] = x_pad[b, ci, stride*(m + d) + r]
    x_pad = jnp.pad(x, ((0, 0), (0, 0), (padding, LPP - L - padding)))
    xb = x_pad.astype(jnp.bfloat16)
    z = xb.reshape(B, Cin, Z_LEN, stride)             # z[b,ci,m,r] = x_pad[b,ci,4m+r]
    x_pre = jnp.stack([z[:, :, d:d + LP4, :] for d in range(ROWS_PER_GROUP)], axis=0)
    x_pre = jnp.transpose(x_pre, (2, 4, 1, 0, 3))     # (Cin, stride, B, 16, LP4)

    bias2d = bias.astype(jnp.float32).reshape(1, Cout)

    def kernel_fn(x_ref, w_ref, b_ref, o_ref):
        k = pl.program_id(0)

        acc = None
        for j in range(stride):                        # phase segments of this step
            w_seg = w_ref[j * QPAD:(j + 1) * QPAD, :]  # (QPAD, Cout) bf16
            pieces = []
            for b in range(B):
                for g in range(G):
                    t0 = ROWS_PER_GROUP * g
                    # 16 output rows (t = 16g + d) x QPAD taps: Hankel slab built
                    # from a single aligned-sublane slice of the resident input.
                    pieces.append(x_ref[j, b, :, t0:t0 + QPAD])
            a_blk = jnp.concatenate(pieces, axis=0)    # (MP, QPAD) bf16
            part = jnp.dot(a_blk, w_seg, preferred_element_type=jnp.float32)
            acc = part if acc is None else acc + part

        @pl.when(k == 0)
        def _():
            o_ref[...] = acc

        @pl.when(k > 0)
        def _():
            o_ref[...] = o_ref[...] + acc

        @pl.when(k == pl.num_programs(0) - 1)
        def _():
            o_ref[...] = jnp.tanh(o_ref[...] + b_ref[...])

    flops = 2 * MP * (Cin * stride * QPAD) * Cout
    bytes_accessed = (x_pre.size * 2 + w_packed.size * 2
                      + bias2d.size * 4 + MP * Cout * 4)

    out = pl.pallas_call(
        kernel_fn,
        out_shape=jax.ShapeDtypeStruct((MP, Cout), jnp.float32),
        grid_spec=pltpu.PrefetchScalarGridSpec(
            num_scalar_prefetch=0,
            grid=(Cin,),
            in_specs=[
                pl.BlockSpec((None, stride, B, ROWS_PER_GROUP, LP4),
                             lambda k: (k, 0, 0, 0, 0)),        # pre-shifted input
                pl.BlockSpec((None, stride * QPAD, Cout),
                             lambda k: (k, 0, 0)),              # packed weights
                pl.BlockSpec((1, Cout), lambda k: (0, 0)),      # bias (resident)
            ],
            out_specs=pl.BlockSpec((MP, Cout), lambda k: (0, 0)),
        ),
        compiler_params=pltpu.CompilerParams(
            dimension_semantics=("arbitrary",),
            vmem_limit_bytes=32 * 1024 * 1024),
        cost_estimate=pl.CostEstimate(
            flops=flops, transcendentals=MP * Cout, bytes_accessed=bytes_accessed),
    )(x_pre, w_packed, bias2d)

    out = out.reshape(B, T_pad, Cout)[:, :L_out, :]
    return jnp.transpose(out, (0, 2, 1))               # (B, Cout, L_out)


if __name__ == "__main__":
    key = jax.random.PRNGKey(0)
    kx, kw, kb = jax.random.split(key, 3)

    B, L = 2, 9600                      # smallest sensible batch / length -> L_out = 68
    x = jax.random.normal(kx, (B, C_IN, L), dtype=jnp.float32)

    # deterministic parameter init (PyTorch Conv1d default: U(-1/sqrt(fan_in), +))
    fan_in = C_IN * KERNEL
    bound = 1.0 / (fan_in ** 0.5)
    weight = jax.random.uniform(kw, (C_OUT, C_IN, KERNEL), jnp.float32, -bound, bound)
    bias = jax.random.uniform(kb, (C_OUT,), jnp.float32, -bound, bound)

    # Weight transform hoisted out of the per-call path (done once).
    w_packed = jax.block_until_ready(pack_weight(weight))

    conv_fn = jax.jit(conv1d_tanh)
    y = jax.block_until_ready(conv_fn(x, w_packed, bias))

    # correctness check against XLA's conv + tanh (f32 reference)
    ref = jax.lax.conv_general_dilated(
        x, weight, window_strides=(STRIDE,), padding=[(PADDING, PADDING)],
        dimension_numbers=("NCH", "OIH", "NCH"))
    ref = jnp.tanh(ref + bias[None, :, None])

    L_out = (L + 2 * PADDING - KERNEL) // STRIDE + 1
    assert y.shape == (B, C_OUT, L_out), y.shape
    # bf16 operands over a 28848-long contraction: tolerance loosened vs f32 ref.
    assert jnp.allclose(y, ref, atol=3e-2, rtol=3e-2), float(jnp.max(jnp.abs(y - ref)))

    print("KERNEL_OK")
</pallas_src>

<mosaic_0001>
module attributes {stable_mosaic.version = 11 : i64} {
  func.func @kernel_fn(%arg0: i32, %arg1: memref<1x4x2x16x2560xbf16, #tpu.memory_space<vmem>>, %arg2: memref<1x9728x97xbf16, #tpu.memory_space<vmem>>, %arg3: memref<1x97xf32, #tpu.memory_space<vmem>>, %arg4: memref<160x97xf32, #tpu.memory_space<vmem>>) attributes {dimension_semantics = [#tpu.dimension_semantics<arbitrary>], iteration_bounds = array<i64: 3>, scalar_prefetch = 0 : i64, scratch_operands = 0 : i64, tpu.core_type = #tpu.core_type<tc>, window_params = [{transform_indices = @transform_0, window_bounds = array<i64: 1, 4, 2, 16, 2560>}, {transform_indices = @transform_1, window_bounds = array<i64: 1, 9728, 97>}, {pipeline_mode = #tpu.pipeline_mode<synchronous>, transform_indices = @transform_2, window_bounds = array<i64: 1, 97>}, {pipeline_mode = #tpu.pipeline_mode<synchronous>, transform_indices = @transform_3, window_bounds = array<i64: 160, 97>}]} {
    %c0 = arith.constant 0 : index
    %c0_0 = arith.constant 0 : index
    %c0_1 = arith.constant 0 : index
    %0 = vector.load %arg2[%c0, %c0_0, %c0_1] : memref<1x9728x97xbf16, #tpu.memory_space<vmem>>, vector<1x2432x97xbf16>
    %1 = vector.shape_cast %0 : vector<1x2432x97xbf16> to vector<2432x97xbf16>
    %c0_2 = arith.constant 0 : index
    %c0_3 = arith.constant 0 : index
    %c0_4 = arith.constant 0 : index
    %c0_5 = arith.constant 0 : index
    %c0_6 = arith.constant 0 : index
    %2 = vector.load %arg1[%c0_2, %c0_3, %c0_4, %c0_5, %c0_6] : memref<1x4x2x16x2560xbf16, #tpu.memory_space<vmem>>, vector<1x1x1x16x2432xbf16>
    %3 = vector.shape_cast %2 : vector<1x1x1x16x2432xbf16> to vector<16x2432xbf16>
    %c0_7 = arith.constant 0 : index
    %c0_8 = arith.constant 0 : index
    %c0_9 = arith.constant 0 : index
    %c0_10 = arith.constant 0 : index
    %c16 = arith.constant 16 : index
    %4 = vector.load %arg1[%c0_7, %c0_8, %c0_9, %c0_10, %c16] : memref<1x4x2x16x2560xbf16, #tpu.memory_space<vmem>>, vector<1x1x1x16x2432xbf16>
    %5 = vector.shape_cast %4 : vector<1x1x1x16x2432xbf16> to vector<16x2432xbf16>
    %c0_11 = arith.constant 0 : index
    %c0_12 = arith.constant 0 : index
    %c0_13 = arith.constant 0 : index
    %c0_14 = arith.constant 0 : index
    %c32 = arith.constant 32 : index
    %6 = vector.load %arg1[%c0_11, %c0_12, %c0_13, %c0_14, %c32] : memref<1x4x2x16x2560xbf16, #tpu.memory_space<vmem>>, vector<1x1x1x16x2432xbf16>
    %7 = vector.shape_cast %6 : vector<1x1x1x16x2432xbf16> to vector<16x2432xbf16>
    %c0_15 = arith.constant 0 : index
    %c0_16 = arith.constant 0 : index
    %c0_17 = arith.constant 0 : index
    %c0_18 = arith.constant 0 : index
    %c48 = arith.constant 48 : index
    %8 = vector.load %arg1[%c0_15, %c0_16, %c0_17, %c0_18, %c48] : memref<1x4x2x16x2560xbf16, #tpu.memory_space<vmem>>, vector<1x1x1x16x2432xbf16>
    %9 = vector.shape_cast %8 : vector<1x1x1x16x2432xbf16> to vector<16x2432xbf16>
    %c0_19 = arith.constant 0 : index
    %c0_20 = arith.constant 0 : index
    %c0_21 = arith.constant 0 : index
    %c0_22 = arith.constant 0 : index
    %c64 = arith.constant 64 : index
    %10 = vector.load %arg1[%c0_19, %c0_20, %c0_21, %c0_22, %c64] : memref<1x4x2x16x2560xbf16, #tpu.memory_space<vmem>>, vector<1x1x1x16x2432xbf16>
    %11 = vector.shape_cast %10 : vector<1x1x1x16x2432xbf16> to vector<16x2432xbf16>
    %c0_23 = arith.constant 0 : index
    %c0_24 = arith.constant 0 : index
    %c1 = arith.constant 1 : index
    %c0_25 = arith.constant 0 : index
    %c0_26 = arith.constant 0 : index
    %12 = vector.load %arg1[%c0_23, %c0_24, %c1, %c0_25, %c0_26] : memref<1x4x2x16x2560xbf16, #tpu.memory_space<vmem>>, vector<1x1x1x16x2432xbf16>
    %13 = vector.shape_cast %12 : vector<1x1x1x16x2432xbf16> to vector<16x2432xbf16>
    %c0_27 = arith.constant 0 : index
    %c0_28 = arith.constant 0 : index
    %c1_29 = arith.constant 1 : index
    %c0_30 = arith.constant 0 : index
    %c16_31 = arith.constant 16 : index
    %14 = vector.load %arg1[%c0_27, %c0_28, %c1_29, %c0_30, %c16_31] : memref<1x4x2x16x2560xbf16, #tpu.memory_space<vmem>>, vector<1x1x1x16x2432xbf16>
    %15 = vector.shape_cast %14 : vector<1x1x1x16x2432xbf16> to vector<16x2432xbf16>
    %c0_32 = arith.constant 0 : index
    %c0_33 = arith.constant 0 : index
    %c1_34 = arith.constant 1 : index
    %c0_35 = arith.constant 0 : index
    %c32_36 = arith.constant 32 : index
    %16 = vector.load %arg1[%c0_32, %c0_33, %c1_34, %c0_35, %c32_36] : memref<1x4x2x16x2560xbf16, #tpu.memory_space<vmem>>, vector<1x1x1x16x2432xbf16>
    %17 = vector.shape_cast %16 : vector<1x1x1x16x2432xbf16> to vector<16x2432xbf16>
    %c0_37 = arith.constant 0 : index
    %c0_38 = arith.constant 0 : index
    %c1_39 = arith.constant 1 : index
    %c0_40 = arith.constant 0 : index
    %c48_41 = arith.constant 48 : index
    %18 = vector.load %arg1[%c0_37, %c0_38, %c1_39, %c0_40, %c48_41] : memref<1x4x2x16x2560xbf16, #tpu.memory_space<vmem>>, vector<1x1x1x16x2432xbf16>
    %19 = vector.shape_cast %18 : vector<1x1x1x16x2432xbf16> to vector<16x2432xbf16>
    %c0_42 = arith.constant 0 : index
    %c0_43 = arith.constant 0 : index
    %c1_44 = arith.constant 1 : index
    %c0_45 = arith.constant 0 : index
    %c64_46 = arith.constant 64 : index
    %20 = vector.load %arg1[%c0_42, %c0_43, %c1_44, %c0_45, %c64_46] : memref<1x4x2x16x2560xbf16, #tpu.memory_space<vmem>>, vector<1x1x1x16x2432xbf16>
    %21 = vector.shape_cast %20 : vector<1x1x1x16x2432xbf16> to vector<16x2432xbf16>
    %22 = tpu.concatenate %3, %5, %7, %9, %11, %13, %15, %17, %19, %21 in 0 : vector<16x2432xbf16>, vector<16x2432xbf16>, vector<16x2432xbf16>, vector<16x2432xbf16>, vector<16x2432xbf16>, vector<16x2432xbf16>, vector<16x2432xbf16>, vector<16x2432xbf16>, vector<16x2432xbf16>, vector<16x2432xbf16> -> vector<160x2432xbf16>
    %cst = arith.constant dense<0.000000e+00> : vector<160x97xf32>
    %23 = tpu.matmul %22, %1, %cst {dimension_numbers = #tpu.dot_dimension_numbers<[1], [0], [0], [1], [0, 0, 1, 1], [], []>} : vector<160x2432xbf16>, vector<2432x97xbf16>, vector<160x97xf32> -> vector<160x97xf32>
    %c0_47 = arith.constant 0 : index
    %c2432 = arith.constant 2432 : index
    %c0_48 = arith.constant 0 : index
    %24 = vector.load %arg2[%c0_47, %c2432, %c0_48] : memref<1x9728x97xbf16, #tpu.memory_space<vmem>>, vector<1x2432x97xbf16>
    %25 = vector.shape_cast %24 : vector<1x2432x97xbf16> to vector<2432x97xbf16>
    %c0_49 = arith.constant 0 : index
    %c1_50 = arith.constant 1 : index
    %c0_51 = arith.constant 0 : index
    %c0_52 = arith.constant 0 : index
    %c0_53 = arith.constant 0 : index
    %26 = vector.load %arg1[%c0_49, %c1_50, %c0_51, %c0_52, %c0_53] : memref<1x4x2x16x2560xbf16, #tpu.memory_space<vmem>>, vector<1x1x1x16x2432xbf16>
    %27 = vector.shape_cast %26 : vector<1x1x1x16x2432xbf16> to vector<16x2432xbf16>
    %c0_54 = arith.constant 0 : index
    %c1_55 = arith.constant 1 : index
    %c0_56 = arith.constant 0 : index
    %c0_57 = arith.constant 0 : index
    %c16_58 = arith.constant 16 : index
    %28 = vector.load %arg1[%c0_54, %c1_55, %c0_56, %c0_57, %c16_58] : memref<1x4x2x16x2560xbf16, #tpu.memory_space<vmem>>, vector<1x1x1x16x2432xbf16>
    %29 = vector.shape_cast %28 : vector<1x1x1x16x2432xbf16> to vector<16x2432xbf16>
    %c0_59 = arith.constant 0 : index
    %c1_60 = arith.constant 1 : index
    %c0_61 = arith.constant 0 : index
    %c0_62 = arith.constant 0 : index
    %c32_63 = arith.constant 32 : index
    %30 = vector.load %arg1[%c0_59, %c1_60, %c0_61, %c0_62, %c32_63] : memref<1x4x2x16x2560xbf16, #tpu.memory_space<vmem>>, vector<1x1x1x16x2432xbf16>
    %31 = vector.shape_cast %30 : vector<1x1x1x16x2432xbf16> to vector<16x2432xbf16>
    %c0_64 = arith.constant 0 : index
    %c1_65 = arith.constant 1 : index
    %c0_66 = arith.constant 0 : index
    %c0_67 = arith.constant 0 : index
    %c48_68 = arith.constant 48 : index
    %32 = vector.load %arg1[%c0_64, %c1_65, %c0_66, %c0_67, %c48_68] : memref<1x4x2x16x2560xbf16, #tpu.memory_space<vmem>>, vector<1x1x1x16x2432xbf16>
    %33 = vector.shape_cast %32 : vector<1x1x1x16x2432xbf16> to vector<16x2432xbf16>
    %c0_69 = arith.constant 0 : index
    %c1_70 = arith.constant 1 : index
    %c0_71 = arith.constant 0 : index
    %c0_72 = arith.constant 0 : index
    %c64_73 = arith.constant 64 : index
    %34 = vector.load %arg1[%c0_69, %c1_70, %c0_71, %c0_72, %c64_73] : memref<1x4x2x16x2560xbf16, #tpu.memory_space<vmem>>, vector<1x1x1x16x2432xbf16>
    %35 = vector.shape_cast %34 : vector<1x1x1x16x2432xbf16> to vector<16x2432xbf16>
    %c0_74 = arith.constant 0 : index
    %c1_75 = arith.constant 1 : index
    %c1_76 = arith.constant 1 : index
    %c0_77 = arith.constant 0 : index
    %c0_78 = arith.constant 0 : index
    %36 = vector.load %arg1[%c0_74, %c1_75, %c1_76, %c0_77, %c0_78] : memref<1x4x2x16x2560xbf16, #tpu.memory_space<vmem>>, vector<1x1x1x16x2432xbf16>
    %37 = vector.shape_cast %36 : vector<1x1x1x16x2432xbf16> to vector<16x2432xbf16>
    %c0_79 = arith.constant 0 : index
    %c1_80 = arith.constant 1 : index
    %c1_81 = arith.constant 1 : index
    %c0_82 = arith.constant 0 : index
    %c16_83 = arith.constant 16 : index
    %38 = vector.load %arg1[%c0_79, %c1_80, %c1_81, %c0_82, %c16_83] : memref<1x4x2x16x2560xbf16, #tpu.memory_space<vmem>>, vector<1x1x1x16x2432xbf16>
    %39 = vector.shape_cast %38 : vector<1x1x1x16x2432xbf16> to vector<16x2432xbf16>
    %c0_84 = arith.constant 0 : index
    %c1_85 = arith.constant 1 : index
    %c1_86 = arith.constant 1 : index
    %c0_87 = arith.constant 0 : index
    %c32_88 = arith.constant 32 : index
    %40 = vector.load %arg1[%c0_84, %c1_85, %c1_86, %c0_87, %c32_88] : memref<1x4x2x16x2560xbf16, #tpu.memory_space<vmem>>, vector<1x1x1x16x2432xbf16>
    %41 = vector.shape_cast %40 : vector<1x1x1x16x2432xbf16> to vector<16x2432xbf16>
    %c0_89 = arith.constant 0 : index
    %c1_90 = arith.constant 1 : index
    %c1_91 = arith.constant 1 : index
    %c0_92 = arith.constant 0 : index
    %c48_93 = arith.constant 48 : index
    %42 = vector.load %arg1[%c0_89, %c1_90, %c1_91, %c0_92, %c48_93] : memref<1x4x2x16x2560xbf16, #tpu.memory_space<vmem>>, vector<1x1x1x16x2432xbf16>
    %43 = vector.shape_cast %42 : vector<1x1x1x16x2432xbf16> to vector<16x2432xbf16>
    %c0_94 = arith.constant 0 : index
    %c1_95 = arith.constant 1 : index
    %c1_96 = arith.constant 1 : index
    %c0_97 = arith.constant 0 : index
    %c64_98 = arith.constant 64 : index
    %44 = vector.load %arg1[%c0_94, %c1_95, %c1_96, %c0_97, %c64_98] : memref<1x4x2x16x2560xbf16, #tpu.memory_space<vmem>>, vector<1x1x1x16x2432xbf16>
    %45 = vector.shape_cast %44 : vector<1x1x1x16x2432xbf16> to vector<16x2432xbf16>
    %46 = tpu.concatenate %27, %29, %31, %33, %35, %37, %39, %41, %43, %45 in 0 : vector<16x2432xbf16>, vector<16x2432xbf16>, vector<16x2432xbf16>, vector<16x2432xbf16>, vector<16x2432xbf16>, vector<16x2432xbf16>, vector<16x2432xbf16>, vector<16x2432xbf16>, vector<16x2432xbf16>, vector<16x2432xbf16> -> vector<160x2432xbf16>
    %cst_99 = arith.constant dense<0.000000e+00> : vector<160x97xf32>
    %47 = tpu.matmul %46, %25, %cst_99 {dimension_numbers = #tpu.dot_dimension_numbers<[1], [0], [0], [1], [0, 0, 1, 1], [], []>} : vector<160x2432xbf16>, vector<2432x97xbf16>, vector<160x97xf32> -> vector<160x97xf32>
    %48 = arith.addf %23, %47 : vector<160x97xf32>
    %c0_100 = arith.constant 0 : index
    %c4864 = arith.constant 4864 : index
    %c0_101 = arith.constant 0 : index
    %49 = vector.load %arg2[%c0_100, %c4864, %c0_101] : memref<1x9728x97xbf16, #tpu.memory_space<vmem>>, vector<1x2432x97xbf16>
    %50 = vector.shape_cast %49 : vector<1x2432x97xbf16> to vector<2432x97xbf16>
    %c0_102 = arith.constant 0 : index
    %c2 = arith.constant 2 : index
    %c0_103 = arith.constant 0 : index
    %c0_104 = arith.constant 0 : index
    %c0_105 = arith.constant 0 : index
    %51 = vector.load %arg1[%c0_102, %c2, %c0_103, %c0_104, %c0_105] : memref<1x4x2x16x2560xbf16, #tpu.memory_space<vmem>>, vector<1x1x1x16x2432xbf16>
    %52 = vector.shape_cast %51 : vector<1x1x1x16x2432xbf16> to vector<16x2432xbf16>
    %c0_106 = arith.constant 0 : index
    %c2_107 = arith.constant 2 : index
    %c0_108 = arith.constant 0 : index
    %c0_109 = arith.constant 0 : index
    %c16_110 = arith.constant 16 : index
    %53 = vector.load %arg1[%c0_106, %c2_107, %c0_108, %c0_109, %c16_110] : memref<1x4x2x16x2560xbf16, #tpu.memory_space<vmem>>, vector<1x1x1x16x2432xbf16>
    %54 = vector.shape_cast %53 : vector<1x1x1x16x2432xbf16> to vector<16x2432xbf16>
    %c0_111 = arith.constant 0 : index
    %c2_112 = arith.constant 2 : index
    %c0_113 = arith.constant 0 : index
    %c0_114 = arith.constant 0 : index
    %c32_115 = arith.constant 32 : index
    %55 = vector.load %arg1[%c0_111, %c2_112, %c0_113, %c0_114, %c32_115] : memref<1x4x2x16x2560xbf16, #tpu.memory_space<vmem>>, vector<1x1x1x16x2432xbf16>
    %56 = vector.shape_cast %55 : vector<1x1x1x16x2432xbf16> to vector<16x2432xbf16>
    %c0_116 = arith.constant 0 : index
    %c2_117 = arith.constant 2 : index
    %c0_118 = arith.constant 0 : index
    %c0_119 = arith.constant 0 : index
    %c48_120 = arith.constant 48 : index
    %57 = vector.load %arg1[%c0_116, %c2_117, %c0_118, %c0_119, %c48_120] : memref<1x4x2x16x2560xbf16, #tpu.memory_space<vmem>>, vector<1x1x1x16x2432xbf16>
    %58 = vector.shape_cast %57 : vector<1x1x1x16x2432xbf16> to vector<16x2432xbf16>
    %c0_121 = arith.constant 0 : index
    %c2_122 = arith.constant 2 : index
    %c0_123 = arith.constant 0 : index
    %c0_124 = arith.constant 0 : index
    %c64_125 = arith.constant 64 : index
    %59 = vector.load %arg1[%c0_121, %c2_122, %c0_123, %c0_124, %c64_125] : memref<1x4x2x16x2560xbf16, #tpu.memory_space<vmem>>, vector<1x1x1x16x2432xbf16>
    %60 = vector.shape_cast %59 : vector<1x1x1x16x2432xbf16> to vector<16x2432xbf16>
    %c0_126 = arith.constant 0 : index
    %c2_127 = arith.constant 2 : index
    %c1_128 = arith.constant 1 : index
    %c0_129 = arith.constant 0 : index
    %c0_130 = arith.constant 0 : index
    %61 = vector.load %arg1[%c0_126, %c2_127, %c1_128, %c0_129, %c0_130] : memref<1x4x2x16x2560xbf16, #tpu.memory_space<vmem>>, vector<1x1x1x16x2432xbf16>
    %62 = vector.shape_cast %61 : vector<1x1x1x16x2432xbf16> to vector<16x2432xbf16>
    %c0_131 = arith.constant 0 : index
    %c2_132 = arith.constant 2 : index
    %c1_133 = arith.constant 1 : index
    %c0_134 = arith.constant 0 : index
    %c16_135 = arith.constant 16 : index
    %63 = vector.load %arg1[%c0_131, %c2_132, %c1_133, %c0_134, %c16_135] : memref<1x4x2x16x2560xbf16, #tpu.memory_space<vmem>>, vector<1x1x1x16x2432xbf16>
    %64 = vector.shape_cast %63 : vector<1x1x1x16x2432xbf16> to vector<16x2432xbf16>
    %c0_136 = arith.constant 0 : index
    %c2_137 = arith.constant 2 : index
    %c1_138 = arith.constant 1 : index
    %c0_139 = arith.constant 0 : index
    %c32_140 = arith.constant 32 : index
    %65 = vector.load %arg1[%c0_136, %c2_137, %c1_138, %c0_139, %c32_140] : memref<1x4x2x16x2560xbf16, #tpu.memory_space<vmem>>, vector<1x1x1x16x2432xbf16>
    %66 = vector.shape_cast %65 : vector<1x1x1x16x2432xbf16> to vector<16x2432xbf16>
    %c0_141 = arith.constant 0 : index
    %c2_142 = arith.constant 2 : index
    %c1_143 = arith.constant 1 : index
    %c0_144 = arith.constant 0 : index
    %c48_145 = arith.constant 48 : index
    %67 = vector.load %arg1[%c0_141, %c2_142, %c1_143, %c0_144, %c48_145] : memref<1x4x2x16x2560xbf16, #tpu.memory_space<vmem>>, vector<1x1x1x16x2432xbf16>
    %68 = vector.shape_cast %67 : vector<1x1x1x16x2432xbf16> to vector<16x2432xbf16>
    %c0_146 = arith.constant 0 : index
    %c2_147 = arith.constant 2 : index
    %c1_148 = arith.constant 1 : index
    %c0_149 = arith.constant 0 : index
    %c64_150 = arith.constant 64 : index
    %69 = vector.load %arg1[%c0_146, %c2_147, %c1_148, %c0_149, %c64_150] : memref<1x4x2x16x2560xbf16, #tpu.memory_space<vmem>>, vector<1x1x1x16x2432xbf16>
    %70 = vector.shape_cast %69 : vector<1x1x1x16x2432xbf16> to vector<16x2432xbf16>
    %71 = tpu.concatenate %52, %54, %56, %58, %60, %62, %64, %66, %68, %70 in 0 : vector<16x2432xbf16>, vector<16x2432xbf16>, vector<16x2432xbf16>, vector<16x2432xbf16>, vector<16x2432xbf16>, vector<16x2432xbf16>, vector<16x2432xbf16>, vector<16x2432xbf16>, vector<16x2432xbf16>, vector<16x2432xbf16> -> vector<160x2432xbf16>
    %cst_151 = arith.constant dense<0.000000e+00> : vector<160x97xf32>
    %72 = tpu.matmul %71, %50, %cst_151 {dimension_numbers = #tpu.dot_dimension_numbers<[1], [0], [0], [1], [0, 0, 1, 1], [], []>} : vector<160x2432xbf16>, vector<2432x97xbf16>, vector<160x97xf32> -> vector<160x97xf32>
    %73 = arith.addf %48, %72 : vector<160x97xf32>
    %c0_152 = arith.constant 0 : index
    %c7296 = arith.constant 7296 : index
    %c0_153 = arith.constant 0 : index
    %74 = vector.load %arg2[%c0_152, %c7296, %c0_153] : memref<1x9728x97xbf16, #tpu.memory_space<vmem>>, vector<1x2432x97xbf16>
    %75 = vector.shape_cast %74 : vector<1x2432x97xbf16> to vector<2432x97xbf16>
    %c0_154 = arith.constant 0 : index
    %c3 = arith.constant 3 : index
    %c0_155 = arith.constant 0 : index
    %c0_156 = arith.constant 0 : index
    %c0_157 = arith.constant 0 : index
    %76 = vector.load %arg1[%c0_154, %c3, %c0_155, %c0_156, %c0_157] : memref<1x4x2x16x2560xbf16, #tpu.memory_space<vmem>>, vector<1x1x1x16x2432xbf16>
    %77 = vector.shape_cast %76 : vector<1x1x1x16x2432xbf16> to vector<16x2432xbf16>
    %c0_158 = arith.constant 0 : index
    %c3_159 = arith.constant 3 : index
    %c0_160 = arith.constant 0 : index
    %c0_161 = arith.constant 0 : index
    %c16_162 = arith.constant 16 : index
    %78 = vector.load %arg1[%c0_158, %c3_159, %c0_160, %c0_161, %c16_162] : memref<1x4x2x16x2560xbf16, #tpu.memory_space<vmem>>, vector<1x1x1x16x2432xbf16>
    %79 = vector.shape_cast %78 : vector<1x1x1x16x2432xbf16> to vector<16x2432xbf16>
    %c0_163 = arith.constant 0 : index
    %c3_164 = arith.constant 3 : index
    %c0_165 = arith.constant 0 : index
    %c0_166 = arith.constant 0 : index
    %c32_167 = arith.constant 32 : index
    %80 = vector.load %arg1[%c0_163, %c3_164, %c0_165, %c0_166, %c32_167] : memref<1x4x2x16x2560xbf16, #tpu.memory_space<vmem>>, vector<1x1x1x16x2432xbf16>
    %81 = vector.shape_cast %80 : vector<1x1x1x16x2432xbf16> to vector<16x2432xbf16>
    %c0_168 = arith.constant 0 : index
    %c3_169 = arith.constant 3 : index
    %c0_170 = arith.constant 0 : index
    %c0_171 = arith.constant 0 : index
    %c48_172 = arith.constant 48 : index
    %82 = vector.load %arg1[%c0_168, %c3_169, %c0_170, %c0_171, %c48_172] : memref<1x4x2x16x2560xbf16, #tpu.memory_space<vmem>>, vector<1x1x1x16x2432xbf16>
    %83 = vector.shape_cast %82 : vector<1x1x1x16x2432xbf16> to vector<16x2432xbf16>
    %c0_173 = arith.constant 0 : index
    %c3_174 = arith.constant 3 : index
    %c0_175 = arith.constant 0 : index
    %c0_176 = arith.constant 0 : index
    %c64_177 = arith.constant 64 : index
    %84 = vector.load %arg1[%c0_173, %c3_174, %c0_175, %c0_176, %c64_177] : memref<1x4x2x16x2560xbf16, #tpu.memory_space<vmem>>, vector<1x1x1x16x2432xbf16>
    %85 = vector.shape_cast %84 : vector<1x1x1x16x2432xbf16> to vector<16x2432xbf16>
    %c0_178 = arith.constant 0 : index
    %c3_179 = arith.constant 3 : index
    %c1_180 = arith.constant 1 : index
    %c0_181 = arith.constant 0 : index
    %c0_182 = arith.constant 0 : index
    %86 = vector.load %arg1[%c0_178, %c3_179, %c1_180, %c0_181, %c0_182] : memref<1x4x2x16x2560xbf16, #tpu.memory_space<vmem>>, vector<1x1x1x16x2432xbf16>
    %87 = vector.shape_cast %86 : vector<1x1x1x16x2432xbf16> to vector<16x2432xbf16>
    %c0_183 = arith.constant 0 : index
    %c3_184 = arith.constant 3 : index
    %c1_185 = arith.constant 1 : index
    %c0_186 = arith.constant 0 : index
    %c16_187 = arith.constant 16 : index
    %88 = vector.load %arg1[%c0_183, %c3_184, %c1_185, %c0_186, %c16_187] : memref<1x4x2x16x2560xbf16, #tpu.memory_space<vmem>>, vector<1x1x1x16x2432xbf16>
    %89 = vector.shape_cast %88 : vector<1x1x1x16x2432xbf16> to vector<16x2432xbf16>
    %c0_188 = arith.constant 0 : index
    %c3_189 = arith.constant 3 : index
    %c1_190 = arith.constant 1 : index
    %c0_191 = arith.constant 0 : index
    %c32_192 = arith.constant 32 : index
    %90 = vector.load %arg1[%c0_188, %c3_189, %c1_190, %c0_191, %c32_192] : memref<1x4x2x16x2560xbf16, #tpu.memory_space<vmem>>, vector<1x1x1x16x2432xbf16>
    %91 = vector.shape_cast %90 : vector<1x1x1x16x2432xbf16> to vector<16x2432xbf16>
    %c0_193 = arith.constant 0 : index
    %c3_194 = arith.constant 3 : index
    %c1_195 = arith.constant 1 : index
    %c0_196 = arith.constant 0 : index
    %c48_197 = arith.constant 48 : index
    %92 = vector.load %arg1[%c0_193, %c3_194, %c1_195, %c0_196, %c48_197] : memref<1x4x2x16x2560xbf16, #tpu.memory_space<vmem>>, vector<1x1x1x16x2432xbf16>
    %93 = vector.shape_cast %92 : vector<1x1x1x16x2432xbf16> to vector<16x2432xbf16>
    %c0_198 = arith.constant 0 : index
    %c3_199 = arith.constant 3 : index
    %c1_200 = arith.constant 1 : index
    %c0_201 = arith.constant 0 : index
    %c64_202 = arith.constant 64 : index
    %94 = vector.load %arg1[%c0_198, %c3_199, %c1_200, %c0_201, %c64_202] : memref<1x4x2x16x2560xbf16, #tpu.memory_space<vmem>>, vector<1x1x1x16x2432xbf16>
    %95 = vector.shape_cast %94 : vector<1x1x1x16x2432xbf16> to vector<16x2432xbf16>
    %96 = tpu.concatenate %77, %79, %81, %83, %85, %87, %89, %91, %93, %95 in 0 : vector<16x2432xbf16>, vector<16x2432xbf16>, vector<16x2432xbf16>, vector<16x2432xbf16>, vector<16x2432xbf16>, vector<16x2432xbf16>, vector<16x2432xbf16>, vector<16x2432xbf16>, vector<16x2432xbf16>, vector<16x2432xbf16> -> vector<160x2432xbf16>
    %cst_203 = arith.constant dense<0.000000e+00> : vector<160x97xf32>
    %97 = tpu.matmul %96, %75, %cst_203 {dimension_numbers = #tpu.dot_dimension_numbers<[1], [0], [0], [1], [0, 0, 1, 1], [], []>} : vector<160x2432xbf16>, vector<2432x97xbf16>, vector<160x97xf32> -> vector<160x97xf32>
    %98 = arith.addf %73, %97 : vector<160x97xf32>
    %c0_i32 = arith.constant 0 : i32
    %99 = arith.cmpi eq, %arg0, %c0_i32 : i32
    %100 = arith.extui %99 : i1 to i32
    %c0_i32_204 = arith.constant 0 : i32
    %101 = arith.cmpi ne, %100, %c0_i32_204 : i32
    scf.if %101 {
      %c0_208 = arith.constant 0 : index
      %c0_209 = arith.constant 0 : index
      %108 = vector.load %arg4[%c0_208, %c0_209] : memref<160x97xf32, #tpu.memory_space<vmem>>, vector<160x97xf32>
      tpu.vector_store %arg4[%c0_208, %c0_209], %98 {strides = array<i32>} : memref<160x97xf32, #tpu.memory_space<vmem>>, vector<160x97xf32>,
    } else {
    }
    %c0_i32_205 = arith.constant 0 : i32
    %102 = arith.cmpi sgt, %arg0, %c0_i32_205 : i32
    %103 = arith.extui %102 : i1 to i32
    %c0_i32_206 = arith.constant 0 : i32
    %104 = arith.cmpi ne, %103, %c0_i32_206 : i32
    scf.if %104 {
      %c0_208 = arith.constant 0 : index
      %c0_209 = arith.constant 0 : index
      %108 = vector.load %arg4[%c0_208, %c0_209] : memref<160x97xf32, #tpu.memory_space<vmem>>, vector<160x97xf32>
      %109 = arith.addf %108, %98 : vector<160x97xf32>
      %c0_210 = arith.constant 0 : index
      %c0_211 = arith.constant 0 : index
      %110 = vector.load %arg4[%c0_210, %c0_211] : memref<160x97xf32, #tpu.memory_space<vmem>>, vector<160x97xf32>
      tpu.vector_store %arg4[%c0_210, %c0_211], %109 {strides = array<i32>} : memref<160x97xf32, #tpu.memory_space<vmem>>, vector<160x97xf32>,
    } else {
    }
    %c2_i32 = arith.constant 2 : i32
    %105 = arith.cmpi eq, %arg0, %c2_i32 : i32
    %106 = arith.extui %105 : i1 to i32
    %c0_i32_207 = arith.constant 0 : i32
    %107 = arith.cmpi ne, %106, %c0_i32_207 : i32
    scf.if %107 {
      %c0_208 = arith.constant 0 : index
      %c0_209 = arith.constant 0 : index
      %108 = vector.load %arg4[%c0_208, %c0_209] : memref<160x97xf32, #tpu.memory_space<vmem>>, vector<160x97xf32>
      %c0_210 = arith.constant 0 : index
      %c0_211 = arith.constant 0 : index
      %109 = vector.load %arg3[%c0_210, %c0_211] : memref<1x97xf32, #tpu.memory_space<vmem>>, vector<1x97xf32>
      %110 = vector.broadcast %109 : vector<1x97xf32> to vector<160x97xf32>
      %111 = arith.addf %108, %110 : vector<160x97xf32>
      %112 = math.tanh %111 : vector<160x97xf32>
      %c0_212 = arith.constant 0 : index
      %c0_213 = arith.constant 0 : index
      %113 = vector.load %arg4[%c0_212, %c0_213] : memref<160x97xf32, #tpu.memory_space<vmem>>, vector<160x97xf32>
      tpu.vector_store %arg4[%c0_212, %c0_213], %112 {strides = array<i32>} : memref<160x97xf32, #tpu.memory_space<vmem>>, vector<160x97xf32>,
    } else {
    }
    return
  }
  func.func @transform_0(%arg0: i32) -> (i32, i32, i32, i32, i32) {
    %c0_i32 = arith.constant 0 : i32
    %c0_i32_0 = arith.constant 0 : i32
    %c0_i32_1 = arith.constant 0 : i32
    %c0_i32_2 = arith.constant 0 : i32
    %c0_i32_3 = arith.constant 0 : i32
    return %arg0, %c0_i32, %c0_i32_0, %c0_i32_1, %c0_i32_2 : i32, i32, i32, i32, i32
  }
  func.func @transform_1(%arg0: i32) -> (i32, i32, i32) {
    %c0_i32 = arith.constant 0 : i32
    %c0_i32_0 = arith.constant 0 : i32
    %c0_i32_1 = arith.constant 0 : i32
    return %arg0, %c0_i32, %c0_i32_0 : i32, i32, i32
  }
  func.func @transform_2(%arg0: i32) -> (i32, i32) {
    %c0_i32 = arith.constant 0 : i32
    %c0_i32_0 = arith.constant 0 : i32
    %c0_i32_1 = arith.constant 0 : i32
    return %c0_i32, %c0_i32_0 : i32, i32
  }
  func.func @transform_3(%arg0: i32) -> (i32, i32) {
    %c0_i32 = arith.constant 0 : i32
    %c0_i32_0 = arith.constant 0 : i32
    %c0_i32_1 = arith.constant 0 : i32
    return %c0_i32, %c0_i32_0 : i32, i32
  }
}

</mosaic_0001>

<llo_original>
// kernel: conv1d_tanh.1
$region0: #{conv1d_tanh.1}
  #allocation0 [shape = 'u32[]', space=smem, size = 0x4, offset = 0x4, fixed_abs, tag = 'smem constant byte address 0x4 - core index']
  #allocation1 [shape = 'u32[144,128]{1,0:T(1,128)}', space=vmem, size = 0x12000, scoped, tag = 'internal scratch']
  %s0 = inlined_call_operand.vmem [shape: bf16[3,4,2,16,2560], index: 0, kind: input, shape index: {}]
  %s1 = inlined_call_operand.vmem [shape: bf16[3,9728,97], index: 1, kind: input, shape index: {}]
  %s2 = inlined_call_operand.vmem [shape: f32[1,97], index: 2, kind: input, shape index: {}]
  %s3 = inlined_call_operand.vmem [shape: f32[160,97], index: 3, kind: output, shape index: {}]
  %s4 = sld [smem:[#allocation0]]
  $region57: #{conv1d_tanh.1} parent=0
    _
  %s6 = ssub.s32 1, %s4
  %s7 = scalar_select 0, %s6, %s4
  loop: start=0, step=1, limit=5
  $region2: #{conv1d_tanh.1} parent=0 // loop_pre_header
    _
  $region3: #{conv1d_tanh.1} parent=0 // loop_header
    %s9 = sphi 0, %s13
    %p10 = scmp.ge.s32.totalorder %s9, 5
    %s19 = sphi 0, %s21
    %s22 = sphi 0, %s19
    %s23 = sphi 0, %s22
    %s39 = sphi 0, %s23
    %s45 = sphi 0, %s47
    %s48 = sphi 0, %s45
    %s49 = sphi 0, %s48
    %s65 = sphi 0, %s49
    %s69 = sphi 0, %s69
    %s71 = sphi 0, %s69
    %s72 = sphi 0, %s71
    %s86 = sphi 0, %s72
    %s90 = sphi 0, %s90
    %s92 = sphi 0, %s90
    %s93 = sphi 0, %s92
    %s107 = sphi 0, %s93
  $region4: #{conv1d_tanh.1} parent=0 // loop_header_branch
    %12 = sbr.rel (%p10) target = $region8
  $region5: #{conv1d_tanh.1} parent=0 // loop_body
    %s14 = ssub.s32 %s9, 1
    %s15 = ssub.s32 %s9, 2
    %s16 = sadd.s32 %s9, 1
    %s17 = ssub.s32 %s9, %s16
    %p18 = scmp.eq.s32.totalorder %s17, 0
    %s20 = sadd.s32 %s19, 1
    %s21 = scalar_select %p18, %s19, %s20
    %p24 = pneg %p18
    %p25 = scmp.eq.s32.totalorder %s9, 2
    %p26 = por %p24, %p25
    %p27 = scmp.ne.s32.totalorder %s19, %s22
    %p28 = scmp.eq.s32.totalorder %s9, 0
    %p29 = por %p27, %p28
    %p30 = scmp.ne.s32.totalorder %s19, %s22
    %p31 = scmp.eq.s32.totalorder %s14, 2
    %p32 = por %p30, %p31
    %p33 = scmp.ne.s32.totalorder %s22, %s23
    %p34 = scmp.eq.s32.totalorder %s14, 0
    %p35 = por %p33, %p34
    %p36 = scmp.ne.s32.totalorder %s22, %s23
    %p37 = scmp.eq.s32.totalorder %s15, 2
    %p38 = por %p36, %p37
    %p40 = scmp.ne.s32.totalorder %s23, %s39
    %p41 = scmp.eq.s32.totalorder %s15, 0
    %p42 = por %p40, %p41
    %s43 = ssub.s32 %s9, %s16
    %p44 = scmp.eq.s32.totalorder %s43, 0
    %s46 = sadd.s32 %s45, 1
    %s47 = scalar_select %p44, %s45, %s46
    %p50 = pneg %p44
    %p51 = scmp.eq.s32.totalorder %s9, 2
    %p52 = por %p50, %p51
    %p53 = scmp.ne.s32.totalorder %s45, %s48
    %p54 = scmp.eq.s32.totalorder %s9, 0
    %p55 = por %p53, %p54
    %p56 = scmp.ne.s32.totalorder %s45, %s48
    %p57 = scmp.eq.s32.totalorder %s14, 2
    %p58 = por %p56, %p57
    %p59 = scmp.ne.s32.totalorder %s48, %s49
    %p60 = scmp.eq.s32.totalorder %s14, 0
    %p61 = por %p59, %p60
    %p62 = scmp.ne.s32.totalorder %s48, %s49
    %p63 = scmp.eq.s32.totalorder %s15, 2
    %p64 = por %p62, %p63
    %p66 = scmp.ne.s32.totalorder %s49, %s65
    %p67 = scmp.eq.s32.totalorder %s15, 0
    %p68 = por %p66, %p67
    %s70 = sadd.s32 %s69, 1
    %p73 = scmp.eq.s32.totalorder %s9, 2
    %p74 = scmp.ne.s32.totalorder %s69, %s71
    %p75 = scmp.eq.s32.totalorder %s9, 0
    %p76 = por %p74, %p75
    %p77 = scmp.ne.s32.totalorder %s69, %s71
    %p78 = scmp.eq.s32.totalorder %s14, 2
    %p79 = por %p77, %p78
    %p80 = scmp.ne.s32.totalorder %s71, %s72
    %p81 = scmp.eq.s32.totalorder %s14, 0
    %p82 = por %p80, %p81
    %p83 = scmp.ne.s32.totalorder %s71, %s72
    %p84 = scmp.eq.s32.totalorder %s15, 2
    %p85 = por %p83, %p84
    %p87 = scmp.ne.s32.totalorder %s72, %s86
    %p88 = scmp.eq.s32.totalorder %s15, 0
    %p89 = por %p87, %p88
    %s91 = sadd.s32 %s90, 1
    %p94 = scmp.eq.s32.totalorder %s9, 2
    %p95 = scmp.ne.s32.totalorder %s90, %s92
    %p96 = scmp.eq.s32.totalorder %s9, 0
    %p97 = por %p95, %p96
    %p98 = scmp.ne.s32.totalorder %s90, %s92
    %p99 = scmp.eq.s32.totalorder %s14, 2
    %p100 = por %p98, %p99
    %p101 = scmp.ne.s32.totalorder %s92, %s93
    %p102 = scmp.eq.s32.totalorder %s14, 0
    %p103 = por %p101, %p102
    %p104 = scmp.ne.s32.totalorder %s92, %s93
    %p105 = scmp.eq.s32.totalorder %s15, 2
    %p106 = por %p104, %p105
    %p108 = scmp.ne.s32.totalorder %s93, %s107
    %p109 = scmp.eq.s32.totalorder %s15, 0
    %p110 = por %p108, %p109
    %p111 = scmp.le.s32.totalorder 1, %s9
    %p112 = scmp.lt.s32.totalorder %s9, 4
    %p113 = pnand %p111, %p112
    %p114 = pneg %p113
    // Predicated region
    $region9: #{conv1d_tanh.1} parent=5 // pred_check
      _
    $region10: #{conv1d_tanh.1} parent=5 // pred_check_branch
      %116 = sbr.rel (%p113) target = $region12
    $region11: #{conv1d_tanh.1} parent=5 // pred_region
      %s117 = ssub.s32 %s9, 1
      // Predicated region
      $region13: #{conv1d_tanh.1} parent=11 // pred_check
        %p118 = pneg %p82
      $region14: #{conv1d_tanh.1} parent=11 // pred_check_branch
        %120 = sbr.rel (%p118) target = $region16
      $region15: #{conv1d_tanh.1} parent=11 // pred_region
        _
      $region16: #{conv1d_tanh.1} parent=11 // pred_fallthru
        _
    $region12: #{conv1d_tanh.1} parent=5 // pred_fallthru
      _
    %p121 = scmp.lt.s32.totalorder %s9, 3
    // Predicated region
    $region17: #{conv1d_tanh.1} parent=5 // pred_check
      %p122 = pneg %p121
    $region18: #{conv1d_tanh.1} parent=5 // pred_check_branch
      %124 = sbr.rel (%p122) target = $region20
    $region19: #{conv1d_tanh.1} parent=5 // pred_region
      // Predicated region
      $region21: #{conv1d_tanh.1} parent=19 // pred_check
        %p125 = pneg %p29
      $region22: #{conv1d_tanh.1} parent=19 // pred_check_branch
        %127 = sbr.rel (%p125) target = $region24
      $region23: #{conv1d_tanh.1} parent=19 // pred_region
        %p128 = scmp.lt.s32.totalorder %s9, 2
        %s129 = scalar_select %p128, %s9, 2
        %s130 = smul.addr %s129, 320
        %s131 = smul.addr %s130, 4
        %s132 = scalar_lea.vmem %s0, %s131
      $region24: #{conv1d_tanh.1} parent=19 // pred_fallthru
        _
      // Predicated region
      $region25: #{conv1d_tanh.1} parent=19 // pred_check
        %p133 = pneg %p55
      $region26: #{conv1d_tanh.1} parent=19 // pred_check_branch
        %135 = sbr.rel (%p133) target = $region28
      $region27: #{conv1d_tanh.1} parent=19 // pred_region
        %p136 = scmp.lt.s32.totalorder %s9, 2
        %s137 = scalar_select %p136, %s9, 2
        %s138 = smul.addr %s137, 1216
        %s139 = smul.addr %s138, 4
        %s140 = scalar_lea.vmem %s1, %s139
      $region28: #{conv1d_tanh.1} parent=19 // pred_fallthru
        _
    $region20: #{conv1d_tanh.1} parent=5 // pred_fallthru
      _
    %p141 = scmp.le.s32.totalorder 1, %s9
    %p142 = scmp.lt.s32.totalorder %s9, 4
    %p143 = pnand %p141, %p142
    %p144 = pneg %p143
    // Predicated region
    $region29: #{conv1d_tanh.1} parent=5 // pred_check
      _
    $region30: #{conv1d_tanh.1} parent=5 // pred_check_branch
      %146 = sbr.rel (%p143) target = $region32
    $region31: #{conv1d_tanh.1} parent=5 // pred_region
      %s147 = ssub.s32 %s9, 1
      %p148 = scmp.lt.s32.totalorder %s14, 2
      %s149 = scalar_select %p148, %s14, 2
      %s150 = smul.addr %s149, 320
      %s151 = smul.addr %s150, 4
      %s152 = scalar_lea.vmem %s0, %s151
      %p153 = pneg %p35
      %p154 = pneg %p32
      %p155 = scmp.lt.s32.totalorder %s14, 2
      %s156 = scalar_select %p155, %s14, 2
      %s157 = smul.addr %s156, 1216
      %s158 = smul.addr %s157, 4
      %s159 = scalar_lea.vmem %s1, %s158
      %p160 = pneg %p61
      %p161 = pneg %p58
      %p162 = pneg %p82
      %p163 = pneg %p79
      %p164 = pneg %p103
      %p165 = pneg %p100
      %p166 = scmp.lt.s32.totalorder %s14, 2
      %s167 = scalar_select %p166, %s14, 2
      %s168 = smul.addr %s167, 320
      %s169 = smul.addr %s168, 4
      %s170 = scalar_lea.vmem %s0, %s169
      %p171 = scmp.lt.s32.totalorder %s14, 2
      %s172 = scalar_select %p171, %s14, 2
      %s173 = smul.addr %s172, 1216
      %s174 = smul.addr %s173, 4
      %s175 = scalar_lea.vmem %s1, %s174
      %v177 = vld [vmem:[%s175] sm:$0xf]
      %v178 = vld [vmem:[%s175 + $0x4] sm:$0xf]
      %v179 = vld [vmem:[%s175 + $0x8] sm:$0xf]
      %v180 = vld [vmem:[%s175 + $0xc] sm:$0xf]
      %v181 = vld [vmem:[%s175 + $0x10] sm:$0xf]
      %v182 = vld [vmem:[%s175 + $0x14] sm:$0xf]
      %v183 = vld [vmem:[%s175 + $0x18] sm:$0xf]
      %v184 = vld [vmem:[%s175 + $0x1c] sm:$0xf]
      %v185 = vld [vmem:[%s175 + $0x20] sm:$0xf]
      %v186 = vld [vmem:[%s175 + $0x24] sm:$0xf]
      %v187 = vld [vmem:[%s175 + $0x28] sm:$0xf]
      %v188 = vld [vmem:[%s175 + $0x2c] sm:$0xf]
      %v189 = vld [vmem:[%s175 + $0x30] sm:$0xf]
      %v190 = vld [vmem:[%s175 + $0x34] sm:$0xf]
      %v191 = vld [vmem:[%s175 + $0x38] sm:$0xf]
      %v192 = vld [vmem:[%s175 + $0x3c] sm:$0xf]
      %v193 = vld [vmem:[%s175 + $0x40] sm:$0xf]
      %v194 = vld [vmem:[%s175 + $0x44] sm:$0xf]
      %v195 = vld [vmem:[%s175 + $0x48] sm:$0xf]
      %v196 = vld [vmem:[%s175 + $0x4c] sm:$0xf]
      %v197 = vld [vmem:[%s175 + $0x50] sm:$0xf]
      %v198 = vld [vmem:[%s175 + $0x54] sm:$0xf]
      %v199 = vld [vmem:[%s175 + $0x58] sm:$0xf]
      %v200 = vld [vmem:[%s175 + $0x5c] sm:$0xf]
      %v201 = vld [vmem:[%s175 + $0x60] sm:$0xf]
      %v202 = vld [vmem:[%s175 + $0x64] sm:$0xf]
      %v203 = vld [vmem:[%s175 + $0x68] sm:$0xf]
      %v204 = vld [vmem:[%s175 + $0x6c] sm:$0xf]
      %v205 = vld [vmem:[%s175 + $0x70] sm:$0xf]
      %v206 = vld [vmem:[%s175 + $0x74] sm:$0xf]
      %v207 = vld [vmem:[%s175 + $0x78] sm:$0xf]
      %v208 = vld [vmem:[%s175 + $0x7c] sm:$0xf]
      %v209 = vld [vmem:[%s175 + $0x80] sm:$0xf]
      %v210 = vld [vmem:[%s175 + $0x84] sm:$0xf]
      %v211 = vld [vmem:[%s175 + $0x88] sm:$0xf]
      %v212 = vld [vmem:[%s175 + $0x8c] sm:$0xf]
      %v213 = vld [vmem:[%s175 + $0x90] sm:$0xf]
      %v214 = vld [vmem:[%s175 + $0x94] sm:$0xf]
      %v215 = vld [vmem:[%s175 + $0x98] sm:$0xf]
      %v216 = vld [vmem:[%s175 + $0x9c] sm:$0xf]
      %v217 = vld [vmem:[%s175 + $0xa0] sm:$0xf]
      %v218 = vld [vmem:[%s175 + $0xa4] sm:$0xf]
      %v219 = vld [vmem:[%s175 + $0xa8] sm:$0xf]
      %v220 = vld [vmem:[%s175 + $0xac] sm:$0xf]
      %v221 = vld [vmem:[%s175 + $0xb0] sm:$0xf]
      %v222 = vld [vmem:[%s175 + $0xb4] sm:$0xf]
      %v223 = vld [vmem:[%s175 + $0xb8] sm:$0xf]
      %v224 = vld [vmem:[%s175 + $0xbc] sm:$0xf]
      %v225 = vld [vmem:[%s175 + $0xc0] sm:$0xf]
      %v226 = vld [vmem:[%s175 + $0xc4] sm:$0xf]
      %v227 = vld [vmem:[%s175 + $0xc8] sm:$0xf]
      %v228 = vld [vmem:[%s175 + $0xcc] sm:$0xf]
      %v229 = vld [vmem:[%s175 + $0xd0] sm:$0xf]
      %v230 = vld [vmem:[%s175 + $0xd4] sm:$0xf]
      %v231 = vld [vmem:[%s175 + $0xd8] sm:$0xf]
      %v232 = vld [vmem:[%s175 + $0xdc] sm:$0xf]
      %v233 = vld [vmem:[%s175 + $0xe0] sm:$0xf]
      %v234 = vld [vmem:[%s175 + $0xe4] sm:$0xf]
      %v235 = vld [vmem:[%s175 + $0xe8] sm:$0xf]
      %v236 = vld [vmem:[%s175 + $0xec] sm:$0xf]
      %v237 = vld [vmem:[%s175 + $0xf0] sm:$0xf]
      %v238 = vld [vmem:[%s175 + $0xf4] sm:$0xf]
      %v239 = vld [vmem:[%s175 + $0xf8] sm:$0xf]
      %v240 = vld [vmem:[%s175 + $0xfc] sm:$0xf]
      %v241 = vld [vmem:[%s175 + $0x100] sm:$0xf]
      %v242 = vld [vmem:[%s175 + $0x104] sm:$0xf]
      %v243 = vld [vmem:[%s175 + $0x108] sm:$0xf]
      %v244 = vld [vmem:[%s175 + $0x10c] sm:$0xf]
      %v245 = vld [vmem:[%s175 + $0x110] sm:$0xf]
      %v246 = vld [vmem:[%s175 + $0x114] sm:$0xf]
      %v247 = vld [vmem:[%s175 + $0x118] sm:$0xf]
      %v248 = vld [vmem:[%s175 + $0x11c] sm:$0xf]
      %v249 = vld [vmem:[%s175 + $0x120] sm:$0xf]
      %v250 = vld [vmem:[%s175 + $0x124] sm:$0xf]
      %v251 = vld [vmem:[%s175 + $0x128] sm:$0xf]
      %v252 = vld [vmem:[%s175 + $0x12c] sm:$0xf]
      %v253 = vld [vmem:[%s175 + $0x130] sm:$0xf]
      %v254 = vld [vmem:[%s175 + $0x134] sm:$0xf]
      %v255 = vld [vmem:[%s175 + $0x138] sm:$0xf]
      %v256 = vld [vmem:[%s175 + $0x13c] sm:$0xf]
      %v257 = vld [vmem:[%s175 + $0x140] sm:$0xf]
      %v258 = vld [vmem:[%s175 + $0x144] sm:$0xf]
      %v259 = vld [vmem:[%s175 + $0x148] sm:$0xf]
      %v260 = vld [vmem:[%s175 + $0x14c] sm:$0xf]
      %v261 = vld [vmem:[%s175 + $0x150] sm:$0xf]
      %v262 = vld [vmem:[%s175 + $0x154] sm:$0xf]
      %v263 = vld [vmem:[%s175 + $0x158] sm:$0xf]
      %v264 = vld [vmem:[%s175 + $0x15c] sm:$0xf]
      %v265 = vld [vmem:[%s175 + $0x160] sm:$0xf]
      %v266 = vld [vmem:[%s175 + $0x164] sm:$0xf]
      %v267 = vld [vmem:[%s175 + $0x168] sm:$0xf]
      %v268 = vld [vmem:[%s175 + $0x16c] sm:$0xf]
      %v269 = vld [vmem:[%s175 + $0x170] sm:$0xf]
      %v270 = vld [vmem:[%s175 + $0x174] sm:$0xf]
      %v271 = vld [vmem:[%s175 + $0x178] sm:$0xf]
      %v272 = vld [vmem:[%s175 + $0x17c] sm:$0xf]
      %v273 = vld [vmem:[%s175 + $0x180] sm:$0xf]
      %v274 = vld [vmem:[%s175 + $0x184] sm:$0xf]
      %v275 = vld [vmem:[%s175 + $0x188] sm:$0xf]
      %v276 = vld [vmem:[%s175 + $0x18c] sm:$0xf]
      %v277 = vld [vmem:[%s175 + $0x190] sm:$0xf]
      %v278 = vld [vmem:[%s175 + $0x194] sm:$0xf]
      %v279 = vld [vmem:[%s175 + $0x198] sm:$0xf]
      %v280 = vld [vmem:[%s175 + $0x19c] sm:$0xf]
      %v281 = vld [vmem:[%s175 + $0x1a0] sm:$0xf]
      %v282 = vld [vmem:[%s175 + $0x1a4] sm:$0xf]
      %v283 = vld [vmem:[%s175 + $0x1a8] sm:$0xf]
      %v284 = vld [vmem:[%s175 + $0x1ac] sm:$0xf]
      %v285 = vld [vmem:[%s175 + $0x1b0] sm:$0xf]
      %v286 = vld [vmem:[%s175 + $0x1b4] sm:$0xf]
      %v287 = vld [vmem:[%s175 + $0x1b8] sm:$0xf]
      %v288 = vld [vmem:[%s175 + $0x1bc] sm:$0xf]
      %v289 = vld [vmem:[%s175 + $0x1c0] sm:$0xf]
      %v290 = vld [vmem:[%s175 + $0x1c4] sm:$0xf]
      %v291 = vld [vmem:[%s175 + $0x1c8] sm:$0xf]
      %v292 = vld [vmem:[%s175 + $0x1cc] sm:$0xf]
      %v293 = vld [vmem:[%s175 + $0x1d0] sm:$0xf]
      %v294 = vld [vmem:[%s175 + $0x1d4] sm:$0xf]
      %v295 = vld [vmem:[%s175 + $0x1d8] sm:$0xf]
      %v296 = vld [vmem:[%s175 + $0x1dc] sm:$0xf]
      %v297 = vld [vmem:[%s175 + $0x1e0] sm:$0xf]
      %v298 = vld [vmem:[%s175 + $0x1e4] sm:$0xf]
      %v299 = vld [vmem:[%s175 + $0x1e8] sm:$0xf]
      %v300 = vld [vmem:[%s175 + $0x1ec] sm:$0xf]
      %v301 = vld [vmem:[%s175 + $0x1f0] sm:$0xf]
      %v302 = vld [vmem:[%s175 + $0x1f4] sm:$0xf]
      %v303 = vld [vmem:[%s175 + $0x1f8] sm:$0xf]
      %v304 = vld [vmem:[%s175 + $0x1fc] sm:$0xf]
      %v305 = vld [vmem:[%s175 + $0x200] sm:$0xf]
      %v306 = vld [vmem:[%s175 + $0x204] sm:$0xf]
      %v307 = vld [vmem:[%s175 + $0x208] sm:$0xf]
      %v308 = vld [vmem:[%s175 + $0x20c] sm:$0xf]
      %v309 = vld [vmem:[%s175 + $0x210] sm:$0xf]
      %v310 = vld [vmem:[%s175 + $0x214] sm:$0xf]
      %v311 = vld [vmem:[%s175 + $0x218] sm:$0xf]
      %v312 = vld [vmem:[%s175 + $0x21c] sm:$0xf]
      %v313 = vld [vmem:[%s175 + $0x220] sm:$0xf]
      %v314 = vld [vmem:[%s175 + $0x224] sm:$0xf]
      %v315 = vld [vmem:[%s175 + $0x228] sm:$0xf]
      %v316 = vld [vmem:[%s175 + $0x22c] sm:$0xf]
      %v317 = vld [vmem:[%s175 + $0x230] sm:$0xf]
      %v318 = vld [vmem:[%s175 + $0x234] sm:$0xf]
      %v319 = vld [vmem:[%s175 + $0x238] sm:$0xf]
      %v320 = vld [vmem:[%s175 + $0x23c] sm:$0xf]
      %v321 = vld [vmem:[%s175 + $0x240] sm:$0xf]
      %v322 = vld [vmem:[%s175 + $0x244] sm:$0xf]
      %v323 = vld [vmem:[%s175 + $0x248] sm:$0xf]
      %v324 = vld [vmem:[%s175 + $0x24c] sm:$0xf]
      %v325 = vld [vmem:[%s175 + $0x250] sm:$0xf]
      %v326 = vld [vmem:[%s175 + $0x254] sm:$0xf]
      %v327 = vld [vmem:[%s175 + $0x258] sm:$0xf]
      %v328 = vld [vmem:[%s175 + $0x25c] sm:$0xf]
      %v329 = vld [vmem:[%s175 + $0x260] sm:$0xf]
      %v330 = vld [vmem:[%s175 + $0x264] sm:$0xf]
      %v331 = vld [vmem:[%s175 + $0x268] sm:$0xf]
      %v332 = vld [vmem:[%s175 + $0x26c] sm:$0xf]
      %v333 = vld [vmem:[%s175 + $0x270] sm:$0xf]
      %v334 = vld [vmem:[%s175 + $0x274] sm:$0xf]
      %v335 = vld [vmem:[%s175 + $0x278] sm:$0xf]
      %v336 = vld [vmem:[%s175 + $0x27c] sm:$0xf]
      %v337 = vld [vmem:[%s175 + $0x280] sm:$0xf]
      %v338 = vld [vmem:[%s175 + $0x284] sm:$0xf]
      %v339 = vld [vmem:[%s175 + $0x288] sm:$0xf]
      %v340 = vld [vmem:[%s175 + $0x28c] sm:$0xf]
      %v341 = vld [vmem:[%s175 + $0x290] sm:$0xf]
      %v342 = vld [vmem:[%s175 + $0x294] sm:$0xf]
      %v343 = vld [vmem:[%s175 + $0x298] sm:$0xf]
      %v344 = vld [vmem:[%s175 + $0x29c] sm:$0xf]
      %v345 = vld [vmem:[%s175 + $0x2a0] sm:$0xf]
      %v346 = vld [vmem:[%s175 + $0x2a4] sm:$0xf]
      %v347 = vld [vmem:[%s175 + $0x2a8] sm:$0xf]
      %v348 = vld [vmem:[%s175 + $0x2ac] sm:$0xf]
      %v349 = vld [vmem:[%s175 + $0x2b0] sm:$0xf]
      %v350 = vld [vmem:[%s175 + $0x2b4] sm:$0xf]
      %v351 = vld [vmem:[%s175 + $0x2b8] sm:$0xf]
      %v352 = vld [vmem:[%s175 + $0x2bc] sm:$0xf]
      %v353 = vld [vmem:[%s175 + $0x2c0] sm:$0xf]
      %v354 = vld [vmem:[%s175 + $0x2c4] sm:$0xf]
      %v355 = vld [vmem:[%s175 + $0x2c8] sm:$0xf]
      %v356 = vld [vmem:[%s175 + $0x2cc] sm:$0xf]
      %v357 = vld [vmem:[%s175 + $0x2d0] sm:$0xf]
      %v358 = vld [vmem:[%s175 + $0x2d4] sm:$0xf]
      %v359 = vld [vmem:[%s175 + $0x2d8] sm:$0xf]
      %v360 = vld [vmem:[%s175 + $0x2dc] sm:$0xf]
      %v361 = vld [vmem:[%s175 + $0x2e0] sm:$0xf]
      %v362 = vld [vmem:[%s175 + $0x2e4] sm:$0xf]
      %v363 = vld [vmem:[%s175 + $0x2e8] sm:$0xf]
      %v364 = vld [vmem:[%s175 + $0x2ec] sm:$0xf]
      %v365 = vld [vmem:[%s175 + $0x2f0] sm:$0xf]
      %v366 = vld [vmem:[%s175 + $0x2f4] sm:$0xf]
      %v367 = vld [vmem:[%s175 + $0x2f8] sm:$0xf]
      %v368 = vld [vmem:[%s175 + $0x2fc] sm:$0xf]
      %v369 = vld [vmem:[%s175 + $0x300] sm:$0xf]
      %v370 = vld [vmem:[%s175 + $0x304] sm:$0xf]
      %v371 = vld [vmem:[%s175 + $0x308] sm:$0xf]
      %v372 = vld [vmem:[%s175 + $0x30c] sm:$0xf]
      %v373 = vld [vmem:[%s175 + $0x310] sm:$0xf]
      %v374 = vld [vmem:[%s175 + $0x314] sm:$0xf]
      %v375 = vld [vmem:[%s175 + $0x318] sm:$0xf]
      %v376 = vld [vmem:[%s175 + $0x31c] sm:$0xf]
      %v377 = vld [vmem:[%s175 + $0x320] sm:$0xf]
      %v378 = vld [vmem:[%s175 + $0x324] sm:$0xf]
      %v379 = vld [vmem:[%s175 + $0x328] sm:$0xf]
      %v380 = vld [vmem:[%s175 + $0x32c] sm:$0xf]
      %v381 = vld [vmem:[%s175 + $0x330] sm:$0xf]
      %v382 = vld [vmem:[%s175 + $0x334] sm:$0xf]
      %v383 = vld [vmem:[%s175 + $0x338] sm:$0xf]
      %v384 = vld [vmem:[%s175 + $0x33c] sm:$0xf]
      %v385 = vld [vmem:[%s175 + $0x340] sm:$0xf]
      %v386 = vld [vmem:[%s175 + $0x344] sm:$0xf]
      %v387 = vld [vmem:[%s175 + $0x348] sm:$0xf]
      %v388 = vld [vmem:[%s175 + $0x34c] sm:$0xf]
      %v389 = vld [vmem:[%s175 + $0x350] sm:$0xf]
      %v390 = vld [vmem:[%s175 + $0x354] sm:$0xf]
      %v391 = vld [vmem:[%s175 + $0x358] sm:$0xf]
      %v392 = vld [vmem:[%s175 + $0x35c] sm:$0xf]
      %v393 = vld [vmem:[%s175 + $0x360] sm:$0xf]
      %v394 = vld [vmem:[%s175 + $0x364] sm:$0xf]
      %v395 = vld [vmem:[%s175 + $0x368] sm:$0xf]
      %v396 = vld [vmem:[%s175 + $0x36c] sm:$0xf]
      %v397 = vld [vmem:[%s175 + $0x370] sm:$0xf]
      %v398 = vld [vmem:[%s175 + $0x374] sm:$0xf]
      %v399 = vld [vmem:[%s175 + $0x378] sm:$0xf]
      %v400 = vld [vmem:[%s175 + $0x37c] sm:$0xf]
      %v401 = vld [vmem:[%s175 + $0x380] sm:$0xf]
      %v402 = vld [vmem:[%s175 + $0x384] sm:$0xf]
      %v403 = vld [vmem:[%s175 + $0x388] sm:$0xf]
      %v404 = vld [vmem:[%s175 + $0x38c] sm:$0xf]
      %v405 = vld [vmem:[%s175 + $0x390] sm:$0xf]
      %v406 = vld [vmem:[%s175 + $0x394] sm:$0xf]
      %v407 = vld [vmem:[%s175 + $0x398] sm:$0xf]
      %v408 = vld [vmem:[%s175 + $0x39c] sm:$0xf]
      %v409 = vld [vmem:[%s175 + $0x3a0] sm:$0xf]
      %v410 = vld [vmem:[%s175 + $0x3a4] sm:$0xf]
      %v411 = vld [vmem:[%s175 + $0x3a8] sm:$0xf]
      %v412 = vld [vmem:[%s175 + $0x3ac] sm:$0xf]
      %v413 = vld [vmem:[%s175 + $0x3b0] sm:$0xf]
      %v414 = vld [vmem:[%s175 + $0x3b4] sm:$0xf]
      %v415 = vld [vmem:[%s175 + $0x3b8] sm:$0xf]
      %v416 = vld [vmem:[%s175 + $0x3bc] sm:$0xf]
      %v417 = vld [vmem:[%s175 + $0x3c0] sm:$0xf]
      %v418 = vld [vmem:[%s175 + $0x3c4] sm:$0xf]
      %v419 = vld [vmem:[%s175 + $0x3c8] sm:$0xf]
      %v420 = vld [vmem:[%s175 + $0x3cc] sm:$0xf]
      %v421 = vld [vmem:[%s175 + $0x3d0] sm:$0xf]
      %v422 = vld [vmem:[%s175 + $0x3d4] sm:$0xf]
      %v423 = vld [vmem:[%s175 + $0x3d8] sm:$0xf]
      %v424 = vld [vmem:[%s175 + $0x3dc] sm:$0xf]
      %v425 = vld [vmem:[%s175 + $0x3e0] sm:$0xf]
      %v426 = vld [vmem:[%s175 + $0x3e4] sm:$0xf]
      %v427 = vld [vmem:[%s175 + $0x3e8] sm:$0xf]
      %v428 = vld [vmem:[%s175 + $0x3ec] sm:$0xf]
      %v429 = vld [vmem:[%s175 + $0x3f0] sm:$0xf]
      %v430 = vld [vmem:[%s175 + $0x3f4] sm:$0xf]
      %v431 = vld [vmem:[%s175 + $0x3f8] sm:$0xf]
      %v432 = vld [vmem:[%s175 + $0x3fc] sm:$0xf]
      %v433 = vld [vmem:[%s175 + $0x400] sm:$0xf]
      %v434 = vld [vmem:[%s175 + $0x404] sm:$0xf]
      %v435 = vld [vmem:[%s175 + $0x408] sm:$0xf]
      %v436 = vld [vmem:[%s175 + $0x40c] sm:$0xf]
      %v437 = vld [vmem:[%s175 + $0x410] sm:$0xf]
      %v438 = vld [vmem:[%s175 + $0x414] sm:$0xf]
      %v439 = vld [vmem:[%s175 + $0x418] sm:$0xf]
      %v440 = vld [vmem:[%s175 + $0x41c] sm:$0xf]
      %v441 = vld [vmem:[%s175 + $0x420] sm:$0xf]
      %v442 = vld [vmem:[%s175 + $0x424] sm:$0xf]
      %v443 = vld [vmem:[%s175 + $0x428] sm:$0xf]
      %v444 = vld [vmem:[%s175 + $0x42c] sm:$0xf]
      %v445 = vld [vmem:[%s175 + $0x430] sm:$0xf]
      %v446 = vld [vmem:[%s175 + $0x434] sm:$0xf]
      %v447 = vld [vmem:[%s175 + $0x438] sm:$0xf]
      %v448 = vld [vmem:[%s175 + $0x43c] sm:$0xf]
      %v449 = vld [vmem:[%s175 + $0x440] sm:$0xf]
      %v450 = vld [vmem:[%s175 + $0x444] sm:$0xf]
      %v451 = vld [vmem:[%s175 + $0x448] sm:$0xf]
      %v452 = vld [vmem:[%s175 + $0x44c] sm:$0xf]
      %v453 = vld [vmem:[%s175 + $0x450] sm:$0xf]
      %v454 = vld [vmem:[%s175 + $0x454] sm:$0xf]
      %v455 = vld [vmem:[%s175 + $0x458] sm:$0xf]
      %v456 = vld [vmem:[%s175 + $0x45c] sm:$0xf]
      %v457 = vld [vmem:[%s175 + $0x460] sm:$0xf]
      %v458 = vld [vmem:[%s175 + $0x464] sm:$0xf]
      %v459 = vld [vmem:[%s175 + $0x468] sm:$0xf]
      %v460 = vld [vmem:[%s175 + $0x46c] sm:$0xf]
      %v461 = vld [vmem:[%s175 + $0x470] sm:$0xf]
      %v462 = vld [vmem:[%s175 + $0x474] sm:$0xf]
      %v463 = vld [vmem:[%s175 + $0x478] sm:$0xf]
      %v464 = vld [vmem:[%s175 + $0x47c] sm:$0xf]
      %v465 = vld [vmem:[%s175 + $0x480] sm:$0xf]
      %v466 = vld [vmem:[%s175 + $0x484] sm:$0xf]
      %v467 = vld [vmem:[%s175 + $0x488] sm:$0xf]
      %v468 = vld [vmem:[%s175 + $0x48c] sm:$0xf]
      %v469 = vld [vmem:[%s175 + $0x490] sm:$0xf]
      %v470 = vld [vmem:[%s175 + $0x494] sm:$0xf]
      %v471 = vld [vmem:[%s175 + $0x498] sm:$0xf]
      %v472 = vld [vmem:[%s175 + $0x49c] sm:$0xf]
      %v473 = vld [vmem:[%s175 + $0x4a0] sm:$0xf]
      %v474 = vld [vmem:[%s175 + $0x4a4] sm:$0xf]
      %v475 = vld [vmem:[%s175 + $0x4a8] sm:$0xf]
      %v476 = vld [vmem:[%s175 + $0x4ac] sm:$0xf]
      %v477 = vld [vmem:[%s175 + $0x4b0] sm:$0xf]
      %v478 = vld [vmem:[%s175 + $0x4b4] sm:$0xf]
      %v479 = vld [vmem:[%s175 + $0x4b8] sm:$0xf]
      %v480 = vld [vmem:[%s175 + $0x4bc] sm:$0xf]
      %v481 = vld [vmem:[%s170] sm:$0xff]
      %v482 = vld [vmem:[%s170 + $0x8] sm:$0xff]
      %v483 = vld [vmem:[%s170 + $0x10] sm:$0xff]
      %v484 = vld [vmem:[%s170 + $0x18] sm:$0xff]
      %v485 = vld [vmem:[%s170 + $0x20] sm:$0xff]
      %v486 = vld [vmem:[%s170 + $0x28] sm:$0xff]
      %v487 = vld [vmem:[%s170 + $0x30] sm:$0xff]
      %v488 = vld [vmem:[%s170 + $0x38] sm:$0xff]
      %v489 = vld [vmem:[%s170 + $0x40] sm:$0xff]
      %v490 = vld [vmem:[%s170 + $0x48] sm:$0xf]
      %v491 = vld [vmem:[%s170 + $0x50] sm:$0xff]
      %v492 = vld [vmem:[%s170 + $0x58] sm:$0xff]
      %v493 = vld [vmem:[%s170 + $0x60] sm:$0xff]
      %v494 = vld [vmem:[%s170 + $0x68] sm:$0xff]
      %v495 = vld [vmem:[%s170 + $0x70] sm:$0xff]
      %v496 = vld [vmem:[%s170 + $0x78] sm:$0xff]
      %v497 = vld [vmem:[%s170 + $0x80] sm:$0xff]
      %v498 = vld [vmem:[%s170 + $0x88] sm:$0xff]
      %v499 = vld [vmem:[%s170 + $0x90] sm:$0xff]
      %v500 = vld [vmem:[%s170 + $0x98] sm:$0xf]
      %v501 = vld [vmem:[%s170 + $0x48] sm:$0xff]
      %v502 = vld [vmem:[%s170 + $0x98] sm:$0xff]
      %s503 = scalar_lea.vmem %s170, 160
      %v504 = vld [vmem:[%s503] sm:$0xff]
      %v505 = vld [vmem:[%s503 + $0x8] sm:$0xff]
      %v506 = vld [vmem:[%s503 + $0x10] sm:$0xff]
      %v507 = vld [vmem:[%s503 + $0x18] sm:$0xff]
      %v508 = vld [vmem:[%s503 + $0x20] sm:$0xff]
      %v509 = vld [vmem:[%s503 + $0x28] sm:$0xff]
      %v510 = vld [vmem:[%s503 + $0x30] sm:$0xff]
      %v511 = vld [vmem:[%s503 + $0x38] sm:$0xff]
      %v512 = vld [vmem:[%s503 + $0x40] sm:$0xff]
      %v513 = vld [vmem:[%s503 + $0x48] sm:$0xf]
      %v514 = vld [vmem:[%s503 + $0x50] sm:$0xff]
      %v515 = vld [vmem:[%s503 + $0x58] sm:$0xff]
      %v516 = vld [vmem:[%s503 + $0x60] sm:$0xff]
      %v517 = vld [vmem:[%s503 + $0x68] sm:$0xff]
      %v518 = vld [vmem:[%s503 + $0x70] sm:$0xff]
      %v519 = vld [vmem:[%s503 + $0x78] sm:$0xff]
      %v520 = vld [vmem:[%s503 + $0x80] sm:$0xff]
      %v521 = vld [vmem:[%s503 + $0x88] sm:$0xff]
      %v522 = vld [vmem:[%s503 + $0x90] sm:$0xff]
      %v523 = vld [vmem:[%s503 + $0x98] sm:$0xf]
      %v524 = vld [vmem:[%s503 + $0x48] sm:$0xff]
      %v525 = vld [vmem:[%s503 + $0x98] sm:$0xff]
      %v546 = vunpack.c.l.b16 %v481
      %v547 = vunpack.c.h.b16 %v481
      %v548 = vunpack.c.l.b16 %v482
      %v549 = vunpack.c.h.b16 %v482
      %v550 = vunpack.c.l.b16 %v483
      %v551 = vunpack.c.h.b16 %v483
      %v552 = vunpack.c.l.b16 %v484
      %v553 = vunpack.c.h.b16 %v484
      %v554 = vunpack.c.l.b16 %v485
      %v555 = vunpack.c.h.b16 %v485
      %v556 = vunpack.c.l.b16 %v486
      %v557 = vunpack.c.h.b16 %v486
      %v558 = vunpack.c.l.b16 %v487
      %v559 = vunpack.c.h.b16 %v487
      %v560 = vunpack.c.l.b16 %v488
      %v561 = vunpack.c.h.b16 %v488
      %v562 = vunpack.c.l.b16 %v489
      %v563 = vunpack.c.h.b16 %v489
      %v564 = vunpack.c.l.b16 %v490
      %v565 = vunpack.c.l.b16 %v491
      %v566 = vunpack.c.h.b16 %v491
      %v567 = vunpack.c.l.b16 %v492
      %v568 = vunpack.c.h.b16 %v492
      %v569 = vunpack.c.l.b16 %v493
      %v570 = vunpack.c.h.b16 %v493
      %v571 = vunpack.c.l.b16 %v494
      %v572 = vunpack.c.h.b16 %v494
      %v573 = vunpack.c.l.b16 %v495
      %v574 = vunpack.c.h.b16 %v495
      %v575 = vunpack.c.l.b16 %v496
      %v576 = vunpack.c.h.b16 %v496
      %v577 = vunpack.c.l.b16 %v497
      %v578 = vunpack.c.h.b16 %v497
      %v579 = vunpack.c.l.b16 %v498
      %v580 = vunpack.c.h.b16 %v498
      %v581 = vunpack.c.l.b16 %v499
      %v582 = vunpack.c.h.b16 %v499
      %v583 = vunpack.c.l.b16 %v500
      %v584 = vpack.c.b16 %v565, %v546
      %v585 = vpack.c.b16 %v566, %v547
      %v586 = vpack.c.b16 %v567, %v548
      %v587 = vpack.c.b16 %v568, %v549
      %v588 = vpack.c.b16 %v569, %v550
      %v589 = vpack.c.b16 %v570, %v551
      %v590 = vpack.c.b16 %v571, %v552
      %v591 = vpack.c.b16 %v572, %v553
      %v592 = vpack.c.b16 %v573, %v554
      %v593 = vpack.c.b16 %v574, %v555
      %v594 = vpack.c.b16 %v575, %v556
      %v595 = vpack.c.b16 %v576, %v557
      %v596 = vpack.c.b16 %v577, %v558
      %v597 = vpack.c.b16 %v578, %v559
      %v598 = vpack.c.b16 %v579, %v560
      %v599 = vpack.c.b16 %v580, %v561
      %v600 = vpack.c.b16 %v581, %v562
      %v601 = vpack.c.b16 %v582, %v563
      %v602 = vpack.c.b16 %v583, %v564
      %v624 = vunpack.c.l.b16 %v501
      %v625 = vunpack.c.h.b16 %v501
      %v626 = vunpack.c.l.b16 %v502
      %v627 = vunpack.c.h.b16 %v502
      %v628 = vpack.c.b16 %v626, %v624
      %v629 = vpack.c.b16 %v627, %v625
      %630 = vrot.lane.b32.xlu0 %v584, 112
      %v631 = vpop.permute.xlu0 %630
      %632 = vrot.lane.b32.xlu0 %v585, 112
      %v633 = vpop.permute.xlu0 %632
      %634 = vrot.lane.b32.xlu0 %v586, 112
      %v635 = vpop.permute.xlu0 %634
      %636 = vrot.lane.b32.xlu0 %v587, 112
      %v637 = vpop.permute.xlu0 %636
      %638 = vrot.lane.b32.xlu0 %v588, 112
      %v639 = vpop.permute.xlu0 %638
      %640 = vrot.lane.b32.xlu0 %v589, 112
      %v641 = vpop.permute.xlu0 %640
      %642 = vrot.lane.b32.xlu0 %v590, 112
      %v643 = vpop.permute.xlu0 %642
      %644 = vrot.lane.b32.xlu0 %v591, 112
      %v645 = vpop.permute.xlu0 %644
      %646 = vrot.lane.b32.xlu0 %v592, 112
      %v647 = vpop.permute.xlu0 %646
      %648 = vrot.lane.b32.xlu0 %v593, 112
      %v649 = vpop.permute.xlu0 %648
      %650 = vrot.lane.b32.xlu0 %v594, 112
      %v651 = vpop.permute.xlu0 %650
      %652 = vrot.lane.b32.xlu0 %v595, 112
      %v653 = vpop.permute.xlu0 %652
      %654 = vrot.lane.b32.xlu0 %v596, 112
      %v655 = vpop.permute.xlu0 %654
      %656 = vrot.lane.b32.xlu0 %v597, 112
      %v657 = vpop.permute.xlu0 %656
      %658 = vrot.lane.b32.xlu0 %v598, 112
      %v659 = vpop.permute.xlu0 %658
      %660 = vrot.lane.b32.xlu0 %v599, 112
      %v661 = vpop.permute.xlu0 %660
      %662 = vrot.lane.b32.xlu0 %v600, 112
      %v663 = vpop.permute.xlu0 %662
      %664 = vrot.lane.b32.xlu0 %v601, 112
      %v665 = vpop.permute.xlu0 %664
      %666 = vrot.lane.b32.xlu0 %v628, 112
      %v667 = vpop.permute.xlu0 %666
      %668 = vrot.lane.b32.xlu0 %v629, 112
      %v669 = vpop.permute.xlu0 %668
      %vm670 = vcmask 916480
      %v671 = vsel %vm670, %v631, %v633
      %v672 = vsel %vm670, %v633, %v635
      %v673 = vsel %vm670, %v635, %v637
      %v674 = vsel %vm670, %v637, %v639
      %v675 = vsel %vm670, %v639, %v641
      %v676 = vsel %vm670, %v641, %v643
      %v677 = vsel %vm670, %v643, %v645
      %v678 = vsel %vm670, %v645, %v647
      %v679 = vsel %vm670, %v647, %v649
      %v680 = vsel %vm670, %v649, %v651
      %v681 = vsel %vm670, %v651, %v653
      %v682 = vsel %vm670, %v653, %v655
      %v683 = vsel %vm670, %v655, %v657
      %v684 = vsel %vm670, %v657, %v659
      %v685 = vsel %vm670, %v659, %v661
      %v686 = vsel %vm670, %v661, %v663
      %v687 = vsel %vm670, %v663, %v665
      %v688 = vsel %vm670, %v665, %v667
      %v689 = vsel %vm670, %v667, %v669
      %709 = vrot.lane.b32.xlu0 %v584, 96
      %v710 = vpop.permute.xlu0 %709
      %711 = vrot.lane.b32.xlu0 %v585, 96
      %v712 = vpop.permute.xlu0 %711
      %713 = vrot.lane.b32.xlu0 %v586, 96
      %v714 = vpop.permute.xlu0 %713
      %715 = vrot.lane.b32.xlu0 %v587, 96
      %v716 = vpop.permute.xlu0 %715
      %717 = vrot.lane.b32.xlu0 %v588, 96
      %v718 = vpop.permute.xlu0 %717
      %719 = vrot.lane.b32.xlu0 %v589, 96
      %v720 = vpop.permute.xlu0 %719
      %721 = vrot.lane.b32.xlu0 %v590, 96
      %v722 = vpop.permute.xlu0 %721
      %723 = vrot.lane.b32.xlu0 %v591, 96
      %v724 = vpop.permute.xlu0 %723
      %725 = vrot.lane.b32.xlu0 %v592, 96
      %v726 = vpop.permute.xlu0 %725
      %727 = vrot.lane.b32.xlu0 %v593, 96
      %v728 = vpop.permute.xlu0 %727
      %729 = vrot.lane.b32.xlu0 %v594, 96
      %v730 = vpop.permute.xlu0 %729
      %731 = vrot.lane.b32.xlu0 %v595, 96
      %v732 = vpop.permute.xlu0 %731
      %733 = vrot.lane.b32.xlu0 %v596, 96
      %v734 = vpop.permute.xlu0 %733
      %735 = vrot.lane.b32.xlu0 %v597, 96
      %v736 = vpop.permute.xlu0 %735
      %737 = vrot.lane.b32.xlu0 %v598, 96
      %v738 = vpop.permute.xlu0 %737
      %739 = vrot.lane.b32.xlu0 %v599, 96
      %v740 = vpop.permute.xlu0 %739
      %741 = vrot.lane.b32.xlu0 %v600, 96
      %v742 = vpop.permute.xlu0 %741
      %743 = vrot.lane.b32.xlu0 %v601, 96
      %v744 = vpop.permute.xlu0 %743
      %745 = vrot.lane.b32.xlu0 %v628, 96
      %v746 = vpop.permute.xlu0 %745
      %747 = vrot.lane.b32.xlu0 %v629, 96
      %v748 = vpop.permute.xlu0 %747
      %vm749 = vcmask 785408
      %v750 = vsel %vm749, %v710, %v712
      %v751 = vsel %vm749, %v712, %v714
      %v752 = vsel %vm749, %v714, %v716
      %v753 = vsel %vm749, %v716, %v718
      %v754 = vsel %vm749, %v718, %v720
      %v755 = vsel %vm749, %v720, %v722
      %v756 = vsel %vm749, %v722, %v724
      %v757 = vsel %vm749, %v724, %v726
      %v758 = vsel %vm749, %v726, %v728
      %v759 = vsel %vm749, %v728, %v730
      %v760 = vsel %vm749, %v730, %v732
      %v761 = vsel %vm749, %v732, %v734
      %v762 = vsel %vm749, %v734, %v736
      %v763 = vsel %vm749, %v736, %v738
      %v764 = vsel %vm749, %v738, %v740
      %v765 = vsel %vm749, %v740, %v742
      %v766 = vsel %vm749, %v742, %v744
      %v767 = vsel %vm749, %v744, %v746
      %v768 = vsel %vm749, %v746, %v748
      %788 = vrot.lane.b32.xlu0 %v584, 80
      %v789 = vpop.permute.xlu0 %788
      %790 = vrot.lane.b32.xlu0 %v585, 80
      %v791 = vpop.permute.xlu0 %790
      %792 = vrot.lane.b32.xlu0 %v586, 80
      %v793 = vpop.permute.xlu0 %792
      %794 = vrot.lane.b32.xlu0 %v587, 80
      %v795 = vpop.permute.xlu0 %794
      %796 = vrot.lane.b32.xlu0 %v588, 80
      %v797 = vpop.permute.xlu0 %796
      %798 = vrot.lane.b32.xlu0 %v589, 80
      %v799 = vpop.permute.xlu0 %798
      %800 = vrot.lane.b32.xlu0 %v590, 80
      %v801 = vpop.permute.xlu0 %800
      %802 = vrot.lane.b32.xlu0 %v591, 80
      %v803 = vpop.permute.xlu0 %802
      %804 = vrot.lane.b32.xlu0 %v592, 80
      %v805 = vpop.permute.xlu0 %804
      %806 = vrot.lane.b32.xlu0 %v593, 80
      %v807 = vpop.permute.xlu0 %806
      %808 = vrot.lane.b32.xlu0 %v594, 80
      %v809 = vpop.permute.xlu0 %808
      %810 = vrot.lane.b32.xlu0 %v595, 80
      %v811 = vpop.permute.xlu0 %810
      %812 = vrot.lane.b32.xlu0 %v596, 80
      %v813 = vpop.permute.xlu0 %812
      %814 = vrot.lane.b32.xlu0 %v597, 80
      %v815 = vpop.permute.xlu0 %814
      %816 = vrot.lane.b32.xlu0 %v598, 80
      %v817 = vpop.permute.xlu0 %816
      %818 = vrot.lane.b32.xlu0 %v599, 80
      %v819 = vpop.permute.xlu0 %818
      %820 = vrot.lane.b32.xlu0 %v600, 80
      %v821 = vpop.permute.xlu0 %820
      %822 = vrot.lane.b32.xlu0 %v601, 80
      %v823 = vpop.permute.xlu0 %822
      %824 = vrot.lane.b32.xlu0 %v628, 80
      %v825 = vpop.permute.xlu0 %824
      %826 = vrot.lane.b32.xlu0 %v629, 80
      %v827 = vpop.permute.xlu0 %826
      %vm828 = vcmask 654336
      %v829 = vsel %vm828, %v789, %v791
      %v830 = vsel %vm828, %v791, %v793
      %v831 = vsel %vm828, %v793, %v795
      %v832 = vsel %vm828, %v795, %v797
      %v833 = vsel %vm828, %v797, %v799
      %v834 = vsel %vm828, %v799, %v801
      %v835 = vsel %vm828, %v801, %v803
      %v836 = vsel %vm828, %v803, %v805
      %v837 = vsel %vm828, %v805, %v807
      %v838 = vsel %vm828, %v807, %v809
      %v839 = vsel %vm828, %v809, %v811
      %v840 = vsel %vm828, %v811, %v813
      %v841 = vsel %vm828, %v813, %v815
      %v842 = vsel %vm828, %v815, %v817
      %v843 = vsel %vm828, %v817, %v819
      %v844 = vsel %vm828, %v819, %v821
      %v845 = vsel %vm828, %v821, %v823
      %v846 = vsel %vm828, %v823, %v825
      %v847 = vsel %vm828, %v825, %v827
      %867 = vrot.lane.b32.xlu0 %v584, 64
      %v868 = vpop.permute.xlu0 %867
      %869 = vrot.lane.b32.xlu0 %v585, 64
      %v870 = vpop.permute.xlu0 %869
      %871 = vrot.lane.b32.xlu0 %v586, 64
      %v872 = vpop.permute.xlu0 %871
      %873 = vrot.lane.b32.xlu0 %v587, 64
      %v874 = vpop.permute.xlu0 %873
      %875 = vrot.lane.b32.xlu0 %v588, 64
      %v876 = vpop.permute.xlu0 %875
      %877 = vrot.lane.b32.xlu0 %v589, 64
      %v878 = vpop.permute.xlu0 %877
      %879 = vrot.lane.b32.xlu0 %v590, 64
      %v880 = vpop.permute.xlu0 %879
      %881 = vrot.lane.b32.xlu0 %v591, 64
      %v882 = vpop.permute.xlu0 %881
      %883 = vrot.lane.b32.xlu0 %v592, 64
      %v884 = vpop.permute.xlu0 %883
      %885 = vrot.lane.b32.xlu0 %v593, 64
      %v886 = vpop.permute.xlu0 %885
      %887 = vrot.lane.b32.xlu0 %v594, 64
      %v888 = vpop.permute.xlu0 %887
      %889 = vrot.lane.b32.xlu0 %v595, 64
      %v890 = vpop.permute.xlu0 %889
      %891 = vrot.lane.b32.xlu0 %v596, 64
      %v892 = vpop.permute.xlu0 %891
      %893 = vrot.lane.b32.xlu0 %v597, 64
      %v894 = vpop.permute.xlu0 %893
      %895 = vrot.lane.b32.xlu0 %v598, 64
      %v896 = vpop.permute.xlu0 %895
      %897 = vrot.lane.b32.xlu0 %v599, 64
      %v898 = vpop.permute.xlu0 %897
      %899 = vrot.lane.b32.xlu0 %v600, 64
      %v900 = vpop.permute.xlu0 %899
      %901 = vrot.lane.b32.xlu0 %v601, 64
      %v902 = vpop.permute.xlu0 %901
      %903 = vrot.lane.b32.xlu0 %v628, 64
      %v904 = vpop.permute.xlu0 %903
      %905 = vrot.lane.b32.xlu0 %v629, 64
      %v906 = vpop.permute.xlu0 %905
      %vm907 = vcmask 523264
      %v908 = vsel %vm907, %v868, %v870
      %v909 = vsel %vm907, %v870, %v872
      %v910 = vsel %vm907, %v872, %v874
      %v911 = vsel %vm907, %v874, %v876
      %v912 = vsel %vm907, %v876, %v878
      %v913 = vsel %vm907, %v878, %v880
      %v914 = vsel %vm907, %v880, %v882
      %v915 = vsel %vm907, %v882, %v884
      %v916 = vsel %vm907, %v884, %v886
      %v917 = vsel %vm907, %v886, %v888
      %v918 = vsel %vm907, %v888, %v890
      %v919 = vsel %vm907, %v890, %v892
      %v920 = vsel %vm907, %v892, %v894
      %v921 = vsel %vm907, %v894, %v896
      %v922 = vsel %vm907, %v896, %v898
      %v923 = vsel %vm907, %v898, %v900
      %v924 = vsel %vm907, %v900, %v902
      %v925 = vsel %vm907, %v902, %v904
      %v926 = vsel %vm907, %v904, %v906
      %v966 = vunpack.c.l.b16 %v504
      %v967 = vunpack.c.h.b16 %v504
      %v968 = vunpack.c.l.b16 %v505
      %v969 = vunpack.c.h.b16 %v505
      %v970 = vunpack.c.l.b16 %v506
      %v971 = vunpack.c.h.b16 %v506
      %v972 = vunpack.c.l.b16 %v507
      %v973 = vunpack.c.h.b16 %v507
      %v974 = vunpack.c.l.b16 %v508
      %v975 = vunpack.c.h.b16 %v508
      %v976 = vunpack.c.l.b16 %v509
      %v977 = vunpack.c.h.b16 %v509
      %v978 = vunpack.c.l.b16 %v510
      %v979 = vunpack.c.h.b16 %v510
      %v980 = vunpack.c.l.b16 %v511
      %v981 = vunpack.c.h.b16 %v511
      %v982 = vunpack.c.l.b16 %v512
      %v983 = vunpack.c.h.b16 %v512
      %v984 = vunpack.c.l.b16 %v513
      %v985 = vunpack.c.l.b16 %v514
      %v986 = vunpack.c.h.b16 %v514
      %v987 = vunpack.c.l.b16 %v515
      %v988 = vunpack.c.h.b16 %v515
      %v989 = vunpack.c.l.b16 %v516
      %v990 = vunpack.c.h.b16 %v516
      %v991 = vunpack.c.l.b16 %v517
      %v992 = vunpack.c.h.b16 %v517
      %v993 = vunpack.c.l.b16 %v518
      %v994 = vunpack.c.h.b16 %v518
      %v995 = vunpack.c.l.b16 %v519
      %v996 = vunpack.c.h.b16 %v519
      %v997 = vunpack.c.l.b16 %v520
      %v998 = vunpack.c.h.b16 %v520
      %v999 = vunpack.c.l.b16 %v521
      %v1000 = vunpack.c.h.b16 %v521
      %v1001 = vunpack.c.l.b16 %v522
      %v1002 = vunpack.c.h.b16 %v522
      %v1003 = vunpack.c.l.b16 %v523
      %v1004 = vpack.c.b16 %v985, %v966
      %v1005 = vpack.c.b16 %v986, %v967
      %v1006 = vpack.c.b16 %v987, %v968
      %v1007 = vpack.c.b16 %v988, %v969
      %v1008 = vpack.c.b16 %v989, %v970
      %v1009 = vpack.c.b16 %v990, %v971
      %v1010 = vpack.c.b16 %v991, %v972
      %v1011 = vpack.c.b16 %v992, %v973
      %v1012 = vpack.c.b16 %v993, %v974
      %v1013 = vpack.c.b16 %v994, %v975
      %v1014 = vpack.c.b16 %v995, %v976
      %v1015 = vpack.c.b16 %v996, %v977
      %v1016 = vpack.c.b16 %v997, %v978
      %v1017 = vpack.c.b16 %v998, %v979
      %v1018 = vpack.c.b16 %v999, %v980
      %v1019 = vpack.c.b16 %v1000, %v981
      %v1020 = vpack.c.b16 %v1001, %v982
      %v1021 = vpack.c.b16 %v1002, %v983
      %v1022 = vpack.c.b16 %v1003, %v984
      %v1044 = vunpack.c.l.b16 %v524
      %v1045 = vunpack.c.h.b16 %v524
      %v1046 = vunpack.c.l.b16 %v525
      %v1047 = vunpack.c.h.b16 %v525
      %v1048 = vpack.c.b16 %v1046, %v1044
      %v1049 = vpack.c.b16 %v1047, %v1045
      %1050 = vrot.lane.b32.xlu0 %v1004, 112
      %v1051 = vpop.permute.xlu0 %1050
      %1052 = vrot.lane.b32.xlu0 %v1005, 112
      %v1053 = vpop.permute.xlu0 %1052
      %1054 = vrot.lane.b32.xlu0 %v1006, 112
      %v1055 = vpop.permute.xlu0 %1054
      %1056 = vrot.lane.b32.xlu0 %v1007, 112
      %v1057 = vpop.permute.xlu0 %1056
      %1058 = vrot.lane.b32.xlu0 %v1008, 112
      %v1059 = vpop.permute.xlu0 %1058
      %1060 = vrot.lane.b32.xlu0 %v1009, 112
      %v1061 = vpop.permute.xlu0 %1060
      %1062 = vrot.lane.b32.xlu0 %v1010, 112
      %v1063 = vpop.permute.xlu0 %1062
      %1064 = vrot.lane.b32.xlu0 %v1011, 112
      %v1065 = vpop.permute.xlu0 %1064
      %1066 = vrot.lane.b32.xlu0 %v1012, 112
      %v1067 = vpop.permute.xlu0 %1066
      %1068 = vrot.lane.b32.xlu0 %v1013, 112
      %v1069 = vpop.permute.xlu0 %1068
      %1070 = vrot.lane.b32.xlu0 %v1014, 112
      %v1071 = vpop.permute.xlu0 %1070
      %1072 = vrot.lane.b32.xlu0 %v1015, 112
      %v1073 = vpop.permute.xlu0 %1072
      %1074 = vrot.lane.b32.xlu0 %v1016, 112
      %v1075 = vpop.permute.xlu0 %1074
      %1076 = vrot.lane.b32.xlu0 %v1017, 112
      %v1077 = vpop.permute.xlu0 %1076
      %1078 = vrot.lane.b32.xlu0 %v1018, 112
      %v1079 = vpop.permute.xlu0 %1078
      %1080 = vrot.lane.b32.xlu0 %v1019, 112
      %v1081 = vpop.permute.xlu0 %1080
      %1082 = vrot.lane.b32.xlu0 %v1020, 112
      %v1083 = vpop.permute.xlu0 %1082
      %1084 = vrot.lane.b32.xlu0 %v1021, 112
      %v1085 = vpop.permute.xlu0 %1084
      %1086 = vrot.lane.b32.xlu0 %v1048, 112
      %v1087 = vpop.permute.xlu0 %1086
      %1088 = vrot.lane.b32.xlu0 %v1049, 112
      %v1089 = vpop.permute.xlu0 %1088
      %v1090 = vsel %vm670, %v1051, %v1053
      %v1091 = vsel %vm670, %v1053, %v1055
      %v1092 = vsel %vm670, %v1055, %v1057
      %v1093 = vsel %vm670, %v1057, %v1059
      %v1094 = vsel %vm670, %v1059, %v1061
      %v1095 = vsel %vm670, %v1061, %v1063
      %v1096 = vsel %vm670, %v1063, %v1065
      %v1097 = vsel %vm670, %v1065, %v1067
      %v1098 = vsel %vm670, %v1067, %v1069
      %v1099 = vsel %vm670, %v1069, %v1071
      %v1100 = vsel %vm670, %v1071, %v1073
      %v1101 = vsel %vm670, %v1073, %v1075
      %v1102 = vsel %vm670, %v1075, %v1077
      %v1103 = vsel %vm670, %v1077, %v1079
      %v1104 = vsel %vm670, %v1079, %v1081
      %v1105 = vsel %vm670, %v1081, %v1083
      %v1106 = vsel %vm670, %v1083, %v1085
      %v1107 = vsel %vm670, %v1085, %v1087
      %v1108 = vsel %vm670, %v1087, %v1089
      %1128 = vrot.lane.b32.xlu0 %v1004, 96
      %v1129 = vpop.permute.xlu0 %1128
      %1130 = vrot.lane.b32.xlu0 %v1005, 96
      %v1131 = vpop.permute.xlu0 %1130
      %1132 = vrot.lane.b32.xlu0 %v1006, 96
      %v1133 = vpop.permute.xlu0 %1132
      %1134 = vrot.lane.b32.xlu0 %v1007, 96
      %v1135 = vpop.permute.xlu0 %1134
      %1136 = vrot.lane.b32.xlu0 %v1008, 96
      %v1137 = vpop.permute.xlu0 %1136
      %1138 = vrot.lane.b32.xlu0 %v1009, 96
      %v1139 = vpop.permute.xlu0 %1138
      %1140 = vrot.lane.b32.xlu0 %v1010, 96
      %v1141 = vpop.permute.xlu0 %1140
      %1142 = vrot.lane.b32.xlu0 %v1011, 96
      %v1143 = vpop.permute.xlu0 %1142
      %1144 = vrot.lane.b32.xlu0 %v1012, 96
      %v1145 = vpop.permute.xlu0 %1144
      %1146 = vrot.lane.b32.xlu0 %v1013, 96
      %v1147 = vpop.permute.xlu0 %1146
      %1148 = vrot.lane.b32.xlu0 %v1014, 96
      %v1149 = vpop.permute.xlu0 %1148
      %1150 = vrot.lane.b32.xlu0 %v1015, 96
      %v1151 = vpop.permute.xlu0 %1150
      %1152 = vrot.lane.b32.xlu0 %v1016, 96
      %v1153 = vpop.permute.xlu0 %1152
      %1154 = vrot.lane.b32.xlu0 %v1017, 96
      %v1155 = vpop.permute.xlu0 %1154
      %1156 = vrot.lane.b32.xlu0 %v1018, 96
      %v1157 = vpop.permute.xlu0 %1156
      %1158 = vrot.lane.b32.xlu0 %v1019, 96
      %v1159 = vpop.permute.xlu0 %1158
      %1160 = vrot.lane.b32.xlu0 %v1020, 96
      %v1161 = vpop.permute.xlu0 %1160
      %1162 = vrot.lane.b32.xlu0 %v1021, 96
      %v1163 = vpop.permute.xlu0 %1162
      %1164 = vrot.lane.b32.xlu0 %v1048, 96
      %v1165 = vpop.permute.xlu0 %1164
      %1166 = vrot.lane.b32.xlu0 %v1049, 96
      %v1167 = vpop.permute.xlu0 %1166
      %v1168 = vsel %vm749, %v1129, %v1131
      %v1169 = vsel %vm749, %v1131, %v1133
      %v1170 = vsel %vm749, %v1133, %v1135
      %v1171 = vsel %vm749, %v1135, %v1137
      %v1172 = vsel %vm749, %v1137, %v1139
      %v1173 = vsel %vm749, %v1139, %v1141
      %v1174 = vsel %vm749, %v1141, %v1143
      %v1175 = vsel %vm749, %v1143, %v1145
      %v1176 = vsel %vm749, %v1145, %v1147
      %v1177 = vsel %vm749, %v1147, %v1149
      %v1178 = vsel %vm749, %v1149, %v1151
      %v1179 = vsel %vm749, %v1151, %v1153
      %v1180 = vsel %vm749, %v1153, %v1155
      %v1181 = vsel %vm749, %v1155, %v1157
      %v1182 = vsel %vm749, %v1157, %v1159
      %v1183 = vsel %vm749, %v1159, %v1161
      %v1184 = vsel %vm749, %v1161, %v1163
      %v1185 = vsel %vm749, %v1163, %v1165
      %v1186 = vsel %vm749, %v1165, %v1167
      %1206 = vrot.lane.b32.xlu0 %v1004, 80
      %v1207 = vpop.permute.xlu0 %1206
      %1208 = vrot.lane.b32.xlu0 %v1005, 80
      %v1209 = vpop.permute.xlu0 %1208
      %1210 = vrot.lane.b32.xlu0 %v1006, 80
      %v1211 = vpop.permute.xlu0 %1210
      %1212 = vrot.lane.b32.xlu0 %v1007, 80
      %v1213 = vpop.permute.xlu0 %1212
      %1214 = vrot.lane.b32.xlu0 %v1008, 80
      %v1215 = vpop.permute.xlu0 %1214
      %1216 = vrot.lane.b32.xlu0 %v1009, 80
      %v1217 = vpop.permute.xlu0 %1216
      %1218 = vrot.lane.b32.xlu0 %v1010, 80
      %v1219 = vpop.permute.xlu0 %1218
      %1220 = vrot.lane.b32.xlu0 %v1011, 80
      %v1221 = vpop.permute.xlu0 %1220
      %1222 = vrot.lane.b32.xlu0 %v1012, 80
      %v1223 = vpop.permute.xlu0 %1222
      %1224 = vrot.lane.b32.xlu0 %v1013, 80
      %v1225 = vpop.permute.xlu0 %1224
      %1226 = vrot.lane.b32.xlu0 %v1014, 80
      %v1227 = vpop.permute.xlu0 %1226
      %1228 = vrot.lane.b32.xlu0 %v1015, 80
      %v1229 = vpop.permute.xlu0 %1228
      %1230 = vrot.lane.b32.xlu0 %v1016, 80
      %v1231 = vpop.permute.xlu0 %1230
      %1232 = vrot.lane.b32.xlu0 %v1017, 80
      %v1233 = vpop.permute.xlu0 %1232
      %1234 = vrot.lane.b32.xlu0 %v1018, 80
      %v1235 = vpop.permute.xlu0 %1234
      %1236 = vrot.lane.b32.xlu0 %v1019, 80
      %v1237 = vpop.permute.xlu0 %1236
      %1238 = vrot.lane.b32.xlu0 %v1020, 80
      %v1239 = vpop.permute.xlu0 %1238
      %1240 = vrot.lane.b32.xlu0 %v1021, 80
      %v1241 = vpop.permute.xlu0 %1240
      %1242 = vrot.lane.b32.xlu0 %v1048, 80
      %v1243 = vpop.permute.xlu0 %1242
      %1244 = vrot.lane.b32.xlu0 %v1049, 80
      %v1245 = vpop.permute.xlu0 %1244
      %v1246 = vsel %vm828, %v1207, %v1209
      %v1247 = vsel %vm828, %v1209, %v1211
      %v1248 = vsel %vm828, %v1211, %v1213
      %v1249 = vsel %vm828, %v1213, %v1215
      %v1250 = vsel %vm828, %v1215, %v1217
      %v1251 = vsel %vm828, %v1217, %v1219
      %v1252 = vsel %vm828, %v1219, %v1221
      %v1253 = vsel %vm828, %v1221, %v1223
      %v1254 = vsel %vm828, %v1223, %v1225
      %v1255 = vsel %vm828, %v1225, %v1227
      %v1256 = vsel %vm828, %v1227, %v1229
      %v1257 = vsel %vm828, %v1229, %v1231
      %v1258 = vsel %vm828, %v1231, %v1233
      %v1259 = vsel %vm828, %v1233, %v1235
      %v1260 = vsel %vm828, %v1235, %v1237
      %v1261 = vsel %vm828, %v1237, %v1239
      %v1262 = vsel %vm828, %v1239, %v1241
      %v1263 = vsel %vm828, %v1241, %v1243
      %v1264 = vsel %vm828, %v1243, %v1245
      %1284 = vrot.lane.b32.xlu0 %v1004, 64
      %v1285 = vpop.permute.xlu0 %1284
      %1286 = vrot.lane.b32.xlu0 %v1005, 64
      %v1287 = vpop.permute.xlu0 %1286
      %1288 = vrot.lane.b32.xlu0 %v1006, 64
      %v1289 = vpop.permute.xlu0 %1288
      %1290 = vrot.lane.b32.xlu0 %v1007, 64
      %v1291 = vpop.permute.xlu0 %1290
      %1292 = vrot.lane.b32.xlu0 %v1008, 64
      %v1293 = vpop.permute.xlu0 %1292
      %1294 = vrot.lane.b32.xlu0 %v1009, 64
      %v1295 = vpop.permute.xlu0 %1294
      %1296 = vrot.lane.b32.xlu0 %v1010, 64
      %v1297 = vpop.permute.xlu0 %1296
      %1298 = vrot.lane.b32.xlu0 %v1011, 64
      %v1299 = vpop.permute.xlu0 %1298
      %1300 = vrot.lane.b32.xlu0 %v1012, 64
      %v1301 = vpop.permute.xlu0 %1300
      %1302 = vrot.lane.b32.xlu0 %v1013, 64
      %v1303 = vpop.permute.xlu0 %1302
      %1304 = vrot.lane.b32.xlu0 %v1014, 64
      %v1305 = vpop.permute.xlu0 %1304
      %1306 = vrot.lane.b32.xlu0 %v1015, 64
      %v1307 = vpop.permute.xlu0 %1306
      %1308 = vrot.lane.b32.xlu0 %v1016, 64
      %v1309 = vpop.permute.xlu0 %1308
      %1310 = vrot.lane.b32.xlu0 %v1017, 64
      %v1311 = vpop.permute.xlu0 %1310
      %1312 = vrot.lane.b32.xlu0 %v1018, 64
      %v1313 = vpop.permute.xlu0 %1312
      %1314 = vrot.lane.b32.xlu0 %v1019, 64
      %v1315 = vpop.permute.xlu0 %1314
      %1316 = vrot.lane.b32.xlu0 %v1020, 64
      %v1317 = vpop.permute.xlu0 %1316
      %1318 = vrot.lane.b32.xlu0 %v1021, 64
      %v1319 = vpop.permute.xlu0 %1318
      %1320 = vrot.lane.b32.xlu0 %v1048, 64
      %v1321 = vpop.permute.xlu0 %1320
      %1322 = vrot.lane.b32.xlu0 %v1049, 64
      %v1323 = vpop.permute.xlu0 %1322
      %v1324 = vsel %vm907, %v1285, %v1287
      %v1325 = vsel %vm907, %v1287, %v1289
      %v1326 = vsel %vm907, %v1289, %v1291
      %v1327 = vsel %vm907, %v1291, %v1293
      %v1328 = vsel %vm907, %v1293, %v1295
      %v1329 = vsel %vm907, %v1295, %v1297
      %v1330 = vsel %vm907, %v1297, %v1299
      %v1331 = vsel %vm907, %v1299, %v1301
      %v1332 = vsel %vm907, %v1301, %v1303
      %v1333 = vsel %vm907, %v1303, %v1305
      %v1334 = vsel %vm907, %v1305, %v1307
      %v1335 = vsel %vm907, %v1307, %v1309
      %v1336 = vsel %vm907, %v1309, %v1311
      %v1337 = vsel %vm907, %v1311, %v1313
      %v1338 = vsel %vm907, %v1313, %v1315
      %v1339 = vsel %vm907, %v1315, %v1317
      %v1340 = vsel %vm907, %v1317, %v1319
      %v1341 = vsel %vm907, %v1319, %v1321
      %v1342 = vsel %vm907, %v1321, %v1323
      %v1362 = vld [vmem:[%s175 + $0x4c0] sm:$0xf]
      %v1363 = vld [vmem:[%s175 + $0x4c4] sm:$0xf]
      %v1364 = vld [vmem:[%s175 + $0x4c8] sm:$0xf]
      %v1365 = vld [vmem:[%s175 + $0x4cc] sm:$0xf]
      %v1366 = vld [vmem:[%s175 + $0x4d0] sm:$0xf]
      %v1367 = vld [vmem:[%s175 + $0x4d4] sm:$0xf]
      %v1368 = vld [vmem:[%s175 + $0x4d8] sm:$0xf]
      %v1369 = vld [vmem:[%s175 + $0x4dc] sm:$0xf]
      %v1370 = vld [vmem:[%s175 + $0x4e0] sm:$0xf]
      %v1371 = vld [vmem:[%s175 + $0x4e4] sm:$0xf]
      %v1372 = vld [vmem:[%s175 + $0x4e8] sm:$0xf]
      %v1373 = vld [vmem:[%s175 + $0x4ec] sm:$0xf]
      %v1374 = vld [vmem:[%s175 + $0x4f0] sm:$0xf]
      %v1375 = vld [vmem:[%s175 + $0x4f4] sm:$0xf]
      %v1376 = vld [vmem:[%s175 + $0x4f8] sm:$0xf]
      %v1377 = vld [vmem:[%s175 + $0x4fc] sm:$0xf]
      %v1378 = vld [vmem:[%s175 + $0x500] sm:$0xf]
      %v1379 = vld [vmem:[%s175 + $0x504] sm:$0xf]
      %v1380 = vld [vmem:[%s175 + $0x508] sm:$0xf]
      %v1381 = vld [vmem:[%s175 + $0x50c] sm:$0xf]
      %v1382 = vld [vmem:[%s175 + $0x510] sm:$0xf]
      %v1383 = vld [vmem:[%s175 + $0x514] sm:$0xf]
      %v1384 = vld [vmem:[%s175 + $0x518] sm:$0xf]
      %v1385 = vld [vmem:[%s175 + $0x51c] sm:$0xf]
      %v1386 = vld [vmem:[%s175 + $0x520] sm:$0xf]
      %v1387 = vld [vmem:[%s175 + $0x524] sm:$0xf]
      %v1388 = vld [vmem:[%s175 + $0x528] sm:$0xf]
      %v1389 = vld [vmem:[%s175 + $0x52c] sm:$0xf]
      %v1390 = vld [vmem:[%s175 + $0x530] sm:$0xf]
      %v1391 = vld [vmem:[%s175 + $0x534] sm:$0xf]
      %v1392 = vld [vmem:[%s175 + $0x538] sm:$0xf]
      %v1393 = vld [vmem:[%s175 + $0x53c] sm:$0xf]
      %v1394 = vld [vmem:[%s175 + $0x540] sm:$0xf]
      %v1395 = vld [vmem:[%s175 + $0x544] sm:$0xf]
      %v1396 = vld [vmem:[%s175 + $0x548] sm:$0xf]
      %v1397 = vld [vmem:[%s175 + $0x54c] sm:$0xf]
      %v1398 = vld [vmem:[%s175 + $0x550] sm:$0xf]
      %v1399 = vld [vmem:[%s175 + $0x554] sm:$0xf]
      %v1400 = vld [vmem:[%s175 + $0x558] sm:$0xf]
      %v1401 = vld [vmem:[%s175 + $0x55c] sm:$0xf]
      %v1402 = vld [vmem:[%s175 + $0x560] sm:$0xf]
      %v1403 = vld [vmem:[%s175 + $0x564] sm:$0xf]
      %v1404 = vld [vmem:[%s175 + $0x568] sm:$0xf]
      %v1405 = vld [vmem:[%s175 + $0x56c] sm:$0xf]
      %v1406 = vld [vmem:[%s175 + $0x570] sm:$0xf]
      %v1407 = vld [vmem:[%s175 + $0x574] sm:$0xf]
      %v1408 = vld [vmem:[%s175 + $0x578] sm:$0xf]
      %v1409 = vld [vmem:[%s175 + $0x57c] sm:$0xf]
      %v1410 = vld [vmem:[%s175 + $0x580] sm:$0xf]
      %v1411 = vld [vmem:[%s175 + $0x584] sm:$0xf]
      %v1412 = vld [vmem:[%s175 + $0x588] sm:$0xf]
      %v1413 = vld [vmem:[%s175 + $0x58c] sm:$0xf]
      %v1414 = vld [vmem:[%s175 + $0x590] sm:$0xf]
      %v1415 = vld [vmem:[%s175 + $0x594] sm:$0xf]
      %v1416 = vld [vmem:[%s175 + $0x598] sm:$0xf]
      %v1417 = vld [vmem:[%s175 + $0x59c] sm:$0xf]
      %v1418 = vld [vmem:[%s175 + $0x5a0] sm:$0xf]
      %v1419 = vld [vmem:[%s175 + $0x5a4] sm:$0xf]
      %v1420 = vld [vmem:[%s175 + $0x5a8] sm:$0xf]
      %v1421 = vld [vmem:[%s175 + $0x5ac] sm:$0xf]
      %v1422 = vld [vmem:[%s175 + $0x5b0] sm:$0xf]
      %v1423 = vld [vmem:[%s175 + $0x5b4] sm:$0xf]
      %v1424 = vld [vmem:[%s175 + $0x5b8] sm:$0xf]
      %v1425 = vld [vmem:[%s175 + $0x5bc] sm:$0xf]
      %v1426 = vld [vmem:[%s175 + $0x5c0] sm:$0xf]
      %v1427 = vld [vmem:[%s175 + $0x5c4] sm:$0xf]
      %v1428 = vld [vmem:[%s175 + $0x5c8] sm:$0xf]
      %v1429 = vld [vmem:[%s175 + $0x5cc] sm:$0xf]
      %v1430 = vld [vmem:[%s175 + $0x5d0] sm:$0xf]
      %v1431 = vld [vmem:[%s175 + $0x5d4] sm:$0xf]
      %v1432 = vld [vmem:[%s175 + $0x5d8] sm:$0xf]
      %v1433 = vld [vmem:[%s175 + $0x5dc] sm:$0xf]
      %v1434 = vld [vmem:[%s175 + $0x5e0] sm:$0xf]
      %v1435 = vld [vmem:[%s175 + $0x5e4] sm:$0xf]
      %v1436 = vld [vmem:[%s175 + $0x5e8] sm:$0xf]
      %v1437 = vld [vmem:[%s175 + $0x5ec] sm:$0xf]
      %v1438 = vld [vmem:[%s175 + $0x5f0] sm:$0xf]
      %v1439 = vld [vmem:[%s175 + $0x5f4] sm:$0xf]
      %v1440 = vld [vmem:[%s175 + $0x5f8] sm:$0xf]
      %v1441 = vld [vmem:[%s175 + $0x5fc] sm:$0xf]
      %v1442 = vld [vmem:[%s175 + $0x600] sm:$0xf]
      %v1443 = vld [vmem:[%s175 + $0x604] sm:$0xf]
      %v1444 = vld [vmem:[%s175 + $0x608] sm:$0xf]
      %v1445 = vld [vmem:[%s175 + $0x60c] sm:$0xf]
      %v1446 = vld [vmem:[%s175 + $0x610] sm:$0xf]
      %v1447 = vld [vmem:[%s175 + $0x614] sm:$0xf]
      %v1448 = vld [vmem:[%s175 + $0x618] sm:$0xf]
      %v1449 = vld [vmem:[%s175 + $0x61c] sm:$0xf]
      %v1450 = vld [vmem:[%s175 + $0x620] sm:$0xf]
      %v1451 = vld [vmem:[%s175 + $0x624] sm:$0xf]
      %v1452 = vld [vmem:[%s175 + $0x628] sm:$0xf]
      %v1453 = vld [vmem:[%s175 + $0x62c] sm:$0xf]
      %v1454 = vld [vmem:[%s175 + $0x630] sm:$0xf]
      %v1455 = vld [vmem:[%s175 + $0x634] sm:$0xf]
      %v1456 = vld [vmem:[%s175 + $0x638] sm:$0xf]
      %v1457 = vld [vmem:[%s175 + $0x63c] sm:$0xf]
      %v1458 = vld [vmem:[%s175 + $0x640] sm:$0xf]
      %v1459 = vld [vmem:[%s175 + $0x644] sm:$0xf]
      %v1460 = vld [vmem:[%s175 + $0x648] sm:$0xf]
      %v1461 = vld [vmem:[%s175 + $0x64c] sm:$0xf]
      %v1462 = vld [vmem:[%s175 + $0x650] sm:$0xf]
      %v1463 = vld [vmem:[%s175 + $0x654] sm:$0xf]
      %v1464 = vld [vmem:[%s175 + $0x658] sm:$0xf]
      %v1465 = vld [vmem:[%s175 + $0x65c] sm:$0xf]
      %v1466 = vld [vmem:[%s175 + $0x660] sm:$0xf]
      %v1467 = vld [vmem:[%s175 + $0x664] sm:$0xf]
      %v1468 = vld [vmem:[%s175 + $0x668] sm:$0xf]
      %v1469 = vld [vmem:[%s175 + $0x66c] sm:$0xf]
      %v1470 = vld [vmem:[%s175 + $0x670] sm:$0xf]
      %v1471 = vld [vmem:[%s175 + $0x674] sm:$0xf]
      %v1472 = vld [vmem:[%s175 + $0x678] sm:$0xf]
      %v1473 = vld [vmem:[%s175 + $0x67c] sm:$0xf]
      %v1474 = vld [vmem:[%s175 + $0x680] sm:$0xf]
      %v1475 = vld [vmem:[%s175 + $0x684] sm:$0xf]
      %v1476 = vld [vmem:[%s175 + $0x688] sm:$0xf]
      %v1477 = vld [vmem:[%s175 + $0x68c] sm:$0xf]
      %v1478 = vld [vmem:[%s175 + $0x690] sm:$0xf]
      %v1479 = vld [vmem:[%s175 + $0x694] sm:$0xf]
      %v1480 = vld [vmem:[%s175 + $0x698] sm:$0xf]
      %v1481 = vld [vmem:[%s175 + $0x69c] sm:$0xf]
      %v1482 = vld [vmem:[%s175 + $0x6a0] sm:$0xf]
      %v1483 = vld [vmem:[%s175 + $0x6a4] sm:$0xf]
      %v1484 = vld [vmem:[%s175 + $0x6a8] sm:$0xf]
      %v1485 = vld [vmem:[%s175 + $0x6ac] sm:$0xf]
      %v1486 = vld [vmem:[%s175 + $0x6b0] sm:$0xf]
      %v1487 = vld [vmem:[%s175 + $0x6b4] sm:$0xf]
      %v1488 = vld [vmem:[%s175 + $0x6b8] sm:$0xf]
      %v1489 = vld [vmem:[%s175 + $0x6bc] sm:$0xf]
      %v1490 = vld [vmem:[%s175 + $0x6c0] sm:$0xf]
      %v1491 = vld [vmem:[%s175 + $0x6c4] sm:$0xf]
      %v1492 = vld [vmem:[%s175 + $0x6c8] sm:$0xf]
      %v1493 = vld [vmem:[%s175 + $0x6cc] sm:$0xf]
      %v1494 = vld [vmem:[%s175 + $0x6d0] sm:$0xf]
      %v1495 = vld [vmem:[%s175 + $0x6d4] sm:$0xf]
      %v1496 = vld [vmem:[%s175 + $0x6d8] sm:$0xf]
      %v1497 = vld [vmem:[%s175 + $0x6dc] sm:$0xf]
      %v1498 = vld [vmem:[%s175 + $0x6e0] sm:$0xf]
      %v1499 = vld [vmem:[%s175 + $0x6e4] sm:$0xf]
      %v1500 = vld [vmem:[%s175 + $0x6e8] sm:$0xf]
      %v1501 = vld [vmem:[%s175 + $0x6ec] sm:$0xf]
      %v1502 = vld [vmem:[%s175 + $0x6f0] sm:$0xf]
      %v1503 = vld [vmem:[%s175 + $0x6f4] sm:$0xf]
      %v1504 = vld [vmem:[%s175 + $0x6f8] sm:$0xf]
      %v1505 = vld [vmem:[%s175 + $0x6fc] sm:$0xf]
      %v1506 = vld [vmem:[%s175 + $0x700] sm:$0xf]
      %v1507 = vld [vmem:[%s175 + $0x704] sm:$0xf]
      %v1508 = vld [vmem:[%s175 + $0x708] sm:$0xf]
      %v1509 = vld [vmem:[%s175 + $0x70c] sm:$0xf]
      %v1510 = vld [vmem:[%s175 + $0x710] sm:$0xf]
      %v1511 = vld [vmem:[%s175 + $0x714] sm:$0xf]
      %v1512 = vld [vmem:[%s175 + $0x718] sm:$0xf]
      %v1513 = vld [vmem:[%s175 + $0x71c] sm:$0xf]
      %v1514 = vld [vmem:[%s175 + $0x720] sm:$0xf]
      %v1515 = vld [vmem:[%s175 + $0x724] sm:$0xf]
      %v1516 = vld [vmem:[%s175 + $0x728] sm:$0xf]
      %v1517 = vld [vmem:[%s175 + $0x72c] sm:$0xf]
      %v1518 = vld [vmem:[%s175 + $0x730] sm:$0xf]
      %v1519 = vld [vmem:[%s175 + $0x734] sm:$0xf]
      %v1520 = vld [vmem:[%s175 + $0x738] sm:$0xf]
      %v1521 = vld [vmem:[%s175 + $0x73c] sm:$0xf]
      %v1522 = vld [vmem:[%s175 + $0x740] sm:$0xf]
      %v1523 = vld [vmem:[%s175 + $0x744] sm:$0xf]
      %v1524 = vld [vmem:[%s175 + $0x748] sm:$0xf]
      %v1525 = vld [vmem:[%s175 + $0x74c] sm:$0xf]
      %v1526 = vld [vmem:[%s175 + $0x750] sm:$0xf]
      %v1527 = vld [vmem:[%s175 + $0x754] sm:$0xf]
      %v1528 = vld [vmem:[%s175 + $0x758] sm:$0xf]
      %v1529 = vld [vmem:[%s175 + $0x75c] sm:$0xf]
      %v1530 = vld [vmem:[%s175 + $0x760] sm:$0xf]
      %v1531 = vld [vmem:[%s175 + $0x764] sm:$0xf]
      %v1532 = vld [vmem:[%s175 + $0x768] sm:$0xf]
      %v1533 = vld [vmem:[%s175 + $0x76c] sm:$0xf]
      %v1534 = vld [vmem:[%s175 + $0x770] sm:$0xf]
      %v1535 = vld [vmem:[%s175 + $0x774] sm:$0xf]
      %v1536 = vld [vmem:[%s175 + $0x778] sm:$0xf]
      %v1537 = vld [vmem:[%s175 + $0x77c] sm:$0xf]
      %v1538 = vld [vmem:[%s175 + $0x780] sm:$0xf]
      %v1539 = vld [vmem:[%s175 + $0x784] sm:$0xf]
      %v1540 = vld [vmem:[%s175 + $0x788] sm:$0xf]
      %v1541 = vld [vmem:[%s175 + $0x78c] sm:$0xf]
      %v1542 = vld [vmem:[%s175 + $0x790] sm:$0xf]
      %v1543 = vld [vmem:[%s175 + $0x794] sm:$0xf]
      %v1544 = vld [vmem:[%s175 + $0x798] sm:$0xf]
      %v1545 = vld [vmem:[%s175 + $0x79c] sm:$0xf]
      %v1546 = vld [vmem:[%s175 + $0x7a0] sm:$0xf]
      %v1547 = vld [vmem:[%s175 + $0x7a4] sm:$0xf]
      %v1548 = vld [vmem:[%s175 + $0x7a8] sm:$0xf]
      %v1549 = vld [vmem:[%s175 + $0x7ac] sm:$0xf]
      %v1550 = vld [vmem:[%s175 + $0x7b0] sm:$0xf]
      %v1551 = vld [vmem:[%s175 + $0x7b4] sm:$0xf]
      %v1552 = vld [vmem:[%s175 + $0x7b8] sm:$0xf]
      %v1553 = vld [vmem:[%s175 + $0x7bc] sm:$0xf]
      %v1554 = vld [vmem:[%s175 + $0x7c0] sm:$0xf]
      %v1555 = vld [vmem:[%s175 + $0x7c4] sm:$0xf]
      %v1556 = vld [vmem:[%s175 + $0x7c8] sm:$0xf]
      %v1557 = vld [vmem:[%s175 + $0x7cc] sm:$0xf]
      %v1558 = vld [vmem:[%s175 + $0x7d0] sm:$0xf]
      %v1559 = vld [vmem:[%s175 + $0x7d4] sm:$0xf]
      %v1560 = vld [vmem:[%s175 + $0x7d8] sm:$0xf]
      %v1561 = vld [vmem:[%s175 + $0x7dc] sm:$0xf]
      %v1562 = vld [vmem:[%s175 + $0x7e0] sm:$0xf]
      %v1563 = vld [vmem:[%s175 + $0x7e4] sm:$0xf]
      %v1564 = vld [vmem:[%s175 + $0x7e8] sm:$0xf]
      %v1565 = vld [vmem:[%s175 + $0x7ec] sm:$0xf]
      %v1566 = vld [vmem:[%s175 + $0x7f0] sm:$0xf]
      %v1567 = vld [vmem:[%s175 + $0x7f4] sm:$0xf]
      %v1568 = vld [vmem:[%s175 + $0x7f8] sm:$0xf]
      %v1569 = vld [vmem:[%s175 + $0x7fc] sm:$0xf]
      %v1570 = vld [vmem:[%s175 + $0x800] sm:$0xf]
      %v1571 = vld [vmem:[%s175 + $0x804] sm:$0xf]
      %v1572 = vld [vmem:[%s175 + $0x808] sm:$0xf]
      %v1573 = vld [vmem:[%s175 + $0x80c] sm:$0xf]
      %v1574 = vld [vmem:[%s175 + $0x810] sm:$0xf]
      %v1575 = vld [vmem:[%s175 + $0x814] sm:$0xf]
      %v1576 = vld [vmem:[%s175 + $0x818] sm:$0xf]
      %v1577 = vld [vmem:[%s175 + $0x81c] sm:$0xf]
      %v1578 = vld [vmem:[%s175 + $0x820] sm:$0xf]
      %v1579 = vld [vmem:[%s175 + $0x824] sm:$0xf]
      %v1580 = vld [vmem:[%s175 + $0x828] sm:$0xf]
      %v1581 = vld [vmem:[%s175 + $0x82c] sm:$0xf]
      %v1582 = vld [vmem:[%s175 + $0x830] sm:$0xf]
      %v1583 = vld [vmem:[%s175 + $0x834] sm:$0xf]
      %v1584 = vld [vmem:[%s175 + $0x838] sm:$0xf]
      %v1585 = vld [vmem:[%s175 + $0x83c] sm:$0xf]
      %v1586 = vld [vmem:[%s175 + $0x840] sm:$0xf]
      %v1587 = vld [vmem:[%s175 + $0x844] sm:$0xf]
      %v1588 = vld [vmem:[%s175 + $0x848] sm:$0xf]
      %v1589 = vld [vmem:[%s175 + $0x84c] sm:$0xf]
      %v1590 = vld [vmem:[%s175 + $0x850] sm:$0xf]
      %v1591 = vld [vmem:[%s175 + $0x854] sm:$0xf]
      %v1592 = vld [vmem:[%s175 + $0x858] sm:$0xf]
      %v1593 = vld [vmem:[%s175 + $0x85c] sm:$0xf]
      %v1594 = vld [vmem:[%s175 + $0x860] sm:$0xf]
      %v1595 = vld [vmem:[%s175 + $0x864] sm:$0xf]
      %v1596 = vld [vmem:[%s175 + $0x868] sm:$0xf]
      %v1597 = vld [vmem:[%s175 + $0x86c] sm:$0xf]
      %v1598 = vld [vmem:[%s175 + $0x870] sm:$0xf]
      %v1599 = vld [vmem:[%s175 + $0x874] sm:$0xf]
      %v1600 = vld [vmem:[%s175 + $0x878] sm:$0xf]
      %v1601 = vld [vmem:[%s175 + $0x87c] sm:$0xf]
      %v1602 = vld [vmem:[%s175 + $0x880] sm:$0xf]
      %v1603 = vld [vmem:[%s175 + $0x884] sm:$0xf]
      %v1604 = vld [vmem:[%s175 + $0x888] sm:$0xf]
      %v1605 = vld [vmem:[%s175 + $0x88c] sm:$0xf]
      %v1606 = vld [vmem:[%s175 + $0x890] sm:$0xf]
      %v1607 = vld [vmem:[%s175 + $0x894] sm:$0xf]
      %v1608 = vld [vmem:[%s175 + $0x898] sm:$0xf]
      %v1609 = vld [vmem:[%s175 + $0x89c] sm:$0xf]
      %v1610 = vld [vmem:[%s175 + $0x8a0] sm:$0xf]
      %v1611 = vld [vmem:[%s175 + $0x8a4] sm:$0xf]
      %v1612 = vld [vmem:[%s175 + $0x8a8] sm:$0xf]
      %v1613 = vld [vmem:[%s175 + $0x8ac] sm:$0xf]
      %v1614 = vld [vmem:[%s175 + $0x8b0] sm:$0xf]
      %v1615 = vld [vmem:[%s175 + $0x8b4] sm:$0xf]
      %v1616 = vld [vmem:[%s175 + $0x8b8] sm:$0xf]
      %v1617 = vld [vmem:[%s175 + $0x8bc] sm:$0xf]
      %v1618 = vld [vmem:[%s175 + $0x8c0] sm:$0xf]
      %v1619 = vld [vmem:[%s175 + $0x8c4] sm:$0xf]
      %v1620 = vld [vmem:[%s175 + $0x8c8] sm:$0xf]
      %v1621 = vld [vmem:[%s175 + $0x8cc] sm:$0xf]
      %v1622 = vld [vmem:[%s175 + $0x8d0] sm:$0xf]
      %v1623 = vld [vmem:[%s175 + $0x8d4] sm:$0xf]
      %v1624 = vld [vmem:[%s175 + $0x8d8] sm:$0xf]
      %v1625 = vld [vmem:[%s175 + $0x8dc] sm:$0xf]
      %v1626 = vld [vmem:[%s175 + $0x8e0] sm:$0xf]
      %v1627 = vld [vmem:[%s175 + $0x8e4] sm:$0xf]
      %v1628 = vld [vmem:[%s175 + $0x8e8] sm:$0xf]
      %v1629 = vld [vmem:[%s175 + $0x8ec] sm:$0xf]
      %v1630 = vld [vmem:[%s175 + $0x8f0] sm:$0xf]
      %v1631 = vld [vmem:[%s175 + $0x8f4] sm:$0xf]
      %v1632 = vld [vmem:[%s175 + $0x8f8] sm:$0xf]
      %v1633 = vld [vmem:[%s175 + $0x8fc] sm:$0xf]
      %v1634 = vld [vmem:[%s175 + $0x900] sm:$0xf]
      %v1635 = vld [vmem:[%s175 + $0x904] sm:$0xf]
      %v1636 = vld [vmem:[%s175 + $0x908] sm:$0xf]
      %v1637 = vld [vmem:[%s175 + $0x90c] sm:$0xf]
      %v1638 = vld [vmem:[%s175 + $0x910] sm:$0xf]
      %v1639 = vld [vmem:[%s175 + $0x914] sm:$0xf]
      %v1640 = vld [vmem:[%s175 + $0x918] sm:$0xf]
      %v1641 = vld [vmem:[%s175 + $0x91c] sm:$0xf]
      %v1642 = vld [vmem:[%s175 + $0x920] sm:$0xf]
      %v1643 = vld [vmem:[%s175 + $0x924] sm:$0xf]
      %v1644 = vld [vmem:[%s175 + $0x928] sm:$0xf]
      %v1645 = vld [vmem:[%s175 + $0x92c] sm:$0xf]
      %v1646 = vld [vmem:[%s175 + $0x930] sm:$0xf]
      %v1647 = vld [vmem:[%s175 + $0x934] sm:$0xf]
      %v1648 = vld [vmem:[%s175 + $0x938] sm:$0xf]
      %v1649 = vld [vmem:[%s175 + $0x93c] sm:$0xf]
      %v1650 = vld [vmem:[%s175 + $0x940] sm:$0xf]
      %v1651 = vld [vmem:[%s175 + $0x944] sm:$0xf]
      %v1652 = vld [vmem:[%s175 + $0x948] sm:$0xf]
      %v1653 = vld [vmem:[%s175 + $0x94c] sm:$0xf]
      %v1654 = vld [vmem:[%s175 + $0x950] sm:$0xf]
      %v1655 = vld [vmem:[%s175 + $0x954] sm:$0xf]
      %v1656 = vld [vmem:[%s175 + $0x958] sm:$0xf]
      %v1657 = vld [vmem:[%s175 + $0x95c] sm:$0xf]
      %v1658 = vld [vmem:[%s175 + $0x960] sm:$0xf]
      %v1659 = vld [vmem:[%s175 + $0x964] sm:$0xf]
      %v1660 = vld [vmem:[%s175 + $0x968] sm:$0xf]
      %v1661 = vld [vmem:[%s175 + $0x96c] sm:$0xf]
      %v1662 = vld [vmem:[%s175 + $0x970] sm:$0xf]
      %v1663 = vld [vmem:[%s175 + $0x974] sm:$0xf]
      %v1664 = vld [vmem:[%s175 + $0x978] sm:$0xf]
      %v1665 = vld [vmem:[%s175 + $0x97c] sm:$0xf]
      %s1666 = scalar_lea.vmem %s170, 320
      %v1667 = vld [vmem:[%s1666] sm:$0xff]
      %v1668 = vld [vmem:[%s1666 + $0x8] sm:$0xff]
      %v1669 = vld [vmem:[%s1666 + $0x10] sm:$0xff]
      %v1670 = vld [vmem:[%s1666 + $0x18] sm:$0xff]
      %v1671 = vld [vmem:[%s1666 + $0x20] sm:$0xff]
      %v1672 = vld [vmem:[%s1666 + $0x28] sm:$0xff]
      %v1673 = vld [vmem:[%s1666 + $0x30] sm:$0xff]
      %v1674 = vld [vmem:[%s1666 + $0x38] sm:$0xff]
      %v1675 = vld [vmem:[%s1666 + $0x40] sm:$0xff]
      %v1676 = vld [vmem:[%s1666 + $0x48] sm:$0xf]
      %v1677 = vld [vmem:[%s1666 + $0x50] sm:$0xff]
      %v1678 = vld [vmem:[%s1666 + $0x58] sm:$0xff]
      %v1679 = vld [vmem:[%s1666 + $0x60] sm:$0xff]
      %v1680 = vld [vmem:[%s1666 + $0x68] sm:$0xff]
      %v1681 = vld [vmem:[%s1666 + $0x70] sm:$0xff]
      %v1682 = vld [vmem:[%s1666 + $0x78] sm:$0xff]
      %v1683 = vld [vmem:[%s1666 + $0x80] sm:$0xff]
      %v1684 = vld [vmem:[%s1666 + $0x88] sm:$0xff]
      %v1685 = vld [vmem:[%s1666 + $0x90] sm:$0xff]
      %v1686 = vld [vmem:[%s1666 + $0x98] sm:$0xf]
      %v1687 = vld [vmem:[%s1666 + $0x48] sm:$0xff]
      %v1688 = vld [vmem:[%s1666 + $0x98] sm:$0xff]
      %s1689 = scalar_lea.vmem %s170, 480
      %v1690 = vld [vmem:[%s1689] sm:$0xff]
      %v1691 = vld [vmem:[%s1689 + $0x8] sm:$0xff]
      %v1692 = vld [vmem:[%s1689 + $0x10] sm:$0xff]
      %v1693 = vld [vmem:[%s1689 + $0x18] sm:$0xff]
      %v1694 = vld [vmem:[%s1689 + $0x20] sm:$0xff]
      %v1695 = vld [vmem:[%s1689 + $0x28] sm:$0xff]
      %v1696 = vld [vmem:[%s1689 + $0x30] sm:$0xff]
      %v1697 = vld [vmem:[%s1689 + $0x38] sm:$0xff]
      %v1698 = vld [vmem:[%s1689 + $0x40] sm:$0xff]
      %v1699 = vld [vmem:[%s1689 + $0x48] sm:$0xf]
      %v1700 = vld [vmem:[%s1689 + $0x50] sm:$0xff]
      %v1701 = vld [vmem:[%s1689 + $0x58] sm:$0xff]
      %v1702 = vld [vmem:[%s1689 + $0x60] sm:$0xff]
      %v1703 = vld [vmem:[%s1689 + $0x68] sm:$0xff]
      %v1704 = vld [vmem:[%s1689 + $0x70] sm:$0xff]
      %v1705 = vld [vmem:[%s1689 + $0x78] sm:$0xff]
      %v1706 = vld [vmem:[%s1689 + $0x80] sm:$0xff]
      %v1707 = vld [vmem:[%s1689 + $0x88] sm:$0xff]
      %v1708 = vld [vmem:[%s1689 + $0x90] sm:$0xff]
      %v1709 = vld [vmem:[%s1689 + $0x98] sm:$0xf]
      %v1710 = vld [vmem:[%s1689 + $0x48] sm:$0xff]
      %v1711 = vld [vmem:[%s1689 + $0x98] sm:$0xff]
      %v1732 = vunpack.c.l.b16 %v1667
      %v1733 = vunpack.c.h.b16 %v1667
      %v1734 = vunpack.c.l.b16 %v1668
      %v1735 = vunpack.c.h.b16 %v1668
      %v1736 = vunpack.c.l.b16 %v1669
      %v1737 = vunpack.c.h.b16 %v1669
      %v1738 = vunpack.c.l.b16 %v1670
      %v1739 = vunpack.c.h.b16 %v1670
      %v1740 = vunpack.c.l.b16 %v1671
      %v1741 = vunpack.c.h.b16 %v1671
      %v1742 = vunpack.c.l.b16 %v1672
      %v1743 = vunpack.c.h.b16 %v1672
      %v1744 = vunpack.c.l.b16 %v1673
      %v1745 = vunpack.c.h.b16 %v1673
      %v1746 = vunpack.c.l.b16 %v1674
      %v1747 = vunpack.c.h.b16 %v1674
      %v1748 = vunpack.c.l.b16 %v1675
      %v1749 = vunpack.c.h.b16 %v1675
      %v1750 = vunpack.c.l.b16 %v1676
      %v1751 = vunpack.c.l.b16 %v1677
      %v1752 = vunpack.c.h.b16 %v1677
      %v1753 = vunpack.c.l.b16 %v1678
      %v1754 = vunpack.c.h.b16 %v1678
      %v1755 = vunpack.c.l.b16 %v1679
      %v1756 = vunpack.c.h.b16 %v1679
      %v1757 = vunpack.c.l.b16 %v1680
      %v1758 = vunpack.c.h.b16 %v1680
      %v1759 = vunpack.c.l.b16 %v1681
      %v1760 = vunpack.c.h.b16 %v1681
      %v1761 = vunpack.c.l.b16 %v1682
      %v1762 = vunpack.c.h.b16 %v1682
      %v1763 = vunpack.c.l.b16 %v1683
      %v1764 = vunpack.c.h.b16 %v1683
      %v1765 = vunpack.c.l.b16 %v1684
      %v1766 = vunpack.c.h.b16 %v1684
      %v1767 = vunpack.c.l.b16 %v1685
      %v1768 = vunpack.c.h.b16 %v1685
      %v1769 = vunpack.c.l.b16 %v1686
      %v1770 = vpack.c.b16 %v1751, %v1732
      %v1771 = vpack.c.b16 %v1752, %v1733
      %v1772 = vpack.c.b16 %v1753, %v1734
      %v1773 = vpack.c.b16 %v1754, %v1735
      %v1774 = vpack.c.b16 %v1755, %v1736
      %v1775 = vpack.c.b16 %v1756, %v1737
      %v1776 = vpack.c.b16 %v1757, %v1738
      %v1777 = vpack.c.b16 %v1758, %v1739
      %v1778 = vpack.c.b16 %v1759, %v1740
      %v1779 = vpack.c.b16 %v1760, %v1741
      %v1780 = vpack.c.b16 %v1761, %v1742
      %v1781 = vpack.c.b16 %v1762, %v1743
      %v1782 = vpack.c.b16 %v1763, %v1744
      %v1783 = vpack.c.b16 %v1764, %v1745
      %v1784 = vpack.c.b16 %v1765, %v1746
      %v1785 = vpack.c.b16 %v1766, %v1747
      %v1786 = vpack.c.b16 %v1767, %v1748
      %v1787 = vpack.c.b16 %v1768, %v1749
      %v1788 = vpack.c.b16 %v1769, %v1750
      %v1810 = vunpack.c.l.b16 %v1687
      %v1811 = vunpack.c.h.b16 %v1687
      %v1812 = vunpack.c.l.b16 %v1688
      %v1813 = vunpack.c.h.b16 %v1688
      %v1814 = vpack.c.b16 %v1812, %v1810
      %v1815 = vpack.c.b16 %v1813, %v1811
      %1816 = vrot.lane.b32.xlu0 %v1770, 112
      %v1817 = vpop.permute.xlu0 %1816
      %1818 = vrot.lane.b32.xlu0 %v1771, 112
      %v1819 = vpop.permute.xlu0 %1818
      %1820 = vrot.lane.b32.xlu0 %v1772, 112
      %v1821 = vpop.permute.xlu0 %1820
      %1822 = vrot.lane.b32.xlu0 %v1773, 112
      %v1823 = vpop.permute.xlu0 %1822
      %1824 = vrot.lane.b32.xlu0 %v1774, 112
      %v1825 = vpop.permute.xlu0 %1824
      %1826 = vrot.lane.b32.xlu0 %v1775, 112
      %v1827 = vpop.permute.xlu0 %1826
      %1828 = vrot.lane.b32.xlu0 %v1776, 112
      %v1829 = vpop.permute.xlu0 %1828
      %1830 = vrot.lane.b32.xlu0 %v1777, 112
      %v1831 = vpop.permute.xlu0 %1830
      %1832 = vrot.lane.b32.xlu0 %v1778, 112
      %v1833 = vpop.permute.xlu0 %1832
      %1834 = vrot.lane.b32.xlu0 %v1779, 112
      %v1835 = vpop.permute.xlu0 %1834
      %1836 = vrot.lane.b32.xlu0 %v1780, 112
      %v1837 = vpop.permute.xlu0 %1836
      %1838 = vrot.lane.b32.xlu0 %v1781, 112
      %v1839 = vpop.permute.xlu0 %1838
      %1840 = vrot.lane.b32.xlu0 %v1782, 112
      %v1841 = vpop.permute.xlu0 %1840
      %1842 = vrot.lane.b32.xlu0 %v1783, 112
      %v1843 = vpop.permute.xlu0 %1842
      %1844 = vrot.lane.b32.xlu0 %v1784, 112
      %v1845 = vpop.permute.xlu0 %1844
      %1846 = vrot.lane.b32.xlu0 %v1785, 112
      %v1847 = vpop.permute.xlu0 %1846
      %1848 = vrot.lane.b32.xlu0 %v1786, 112
      %v1849 = vpop.permute.xlu0 %1848
      %1850 = vrot.lane.b32.xlu0 %v1787, 112
      %v1851 = vpop.permute.xlu0 %1850
      %1852 = vrot.lane.b32.xlu0 %v1814, 112
      %v1853 = vpop.permute.xlu0 %1852
      %1854 = vrot.lane.b32.xlu0 %v1815, 112
      %v1855 = vpop.permute.xlu0 %1854
      %v1856 = vsel %vm670, %v1817, %v1819
      %v1857 = vsel %vm670, %v1819, %v1821
      %v1858 = vsel %vm670, %v1821, %v1823
      %v1859 = vsel %vm670, %v1823, %v1825
      %v1860 = vsel %vm670, %v1825, %v1827
      %v1861 = vsel %vm670, %v1827, %v1829
      %v1862 = vsel %vm670, %v1829, %v1831
      %v1863 = vsel %vm670, %v1831, %v1833
      %v1864 = vsel %vm670, %v1833, %v1835
      %v1865 = vsel %vm670, %v1835, %v1837
      %v1866 = vsel %vm670, %v1837, %v1839
      %v1867 = vsel %vm670, %v1839, %v1841
      %v1868 = vsel %vm670, %v1841, %v1843
      %v1869 = vsel %vm670, %v1843, %v1845
      %v1870 = vsel %vm670, %v1845, %v1847
      %v1871 = vsel %vm670, %v1847, %v1849
      %v1872 = vsel %vm670, %v1849, %v1851
      %v1873 = vsel %vm670, %v1851, %v1853
      %v1874 = vsel %vm670, %v1853, %v1855
      %1894 = vrot.lane.b32.xlu0 %v1770, 96
      %v1895 = vpop.permute.xlu0 %1894
      %1896 = vrot.lane.b32.xlu0 %v1771, 96
      %v1897 = vpop.permute.xlu0 %1896
      %1898 = vrot.lane.b32.xlu0 %v1772, 96
      %v1899 = vpop.permute.xlu0 %1898
      %1900 = vrot.lane.b32.xlu0 %v1773, 96
      %v1901 = vpop.permute.xlu0 %1900
      %1902 = vrot.lane.b32.xlu0 %v1774, 96
      %v1903 = vpop.permute.xlu0 %1902
      %1904 = vrot.lane.b32.xlu0 %v1775, 96
      %v1905 = vpop.permute.xlu0 %1904
      %1906 = vrot.lane.b32.xlu0 %v1776, 96
      %v1907 = vpop.permute.xlu0 %1906
      %1908 = vrot.lane.b32.xlu0 %v1777, 96
      %v1909 = vpop.permute.xlu0 %1908
      %1910 = vrot.lane.b32.xlu0 %v1778, 96
      %v1911 = vpop.permute.xlu0 %1910
      %1912 = vrot.lane.b32.xlu0 %v1779, 96
      %v1913 = vpop.permute.xlu0 %1912
      %1914 = vrot.lane.b32.xlu0 %v1780, 96
      %v1915 = vpop.permute.xlu0 %1914
      %1916 = vrot.lane.b32.xlu0 %v1781, 96
      %v1917 = vpop.permute.xlu0 %1916
      %1918 = vrot.lane.b32.xlu0 %v1782, 96
      %v1919 = vpop.permute.xlu0 %1918
      %1920 = vrot.lane.b32.xlu0 %v1783, 96
      %v1921 = vpop.permute.xlu0 %1920
      %1922 = vrot.lane.b32.xlu0 %v1784, 96
      %v1923 = vpop.permute.xlu0 %1922
      %1924 = vrot.lane.b32.xlu0 %v1785, 96
      %v1925 = vpop.permute.xlu0 %1924
      %1926 = vrot.lane.b32.xlu0 %v1786, 96
      %v1927 = vpop.permute.xlu0 %1926
      %1928 = vrot.lane.b32.xlu0 %v1787, 96
      %v1929 = vpop.permute.xlu0 %1928
      %1930 = vrot.lane.b32.xlu0 %v1814, 96
      %v1931 = vpop.permute.xlu0 %1930
      %1932 = vrot.lane.b32.xlu0 %v1815, 96
      %v1933 = vpop.permute.xlu0 %1932
      %v1934 = vsel %vm749, %v1895, %v1897
      %v1935 = vsel %vm749, %v1897, %v1899
      %v1936 = vsel %vm749, %v1899, %v1901
      %v1937 = vsel %vm749, %v1901, %v1903
      %v1938 = vsel %vm749, %v1903, %v1905
      %v1939 = vsel %vm749, %v1905, %v1907
      %v1940 = vsel %vm749, %v1907, %v1909
      %v1941 = vsel %vm749, %v1909, %v1911
      %v1942 = vsel %vm749, %v1911, %v1913
      %v1943 = vsel %vm749, %v1913, %v1915
      %v1944 = vsel %vm749, %v1915, %v1917
      %v1945 = vsel %vm749, %v1917, %v1919
      %v1946 = vsel %vm749, %v1919, %v1921
      %v1947 = vsel %vm749, %v1921, %v1923
      %v1948 = vsel %vm749, %v1923, %v1925
      %v1949 = vsel %vm749, %v1925, %v1927
      %v1950 = vsel %vm749, %v1927, %v1929
      %v1951 = vsel %vm749, %v1929, %v1931
      %v1952 = vsel %vm749, %v1931, %v1933
      %1972 = vrot.lane.b32.xlu0 %v1770, 80
      %v1973 = vpop.permute.xlu0 %1972
      %1974 = vrot.lane.b32.xlu0 %v1771, 80
      %v1975 = vpop.permute.xlu0 %1974
      %1976 = vrot.lane.b32.xlu0 %v1772, 80
      %v1977 = vpop.permute.xlu0 %1976
      %1978 = vrot.lane.b32.xlu0 %v1773, 80
      %v1979 = vpop.permute.xlu0 %1978
      %1980 = vrot.lane.b32.xlu0 %v1774, 80
      %v1981 = vpop.permute.xlu0 %1980
      %1982 = vrot.lane.b32.xlu0 %v1775, 80
      %v1983 = vpop.permute.xlu0 %1982
      %1984 = vrot.lane.b32.xlu0 %v1776, 80
      %v1985 = vpop.permute.xlu0 %1984
      %1986 = vrot.lane.b32.xlu0 %v1777, 80
      %v1987 = vpop.permute.xlu0 %1986
      %1988 = vrot.lane.b32.xlu0 %v1778, 80
      %v1989 = vpop.permute.xlu0 %1988
      %1990 = vrot.lane.b32.xlu0 %v1779, 80
      %v1991 = vpop.permute.xlu0 %1990
      %1992 = vrot.lane.b32.xlu0 %v1780, 80
      %v1993 = vpop.permute.xlu0 %1992
      %1994 = vrot.lane.b32.xlu0 %v1781, 80
      %v1995 = vpop.permute.xlu0 %1994
      %1996 = vrot.lane.b32.xlu0 %v1782, 80
      %v1997 = vpop.permute.xlu0 %1996
      %1998 = vrot.lane.b32.xlu0 %v1783, 80
      %v1999 = vpop.permute.xlu0 %1998
      %2000 = vrot.lane.b32.xlu0 %v1784, 80
      %v2001 = vpop.permute.xlu0 %2000
      %2002 = vrot.lane.b32.xlu0 %v1785, 80
      %v2003 = vpop.permute.xlu0 %2002
      %2004 = vrot.lane.b32.xlu0 %v1786, 80
      %v2005 = vpop.permute.xlu0 %2004
      %2006 = vrot.lane.b32.xlu0 %v1787, 80
      %v2007 = vpop.permute.xlu0 %2006
      %2008 = vrot.lane.b32.xlu0 %v1814, 80
      %v2009 = vpop.permute.xlu0 %2008
      %2010 = vrot.lane.b32.xlu0 %v1815, 80
      %v2011 = vpop.permute.xlu0 %2010
      %v2012 = vsel %vm828, %v1973, %v1975
      %v2013 = vsel %vm828, %v1975, %v1977
      %v2014 = vsel %vm828, %v1977, %v1979
      %v2015 = vsel %vm828, %v1979, %v1981
      %v2016 = vsel %vm828, %v1981, %v1983
      %v2017 = vsel %vm828, %v1983, %v1985
      %v2018 = vsel %vm828, %v1985, %v1987
      %v2019 = vsel %vm828, %v1987, %v1989
      %v2020 = vsel %vm828, %v1989, %v1991
      %v2021 = vsel %vm828, %v1991, %v1993
      %v2022 = vsel %vm828, %v1993, %v1995
      %v2023 = vsel %vm828, %v1995, %v1997
      %v2024 = vsel %vm828, %v1997, %v1999
      %v2025 = vsel %vm828, %v1999, %v2001
      %v2026 = vsel %vm828, %v2001, %v2003
      %v2027 = vsel %vm828, %v2003, %v2005
      %v2028 = vsel %vm828, %v2005, %v2007
      %v2029 = vsel %vm828, %v2007, %v2009
      %v2030 = vsel %vm828, %v2009, %v2011
      %2050 = vrot.lane.b32.xlu0 %v1770, 64
      %v2051 = vpop.permute.xlu0 %2050
      %2052 = vrot.lane.b32.xlu0 %v1771, 64
      %v2053 = vpop.permute.xlu0 %2052
      %2054 = vrot.lane.b32.xlu0 %v1772, 64
      %v2055 = vpop.permute.xlu0 %2054
      %2056 = vrot.lane.b32.xlu0 %v1773, 64
      %v2057 = vpop.permute.xlu0 %2056
      %2058 = vrot.lane.b32.xlu0 %v1774, 64
      %v2059 = vpop.permute.xlu0 %2058
      %2060 = vrot.lane.b32.xlu0 %v1775, 64
      %v2061 = vpop.permute.xlu0 %2060
      %2062 = vrot.lane.b32.xlu0 %v1776, 64
      %v2063 = vpop.permute.xlu0 %2062
      %2064 = vrot.lane.b32.xlu0 %v1777, 64
      %v2065 = vpop.permute.xlu0 %2064
      %2066 = vrot.lane.b32.xlu0 %v1778, 64
      %v2067 = vpop.permute.xlu0 %2066
      %2068 = vrot.lane.b32.xlu0 %v1779, 64
      %v2069 = vpop.permute.xlu0 %2068
      %2070 = vrot.lane.b32.xlu0 %v1780, 64
      %v2071 = vpop.permute.xlu0 %2070
      %2072 = vrot.lane.b32.xlu0 %v1781, 64
      %v2073 = vpop.permute.xlu0 %2072
      %2074 = vrot.lane.b32.xlu0 %v1782, 64
      %v2075 = vpop.permute.xlu0 %2074
      %2076 = vrot.lane.b32.xlu0 %v1783, 64
      %v2077 = vpop.permute.xlu0 %2076
      %2078 = vrot.lane.b32.xlu0 %v1784, 64
      %v2079 = vpop.permute.xlu0 %2078
      %2080 = vrot.lane.b32.xlu0 %v1785, 64
      %v2081 = vpop.permute.xlu0 %2080
      %2082 = vrot.lane.b32.xlu0 %v1786, 64
      %v2083 = vpop.permute.xlu0 %2082
      %2084 = vrot.lane.b32.xlu0 %v1787, 64
      %v2085 = vpop.permute.xlu0 %2084
      %2086 = vrot.lane.b32.xlu0 %v1814, 64
      %v2087 = vpop.permute.xlu0 %2086
      %2088 = vrot.lane.b32.xlu0 %v1815, 64
      %v2089 = vpop.permute.xlu0 %2088
      %v2090 = vsel %vm907, %v2051, %v2053
      %v2091 = vsel %vm907, %v2053, %v2055
      %v2092 = vsel %vm907, %v2055, %v2057
      %v2093 = vsel %vm907, %v2057, %v2059
      %v2094 = vsel %vm907, %v2059, %v2061
      %v2095 = vsel %vm907, %v2061, %v2063
      %v2096 = vsel %vm907, %v2063, %v2065
      %v2097 = vsel %vm907, %v2065, %v2067
      %v2098 = vsel %vm907, %v2067, %v2069
      %v2099 = vsel %vm907, %v2069, %v2071
      %v2100 = vsel %vm907, %v2071, %v2073
      %v2101 = vsel %vm907, %v2073, %v2075
      %v2102 = vsel %vm907, %v2075, %v2077
      %v2103 = vsel %vm907, %v2077, %v2079
      %v2104 = vsel %vm907, %v2079, %v2081
      %v2105 = vsel %vm907, %v2081, %v2083
      %v2106 = vsel %vm907, %v2083, %v2085
      %v2107 = vsel %vm907, %v2085, %v2087
      %v2108 = vsel %vm907, %v2087, %v2089
      %v2148 = vunpack.c.l.b16 %v1690
      %v2149 = vunpack.c.h.b16 %v1690
      %v2150 = vunpack.c.l.b16 %v1691
      %v2151 = vunpack.c.h.b16 %v1691
      %v2152 = vunpack.c.l.b16 %v1692
      %v2153 = vunpack.c.h.b16 %v1692
      %v2154 = vunpack.c.l.b16 %v1693
      %v2155 = vunpack.c.h.b16 %v1693
      %v2156 = vunpack.c.l.b16 %v1694
      %v2157 = vunpack.c.h.b16 %v1694
      %v2158 = vunpack.c.l.b16 %v1695
      %v2159 = vunpack.c.h.b16 %v1695
      %v2160 = vunpack.c.l.b16 %v1696
      %v2161 = vunpack.c.h.b16 %v1696
      %v2162 = vunpack.c.l.b16 %v1697
      %v2163 = vunpack.c.h.b16 %v1697
      %v2164 = vunpack.c.l.b16 %v1698
      %v2165 = vunpack.c.h.b16 %v1698
      %v2166 = vunpack.c.l.b16 %v1699
      %v2167 = vunpack.c.l.b16 %v1700
      %v2168 = vunpack.c.h.b16 %v1700
      %v2169 = vunpack.c.l.b16 %v1701
      %v2170 = vunpack.c.h.b16 %v1701
      %v2171 = vunpack.c.l.b16 %v1702
      %v2172 = vunpack.c.h.b16 %v1702
      %v2173 = vunpack.c.l.b16 %v1703
      %v2174 = vunpack.c.h.b16 %v1703
      %v2175 = vunpack.c.l.b16 %v1704
      %v2176 = vunpack.c.h.b16 %v1704
      %v2177 = vunpack.c.l.b16 %v1705
      %v2178 = vunpack.c.h.b16 %v1705
      %v2179 = vunpack.c.l.b16 %v1706
      %v2180 = vunpack.c.h.b16 %v1706
      %v2181 = vunpack.c.l.b16 %v1707
      %v2182 = vunpack.c.h.b16 %v1707
      %v2183 = vunpack.c.l.b16 %v1708
      %v2184 = vunpack.c.h.b16 %v1708
      %v2185 = vunpack.c.l.b16 %v1709
      %v2186 = vpack.c.b16 %v2167, %v2148
      %v2187 = vpack.c.b16 %v2168, %v2149
      %v2188 = vpack.c.b16 %v2169, %v2150
      %v2189 = vpack.c.b16 %v2170, %v2151
      %v2190 = vpack.c.b16 %v2171, %v2152
      %v2191 = vpack.c.b16 %v2172, %v2153
      %v2192 = vpack.c.b16 %v2173, %v2154
      %v2193 = vpack.c.b16 %v2174, %v2155
      %v2194 = vpack.c.b16 %v2175, %v2156
      %v2195 = vpack.c.b16 %v2176, %v2157
      %v2196 = vpack.c.b16 %v2177, %v2158
      %v2197 = vpack.c.b16 %v2178, %v2159
      %v2198 = vpack.c.b16 %v2179, %v2160
      %v2199 = vpack.c.b16 %v2180, %v2161
      %v2200 = vpack.c.b16 %v2181, %v2162
      %v2201 = vpack.c.b16 %v2182, %v2163
      %v2202 = vpack.c.b16 %v2183, %v2164
      %v2203 = vpack.c.b16 %v2184, %v2165
      %v2204 = vpack.c.b16 %v2185, %v2166
      %v2226 = vunpack.c.l.b16 %v1710
      %v2227 = vunpack.c.h.b16 %v1710
      %v2228 = vunpack.c.l.b16 %v1711
      %v2229 = vunpack.c.h.b16 %v1711
      %v2230 = vpack.c.b16 %v2228, %v2226
      %v2231 = vpack.c.b16 %v2229, %v2227
      %2232 = vrot.lane.b32.xlu0 %v2186, 112
      %v2233 = vpop.permute.xlu0 %2232
      %2234 = vrot.lane.b32.xlu0 %v2187, 112
      %v2235 = vpop.permute.xlu0 %2234
      %2236 = vrot.lane.b32.xlu0 %v2188, 112
      %v2237 = vpop.permute.xlu0 %2236
      %2238 = vrot.lane.b32.xlu0 %v2189, 112
      %v2239 = vpop.permute.xlu0 %2238
      %2240 = vrot.lane.b32.xlu0 %v2190, 112
      %v2241 = vpop.permute.xlu0 %2240
      %2242 = vrot.lane.b32.xlu0 %v2191, 112
      %v2243 = vpop.permute.xlu0 %2242
      %2244 = vrot.lane.b32.xlu0 %v2192, 112
      %v2245 = vpop.permute.xlu0 %2244
      %2246 = vrot.lane.b32.xlu0 %v2193, 112
      %v2247 = vpop.permute.xlu0 %2246
      %2248 = vrot.lane.b32.xlu0 %v2194, 112
      %v2249 = vpop.permute.xlu0 %2248
      %2250 = vrot.lane.b32.xlu0 %v2195, 112
      %v2251 = vpop.permute.xlu0 %2250
      %2252 = vrot.lane.b32.xlu0 %v2196, 112
      %v2253 = vpop.permute.xlu0 %2252
      %2254 = vrot.lane.b32.xlu0 %v2197, 112
      %v2255 = vpop.permute.xlu0 %2254
      %2256 = vrot.lane.b32.xlu0 %v2198, 112
      %v2257 = vpop.permute.xlu0 %2256
      %2258 = vrot.lane.b32.xlu0 %v2199, 112
      %v2259 = vpop.permute.xlu0 %2258
      %2260 = vrot.lane.b32.xlu0 %v2200, 112
      %v2261 = vpop.permute.xlu0 %2260
      %2262 = vrot.lane.b32.xlu0 %v2201, 112
      %v2263 = vpop.permute.xlu0 %2262
      %2264 = vrot.lane.b32.xlu0 %v2202, 112
      %v2265 = vpop.permute.xlu0 %2264
      %2266 = vrot.lane.b32.xlu0 %v2203, 112
      %v2267 = vpop.permute.xlu0 %2266
      %2268 = vrot.lane.b32.xlu0 %v2230, 112
      %v2269 = vpop.permute.xlu0 %2268
      %2270 = vrot.lane.b32.xlu0 %v2231, 112
      %v2271 = vpop.permute.xlu0 %2270
      %v2272 = vsel %vm670, %v2233, %v2235
      %v2273 = vsel %vm670, %v2235, %v2237
      %v2274 = vsel %vm670, %v2237, %v2239
      %v2275 = vsel %vm670, %v2239, %v2241
      %v2276 = vsel %vm670, %v2241, %v2243
      %v2277 = vsel %vm670, %v2243, %v2245
      %v2278 = vsel %vm670, %v2245, %v2247
      %v2279 = vsel %vm670, %v2247, %v2249
      %v2280 = vsel %vm670, %v2249, %v2251
      %v2281 = vsel %vm670, %v2251, %v2253
      %v2282 = vsel %vm670, %v2253, %v2255
      %v2283 = vsel %vm670, %v2255, %v2257
      %v2284 = vsel %vm670, %v2257, %v2259
      %v2285 = vsel %vm670, %v2259, %v2261
      %v2286 = vsel %vm670, %v2261, %v2263
      %v2287 = vsel %vm670, %v2263, %v2265
      %v2288 = vsel %vm670, %v2265, %v2267
      %v2289 = vsel %vm670, %v2267, %v2269
      %v2290 = vsel %vm670, %v2269, %v2271
      %2310 = vrot.lane.b32.xlu0 %v2186, 96
      %v2311 = vpop.permute.xlu0 %2310
      %2312 = vrot.lane.b32.xlu0 %v2187, 96
      %v2313 = vpop.permute.xlu0 %2312
      %2314 = vrot.lane.b32.xlu0 %v2188, 96
      %v2315 = vpop.permute.xlu0 %2314
      %2316 = vrot.lane.b32.xlu0 %v2189, 96
      %v2317 = vpop.permute.xlu0 %2316
      %2318 = vrot.lane.b32.xlu0 %v2190, 96
      %v2319 = vpop.permute.xlu0 %2318
      %2320 = vrot.lane.b32.xlu0 %v2191, 96
      %v2321 = vpop.permute.xlu0 %2320
      %2322 = vrot.lane.b32.xlu0 %v2192, 96
      %v2323 = vpop.permute.xlu0 %2322
      %2324 = vrot.lane.b32.xlu0 %v2193, 96
      %v2325 = vpop.permute.xlu0 %2324
      %2326 = vrot.lane.b32.xlu0 %v2194, 96
      %v2327 = vpop.permute.xlu0 %2326
      %2328 = vrot.lane.b32.xlu0 %v2195, 96
      %v2329 = vpop.permute.xlu0 %2328
      %2330 = vrot.lane.b32.xlu0 %v2196, 96
      %v2331 = vpop.permute.xlu0 %2330
      %2332 = vrot.lane.b32.xlu0 %v2197, 96
      %v2333 = vpop.permute.xlu0 %2332
      %2334 = vrot.lane.b32.xlu0 %v2198, 96
      %v2335 = vpop.permute.xlu0 %2334
      %2336 = vrot.lane.b32.xlu0 %v2199, 96
      %v2337 = vpop.permute.xlu0 %2336
      %2338 = vrot.lane.b32.xlu0 %v2200, 96
      %v2339 = vpop.permute.xlu0 %2338
      %2340 = vrot.lane.b32.xlu0 %v2201, 96
      %v2341 = vpop.permute.xlu0 %2340
      %2342 = vrot.lane.b32.xlu0 %v2202, 96
      %v2343 = vpop.permute.xlu0 %2342
      %2344 = vrot.lane.b32.xlu0 %v2203, 96
      %v2345 = vpop.permute.xlu0 %2344
      %2346 = vrot.lane.b32.xlu0 %v2230, 96
      %v2347 = vpop.permute.xlu0 %2346
      %2348 = vrot.lane.b32.xlu0 %v2231, 96
      %v2349 = vpop.permute.xlu0 %2348
      %v2350 = vsel %vm749, %v2311, %v2313
      %v2351 = vsel %vm749, %v2313, %v2315
      %v2352 = vsel %vm749, %v2315, %v2317
      %v2353 = vsel %vm749, %v2317, %v2319
      %v2354 = vsel %vm749, %v2319, %v2321
      %v2355 = vsel %vm749, %v2321, %v2323
      %v2356 = vsel %vm749, %v2323, %v2325
      %v2357 = vsel %vm749, %v2325, %v2327
      %v2358 = vsel %vm749, %v2327, %v2329
      %v2359 = vsel %vm749, %v2329, %v2331
      %v2360 = vsel %vm749, %v2331, %v2333
      %v2361 = vsel %vm749, %v2333, %v2335
      %v2362 = vsel %vm749, %v2335, %v2337
      %v2363 = vsel %vm749, %v2337, %v2339
      %v2364 = vsel %vm749, %v2339, %v2341
      %v2365 = vsel %vm749, %v2341, %v2343
      %v2366 = vsel %vm749, %v2343, %v2345
      %v2367 = vsel %vm749, %v2345, %v2347
      %v2368 = vsel %vm749, %v2347, %v2349
      %2388 = vrot.lane.b32.xlu0 %v2186, 80
      %v2389 = vpop.permute.xlu0 %2388
      %2390 = vrot.lane.b32.xlu0 %v2187, 80
      %v2391 = vpop.permute.xlu0 %2390
      %2392 = vrot.lane.b32.xlu0 %v2188, 80
      %v2393 = vpop.permute.xlu0 %2392
      %2394 = vrot.lane.b32.xlu0 %v2189, 80
      %v2395 = vpop.permute.xlu0 %2394
      %2396 = vrot.lane.b32.xlu0 %v2190, 80
      %v2397 = vpop.permute.xlu0 %2396
      %2398 = vrot.lane.b32.xlu0 %v2191, 80
      %v2399 = vpop.permute.xlu0 %2398
      %2400 = vrot.lane.b32.xlu0 %v2192, 80
      %v2401 = vpop.permute.xlu0 %2400
      %2402 = vrot.lane.b32.xlu0 %v2193, 80
      %v2403 = vpop.permute.xlu0 %2402
      %2404 = vrot.lane.b32.xlu0 %v2194, 80
      %v2405 = vpop.permute.xlu0 %2404
      %2406 = vrot.lane.b32.xlu0 %v2195, 80
      %v2407 = vpop.permute.xlu0 %2406
      %2408 = vrot.lane.b32.xlu0 %v2196, 80
      %v2409 = vpop.permute.xlu0 %2408
      %2410 = vrot.lane.b32.xlu0 %v2197, 80
      %v2411 = vpop.permute.xlu0 %2410
      %2412 = vrot.lane.b32.xlu0 %v2198, 80
      %v2413 = vpop.permute.xlu0 %2412
      %2414 = vrot.lane.b32.xlu0 %v2199, 80
      %v2415 = vpop.permute.xlu0 %2414
      %2416 = vrot.lane.b32.xlu0 %v2200, 80
      %v2417 = vpop.permute.xlu0 %2416
      %2418 = vrot.lane.b32.xlu0 %v2201, 80
      %v2419 = vpop.permute.xlu0 %2418
      %2420 = vrot.lane.b32.xlu0 %v2202, 80
      %v2421 = vpop.permute.xlu0 %2420
      %2422 = vrot.lane.b32.xlu0 %v2203, 80
      %v2423 = vpop.permute.xlu0 %2422
      %2424 = vrot.lane.b32.xlu0 %v2230, 80
      %v2425 = vpop.permute.xlu0 %2424
      %2426 = vrot.lane.b32.xlu0 %v2231, 80
      %v2427 = vpop.permute.xlu0 %2426
      %v2428 = vsel %vm828, %v2389, %v2391
      %v2429 = vsel %vm828, %v2391, %v2393
      %v2430 = vsel %vm828, %v2393, %v2395
      %v2431 = vsel %vm828, %v2395, %v2397
      %v2432 = vsel %vm828, %v2397, %v2399
      %v2433 = vsel %vm828, %v2399, %v2401
      %v2434 = vsel %vm828, %v2401, %v2403
      %v2435 = vsel %vm828, %v2403, %v2405
      %v2436 = vsel %vm828, %v2405, %v2407
      %v2437 = vsel %vm828, %v2407, %v2409
      %v2438 = vsel %vm828, %v2409, %v2411
      %v2439 = vsel %vm828, %v2411, %v2413
      %v2440 = vsel %vm828, %v2413, %v2415
      %v2441 = vsel %vm828, %v2415, %v2417
      %v2442 = vsel %vm828, %v2417, %v2419
      %v2443 = vsel %vm828, %v2419, %v2421
      %v2444 = vsel %vm828, %v2421, %v2423
      %v2445 = vsel %vm828, %v2423, %v2425
      %v2446 = vsel %vm828, %v2425, %v2427
      %2466 = vrot.lane.b32.xlu0 %v2186, 64
      %v2467 = vpop.permute.xlu0 %2466
      %2468 = vrot.lane.b32.xlu0 %v2187, 64
      %v2469 = vpop.permute.xlu0 %2468
      %2470 = vrot.lane.b32.xlu0 %v2188, 64
      %v2471 = vpop.permute.xlu0 %2470
      %2472 = vrot.lane.b32.xlu0 %v2189, 64
      %v2473 = vpop.permute.xlu0 %2472
      %2474 = vrot.lane.b32.xlu0 %v2190, 64
      %v2475 = vpop.permute.xlu0 %2474
      %2476 = vrot.lane.b32.xlu0 %v2191, 64
      %v2477 = vpop.permute.xlu0 %2476
      %2478 = vrot.lane.b32.xlu0 %v2192, 64
      %v2479 = vpop.permute.xlu0 %2478
      %2480 = vrot.lane.b32.xlu0 %v2193, 64
      %v2481 = vpop.permute.xlu0 %2480
      %2482 = vrot.lane.b32.xlu0 %v2194, 64
      %v2483 = vpop.permute.xlu0 %2482
      %2484 = vrot.lane.b32.xlu0 %v2195, 64
      %v2485 = vpop.permute.xlu0 %2484
      %2486 = vrot.lane.b32.xlu0 %v2196, 64
      %v2487 = vpop.permute.xlu0 %2486
      %2488 = vrot.lane.b32.xlu0 %v2197, 64
      %v2489 = vpop.permute.xlu0 %2488
      %2490 = vrot.lane.b32.xlu0 %v2198, 64
      %v2491 = vpop.permute.xlu0 %2490
      %2492 = vrot.lane.b32.xlu0 %v2199, 64
      %v2493 = vpop.permute.xlu0 %2492
      %2494 = vrot.lane.b32.xlu0 %v2200, 64
      %v2495 = vpop.permute.xlu0 %2494
      %2496 = vrot.lane.b32.xlu0 %v2201, 64
      %v2497 = vpop.permute.xlu0 %2496
      %2498 = vrot.lane.b32.xlu0 %v2202, 64
      %v2499 = vpop.permute.xlu0 %2498
      %2500 = vrot.lane.b32.xlu0 %v2203, 64
      %v2501 = vpop.permute.xlu0 %2500
      %2502 = vrot.lane.b32.xlu0 %v2230, 64
      %v2503 = vpop.permute.xlu0 %2502
      %2504 = vrot.lane.b32.xlu0 %v2231, 64
      %v2505 = vpop.permute.xlu0 %2504
      %v2506 = vsel %vm907, %v2467, %v2469
      %v2507 = vsel %vm907, %v2469, %v2471
      %v2508 = vsel %vm907, %v2471, %v2473
      %v2509 = vsel %vm907, %v2473, %v2475
      %v2510 = vsel %vm907, %v2475, %v2477
      %v2511 = vsel %vm907, %v2477, %v2479
      %v2512 = vsel %vm907, %v2479, %v2481
      %v2513 = vsel %vm907, %v2481, %v2483
      %v2514 = vsel %vm907, %v2483, %v2485
      %v2515 = vsel %vm907, %v2485, %v2487
      %v2516 = vsel %vm907, %v2487, %v2489
      %v2517 = vsel %vm907, %v2489, %v2491
      %v2518 = vsel %vm907, %v2491, %v2493
      %v2519 = vsel %vm907, %v2493, %v2495
      %v2520 = vsel %vm907, %v2495, %v2497
      %v2521 = vsel %vm907, %v2497, %v2499
      %v2522 = vsel %vm907, %v2499, %v2501
      %v2523 = vsel %vm907, %v2501, %v2503
      %v2524 = vsel %vm907, %v2503, %v2505
      %v2848 = vunpack.c.l.b16 %v1362
      %v2849 = vunpack.c.l.b16 %v1363
      %v2850 = vunpack.c.l.b16 %v1364
      %v2851 = vunpack.c.l.b16 %v1365
      %v2852 = vunpack.c.l.b16 %v1366
      %v2853 = vunpack.c.l.b16 %v1367
      %v2854 = vunpack.c.l.b16 %v1368
      %v2855 = vunpack.c.l.b16 %v1369
      %v2856 = vunpack.c.l.b16 %v1370
      %v2857 = vunpack.c.l.b16 %v1371
      %v2858 = vunpack.c.l.b16 %v1372
      %v2859 = vunpack.c.l.b16 %v1373
      %v2860 = vunpack.c.l.b16 %v1374
      %v2861 = vunpack.c.l.b16 %v1375
      %v2862 = vunpack.c.l.b16 %v1376
      %v2863 = vunpack.c.l.b16 %v1377
      %v2864 = vunpack.c.l.b16 %v1378
      %v2865 = vunpack.c.l.b16 %v1379
      %v2866 = vunpack.c.l.b16 %v1380
      %v2867 = vunpack.c.l.b16 %v1381
      %v2868 = vunpack.c.l.b16 %v1382
      %v2869 = vunpack.c.l.b16 %v1383
      %v2870 = vunpack.c.l.b16 %v1384
      %v2871 = vunpack.c.l.b16 %v1385
      %v2872 = vunpack.c.l.b16 %v1386
      %v2873 = vunpack.c.l.b16 %v1387
      %v2874 = vunpack.c.l.b16 %v1388
      %v2875 = vunpack.c.l.b16 %v1389
      %v2876 = vunpack.c.l.b16 %v1390
      %v2877 = vunpack.c.l.b16 %v1391
      %v2878 = vunpack.c.l.b16 %v1392
      %v2879 = vunpack.c.l.b16 %v1393
      %v2880 = vunpack.c.l.b16 %v1394
      %v2881 = vunpack.c.l.b16 %v1395
      %v2882 = vunpack.c.l.b16 %v1396
      %v2883 = vunpack.c.l.b16 %v1397
      %v2884 = vunpack.c.l.b16 %v1398
      %v2885 = vunpack.c.l.b16 %v1399
      %v2886 = vunpack.c.l.b16 %v1400
      %v2887 = vunpack.c.l.b16 %v1401
      %v2888 = vunpack.c.l.b16 %v1402
      %v2889 = vunpack.c.l.b16 %v1403
      %v2890 = vunpack.c.l.b16 %v1404
      %v2891 = vunpack.c.l.b16 %v1405
      %v2892 = vunpack.c.l.b16 %v1406
      %v2893 = vunpack.c.l.b16 %v1407
      %v2894 = vunpack.c.l.b16 %v1408
      %v2895 = vunpack.c.l.b16 %v1409
      %v2896 = vunpack.c.l.b16 %v1410
      %v2897 = vunpack.c.l.b16 %v1411
      %v2898 = vunpack.c.l.b16 %v1412
      %v2899 = vunpack.c.l.b16 %v1413
      %v2900 = vunpack.c.l.b16 %v1414
      %v2901 = vunpack.c.l.b16 %v1415
      %v2902 = vunpack.c.l.b16 %v1416
      %v2903 = vunpack.c.l.b16 %v1417
      %v2904 = vunpack.c.l.b16 %v1418
      %v2905 = vunpack.c.l.b16 %v1419
      %v2906 = vunpack.c.l.b16 %v1420
      %v2907 = vunpack.c.l.b16 %v1421
      %v2908 = vunpack.c.l.b16 %v1422
      %v2909 = vunpack.c.l.b16 %v1423
      %v2910 = vunpack.c.l.b16 %v1424
      %v2911 = vunpack.c.l.b16 %v1425
      %v2912 = vunpack.c.l.b16 %v1426
      %v2913 = vunpack.c.l.b16 %v1427
      %v2914 = vunpack.c.l.b16 %v1428
      %v2915 = vunpack.c.l.b16 %v1429
      %v2916 = vunpack.c.l.b16 %v1430
      %v2917 = vunpack.c.l.b16 %v1431
      %v2918 = vunpack.c.l.b16 %v1432
      %v2919 = vunpack.c.l.b16 %v1433
      %v2920 = vunpack.c.l.b16 %v1434
      %v2921 = vunpack.c.l.b16 %v1435
      %v2922 = vunpack.c.l.b16 %v1436
      %v2923 = vunpack.c.l.b16 %v1437
      %v2924 = vunpack.c.l.b16 %v1438
      %v2925 = vunpack.c.l.b16 %v1439
      %v2926 = vunpack.c.l.b16 %v1440
      %v2927 = vunpack.c.l.b16 %v1441
      %v2928 = vunpack.c.l.b16 %v1442
      %v2929 = vunpack.c.l.b16 %v1443
      %v2930 = vunpack.c.l.b16 %v1444
      %v2931 = vunpack.c.l.b16 %v1445
      %v2932 = vunpack.c.l.b16 %v1446
      %v2933 = vunpack.c.l.b16 %v1447
      %v2934 = vunpack.c.l.b16 %v1448
      %v2935 = vunpack.c.l.b16 %v1449
      %v2936 = vunpack.c.l.b16 %v1450
      %v2937 = vunpack.c.l.b16 %v1451
      %v2938 = vunpack.c.l.b16 %v1452
      %v2939 = vunpack.c.l.b16 %v1453
      %v2940 = vunpack.c.l.b16 %v1454
      %v2941 = vunpack.c.l.b16 %v1455
      %v2942 = vunpack.c.l.b16 %v1456
      %v2943 = vunpack.c.l.b16 %v1457
      %v2944 = vunpack.c.l.b16 %v1458
      %v2945 = vunpack.c.l.b16 %v1459
      %v2946 = vunpack.c.l.b16 %v1460
      %v2947 = vunpack.c.l.b16 %v1461
      %v2948 = vunpack.c.l.b16 %v1462
      %v2949 = vunpack.c.l.b16 %v1463
      %v2950 = vunpack.c.l.b16 %v1464
      %v2951 = vunpack.c.l.b16 %v1465
      %v2952 = vunpack.c.l.b16 %v1466
      %v2953 = vunpack.c.l.b16 %v1467
      %v2954 = vunpack.c.l.b16 %v1468
      %v2955 = vunpack.c.l.b16 %v1469
      %v2956 = vunpack.c.l.b16 %v1470
      %v2957 = vunpack.c.l.b16 %v1471
      %v2958 = vunpack.c.l.b16 %v1472
      %v2959 = vunpack.c.l.b16 %v1473
      %v2960 = vunpack.c.l.b16 %v1474
      %v2961 = vunpack.c.l.b16 %v1475
      %v2962 = vunpack.c.l.b16 %v1476
      %v2963 = vunpack.c.l.b16 %v1477
      %v2964 = vunpack.c.l.b16 %v1478
      %v2965 = vunpack.c.l.b16 %v1479
      %v2966 = vunpack.c.l.b16 %v1480
      %v2967 = vunpack.c.l.b16 %v1481
      %v2968 = vunpack.c.l.b16 %v1482
      %v2969 = vunpack.c.l.b16 %v1483
      %v2970 = vunpack.c.l.b16 %v1484
      %v2971 = vunpack.c.l.b16 %v1485
      %v2972 = vunpack.c.l.b16 %v1486
      %v2973 = vunpack.c.l.b16 %v1487
      %v2974 = vunpack.c.l.b16 %v1488
      %v2975 = vunpack.c.l.b16 %v1489
      %v2976 = vunpack.c.l.b16 %v1490
      %v2977 = vunpack.c.l.b16 %v1491
      %v2978 = vunpack.c.l.b16 %v1492
      %v2979 = vunpack.c.l.b16 %v1493
      %v2980 = vunpack.c.l.b16 %v1494
      %v2981 = vunpack.c.l.b16 %v1495
      %v2982 = vunpack.c.l.b16 %v1496
      %v2983 = vunpack.c.l.b16 %v1497
      %v2984 = vunpack.c.l.b16 %v1498
      %v2985 = vunpack.c.l.b16 %v1499
      %v2986 = vunpack.c.l.b16 %v1500
      %v2987 = vunpack.c.l.b16 %v1501
      %v2988 = vunpack.c.l.b16 %v1502
      %v2989 = vunpack.c.l.b16 %v1503
      %v2990 = vunpack.c.l.b16 %v1504
      %v2991 = vunpack.c.l.b16 %v1505
      %v2992 = vunpack.c.l.b16 %v1506
      %v2993 = vunpack.c.l.b16 %v1507
      %v2994 = vunpack.c.l.b16 %v1508
      %v2995 = vunpack.c.l.b16 %v1509
      %v2996 = vunpack.c.l.b16 %v1510
      %v2997 = vunpack.c.l.b16 %v1511
      %v2998 = vunpack.c.l.b16 %v1512
      %v2999 = vunpack.c.l.b16 %v1513
      %v3000 = vunpack.c.l.b16 %v1514
      %v3001 = vunpack.c.l.b16 %v1515
      %v3002 = vunpack.c.l.b16 %v1516
      %v3003 = vunpack.c.l.b16 %v1517
      %v3004 = vunpack.c.l.b16 %v1518
      %v3005 = vunpack.c.l.b16 %v1519
      %v3006 = vunpack.c.l.b16 %v1520
      %v3007 = vunpack.c.l.b16 %v1521
      %v3008 = vunpack.c.l.b16 %v1522
      %v3009 = vunpack.c.l.b16 %v1523
      %v3010 = vunpack.c.l.b16 %v1524
      %v3011 = vunpack.c.l.b16 %v1525
      %v3012 = vunpack.c.l.b16 %v1526
      %v3013 = vunpack.c.l.b16 %v1527
      %v3014 = vunpack.c.l.b16 %v1528
      %v3015 = vunpack.c.l.b16 %v1529
      %v3016 = vunpack.c.l.b16 %v1530
      %v3017 = vunpack.c.l.b16 %v1531
      %v3018 = vunpack.c.l.b16 %v1532
      %v3019 = vunpack.c.l.b16 %v1533
      %v3020 = vunpack.c.l.b16 %v1534
      %v3021 = vunpack.c.l.b16 %v1535
      %v3022 = vunpack.c.l.b16 %v1536
      %v3023 = vunpack.c.l.b16 %v1537
      %v3024 = vunpack.c.l.b16 %v1538
      %v3025 = vunpack.c.l.b16 %v1539
      %v3026 = vunpack.c.l.b16 %v1540
      %v3027 = vunpack.c.l.b16 %v1541
      %v3028 = vunpack.c.l.b16 %v1542
      %v3029 = vunpack.c.l.b16 %v1543
      %v3030 = vunpack.c.l.b16 %v1544
      %v3031 = vunpack.c.l.b16 %v1545
      %v3032 = vunpack.c.l.b16 %v1546
      %v3033 = vunpack.c.l.b16 %v1547
      %v3034 = vunpack.c.l.b16 %v1548
      %v3035 = vunpack.c.l.b16 %v1549
      %v3036 = vunpack.c.l.b16 %v1550
      %v3037 = vunpack.c.l.b16 %v1551
      %v3038 = vunpack.c.l.b16 %v1552
      %v3039 = vunpack.c.l.b16 %v1553
      %v3040 = vunpack.c.l.b16 %v1554
      %v3041 = vunpack.c.l.b16 %v1555
      %v3042 = vunpack.c.l.b16 %v1556
      %v3043 = vunpack.c.l.b16 %v1557
      %v3044 = vunpack.c.l.b16 %v1558
      %v3045 = vunpack.c.l.b16 %v1559
      %v3046 = vunpack.c.l.b16 %v1560
      %v3047 = vunpack.c.l.b16 %v1561
      %v3048 = vunpack.c.l.b16 %v1562
      %v3049 = vunpack.c.l.b16 %v1563
      %v3050 = vunpack.c.l.b16 %v1564
      %v3051 = vunpack.c.l.b16 %v1565
      %v3052 = vunpack.c.l.b16 %v1566
      %v3053 = vunpack.c.l.b16 %v1567
      %v3054 = vunpack.c.l.b16 %v1568
      %v3055 = vunpack.c.l.b16 %v1569
      %v3056 = vunpack.c.l.b16 %v1570
      %v3057 = vunpack.c.l.b16 %v1571
      %v3058 = vunpack.c.l.b16 %v1572
      %v3059 = vunpack.c.l.b16 %v1573
      %v3060 = vunpack.c.l.b16 %v1574
      %v3061 = vunpack.c.l.b16 %v1575
      %v3062 = vunpack.c.l.b16 %v1576
      %v3063 = vunpack.c.l.b16 %v1577
      %v3064 = vunpack.c.l.b16 %v1578
      %v3065 = vunpack.c.l.b16 %v1579
      %v3066 = vunpack.c.l.b16 %v1580
      %v3067 = vunpack.c.l.b16 %v1581
      %v3068 = vunpack.c.l.b16 %v1582
      %v3069 = vunpack.c.l.b16 %v1583
      %v3070 = vunpack.c.l.b16 %v1584
      %v3071 = vunpack.c.l.b16 %v1585
      %v3072 = vunpack.c.l.b16 %v1586
      %v3073 = vunpack.c.l.b16 %v1587
      %v3074 = vunpack.c.l.b16 %v1588
      %v3075 = vunpack.c.l.b16 %v1589
      %v3076 = vunpack.c.l.b16 %v1590
      %v3077 = vunpack.c.l.b16 %v1591
      %v3078 = vunpack.c.l.b16 %v1592
      %v3079 = vunpack.c.l.b16 %v1593
      %v3080 = vunpack.c.l.b16 %v1594
      %v3081 = vunpack.c.l.b16 %v1595
      %v3082 = vunpack.c.l.b16 %v1596
      %v3083 = vunpack.c.l.b16 %v1597
      %v3084 = vunpack.c.l.b16 %v1598
      %v3085 = vunpack.c.l.b16 %v1599
      %v3086 = vunpack.c.l.b16 %v1600
      %v3087 = vunpack.c.l.b16 %v1601
      %v3088 = vunpack.c.l.b16 %v1602
      %v3089 = vunpack.c.l.b16 %v1603
      %v3090 = vunpack.c.l.b16 %v1604
      %v3091 = vunpack.c.l.b16 %v1605
      %v3092 = vunpack.c.l.b16 %v1606
      %v3093 = vunpack.c.l.b16 %v1607
      %v3094 = vunpack.c.l.b16 %v1608
      %v3095 = vunpack.c.l.b16 %v1609
      %v3096 = vunpack.c.l.b16 %v1610
      %v3097 = vunpack.c.l.b16 %v1611
      %v3098 = vunpack.c.l.b16 %v1612
      %v3099 = vunpack.c.l.b16 %v1613
      %v3100 = vunpack.c.l.b16 %v1614
      %v3101 = vunpack.c.l.b16 %v1615
      %v3102 = vunpack.c.l.b16 %v1616
      %v3103 = vunpack.c.l.b16 %v1617
      %v3104 = vunpack.c.l.b16 %v1618
      %v3105 = vunpack.c.l.b16 %v1619
      %v3106 = vunpack.c.l.b16 %v1620
      %v3107 = vunpack.c.l.b16 %v1621
      %v3108 = vunpack.c.l.b16 %v1622
      %v3109 = vunpack.c.l.b16 %v1623
      %v3110 = vunpack.c.l.b16 %v1624
      %v3111 = vunpack.c.l.b16 %v1625
      %v3112 = vunpack.c.l.b16 %v1626
      %v3113 = vunpack.c.l.b16 %v1627
      %v3114 = vunpack.c.l.b16 %v1628
      %v3115 = vunpack.c.l.b16 %v1629
      %v3116 = vunpack.c.l.b16 %v1630
      %v3117 = vunpack.c.l.b16 %v1631
      %v3118 = vunpack.c.l.b16 %v1632
      %v3119 = vunpack.c.l.b16 %v1633
      %v3120 = vunpack.c.l.b16 %v1634
      %v3121 = vunpack.c.l.b16 %v1635
      %v3122 = vunpack.c.l.b16 %v1636
      %v3123 = vunpack.c.l.b16 %v1637
      %v3124 = vunpack.c.l.b16 %v1638
      %v3125 = vunpack.c.l.b16 %v1639
      %v3126 = vunpack.c.l.b16 %v1640
      %v3127 = vunpack.c.l.b16 %v1641
      %v3128 = vunpack.c.l.b16 %v1642
      %v3129 = vunpack.c.l.b16 %v1643
      %v3130 = vunpack.c.l.b16 %v1644
      %v3131 = vunpack.c.l.b16 %v1645
      %v3132 = vunpack.c.l.b16 %v1646
      %v3133 = vunpack.c.l.b16 %v1647
      %v3134 = vunpack.c.l.b16 %v1648
      %v3135 = vunpack.c.l.b16 %v1649
      %v3136 = vunpack.c.l.b16 %v1650
      %v3137 = vunpack.c.l.b16 %v1651
      %v3138 = vunpack.c.l.b16 %v1652
      %v3139 = vunpack.c.l.b16 %v1653
      %v3140 = vunpack.c.l.b16 %v1654
      %v3141 = vunpack.c.l.b16 %v1655
      %v3142 = vunpack.c.l.b16 %v1656
      %v3143 = vunpack.c.l.b16 %v1657
      %v3144 = vunpack.c.l.b16 %v1658
      %v3145 = vunpack.c.l.b16 %v1659
      %v3146 = vunpack.c.l.b16 %v1660
      %v3147 = vunpack.c.l.b16 %v1661
      %v3148 = vunpack.c.l.b16 %v1662
      %v3149 = vunpack.c.l.b16 %v1663
      %v3150 = vunpack.c.l.b16 %v1664
      %v3151 = vunpack.c.l.b16 %v1665
      %v3152 = vpack.c.b16 %v2849, %v2848
      %v3153 = vpack.c.b16 %v2851, %v2850
      %v3154 = vpack.c.b16 %v2853, %v2852
      %v3155 = vpack.c.b16 %v2855, %v2854
      %v3156 = vpack.c.b16 %v2857, %v2856
      %v3157 = vpack.c.b16 %v2859, %v2858
      %v3158 = vpack.c.b16 %v2861, %v2860
      %v3159 = vpack.c.b16 %v2863, %v2862
      %v3160 = vpack.c.b16 %v2865, %v2864
      %v3161 = vpack.c.b16 %v2867, %v2866
      %v3162 = vpack.c.b16 %v2869, %v2868
      %v3163 = vpack.c.b16 %v2871, %v2870
      %v3164 = vpack.c.b16 %v2873, %v2872
      %v3165 = vpack.c.b16 %v2875, %v2874
      %v3166 = vpack.c.b16 %v2877, %v2876
      %v3167 = vpack.c.b16 %v2879, %v2878
      %v3168 = vpack.c.b16 %v2881, %v2880
      %v3169 = vpack.c.b16 %v2883, %v2882
      %v3170 = vpack.c.b16 %v2885, %v2884
      %v3171 = vpack.c.b16 %v2887, %v2886
      %v3172 = vpack.c.b16 %v2889, %v2888
      %v3173 = vpack.c.b16 %v2891, %v2890
      %v3174 = vpack.c.b16 %v2893, %v2892
      %v3175 = vpack.c.b16 %v2895, %v2894
      %v3176 = vpack.c.b16 %v2897, %v2896
      %v3177 = vpack.c.b16 %v2899, %v2898
      %v3178 = vpack.c.b16 %v2901, %v2900
      %v3179 = vpack.c.b16 %v2903, %v2902
      %v3180 = vpack.c.b16 %v2905, %v2904
      %v3181 = vpack.c.b16 %v2907, %v2906
      %v3182 = vpack.c.b16 %v2909, %v2908
      %v3183 = vpack.c.b16 %v2911, %v2910
      %v3184 = vpack.c.b16 %v2913, %v2912
      %v3185 = vpack.c.b16 %v2915, %v2914
      %v3186 = vpack.c.b16 %v2917, %v2916
      %v3187 = vpack.c.b16 %v2919, %v2918
      %v3188 = vpack.c.b16 %v2921, %v2920
      %v3189 = vpack.c.b16 %v2923, %v2922
      %v3190 = vpack.c.b16 %v2925, %v2924
      %v3191 = vpack.c.b16 %v2927, %v2926
      %v3192 = vpack.c.b16 %v2929, %v2928
      %v3193 = vpack.c.b16 %v2931, %v2930
      %v3194 = vpack.c.b16 %v2933, %v2932
      %v3195 = vpack.c.b16 %v2935, %v2934
      %v3196 = vpack.c.b16 %v2937, %v2936
      %v3197 = vpack.c.b16 %v2939, %v2938
      %v3198 = vpack.c.b16 %v2941, %v2940
      %v3199 = vpack.c.b16 %v2943, %v2942
      %v3200 = vpack.c.b16 %v2945, %v2944
      %v3201 = vpack.c.b16 %v2947, %v2946
      %v3202 = vpack.c.b16 %v2949, %v2948
      %v3203 = vpack.c.b16 %v2951, %v2950
      %v3204 = vpack.c.b16 %v2953, %v2952
      %v3205 = vpack.c.b16 %v2955, %v2954
      %v3206 = vpack.c.b16 %v2957, %v2956
      %v3207 = vpack.c.b16 %v2959, %v2958
      %v3208 = vpack.c.b16 %v2961, %v2960
      %v3209 = vpack.c.b16 %v2963, %v2962
      %v3210 = vpack.c.b16 %v2965, %v2964
      %v3211 = vpack.c.b16 %v2967, %v2966
      %v3212 = vpack.c.b16 %v2969, %v2968
      %v3213 = vpack.c.b16 %v2971, %v2970
      %v3214 = vpack.c.b16 %v2973, %v2972
      %v3215 = vpack.c.b16 %v2975, %v2974
      %v3216 = vpack.c.b16 %v2977, %v2976
      %v3217 = vpack.c.b16 %v2979, %v2978
      %v3218 = vpack.c.b16 %v2981, %v2980
      %v3219 = vpack.c.b16 %v2983, %v2982
      %v3220 = vpack.c.b16 %v2985, %v2984
      %v3221 = vpack.c.b16 %v2987, %v2986
      %v3222 = vpack.c.b16 %v2989, %v2988
      %v3223 = vpack.c.b16 %v2991, %v2990
      %v3224 = vpack.c.b16 %v2993, %v2992
      %v3225 = vpack.c.b16 %v2995, %v2994
      %v3226 = vpack.c.b16 %v2997, %v2996
      %v3227 = vpack.c.b16 %v2999, %v2998
      %v3228 = vpack.c.b16 %v3001, %v3000
      %v3229 = vpack.c.b16 %v3003, %v3002
      %v3230 = vpack.c.b16 %v3005, %v3004
      %v3231 = vpack.c.b16 %v3007, %v3006
      %v3232 = vpack.c.b16 %v3009, %v3008
      %v3233 = vpack.c.b16 %v3011, %v3010
      %v3234 = vpack.c.b16 %v3013, %v3012
      %v3235 = vpack.c.b16 %v3015, %v3014
      %v3236 = vpack.c.b16 %v3017, %v3016
      %v3237 = vpack.c.b16 %v3019, %v3018
      %v3238 = vpack.c.b16 %v3021, %v3020
      %v3239 = vpack.c.b16 %v3023, %v3022
      %v3240 = vpack.c.b16 %v3025, %v3024
      %v3241 = vpack.c.b16 %v3027, %v3026
      %v3242 = vpack.c.b16 %v3029, %v3028
      %v3243 = vpack.c.b16 %v3031, %v3030
      %v3244 = vpack.c.b16 %v3033, %v3032
      %v3245 = vpack.c.b16 %v3035, %v3034
      %v3246 = vpack.c.b16 %v3037, %v3036
      %v3247 = vpack.c.b16 %v3039, %v3038
      %v3248 = vpack.c.b16 %v3041, %v3040
      %v3249 = vpack.c.b16 %v3043, %v3042
      %v3250 = vpack.c.b16 %v3045, %v3044
      %v3251 = vpack.c.b16 %v3047, %v3046
      %v3252 = vpack.c.b16 %v3049, %v3048
      %v3253 = vpack.c.b16 %v3051, %v3050
      %v3254 = vpack.c.b16 %v3053, %v3052
      %v3255 = vpack.c.b16 %v3055, %v3054
      %v3256 = vpack.c.b16 %v3057, %v3056
      %v3257 = vpack.c.b16 %v3059, %v3058
      %v3258 = vpack.c.b16 %v3061, %v3060
      %v3259 = vpack.c.b16 %v3063, %v3062
      %v3260 = vpack.c.b16 %v3065, %v3064
      %v3261 = vpack.c.b16 %v3067, %v3066
      %v3262 = vpack.c.b16 %v3069, %v3068
      %v3263 = vpack.c.b16 %v3071, %v3070
      %v3264 = vpack.c.b16 %v3073, %v3072
      %v3265 = vpack.c.b16 %v3075, %v3074
      %v3266 = vpack.c.b16 %v3077, %v3076
      %v3267 = vpack.c.b16 %v3079, %v3078
      %v3268 = vpack.c.b16 %v3081, %v3080
      %v3269 = vpack.c.b16 %v3083, %v3082
      %v3270 = vpack.c.b16 %v3085, %v3084
      %v3271 = vpack.c.b16 %v3087, %v3086
      %v3272 = vpack.c.b16 %v3089, %v3088
      %v3273 = vpack.c.b16 %v3091, %v3090
      %v3274 = vpack.c.b16 %v3093, %v3092
      %v3275 = vpack.c.b16 %v3095, %v3094
      %v3276 = vpack.c.b16 %v3097, %v3096
      %v3277 = vpack.c.b16 %v3099, %v3098
      %v3278 = vpack.c.b16 %v3101, %v3100
      %v3279 = vpack.c.b16 %v3103, %v3102
      %v3280 = vpack.c.b16 %v3105, %v3104
      %v3281 = vpack.c.b16 %v3107, %v3106
      %v3282 = vpack.c.b16 %v3109, %v3108
      %v3283 = vpack.c.b16 %v3111, %v3110
      %v3284 = vpack.c.b16 %v3113, %v3112
      %v3285 = vpack.c.b16 %v3115, %v3114
      %v3286 = vpack.c.b16 %v3117, %v3116
      %v3287 = vpack.c.b16 %v3119, %v3118
      %v3288 = vpack.c.b16 %v3121, %v3120
      %v3289 = vpack.c.b16 %v3123, %v3122
      %v3290 = vpack.c.b16 %v3125, %v3124
      %v3291 = vpack.c.b16 %v3127, %v3126
      %v3292 = vpack.c.b16 %v3129, %v3128
      %v3293 = vpack.c.b16 %v3131, %v3130
      %v3294 = vpack.c.b16 %v3133, %v3132
      %v3295 = vpack.c.b16 %v3135, %v3134
      %v3296 = vpack.c.b16 %v3137, %v3136
      %v3297 = vpack.c.b16 %v3139, %v3138
      %v3298 = vpack.c.b16 %v3141, %v3140
      %v3299 = vpack.c.b16 %v3143, %v3142
      %v3300 = vpack.c.b16 %v3145, %v3144
      %v3301 = vpack.c.b16 %v3147, %v3146
      %v3302 = vpack.c.b16 %v3149, %v3148
      %v3303 = vpack.c.b16 %v3151, %v3150
      %3456 = vmatprep.subr.bf16.mxu0 0
      %3457 = vmatpush1.bf16.msra.mxu0 %v3152
      %3458 = vmatprep.subr.bf16.mxu0 0
      %3459 = vmatpush1.bf16.msra.mxu0 %v3153
      %3460 = vmatprep.subr.bf16.mxu0 0
      %3461 = vmatpush1.bf16.msra.mxu0 %v3154
      %3462 = vmatprep.subr.bf16.mxu0 0
      %3463 = vmatpush1.bf16.msra.mxu0 %v3155
      %3464 = vmatprep.subr.bf16.mxu0 0
      %3465 = vmatpush1.bf16.msra.mxu0 %v3156
      %3466 = vmatprep.subr.bf16.mxu0 0
      %3467 = vmatpush1.bf16.msra.mxu0 %v3157
      %3468 = vmatprep.subr.bf16.mxu0 0
      %3469 = vmatpush1.bf16.msra.mxu0 %v3158
      %3470 = vmatprep.subr.bf16.mxu0 0
      %3471 = vmatpush1.bf16.msra.mxu0 %v3159
      %3472 = vmatprep.subr.bf16.mxu0 0
      %3473 = vmatpush1.bf16.msra.mxu0 %v3160
      %3474 = vmatprep.subr.bf16.mxu0 0
      %3475 = vmatpush1.bf16.msra.mxu0 %v3161
      %3476 = vmatprep.subr.bf16.mxu0 0
      %3477 = vmatpush1.bf16.msra.mxu0 %v3162
      %3478 = vmatprep.subr.bf16.mxu0 0
      %3479 = vmatpush1.bf16.msra.mxu0 %v3163
      %3480 = vmatprep.subr.bf16.mxu0 0
      %3481 = vmatpush1.bf16.msra.mxu0 %v3164
      %3482 = vmatprep.subr.bf16.mxu0 0
      %3483 = vmatpush1.bf16.msra.mxu0 %v3165
      %3484 = vmatprep.subr.bf16.mxu0 0
      %3485 = vmatpush1.bf16.msra.mxu0 %v3166
      %3486 = vmatprep.subr.bf16.mxu0 0
      %3487 = vmatpush1.bf16.msra.mxu0 %v3167
      %3488 = vmatprep.mubr.bf16.mxu0 %v1771
      %3489 = vmatmul.mubr.bf16.gmra.mrb[0].mxu0 %v1770
      %v3490 = vpop.f32.mrb[0].mxu0
      %v3491 = vadd.f32 0.0, %v3490
      %v3492 = vpop.f32.mrb[0].mxu0
      %v3493 = vpop.f32.mrb[0].mxu0
      %v3494 = vadd.f32 0.0, %v3493
      %v3495 = vpop.f32.mrb[0].mxu0
      %3496 = vmatprep.mubr.bf16.mxu0 %v1857
      %3497 = vmatmul.mubr.bf16.gmra.mrb[0].mxu0 %v1856
      %v3498 = vpop.f32.mrb[0].mxu0
      %v3499 = vadd.f32 0.0, %v3498
      %v3500 = vpop.f32.mrb[0].mxu0
      %v3501 = vpop.f32.mrb[0].mxu0
      %v3502 = vadd.f32 0.0, %v3501
      %v3503 = vpop.f32.mrb[0].mxu0
      %3504 = vmatprep.mubr.bf16.mxu0 %v1935
      %3505 = vmatmul.mubr.bf16.gmra.mrb[0].mxu0 %v1934
      %v3506 = vpop.f32.mrb[0].mxu0
      %v3507 = vadd.f32 0.0, %v3506
      %v3508 = vpop.f32.mrb[0].mxu0
      %v3509 = vpop.f32.mrb[0].mxu0
      %v3510 = vadd.f32 0.0, %v3509
      %v3511 = vpop.f32.mrb[0].mxu0
      %3512 = vmatprep.mubr.bf16.mxu0 %v2013
      %3513 = vmatmul.mubr.bf16.gmra.mrb[0].mxu0 %v2012
      %v3514 = vpop.f32.mrb[0].mxu0
      %v3515 = vadd.f32 0.0, %v3514
      %v3516 = vpop.f32.mrb[0].mxu0
      %v3517 = vpop.f32.mrb[0].mxu0
      %v3518 = vadd.f32 0.0, %v3517
      %v3519 = vpop.f32.mrb[0].mxu0
      %3520 = vmatprep.mubr.bf16.mxu0 %v2091
      %3521 = vmatmul.mubr.bf16.gmra.mrb[0].mxu0 %v2090
      %v3522 = vpop.f32.mrb[0].mxu0
      %v3523 = vadd.f32 0.0, %v3522
      %v3524 = vpop.f32.mrb[0].mxu0
      %v3525 = vpop.f32.mrb[0].mxu0
      %v3526 = vadd.f32 0.0, %v3525
      %v3527 = vpop.f32.mrb[0].mxu0
      %3528 = vmatprep.mubr.bf16.mxu0 %v2187
      %3529 = vmatmul.mubr.bf16.gmra.mrb[0].mxu0 %v2186
      %v3530 = vpop.f32.mrb[0].mxu0
      %v3531 = vadd.f32 0.0, %v3530
      %v3532 = vpop.f32.mrb[0].mxu0
      %v3533 = vpop.f32.mrb[0].mxu0
      %v3534 = vadd.f32 0.0, %v3533
      %v3535 = vpop.f32.mrb[0].mxu0
      %3536 = vmatprep.mubr.bf16.mxu0 %v2273
      %3537 = vmatmul.mubr.bf16.gmra.mrb[0].mxu0 %v2272
      %v3538 = vpop.f32.mrb[0].mxu0
      %v3539 = vadd.f32 0.0, %v3538
      %v3540 = vpop.f32.mrb[0].mxu0
      %v3541 = vpop.f32.mrb[0].mxu0
      %v3542 = vadd.f32 0.0, %v3541
      %v3543 = vpop.f32.mrb[0].mxu0
      %3544 = vmatprep.mubr.bf16.mxu0 %v2351
      %3545 = vmatmul.mubr.bf16.gmra.mrb[0].mxu0 %v2350
      %v3546 = vpop.f32.mrb[0].mxu0
      %v3547 = vadd.f32 0.0, %v3546
      %v3548 = vpop.f32.mrb[0].mxu0
      %v3549 = vpop.f32.mrb[0].mxu0
      %v3550 = vadd.f32 0.0, %v3549
      %v3551 = vpop.f32.mrb[0].mxu0
      %3552 = vmatprep.mubr.bf16.mxu0 %v2429
      %3553 = vmatmul.mubr.bf16.gmra.mrb[0].mxu0 %v2428
      %v3554 = vpop.f32.mrb[0].mxu0
      %v3555 = vadd.f32 0.0, %v3554
      %v3556 = vpop.f32.mrb[0].mxu0
      %v3557 = vpop.f32.mrb[0].mxu0
      %v3558 = vadd.f32 0.0, %v3557
      %v3559 = vpop.f32.mrb[0].mxu0
      %3560 = vmatprep.mubr.bf16.mxu0 %v2507
      %3561 = vmatmul.mubr.bf16.gmra.mrb[0].mxu0 %v2506
      %v3562 = vpop.f32.mrb[0].mxu0
      %v3563 = vadd.f32 0.0, %v3562
      %v3564 = vpop.f32.mrb[0].mxu0
      %v3565 = vpop.f32.mrb[0].mxu0
      %v3566 = vadd.f32 0.0, %v3565
      %v3567 = vpop.f32.mrb[0].mxu0
      %3568 = vdwg.mxu0
      %3569 = vmatprep.subr.bf16.mxu0 0
      %3570 = vmatpush1.bf16.msra.mxu0 %v3168
      %3571 = vmatprep.subr.bf16.mxu0 0
      %3572 = vmatpush1.bf16.msra.mxu0 %v3169
      %3573 = vmatprep.subr.bf16.mxu0 0
      %3574 = vmatpush1.bf16.msra.mxu0 %v3170
      %3575 = vmatprep.subr.bf16.mxu0 0
      %3576 = vmatpush1.bf16.msra.mxu0 %v3171
      %3577 = vmatprep.subr.bf16.mxu0 0
      %3578 = vmatpush1.bf16.msra.mxu0 %v3172
      %3579 = vmatprep.subr.bf16.mxu0 0
      %3580 = vmatpush1.bf16.msra.mxu0 %v3173
      %3581 = vmatprep.subr.bf16.mxu0 0
      %3582 = vmatpush1.bf16.msra.mxu0 %v3174
      %3583 = vmatprep.subr.bf16.mxu0 0
      %3584 = vmatpush1.bf16.msra.mxu0 %v3175
      %3585 = vmatprep.subr.bf16.mxu0 0
      %3586 = vmatpush1.bf16.msra.mxu0 %v3176
      %3587 = vmatprep.subr.bf16.mxu0 0
      %3588 = vmatpush1.bf16.msra.mxu0 %v3177
      %3589 = vmatprep.subr.bf16.mxu0 0
      %3590 = vmatpush1.bf16.msra.mxu0 %v3178
      %3591 = vmatprep.subr.bf16.mxu0 0
      %3592 = vmatpush1.bf16.msra.mxu0 %v3179
      %3593 = vmatprep.subr.bf16.mxu0 0
      %3594 = vmatpush1.bf16.msra.mxu0 %v3180
      %3595 = vmatprep.subr.bf16.mxu0 0
      %3596 = vmatpush1.bf16.msra.mxu0 %v3181
      %3597 = vmatprep.subr.bf16.mxu0 0
      %3598 = vmatpush1.bf16.msra.mxu0 %v3182
      %3599 = vmatprep.subr.bf16.mxu0 0
      %3600 = vmatpush1.bf16.msra.mxu0 %v3183
      %3601 = vmatprep.mubr.bf16.mxu0 %v1773
      %3602 = vmatmul.mubr.bf16.gmra.mrb[0].mxu0 %v1772
      %v3603 = vpop.f32.mrb[0].mxu0
      %v3604 = vadd.f32 %v3491, %v3603
      %v3605 = vpop.f32.mrb[0].mxu0
      %v3606 = vpop.f32.mrb[0].mxu0
      %v3607 = vadd.f32 %v3494, %v3606
      %v3608 = vpop.f32.mrb[0].mxu0
      %3609 = vmatprep.mubr.bf16.mxu0 %v1859
      %3610 = vmatmul.mubr.bf16.gmra.mrb[0].mxu0 %v1858
      %v3611 = vpop.f32.mrb[0].mxu0
      %v3612 = vadd.f32 %v3499, %v3611
      %v3613 = vpop.f32.mrb[0].mxu0
      %v3614 = vpop.f32.mrb[0].mxu0
      %v3615 = vadd.f32 %v3502, %v3614
      %v3616 = vpop.f32.mrb[0].mxu0
      %3617 = vmatprep.mubr.bf16.mxu0 %v1937
      %3618 = vmatmul.mubr.bf16.gmra.mrb[0].mxu0 %v1936
      %v3619 = vpop.f32.mrb[0].mxu0
      %v3620 = vadd.f32 %v3507, %v3619
      %v3621 = vpop.f32.mrb[0].mxu0
      %v3622 = vpop.f32.mrb[0].mxu0
      %v3623 = vadd.f32 %v3510, %v3622
      %v3624 = vpop.f32.mrb[0].mxu0
      %3625 = vmatprep.mubr.bf16.mxu0 %v2015
      %3626 = vmatmul.mubr.bf16.gmra.mrb[0].mxu0 %v2014
      %v3627 = vpop.f32.mrb[0].mxu0
      %v3628 = vadd.f32 %v3515, %v3627
      %v3629 = vpop.f32.mrb[0].mxu0
      %v3630 = vpop.f32.mrb[0].mxu0
      %v3631 = vadd.f32 %v3518, %v3630
      %v3632 = vpop.f32.mrb[0].mxu0
      %3633 = vmatprep.mubr.bf16.mxu0 %v2093
      %3634 = vmatmul.mubr.bf16.gmra.mrb[0].mxu0 %v2092
      %v3635 = vpop.f32.mrb[0].mxu0
      %v3636 = vadd.f32 %v3523, %v3635
      %v3637 = vpop.f32.mrb[0].mxu0
      %v3638 = vpop.f32.mrb[0].mxu0
      %v3639 = vadd.f32 %v3526, %v3638
      %v3640 = vpop.f32.mrb[0].mxu0
      %3641 = vmatprep.mubr.bf16.mxu0 %v2189
      %3642 = vmatmul.mubr.bf16.gmra.mrb[0].mxu0 %v2188
      %v3643 = vpop.f32.mrb[0].mxu0
      %v3644 = vadd.f32 %v3531, %v3643
      %v3645 = vpop.f32.mrb[0].mxu0
      %v3646 = vpop.f32.mrb[0].mxu0
      %v3647 = vadd.f32 %v3534, %v3646
      %v3648 = vpop.f32.mrb[0].mxu0
      %3649 = vmatprep.mubr.bf16.mxu0 %v2275
      %3650 = vmatmul.mubr.bf16.gmra.mrb[0].mxu0 %v2274
      %v3651 = vpop.f32.mrb[0].mxu0
      %v3652 = vadd.f32 %v3539, %v3651
      %v3653 = vpop.f32.mrb[0].mxu0
      %v3654 = vpop.f32.mrb[0].mxu0
      %v3655 = vadd.f32 %v3542, %v3654
      %v3656 = vpop.f32.mrb[0].mxu0
      %3657 = vmatprep.mubr.bf16.mxu0 %v2353
      %3658 = vmatmul.mubr.bf16.gmra.mrb[0].mxu0 %v2352
      %v3659 = vpop.f32.mrb[0].mxu0
      %v3660 = vadd.f32 %v3547, %v3659
      %v3661 = vpop.f32.mrb[0].mxu0
      %v3662 = vpop.f32.mrb[0].mxu0
      %v3663 = vadd.f32 %v3550, %v3662
      %v3664 = vpop.f32.mrb[0].mxu0
      %3665 = vmatprep.mubr.bf16.mxu0 %v2431
      %3666 = vmatmul.mubr.bf16.gmra.mrb[0].mxu0 %v2430
      %v3667 = vpop.f32.mrb[0].mxu0
      %v3668 = vadd.f32 %v3555, %v3667
      %v3669 = vpop.f32.mrb[0].mxu0
      %v3670 = vpop.f32.mrb[0].mxu0
      %v3671 = vadd.f32 %v3558, %v3670
      %v3672 = vpop.f32.mrb[0].mxu0
      %3673 = vmatprep.mubr.bf16.mxu0 %v2509
      %3674 = vmatmul.mubr.bf16.gmra.mrb[0].mxu0 %v2508
      %v3675 = vpop.f32.mrb[0].mxu0
      %v3676 = vadd.f32 %v3563, %v3675
      %v3677 = vpop.f32.mrb[0].mxu0
      %v3678 = vpop.f32.mrb[0].mxu0
      %v3679 = vadd.f32 %v3566, %v3678
      %v3680 = vpop.f32.mrb[0].mxu0
      %3681 = vdwg.mxu0
      %3682 = vmatprep.subr.bf16.mxu0 0
      %3683 = vmatpush1.bf16.msra.mxu0 %v3184
      %3684 = vmatprep.subr.bf16.mxu0 0
      %3685 = vmatpush1.bf16.msra.mxu0 %v3185
      %3686 = vmatprep.subr.bf16.mxu0 0
      %3687 = vmatpush1.bf16.msra.mxu0 %v3186
      %3688 = vmatprep.subr.bf16.mxu0 0
      %3689 = vmatpush1.bf16.msra.mxu0 %v3187
      %3690 = vmatprep.subr.bf16.mxu0 0
      %3691 = vmatpush1.bf16.msra.mxu0 %v3188
      %3692 = vmatprep.subr.bf16.mxu0 0
      %3693 = vmatpush1.bf16.msra.mxu0 %v3189
      %3694 = vmatprep.subr.bf16.mxu0 0
      %3695 = vmatpush1.bf16.msra.mxu0 %v3190
      %3696 = vmatprep.subr.bf16.mxu0 0
      %3697 = vmatpush1.bf16.msra.mxu0 %v3191
      %3698 = vmatprep.subr.bf16.mxu0 0
      %3699 = vmatpush1.bf16.msra.mxu0 %v3192
      %3700 = vmatprep.subr.bf16.mxu0 0
      %3701 = vmatpush1.bf16.msra.mxu0 %v3193
      %3702 = vmatprep.subr.bf16.mxu0 0
      %3703 = vmatpush1.bf16.msra.mxu0 %v3194
      %3704 = vmatprep.subr.bf16.mxu0 0
      %3705 = vmatpush1.bf16.msra.mxu0 %v3195
      %3706 = vmatprep.subr.bf16.mxu0 0
      %3707 = vmatpush1.bf16.msra.mxu0 %v3196
      %3708 = vmatprep.subr.bf16.mxu0 0
      %3709 = vmatpush1.bf16.msra.mxu0 %v3197
      %3710 = vmatprep.subr.bf16.mxu0 0
      %3711 = vmatpush1.bf16.msra.mxu0 %v3198
      %3712 = vmatprep.subr.bf16.mxu0 0
      %3713 = vmatpush1.bf16.msra.mxu0 %v3199
      %3714 = vmatprep.mubr.bf16.mxu0 %v1775
      %3715 = vmatmul.mubr.bf16.gmra.mrb[0].mxu0 %v1774
      %v3716 = vpop.f32.mrb[0].mxu0
      %v3717 = vadd.f32 %v3604, %v3716
      %v3718 = vpop.f32.mrb[0].mxu0
      %v3719 = vpop.f32.mrb[0].mxu0
      %v3720 = vadd.f32 %v3607, %v3719
      %v3721 = vpop.f32.mrb[0].mxu0
      %3722 = vmatprep.mubr.bf16.mxu0 %v1861
      %3723 = vmatmul.mubr.bf16.gmra.mrb[0].mxu0 %v1860
      %v3724 = vpop.f32.mrb[0].mxu0
      %v3725 = vadd.f32 %v3612, %v3724
      %v3726 = vpop.f32.mrb[0].mxu0
      %v3727 = vpop.f32.mrb[0].mxu0
      %v3728 = vadd.f32 %v3615, %v3727
      %v3729 = vpop.f32.mrb[0].mxu0
      %3730 = vmatprep.mubr.bf16.mxu0 %v1939
      %3731 = vmatmul.mubr.bf16.gmra.mrb[0].mxu0 %v1938
      %v3732 = vpop.f32.mrb[0].mxu0
      %v3733 = vadd.f32 %v3620, %v3732
      %v3734 = vpop.f32.mrb[0].mxu0
      %v3735 = vpop.f32.mrb[0].mxu0
      %v3736 = vadd.f32 %v3623, %v3735
      %v3737 = vpop.f32.mrb[0].mxu0
      %3738 = vmatprep.mubr.bf16.mxu0 %v2017
      %3739 = vmatmul.mubr.bf16.gmra.mrb[0].mxu0 %v2016
      %v3740 = vpop.f32.mrb[0].mxu0
      %v3741 = vadd.f32 %v3628, %v3740
      %v3742 = vpop.f32.mrb[0].mxu0
      %v3743 = vpop.f32.mrb[0].mxu0
      %v3744 = vadd.f32 %v3631, %v3743
      %v3745 = vpop.f32.mrb[0].mxu0
      %3746 = vmatprep.mubr.bf16.mxu0 %v2095
      %3747 = vmatmul.mubr.bf16.gmra.mrb[0].mxu0 %v2094
      %v3748 = vpop.f32.mrb[0].mxu0
      %v3749 = vadd.f32 %v3636, %v3748
      %v3750 = vpop.f32.mrb[0].mxu0
      %v3751 = vpop.f32.mrb[0].mxu0
      %v3752 = vadd.f32 %v3639, %v3751
      %v3753 = vpop.f32.mrb[0].mxu0
      %3754 = vmatprep.mubr.bf16.mxu0 %v2191
      %3755 = vmatmul.mubr.bf16.gmra.mrb[0].mxu0 %v2190
      %v3756 = vpop.f32.mrb[0].mxu0
      %v3757 = vadd.f32 %v3644, %v3756
      %v3758 = vpop.f32.mrb[0].mxu0
      %v3759 = vpop.f32.mrb[0].mxu0
      %v3760 = vadd.f32 %v3647, %v3759
      %v3761 = vpop.f32.mrb[0].mxu0
      %3762 = vmatprep.mubr.bf16.mxu0 %v2277
      %3763 = vmatmul.mubr.bf16.gmra.mrb[0].mxu0 %v2276
      %v3764 = vpop.f32.mrb[0].mxu0
      %v3765 = vadd.f32 %v3652, %v3764
      %v3766 = vpop.f32.mrb[0].mxu0
      %v3767 = vpop.f32.mrb[0].mxu0
      %v3768 = vadd.f32 %v3655, %v3767
      %v3769 = vpop.f32.mrb[0].mxu0
      %3770 = vmatprep.mubr.bf16.mxu0 %v2355
      %3771 = vmatmul.mubr.bf16.gmra.mrb[0].mxu0 %v2354
      %v3772 = vpop.f32.mrb[0].mxu0
      %v3773 = vadd.f32 %v3660, %v3772
      %v3774 = vpop.f32.mrb[0].mxu0
      %v3775 = vpop.f32.mrb[0].mxu0
      %v3776 = vadd.f32 %v3663, %v3775
      %v3777 = vpop.f32.mrb[0].mxu0
      %3778 = vmatprep.mubr.bf16.mxu0 %v2433
      %3779 = vmatmul.mubr.bf16.gmra.mrb[0].mxu0 %v2432
      %v3780 = vpop.f32.mrb[0].mxu0
      %v3781 = vadd.f32 %v3668, %v3780
      %v3782 = vpop.f32.mrb[0].mxu0
      %v3783 = vpop.f32.mrb[0].mxu0
      %v3784 = vadd.f32 %v3671, %v3783
      %v3785 = vpop.f32.mrb[0].mxu0
      %3786 = vmatprep.mubr.bf16.mxu0 %v2511
      %3787 = vmatmul.mubr.bf16.gmra.mrb[0].mxu0 %v2510
      %v3788 = vpop.f32.mrb[0].mxu0
      %v3789 = vadd.f32 %v3676, %v3788
      %v3790 = vpop.f32.mrb[0].mxu0
      %v3791 = vpop.f32.mrb[0].mxu0
      %v3792 = vadd.f32 %v3679, %v3791
      %v3793 = vpop.f32.mrb[0].mxu0
      %3794 = vdwg.mxu0
      %3795 = vmatprep.subr.bf16.mxu0 0
      %3796 = vmatpush1.bf16.msra.mxu0 %v3200
      %3797 = vmatprep.subr.bf16.mxu0 0
      %3798 = vmatpush1.bf16.msra.mxu0 %v3201
      %3799 = vmatprep.subr.bf16.mxu0 0
      %3800 = vmatpush1.bf16.msra.mxu0 %v3202
      %3801 = vmatprep.subr.bf16.mxu0 0
      %3802 = vmatpush1.bf16.msra.mxu0 %v3203
      %3803 = vmatprep.subr.bf16.mxu0 0
      %3804 = vmatpush1.bf16.msra.mxu0 %v3204
      %3805 = vmatprep.subr.bf16.mxu0 0
      %3806 = vmatpush1.bf16.msra.mxu0 %v3205
      %3807 = vmatprep.subr.bf16.mxu0 0
      %3808 = vmatpush1.bf16.msra.mxu0 %v3206
      %3809 = vmatprep.subr.bf16.mxu0 0
      %3810 = vmatpush1.bf16.msra.mxu0 %v3207
      %3811 = vmatprep.subr.bf16.mxu0 0
      %3812 = vmatpush1.bf16.msra.mxu0 %v3208
      %3813 = vmatprep.subr.bf16.mxu0 0
      %3814 = vmatpush1.bf16.msra.mxu0 %v3209
      %3815 = vmatprep.subr.bf16.mxu0 0
      %3816 = vmatpush1.bf16.msra.mxu0 %v3210
      %3817 = vmatprep.subr.bf16.mxu0 0
      %3818 = vmatpush1.bf16.msra.mxu0 %v3211
      %3819 = vmatprep.subr.bf16.mxu0 0
      %3820 = vmatpush1.bf16.msra.mxu0 %v3212
      %3821 = vmatprep.subr.bf16.mxu0 0
      %3822 = vmatpush1.bf16.msra.mxu0 %v3213
      %3823 = vmatprep.subr.bf16.mxu0 0
      %3824 = vmatpush1.bf16.msra.mxu0 %v3214
      %3825 = vmatprep.subr.bf16.mxu0 0
      %3826 = vmatpush1.bf16.msra.mxu0 %v3215
      %3827 = vmatprep.mubr.bf16.mxu0 %v1777
      %3828 = vmatmul.mubr.bf16.gmra.mrb[0].mxu0 %v1776
      %v3829 = vpop.f32.mrb[0].mxu0
      %v3830 = vadd.f32 %v3717, %v3829
      %v3831 = vpop.f32.mrb[0].mxu0
      %v3832 = vpop.f32.mrb[0].mxu0
      %v3833 = vadd.f32 %v3720, %v3832
      %v3834 = vpop.f32.mrb[0].mxu0
      %3835 = vmatprep.mubr.bf16.mxu0 %v1863
      %3836 = vmatmul.mubr.bf16.gmra.mrb[0].mxu0 %v1862
      %v3837 = vpop.f32.mrb[0].mxu0
      %v3838 = vadd.f32 %v3725, %v3837
      %v3839 = vpop.f32.mrb[0].mxu0
      %v3840 = vpop.f32.mrb[0].mxu0
      %v3841 = vadd.f32 %v3728, %v3840
      %v3842 = vpop.f32.mrb[0].mxu0
      %3843 = vmatprep.mubr.bf16.mxu0 %v1941
      %3844 = vmatmul.mubr.bf16.gmra.mrb[0].mxu0 %v1940
      %v3845 = vpop.f32.mrb[0].mxu0
      %v3846 = vadd.f32 %v3733, %v3845
      %v3847 = vpop.f32.mrb[0].mxu0
      %v3848 = vpop.f32.mrb[0].mxu0
      %v3849 = vadd.f32 %v3736, %v3848
      %v3850 = vpop.f32.mrb[0].mxu0
      %3851 = vmatprep.mubr.bf16.mxu0 %v2019
      %3852 = vmatmul.mubr.bf16.gmra.mrb[0].mxu0 %v2018
      %v3853 = vpop.f32.mrb[0].mxu0
      %v3854 = vadd.f32 %v3741, %v3853
      %v3855 = vpop.f32.mrb[0].mxu0
      %v3856 = vpop.f32.mrb[0].mxu0
      %v3857 = vadd.f32 %v3744, %v3856
      %v3858 = vpop.f32.mrb[0].mxu0
      %3859 = vmatprep.mubr.bf16.mxu0 %v2097
      %3860 = vmatmul.mubr.bf16.gmra.mrb[0].mxu0 %v2096
      %v3861 = vpop.f32.mrb[0].mxu0
      %v3862 = vadd.f32 %v3749, %v3861
      %v3863 = vpop.f32.mrb[0].mxu0
      %v3864 = vpop.f32.mrb[0].mxu0
      %v3865 = vadd.f32 %v3752, %v3864
      %v3866 = vpop.f32.mrb[0].mxu0
      %3867 = vmatprep.mubr.bf16.mxu0 %v2193
      %3868 = vmatmul.mubr.bf16.gmra.mrb[0].mxu0 %v2192
      %v3869 = vpop.f32.mrb[0].mxu0
      %v3870 = vadd.f32 %v3757, %v3869
      %v3871 = vpop.f32.mrb[0].mxu0
      %v3872 = vpop.f32.mrb[0].mxu0
      %v3873 = vadd.f32 %v3760, %v3872
      %v3874 = vpop.f32.mrb[0].mxu0
      %3875 = vmatprep.mubr.bf16.mxu0 %v2279
      %3876 = vmatmul.mubr.bf16.gmra.mrb[0].mxu0 %v2278
      %v3877 = vpop.f32.mrb[0].mxu0
      %v3878 = vadd.f32 %v3765, %v3877
      %v3879 = vpop.f32.mrb[0].mxu0
      %v3880 = vpop.f32.mrb[0].mxu0
      %v3881 = vadd.f32 %v3768, %v3880
      %v3882 = vpop.f32.mrb[0].mxu0
      %3883 = vmatprep.mubr.bf16.mxu0 %v2357
      %3884 = vmatmul.mubr.bf16.gmra.mrb[0].mxu0 %v2356
      %v3885 = vpop.f32.mrb[0].mxu0
      %v3886 = vadd.f32 %v3773, %v3885
      %v3887 = vpop.f32.mrb[0].mxu0
      %v3888 = vpop.f32.mrb[0].mxu0
      %v3889 = vadd.f32 %v3776, %v3888
      %v3890 = vpop.f32.mrb[0].mxu0
      %3891 = vmatprep.mubr.bf16.mxu0 %v2435
      %3892 = vmatmul.mubr.bf16.gmra.mrb[0].mxu0 %v2434
      %v3893 = vpop.f32.mrb[0].mxu0
      %v3894 = vadd.f32 %v3781, %v3893
      %v3895 = vpop.f32.mrb[0].mxu0
      %v3896 = vpop.f32.mrb[0].mxu0
      %v3897 = vadd.f32 %v3784, %v3896
      %v3898 = vpop.f32.mrb[0].mxu0
      %3899 = vmatprep.mubr.bf16.mxu0 %v2513
      %3900 = vmatmul.mubr.bf16.gmra.mrb[0].mxu0 %v2512
      %v3901 = vpop.f32.mrb[0].mxu0
      %v3902 = vadd.f32 %v3789, %v3901
      %v3903 = vpop.f32.mrb[0].mxu0
      %v3904 = vpop.f32.mrb[0].mxu0
      %v3905 = vadd.f32 %v3792, %v3904
      %v3906 = vpop.f32.mrb[0].mxu0
      %3907 = vdwg.mxu0
      %3908 = vmatprep.subr.bf16.mxu0 0
      %3909 = vmatpush1.bf16.msra.mxu0 %v3216
      %3910 = vmatprep.subr.bf16.mxu0 0
      %3911 = vmatpush1.bf16.msra.mxu0 %v3217
      %3912 = vmatprep.subr.bf16.mxu0 0
      %3913 = vmatpush1.bf16.msra.mxu0 %v3218
      %3914 = vmatprep.subr.bf16.mxu0 0
      %3915 = vmatpush1.bf16.msra.mxu0 %v3219
      %3916 = vmatprep.subr.bf16.mxu0 0
      %3917 = vmatpush1.bf16.msra.mxu0 %v3220
      %3918 = vmatprep.subr.bf16.mxu0 0
      %3919 = vmatpush1.bf16.msra.mxu0 %v3221
      %3920 = vmatprep.subr.bf16.mxu0 0
      %3921 = vmatpush1.bf16.msra.mxu0 %v3222
      %3922 = vmatprep.subr.bf16.mxu0 0
      %3923 = vmatpush1.bf16.msra.mxu0 %v3223
      %3924 = vmatprep.subr.bf16.mxu0 0
      %3925 = vmatpush1.bf16.msra.mxu0 %v3224
      %3926 = vmatprep.subr.bf16.mxu0 0
      %3927 = vmatpush1.bf16.msra.mxu0 %v3225
      %3928 = vmatprep.subr.bf16.mxu0 0
      %3929 = vmatpush1.bf16.msra.mxu0 %v3226
      %3930 = vmatprep.subr.bf16.mxu0 0
      %3931 = vmatpush1.bf16.msra.mxu0 %v3227
      %3932 = vmatprep.subr.bf16.mxu0 0
      %3933 = vmatpush1.bf16.msra.mxu0 %v3228
      %3934 = vmatprep.subr.bf16.mxu0 0
      %3935 = vmatpush1.bf16.msra.mxu0 %v3229
      %3936 = vmatprep.subr.bf16.mxu0 0
      %3937 = vmatpush1.bf16.msra.mxu0 %v3230
      %3938 = vmatprep.subr.bf16.mxu0 0
      %3939 = vmatpush1.bf16.msra.mxu0 %v3231
      %3940 = vmatprep.mubr.bf16.mxu0 %v1779
      %3941 = vmatmul.mubr.bf16.gmra.mrb[0].mxu0 %v1778
      %v3942 = vpop.f32.mrb[0].mxu0
      %v3943 = vadd.f32 %v3830, %v3942
      %v3944 = vpop.f32.mrb[0].mxu0
      %v3945 = vpop.f32.mrb[0].mxu0
      %v3946 = vadd.f32 %v3833, %v3945
      %v3947 = vpop.f32.mrb[0].mxu0
      %3948 = vmatprep.mubr.bf16.mxu0 %v1865
      %3949 = vmatmul.mubr.bf16.gmra.mrb[0].mxu0 %v1864
      %v3950 = vpop.f32.mrb[0].mxu0
      %v3951 = vadd.f32 %v3838, %v3950
      %v3952 = vpop.f32.mrb[0].mxu0
      %v3953 = vpop.f32.mrb[0].mxu0
      %v3954 = vadd.f32 %v3841, %v3953
      %v3955 = vpop.f32.mrb[0].mxu0
      %3956 = vmatprep.mubr.bf16.mxu0 %v1943
      %3957 = vmatmul.mubr.bf16.gmra.mrb[0].mxu0 %v1942
      %v3958 = vpop.f32.mrb[0].mxu0
      %v3959 = vadd.f32 %v3846, %v3958
      %v3960 = vpop.f32.mrb[0].mxu0
      %v3961 = vpop.f32.mrb[0].mxu0
      %v3962 = vadd.f32 %v3849, %v3961
      %v3963 = vpop.f32.mrb[0].mxu0
      %3964 = vmatprep.mubr.bf16.mxu0 %v2021
      %3965 = vmatmul.mubr.bf16.gmra.mrb[0].mxu0 %v2020
      %v3966 = vpop.f32.mrb[0].mxu0
      %v3967 = vadd.f32 %v3854, %v3966
      %v3968 = vpop.f32.mrb[0].mxu0
      %v3969 = vpop.f32.mrb[0].mxu0
      %v3970 = vadd.f32 %v3857, %v3969
      %v3971 = vpop.f32.mrb[0].mxu0
      %3972 = vmatprep.mubr.bf16.mxu0 %v2099
      %3973 = vmatmul.mubr.bf16.gmra.mrb[0].mxu0 %v2098
      %v3974 = vpop.f32.mrb[0].mxu0
      %v3975 = vadd.f32 %v3862, %v3974
      %v3976 = vpop.f32.mrb[0].mxu0
      %v3977 = vpop.f32.mrb[0].mxu0
      %v3978 = vadd.f32 %v3865, %v3977
      %v3979 = vpop.f32.mrb[0].mxu0
      %3980 = vmatprep.mubr.bf16.mxu0 %v2195
      %3981 = vmatmul.mubr.bf16.gmra.mrb[0].mxu0 %v2194
      %v3982 = vpop.f32.mrb[0].mxu0
      %v3983 = vadd.f32 %v3870, %v3982
      %v3984 = vpop.f32.mrb[0].mxu0
      %v3985 = vpop.f32.mrb[0].mxu0
      %v3986 = vadd.f32 %v3873, %v3985
      %v3987 = vpop.f32.mrb[0].mxu0
      %3988 = vmatprep.mubr.bf16.mxu0 %v2281
      %3989 = vmatmul.mubr.bf16.gmra.mrb[0].mxu0 %v2280
      %v3990 = vpop.f32.mrb[0].mxu0
      %v3991 = vadd.f32 %v3878, %v3990
      %v3992 = vpop.f32.mrb[0].mxu0
      %v3993 = vpop.f32.mrb[0].mxu0
      %v3994 = vadd.f32 %v3881, %v3993
      %v3995 = vpop.f32.mrb[0].mxu0
      %3996 = vmatprep.mubr.bf16.mxu0 %v2359
      %3997 = vmatmul.mubr.bf16.gmra.mrb[0].mxu0 %v2358
      %v3998 = vpop.f32.mrb[0].mxu0
      %v3999 = vadd.f32 %v3886, %v3998
      %v4000 = vpop.f32.mrb[0].mxu0
      %v4001 = vpop.f32.mrb[0].mxu0
      %v4002 = vadd.f32 %v3889, %v4001
      %v4003 = vpop.f32.mrb[0].mxu0
      %4004 = vmatprep.mubr.bf16.mxu0 %v2437
      %4005 = vmatmul.mubr.bf16.gmra.mrb[0].mxu0 %v2436
      %v4006 = vpop.f32.mrb[0].mxu0
      %v4007 = vadd.f32 %v3894, %v4006
      %v4008 = vpop.f32.mrb[0].mxu0
      %v4009 = vpop.f32.mrb[0].mxu0
      %v4010 = vadd.f32 %v3897, %v4009
      %v4011 = vpop.f32.mrb[0].mxu0
      %4012 = vmatprep.mubr.bf16.mxu0 %v2515
      %4013 = vmatmul.mubr.bf16.gmra.mrb[0].mxu0 %v2514
      %v4014 = vpop.f32.mrb[0].mxu0
      %v4015 = vadd.f32 %v3902, %v4014
      %v4016 = vpop.f32.mrb[0].mxu0
      %v4017 = vpop.f32.mrb[0].mxu0
      %v4018 = vadd.f32 %v3905, %v4017
      %v4019 = vpop.f32.mrb[0].mxu0
      %4020 = vdwg.mxu0
      %4021 = vmatprep.subr.bf16.mxu0 0
      %4022 = vmatpush1.bf16.msra.mxu0 %v3232
      %4023 = vmatprep.subr.bf16.mxu0 0
      %4024 = vmatpush1.bf16.msra.mxu0 %v3233
      %4025 = vmatprep.subr.bf16.mxu0 0
      %4026 = vmatpush1.bf16.msra.mxu0 %v3234
      %4027 = vmatprep.subr.bf16.mxu0 0
      %4028 = vmatpush1.bf16.msra.mxu0 %v3235
      %4029 = vmatprep.subr.bf16.mxu0 0
      %4030 = vmatpush1.bf16.msra.mxu0 %v3236
      %4031 = vmatprep.subr.bf16.mxu0 0
      %4032 = vmatpush1.bf16.msra.mxu0 %v3237
      %4033 = vmatprep.subr.bf16.mxu0 0
      %4034 = vmatpush1.bf16.msra.mxu0 %v3238
      %4035 = vmatprep.subr.bf16.mxu0 0
      %4036 = vmatpush1.bf16.msra.mxu0 %v3239
      %4037 = vmatprep.subr.bf16.mxu0 0
      %4038 = vmatpush1.bf16.msra.mxu0 %v3240
      %4039 = vmatprep.subr.bf16.mxu0 0
      %4040 = vmatpush1.bf16.msra.mxu0 %v3241
      %4041 = vmatprep.subr.bf16.mxu0 0
      %4042 = vmatpush1.bf16.msra.mxu0 %v3242
      %4043 = vmatprep.subr.bf16.mxu0 0
      %4044 = vmatpush1.bf16.msra.mxu0 %v3243
      %4045 = vmatprep.subr.bf16.mxu0 0
      %4046 = vmatpush1.bf16.msra.mxu0 %v3244
      %4047 = vmatprep.subr.bf16.mxu0 0
      %4048 = vmatpush1.bf16.msra.mxu0 %v3245
      %4049 = vmatprep.subr.bf16.mxu0 0
      %4050 = vmatpush1.bf16.msra.mxu0 %v3246
      %4051 = vmatprep.subr.bf16.mxu0 0
      %4052 = vmatpush1.bf16.msra.mxu0 %v3247
      %4053 = vmatprep.mubr.bf16.mxu0 %v1781
      %4054 = vmatmul.mubr.bf16.gmra.mrb[0].mxu0 %v1780
      %v4055 = vpop.f32.mrb[0].mxu0
      %v4056 = vadd.f32 %v3943, %v4055
      %v4057 = vpop.f32.mrb[0].mxu0
      %v4058 = vpop.f32.mrb[0].mxu0
      %v4059 = vadd.f32 %v3946, %v4058
      %v4060 = vpop.f32.mrb[0].mxu0
      %4061 = vmatprep.mubr.bf16.mxu0 %v1867
      %4062 = vmatmul.mubr.bf16.gmra.mrb[0].mxu0 %v1866
      %v4063 = vpop.f32.mrb[0].mxu0
      %v4064 = vadd.f32 %v3951, %v4063
      %v4065 = vpop.f32.mrb[0].mxu0
      %v4066 = vpop.f32.mrb[0].mxu0
      %v4067 = vadd.f32 %v3954, %v4066
      %v4068 = vpop.f32.mrb[0].mxu0
      %4069 = vmatprep.mubr.bf16.mxu0 %v1945
      %4070 = vmatmul.mubr.bf16.gmra.mrb[0].mxu0 %v1944
      %v4071 = vpop.f32.mrb[0].mxu0
      %v4072 = vadd.f32 %v3959, %v4071
      %v4073 = vpop.f32.mrb[0].mxu0
      %v4074 = vpop.f32.mrb[0].mxu0
      %v4075 = vadd.f32 %v3962, %v4074
      %v4076 = vpop.f32.mrb[0].mxu0
      %4077 = vmatprep.mubr.bf16.mxu0 %v2023
      %4078 = vmatmul.mubr.bf16.gmra.mrb[0].mxu0 %v2022
      %v4079 = vpop.f32.mrb[0].mxu0
      %v4080 = vadd.f32 %v3967, %v4079
      %v4081 = vpop.f32.mrb[0].mxu0
      %v4082 = vpop.f32.mrb[0].mxu0
      %v4083 = vadd.f32 %v3970, %v4082
      %v4084 = vpop.f32.mrb[0].mxu0
      %4085 = vmatprep.mubr.bf16.mxu0 %v2101
      %4086 = vmatmul.mubr.bf16.gmra.mrb[0].mxu0 %v2100
      %v4087 = vpop.f32.mrb[0].mxu0
      %v4088 = vadd.f32 %v3975, %v4087
      %v4089 = vpop.f32.mrb[0].mxu0
      %v4090 = vpop.f32.mrb[0].mxu0
      %v4091 = vadd.f32 %v3978, %v4090
      %v4092 = vpop.f32.mrb[0].mxu0
      %4093 = vmatprep.mubr.bf16.mxu0 %v2197
      %4094 = vmatmul.mubr.bf16.gmra.mrb[0].mxu0 %v2196
      %v4095 = vpop.f32.mrb[0].mxu0
      %v4096 = vadd.f32 %v3983, %v4095
      %v4097 = vpop.f32.mrb[0].mxu0
      %v4098 = vpop.f32.mrb[0].mxu0
      %v4099 = vadd.f32 %v3986, %v4098
      %v4100 = vpop.f32.mrb[0].mxu0
      %4101 = vmatprep.mubr.bf16.mxu0 %v2283
      %4102 = vmatmul.mubr.bf16.gmra.mrb[0].mxu0 %v2282
      %v4103 = vpop.f32.mrb[0].mxu0
      %v4104 = vadd.f32 %v3991, %v4103
      %v4105 = vpop.f32.mrb[0].mxu0
      %v4106 = vpop.f32.mrb[0].mxu0
      %v4107 = vadd.f32 %v3994, %v4106
      %v4108 = vpop.f32.mrb[0].mxu0
      %4109 = vmatprep.mubr.bf16.mxu0 %v2361
      %4110 = vmatmul.mubr.bf16.gmra.mrb[0].mxu0 %v2360
      %v4111 = vpop.f32.mrb[0].mxu0
      %v4112 = vadd.f32 %v3999, %v4111
      %v4113 = vpop.f32.mrb[0].mxu0
      %v4114 = vpop.f32.mrb[0].mxu0
      %v4115 = vadd.f32 %v4002, %v4114
      %v4116 = vpop.f32.mrb[0].mxu0
      %4117 = vmatprep.mubr.bf16.mxu0 %v2439
      %4118 = vmatmul.mubr.bf16.gmra.mrb[0].mxu0 %v2438
      %v4119 = vpop.f32.mrb[0].mxu0
      %v4120 = vadd.f32 %v4007, %v4119
      %v4121 = vpop.f32.mrb[0].mxu0
      %v4122 = vpop.f32.mrb[0].mxu0
      %v4123 = vadd.f32 %v4010, %v4122
      %v4124 = vpop.f32.mrb[0].mxu0
      %4125 = vmatprep.mubr.bf16.mxu0 %v2517
      %4126 = vmatmul.mubr.bf16.gmra.mrb[0].mxu0 %v2516
      %v4127 = vpop.f32.mrb[0].mxu0
      %v4128 = vadd.f32 %v4015, %v4127
      %v4129 = vpop.f32.mrb[0].mxu0
      %v4130 = vpop.f32.mrb[0].mxu0
      %v4131 = vadd.f32 %v4018, %v4130
      %v4132 = vpop.f32.mrb[0].mxu0
      %4133 = vdwg.mxu0
      %4134 = vmatprep.subr.bf16.mxu0 0
      %4135 = vmatpush1.bf16.msra.mxu0 %v3248
      %4136 = vmatprep.subr.bf16.mxu0 0
      %4137 = vmatpush1.bf16.msra.mxu0 %v3249
      %4138 = vmatprep.subr.bf16.mxu0 0
      %4139 = vmatpush1.bf16.msra.mxu0 %v3250
      %4140 = vmatprep.subr.bf16.mxu0 0
      %4141 = vmatpush1.bf16.msra.mxu0 %v3251
      %4142 = vmatprep.subr.bf16.mxu0 0
      %4143 = vmatpush1.bf16.msra.mxu0 %v3252
      %4144 = vmatprep.subr.bf16.mxu0 0
      %4145 = vmatpush1.bf16.msra.mxu0 %v3253
      %4146 = vmatprep.subr.bf16.mxu0 0
      %4147 = vmatpush1.bf16.msra.mxu0 %v3254
      %4148 = vmatprep.subr.bf16.mxu0 0
      %4149 = vmatpush1.bf16.msra.mxu0 %v3255
      %4150 = vmatprep.subr.bf16.mxu0 0
      %4151 = vmatpush1.bf16.msra.mxu0 %v3256
      %4152 = vmatprep.subr.bf16.mxu0 0
      %4153 = vmatpush1.bf16.msra.mxu0 %v3257
      %4154 = vmatprep.subr.bf16.mxu0 0
      %4155 = vmatpush1.bf16.msra.mxu0 %v3258
      %4156 = vmatprep.subr.bf16.mxu0 0
      %4157 = vmatpush1.bf16.msra.mxu0 %v3259
      %4158 = vmatprep.subr.bf16.mxu0 0
      %4159 = vmatpush1.bf16.msra.mxu0 %v3260
      %4160 = vmatprep.subr.bf16.mxu0 0
      %4161 = vmatpush1.bf16.msra.mxu0 %v3261
      %4162 = vmatprep.subr.bf16.mxu0 0
      %4163 = vmatpush1.bf16.msra.mxu0 %v3262
      %4164 = vmatprep.subr.bf16.mxu0 0
      %4165 = vmatpush1.bf16.msra.mxu0 %v3263
      %4166 = vmatprep.mubr.bf16.mxu0 %v1783
      %4167 = vmatmul.mubr.bf16.gmra.mrb[0].mxu0 %v1782
      %v4168 = vpop.f32.mrb[0].mxu0
      %v4169 = vadd.f32 %v4056, %v4168
      %v4170 = vpop.f32.mrb[0].mxu0
      %v4171 = vpop.f32.mrb[0].mxu0
      %v4172 = vadd.f32 %v4059, %v4171
      %v4173 = vpop.f32.mrb[0].mxu0
      %4174 = vmatprep.mubr.bf16.mxu0 %v1869
      %4175 = vmatmul.mubr.bf16.gmra.mrb[0].mxu0 %v1868
      %v4176 = vpop.f32.mrb[0].mxu0
      %v4177 = vadd.f32 %v4064, %v4176
      %v4178 = vpop.f32.mrb[0].mxu0
      %v4179 = vpop.f32.mrb[0].mxu0
      %v4180 = vadd.f32 %v4067, %v4179
      %v4181 = vpop.f32.mrb[0].mxu0
      %4182 = vmatprep.mubr.bf16.mxu0 %v1947
      %4183 = vmatmul.mubr.bf16.gmra.mrb[0].mxu0 %v1946
      %v4184 = vpop.f32.mrb[0].mxu0
      %v4185 = vadd.f32 %v4072, %v4184
      %v4186 = vpop.f32.mrb[0].mxu0
      %v4187 = vpop.f32.mrb[0].mxu0
      %v4188 = vadd.f32 %v4075, %v4187
      %v4189 = vpop.f32.mrb[0].mxu0
      %4190 = vmatprep.mubr.bf16.mxu0 %v2025
      %4191 = vmatmul.mubr.bf16.gmra.mrb[0].mxu0 %v2024
      %v4192 = vpop.f32.mrb[0].mxu0
      %v4193 = vadd.f32 %v4080, %v4192
      %v4194 = vpop.f32.mrb[0].mxu0
      %v4195 = vpop.f32.mrb[0].mxu0
      %v4196 = vadd.f32 %v4083, %v4195
      %v4197 = vpop.f32.mrb[0].mxu0
      %4198 = vmatprep.mubr.bf16.mxu0 %v2103
      %4199 = vmatmul.mubr.bf16.gmra.mrb[0].mxu0 %v2102
      %v4200 = vpop.f32.mrb[0].mxu0
      %v4201 = vadd.f32 %v4088, %v4200
      %v4202 = vpop.f32.mrb[0].mxu0
      %v4203 = vpop.f32.mrb[0].mxu0
      %v4204 = vadd.f32 %v4091, %v4203
      %v4205 = vpop.f32.mrb[0].mxu0
      %4206 = vmatprep.mubr.bf16.mxu0 %v2199
      %4207 = vmatmul.mubr.bf16.gmra.mrb[0].mxu0 %v2198
      %v4208 = vpop.f32.mrb[0].mxu0
      %v4209 = vadd.f32 %v4096, %v4208
      %v4210 = vpop.f32.mrb[0].mxu0
      %v4211 = vpop.f32.mrb[0].mxu0
      %v4212 = vadd.f32 %v4099, %v4211
      %v4213 = vpop.f32.mrb[0].mxu0
      %4214 = vmatprep.mubr.bf16.mxu0 %v2285
      %4215 = vmatmul.mubr.bf16.gmra.mrb[0].mxu0 %v2284
      %v4216 = vpop.f32.mrb[0].mxu0
      %v4217 = vadd.f32 %v4104, %v4216
      %v4218 = vpop.f32.mrb[0].mxu0
      %v4219 = vpop.f32.mrb[0].mxu0
      %v4220 = vadd.f32 %v4107, %v4219
      %v4221 = vpop.f32.mrb[0].mxu0
      %4222 = vmatprep.mubr.bf16.mxu0 %v2363
      %4223 = vmatmul.mubr.bf16.gmra.mrb[0].mxu0 %v2362
      %v4224 = vpop.f32.mrb[0].mxu0
      %v4225 = vadd.f32 %v4112, %v4224
      %v4226 = vpop.f32.mrb[0].mxu0
      %v4227 = vpop.f32.mrb[0].mxu0
      %v4228 = vadd.f32 %v4115, %v4227
      %v4229 = vpop.f32.mrb[0].mxu0
      %4230 = vmatprep.mubr.bf16.mxu0 %v2441
      %4231 = vmatmul.mubr.bf16.gmra.mrb[0].mxu0 %v2440
      %v4232 = vpop.f32.mrb[0].mxu0
      %v4233 = vadd.f32 %v4120, %v4232
      %v4234 = vpop.f32.mrb[0].mxu0
      %v4235 = vpop.f32.mrb[0].mxu0
      %v4236 = vadd.f32 %v4123, %v4235
      %v4237 = vpop.f32.mrb[0].mxu0
      %4238 = vmatprep.mubr.bf16.mxu0 %v2519
      %4239 = vmatmul.mubr.bf16.gmra.mrb[0].mxu0 %v2518
      %v4240 = vpop.f32.mrb[0].mxu0
      %v4241 = vadd.f32 %v4128, %v4240
      %v4242 = vpop.f32.mrb[0].mxu0
      %v4243 = vpop.f32.mrb[0].mxu0
      %v4244 = vadd.f32 %v4131, %v4243
      %v4245 = vpop.f32.mrb[0].mxu0
      %4246 = vdwg.mxu0
      %4247 = vmatprep.subr.bf16.mxu0 0
      %4248 = vmatpush1.bf16.msra.mxu0 %v3264
      %4249 = vmatprep.subr.bf16.mxu0 0
      %4250 = vmatpush1.bf16.msra.mxu0 %v3265
      %4251 = vmatprep.subr.bf16.mxu0 0
      %4252 = vmatpush1.bf16.msra.mxu0 %v3266
      %4253 = vmatprep.subr.bf16.mxu0 0
      %4254 = vmatpush1.bf16.msra.mxu0 %v3267
      %4255 = vmatprep.subr.bf16.mxu0 0
      %4256 = vmatpush1.bf16.msra.mxu0 %v3268
      %4257 = vmatprep.subr.bf16.mxu0 0
      %4258 = vmatpush1.bf16.msra.mxu0 %v3269
      %4259 = vmatprep.subr.bf16.mxu0 0
      %4260 = vmatpush1.bf16.msra.mxu0 %v3270
      %4261 = vmatprep.subr.bf16.mxu0 0
      %4262 = vmatpush1.bf16.msra.mxu0 %v3271
      %4263 = vmatprep.subr.bf16.mxu0 0
      %4264 = vmatpush1.bf16.msra.mxu0 %v3272
      %4265 = vmatprep.subr.bf16.mxu0 0
      %4266 = vmatpush1.bf16.msra.mxu0 %v3273
      %4267 = vmatprep.subr.bf16.mxu0 0
      %4268 = vmatpush1.bf16.msra.mxu0 %v3274
      %4269 = vmatprep.subr.bf16.mxu0 0
      %4270 = vmatpush1.bf16.msra.mxu0 %v3275
      %4271 = vmatprep.subr.bf16.mxu0 0
      %4272 = vmatpush1.bf16.msra.mxu0 %v3276
      %4273 = vmatprep.subr.bf16.mxu0 0
      %4274 = vmatpush1.bf16.msra.mxu0 %v3277
      %4275 = vmatprep.subr.bf16.mxu0 0
      %4276 = vmatpush1.bf16.msra.mxu0 %v3278
      %4277 = vmatprep.subr.bf16.mxu0 0
      %4278 = vmatpush1.bf16.msra.mxu0 %v3279
      %4279 = vmatprep.mubr.bf16.mxu0 %v1785
      %4280 = vmatmul.mubr.bf16.gmra.mrb[0].mxu0 %v1784
      %v4281 = vpop.f32.mrb[0].mxu0
      %v4282 = vadd.f32 %v4169, %v4281
      %v4283 = vpop.f32.mrb[0].mxu0
      %v4284 = vpop.f32.mrb[0].mxu0
      %v4285 = vadd.f32 %v4172, %v4284
      %v4286 = vpop.f32.mrb[0].mxu0
      %4287 = vmatprep.mubr.bf16.mxu0 %v1871
      %4288 = vmatmul.mubr.bf16.gmra.mrb[0].mxu0 %v1870
      %v4289 = vpop.f32.mrb[0].mxu0
      %v4290 = vadd.f32 %v4177, %v4289
      %v4291 = vpop.f32.mrb[0].mxu0
      %v4292 = vpop.f32.mrb[0].mxu0
      %v4293 = vadd.f32 %v4180, %v4292
      %v4294 = vpop.f32.mrb[0].mxu0
      %4295 = vmatprep.mubr.bf16.mxu0 %v1949
      %4296 = vmatmul.mubr.bf16.gmra.mrb[0].mxu0 %v1948
      %v4297 = vpop.f32.mrb[0].mxu0
      %v4298 = vadd.f32 %v4185, %v4297
      %v4299 = vpop.f32.mrb[0].mxu0
      %v4300 = vpop.f32.mrb[0].mxu0
      %v4301 = vadd.f32 %v4188, %v4300
      %v4302 = vpop.f32.mrb[0].mxu0
      %4303 = vmatprep.mubr.bf16.mxu0 %v2027
      %4304 = vmatmul.mubr.bf16.gmra.mrb[0].mxu0 %v2026
      %v4305 = vpop.f32.mrb[0].mxu0
      %v4306 = vadd.f32 %v4193, %v4305
      %v4307 = vpop.f32.mrb[0].mxu0
      %v4308 = vpop.f32.mrb[0].mxu0
      %v4309 = vadd.f32 %v4196, %v4308
      %v4310 = vpop.f32.mrb[0].mxu0
      %4311 = vmatprep.mubr.bf16.mxu0 %v2105
      %4312 = vmatmul.mubr.bf16.gmra.mrb[0].mxu0 %v2104
      %v4313 = vpop.f32.mrb[0].mxu0
      %v4314 = vadd.f32 %v4201, %v4313
      %v4315 = vpop.f32.mrb[0].mxu0
      %v4316 = vpop.f32.mrb[0].mxu0
      %v4317 = vadd.f32 %v4204, %v4316
      %v4318 = vpop.f32.mrb[0].mxu0
      %4319 = vmatprep.mubr.bf16.mxu0 %v2201
      %4320 = vmatmul.mubr.bf16.gmra.mrb[0].mxu0 %v2200
      %v4321 = vpop.f32.mrb[0].mxu0
      %v4322 = vadd.f32 %v4209, %v4321
      %v4323 = vpop.f32.mrb[0].mxu0
      %v4324 = vpop.f32.mrb[0].mxu0
      %v4325 = vadd.f32 %v4212, %v4324
      %v4326 = vpop.f32.mrb[0].mxu0
      %4327 = vmatprep.mubr.bf16.mxu0 %v2287
      %4328 = vmatmul.mubr.bf16.gmra.mrb[0].mxu0 %v2286
      %v4329 = vpop.f32.mrb[0].mxu0
      %v4330 = vadd.f32 %v4217, %v4329
      %v4331 = vpop.f32.mrb[0].mxu0
      %v4332 = vpop.f32.mrb[0].mxu0
      %v4333 = vadd.f32 %v4220, %v4332
      %v4334 = vpop.f32.mrb[0].mxu0
      %4335 = vmatprep.mubr.bf16.mxu0 %v2365
      %4336 = vmatmul.mubr.bf16.gmra.mrb[0].mxu0 %v2364
      %v4337 = vpop.f32.mrb[0].mxu0
      %v4338 = vadd.f32 %v4225, %v4337
      %v4339 = vpop.f32.mrb[0].mxu0
      %v4340 = vpop.f32.mrb[0].mxu0
      %v4341 = vadd.f32 %v4228, %v4340
      %v4342 = vpop.f32.mrb[0].mxu0
      %4343 = vmatprep.mubr.bf16.mxu0 %v2443
      %4344 = vmatmul.mubr.bf16.gmra.mrb[0].mxu0 %v2442
      %v4345 = vpop.f32.mrb[0].mxu0
      %v4346 = vadd.f32 %v4233, %v4345
      %v4347 = vpop.f32.mrb[0].mxu0
      %v4348 = vpop.f32.mrb[0].mxu0
      %v4349 = vadd.f32 %v4236, %v4348
      %v4350 = vpop.f32.mrb[0].mxu0
      %4351 = vmatprep.mubr.bf16.mxu0 %v2521
      %4352 = vmatmul.mubr.bf16.gmra.mrb[0].mxu0 %v2520
      %v4353 = vpop.f32.mrb[0].mxu0
      %v4354 = vadd.f32 %v4241, %v4353
      %v4355 = vpop.f32.mrb[0].mxu0
      %v4356 = vpop.f32.mrb[0].mxu0
      %v4357 = vadd.f32 %v4244, %v4356
      %v4358 = vpop.f32.mrb[0].mxu0
      %4359 = vdwg.mxu0
      %4360 = vmatprep.subr.bf16.mxu0 0
      %4361 = vmatpush1.bf16.msra.mxu0 %v3280
      %4362 = vmatprep.subr.bf16.mxu0 0
      %4363 = vmatpush1.bf16.msra.mxu0 %v3281
      %4364 = vmatprep.subr.bf16.mxu0 0
      %4365 = vmatpush1.bf16.msra.mxu0 %v3282
      %4366 = vmatprep.subr.bf16.mxu0 0
      %4367 = vmatpush1.bf16.msra.mxu0 %v3283
      %4368 = vmatprep.subr.bf16.mxu0 0
      %4369 = vmatpush1.bf16.msra.mxu0 %v3284
      %4370 = vmatprep.subr.bf16.mxu0 0
      %4371 = vmatpush1.bf16.msra.mxu0 %v3285
      %4372 = vmatprep.subr.bf16.mxu0 0
      %4373 = vmatpush1.bf16.msra.mxu0 %v3286
      %4374 = vmatprep.subr.bf16.mxu0 0
      %4375 = vmatpush1.bf16.msra.mxu0 %v3287
      %4376 = vmatprep.subr.bf16.mxu0 0
      %4377 = vmatpush1.bf16.msra.mxu0 %v3288
      %4378 = vmatprep.subr.bf16.mxu0 0
      %4379 = vmatpush1.bf16.msra.mxu0 %v3289
      %4380 = vmatprep.subr.bf16.mxu0 0
      %4381 = vmatpush1.bf16.msra.mxu0 %v3290
      %4382 = vmatprep.subr.bf16.mxu0 0
      %4383 = vmatpush1.bf16.msra.mxu0 %v3291
      %4384 = vmatprep.subr.bf16.mxu0 0
      %4385 = vmatpush1.bf16.msra.mxu0 %v3292
      %4386 = vmatprep.subr.bf16.mxu0 0
      %4387 = vmatpush1.bf16.msra.mxu0 %v3293
      %4388 = vmatprep.subr.bf16.mxu0 0
      %4389 = vmatpush1.bf16.msra.mxu0 %v3294
      %4390 = vmatprep.subr.bf16.mxu0 0
      %4391 = vmatpush1.bf16.msra.mxu0 %v3295
      %4392 = vmatprep.mubr.bf16.mxu0 %v1787
      %4393 = vmatmul.mubr.bf16.gmra.mrb[0].mxu0 %v1786
      %v4394 = vpop.f32.mrb[0].mxu0
      %v4395 = vadd.f32 %v4282, %v4394
      %v4396 = vpop.f32.mrb[0].mxu0
      %v4397 = vpop.f32.mrb[0].mxu0
      %v4398 = vadd.f32 %v4285, %v4397
      %v4399 = vpop.f32.mrb[0].mxu0
      %4400 = vmatprep.mubr.bf16.mxu0 %v1873
      %4401 = vmatmul.mubr.bf16.gmra.mrb[0].mxu0 %v1872
      %v4402 = vpop.f32.mrb[0].mxu0
      %v4403 = vadd.f32 %v4290, %v4402
      %v4404 = vpop.f32.mrb[0].mxu0
      %v4405 = vpop.f32.mrb[0].mxu0
      %v4406 = vadd.f32 %v4293, %v4405
      %v4407 = vpop.f32.mrb[0].mxu0
      %4408 = vmatprep.mubr.bf16.mxu0 %v1951
      %4409 = vmatmul.mubr.bf16.gmra.mrb[0].mxu0 %v1950
      %v4410 = vpop.f32.mrb[0].mxu0
      %v4411 = vadd.f32 %v4298, %v4410
      %v4412 = vpop.f32.mrb[0].mxu0
      %v4413 = vpop.f32.mrb[0].mxu0
      %v4414 = vadd.f32 %v4301, %v4413
      %v4415 = vpop.f32.mrb[0].mxu0
      %4416 = vmatprep.mubr.bf16.mxu0 %v2029
      %4417 = vmatmul.mubr.bf16.gmra.mrb[0].mxu0 %v2028
      %v4418 = vpop.f32.mrb[0].mxu0
      %v4419 = vadd.f32 %v4306, %v4418
      %v4420 = vpop.f32.mrb[0].mxu0
      %v4421 = vpop.f32.mrb[0].mxu0
      %v4422 = vadd.f32 %v4309, %v4421
      %v4423 = vpop.f32.mrb[0].mxu0
      %4424 = vmatprep.mubr.bf16.mxu0 %v2107
      %4425 = vmatmul.mubr.bf16.gmra.mrb[0].mxu0 %v2106
      %v4426 = vpop.f32.mrb[0].mxu0
      %v4427 = vadd.f32 %v4314, %v4426
      %v4428 = vpop.f32.mrb[0].mxu0
      %v4429 = vpop.f32.mrb[0].mxu0
      %v4430 = vadd.f32 %v4317, %v4429
      %v4431 = vpop.f32.mrb[0].mxu0
      %4432 = vmatprep.mubr.bf16.mxu0 %v2203
      %4433 = vmatmul.mubr.bf16.gmra.mrb[0].mxu0 %v2202
      %v4434 = vpop.f32.mrb[0].mxu0
      %v4435 = vadd.f32 %v4322, %v4434
      %v4436 = vpop.f32.mrb[0].mxu0
      %v4437 = vpop.f32.mrb[0].mxu0
      %v4438 = vadd.f32 %v4325, %v4437
      %v4439 = vpop.f32.mrb[0].mxu0
      %4440 = vmatprep.mubr.bf16.mxu0 %v2289
      %4441 = vmatmul.mubr.bf16.gmra.mrb[0].mxu0 %v2288
      %v4442 = vpop.f32.mrb[0].mxu0
      %v4443 = vadd.f32 %v4330, %v4442
      %v4444 = vpop.f32.mrb[0].mxu0
      %v4445 = vpop.f32.mrb[0].mxu0
      %v4446 = vadd.f32 %v4333, %v4445
      %v4447 = vpop.f32.mrb[0].mxu0
      %4448 = vmatprep.mubr.bf16.mxu0 %v2367
      %4449 = vmatmul.mubr.bf16.gmra.mrb[0].mxu0 %v2366
      %v4450 = vpop.f32.mrb[0].mxu0
      %v4451 = vadd.f32 %v4338, %v4450
      %v4452 = vpop.f32.mrb[0].mxu0
      %v4453 = vpop.f32.mrb[0].mxu0
      %v4454 = vadd.f32 %v4341, %v4453
      %v4455 = vpop.f32.mrb[0].mxu0
      %4456 = vmatprep.mubr.bf16.mxu0 %v2445
      %4457 = vmatmul.mubr.bf16.gmra.mrb[0].mxu0 %v2444
      %v4458 = vpop.f32.mrb[0].mxu0
      %v4459 = vadd.f32 %v4346, %v4458
      %v4460 = vpop.f32.mrb[0].mxu0
      %v4461 = vpop.f32.mrb[0].mxu0
      %v4462 = vadd.f32 %v4349, %v4461
      %v4463 = vpop.f32.mrb[0].mxu0
      %4464 = vmatprep.mubr.bf16.mxu0 %v2523
      %4465 = vmatmul.mubr.bf16.gmra.mrb[0].mxu0 %v2522
      %v4466 = vpop.f32.mrb[0].mxu0
      %v4467 = vadd.f32 %v4354, %v4466
      %v4468 = vpop.f32.mrb[0].mxu0
      %v4469 = vpop.f32.mrb[0].mxu0
      %v4470 = vadd.f32 %v4357, %v4469
      %v4471 = vpop.f32.mrb[0].mxu0
      %4472 = vdwg.mxu0
      %4473 = vmatprep.subr.bf16.mxu0 0
      %4474 = vmatpush1.bf16.msra.mxu0 %v3296
      %4475 = vmatprep.subr.bf16.mxu0 0
      %4476 = vmatpush1.bf16.msra.mxu0 %v3297
      %4477 = vmatprep.subr.bf16.mxu0 0
      %4478 = vmatpush1.bf16.msra.mxu0 %v3298
      %4479 = vmatprep.subr.bf16.mxu0 0
      %4480 = vmatpush1.bf16.msra.mxu0 %v3299
      %4481 = vmatprep.subr.bf16.mxu0 0
      %4482 = vmatpush1.bf16.msra.mxu0 %v3300
      %4483 = vmatprep.subr.bf16.mxu0 0
      %4484 = vmatpush1.bf16.msra.mxu0 %v3301
      %4485 = vmatprep.subr.bf16.mxu0 0
      %4486 = vmatpush1.bf16.msra.mxu0 %v3302
      %4487 = vmatprep.subr.bf16.mxu0 0
      %4488 = vmatpush1.bf16.msra.mxu0 %v3303
      %4489 = vmatprep.subr.bf16.mxu0 0
      %4490 = vmatpush1.bf16.msra.mxu0 0
      %4491 = vmatprep.subr.bf16.mxu0 0
      %4492 = vmatpush1.bf16.msra.mxu0 0
      %4493 = vmatprep.subr.bf16.mxu0 0
      %4494 = vmatpush1.bf16.msra.mxu0 0
      %4495 = vmatprep.subr.bf16.mxu0 0
      %4496 = vmatpush1.bf16.msra.mxu0 0
      %4497 = vmatprep.subr.bf16.mxu0 0
      %4498 = vmatpush1.bf16.msra.mxu0 0
      %4499 = vmatprep.subr.bf16.mxu0 0
      %4500 = vmatpush1.bf16.msra.mxu0 0
      %4501 = vmatprep.subr.bf16.mxu0 0
      %4502 = vmatpush1.bf16.msra.mxu0 0
      %4503 = vmatprep.subr.bf16.mxu0 0
      %4504 = vmatpush1.bf16.msra.mxu0 0
      %4505 = vmatprep.mubr.bf16.mxu0 0
      %4506 = vmatmul.mubr.bf16.gmra.mrb[0].mxu0 %v1788
      %v4507 = vpop.f32.mrb[0].mxu0
      %v4508 = vadd.f32 %v4395, %v4507
      %v4509 = vpop.f32.mrb[0].mxu0
      %v4510 = vpop.f32.mrb[0].mxu0
      %v4511 = vadd.f32 %v4398, %v4510
      %v4512 = vpop.f32.mrb[0].mxu0
      %4513 = vmatprep.mubr.bf16.mxu0 0
      %4514 = vmatmul.mubr.bf16.gmra.mrb[0].mxu0 %v1874
      %v4515 = vpop.f32.mrb[0].mxu0
      %v4516 = vadd.f32 %v4403, %v4515
      %v4517 = vpop.f32.mrb[0].mxu0
      %v4518 = vpop.f32.mrb[0].mxu0
      %v4519 = vadd.f32 %v4406, %v4518
      %v4520 = vpop.f32.mrb[0].mxu0
      %4521 = vmatprep.mubr.bf16.mxu0 0
      %4522 = vmatmul.mubr.bf16.gmra.mrb[0].mxu0 %v1952
      %v4523 = vpop.f32.mrb[0].mxu0
      %v4524 = vadd.f32 %v4411, %v4523
      %v4525 = vpop.f32.mrb[0].mxu0
      %v4526 = vpop.f32.mrb[0].mxu0
      %v4527 = vadd.f32 %v4414, %v4526
      %v4528 = vpop.f32.mrb[0].mxu0
      %4529 = vmatprep.mubr.bf16.mxu0 0
      %4530 = vmatmul.mubr.bf16.gmra.mrb[0].mxu0 %v2030
      %v4531 = vpop.f32.mrb[0].mxu0
      %v4532 = vadd.f32 %v4419, %v4531
      %v4533 = vpop.f32.mrb[0].mxu0
      %v4534 = vpop.f32.mrb[0].mxu0
      %v4535 = vadd.f32 %v4422, %v4534
      %v4536 = vpop.f32.mrb[0].mxu0
      %4537 = vmatprep.mubr.bf16.mxu0 0
      %4538 = vmatmul.mubr.bf16.gmra.mrb[0].mxu0 %v2108
      %v4539 = vpop.f32.mrb[0].mxu0
      %v4540 = vadd.f32 %v4427, %v4539
      %v4541 = vpop.f32.mrb[0].mxu0
      %v4542 = vpop.f32.mrb[0].mxu0
      %v4543 = vadd.f32 %v4430, %v4542
      %v4544 = vpop.f32.mrb[0].mxu0
      %4545 = vmatprep.mubr.bf16.mxu0 0
      %4546 = vmatmul.mubr.bf16.gmra.mrb[0].mxu0 %v2204
      %v4547 = vpop.f32.mrb[0].mxu0
      %v4548 = vadd.f32 %v4435, %v4547
      %v4549 = vpop.f32.mrb[0].mxu0
      %v4550 = vpop.f32.mrb[0].mxu0
      %v4551 = vadd.f32 %v4438, %v4550
      %v4552 = vpop.f32.mrb[0].mxu0
      %4553 = vmatprep.mubr.bf16.mxu0 0
      %4554 = vmatmul.mubr.bf16.gmra.mrb[0].mxu0 %v2290
      %v4555 = vpop.f32.mrb[0].mxu0
      %v4556 = vadd.f32 %v4443, %v4555
      %v4557 = vpop.f32.mrb[0].mxu0
      %v4558 = vpop.f32.mrb[0].mxu0
      %v4559 = vadd.f32 %v4446, %v4558
      %v4560 = vpop.f32.mrb[0].mxu0
      %4561 = vmatprep.mubr.bf16.mxu0 0
      %4562 = vmatmul.mubr.bf16.gmra.mrb[0].mxu0 %v2368
      %v4563 = vpop.f32.mrb[0].mxu0
      %v4564 = vadd.f32 %v4451, %v4563
      %v4565 = vpop.f32.mrb[0].mxu0
      %v4566 = vpop.f32.mrb[0].mxu0
      %v4567 = vadd.f32 %v4454, %v4566
      %v4568 = vpop.f32.mrb[0].mxu0
      %4569 = vmatprep.mubr.bf16.mxu0 0
      %4570 = vmatmul.mubr.bf16.gmra.mrb[0].mxu0 %v2446
      %v4571 = vpop.f32.mrb[0].mxu0
      %v4572 = vadd.f32 %v4459, %v4571
      %v4573 = vpop.f32.mrb[0].mxu0
      %v4574 = vpop.f32.mrb[0].mxu0
      %v4575 = vadd.f32 %v4462, %v4574
      %v4576 = vpop.f32.mrb[0].mxu0
      %4577 = vmatprep.mubr.bf16.mxu0 0
      %4578 = vmatmul.mubr.bf16.gmra.mrb[0].mxu0 %v2524
      %v4579 = vpop.f32.mrb[0].mxu0
      %v4580 = vadd.f32 %v4467, %v4579
      %v4581 = vpop.f32.mrb[0].mxu0
      %v4582 = vpop.f32.mrb[0].mxu0
      %v4583 = vadd.f32 %v4470, %v4582
      %v4584 = vpop.f32.mrb[0].mxu0
      %4585 = vdwg.mxu0
      %v4890 = vunpack.c.l.b16 %v177
      %v4891 = vunpack.c.l.b16 %v178
      %v4892 = vunpack.c.l.b16 %v179
      %v4893 = vunpack.c.l.b16 %v180
      %v4894 = vunpack.c.l.b16 %v181
      %v4895 = vunpack.c.l.b16 %v182
      %v4896 = vunpack.c.l.b16 %v183
      %v4897 = vunpack.c.l.b16 %v184
      %v4898 = vunpack.c.l.b16 %v185
      %v4899 = vunpack.c.l.b16 %v186
      %v4900 = vunpack.c.l.b16 %v187
      %v4901 = vunpack.c.l.b16 %v188
      %v4902 = vunpack.c.l.b16 %v189
      %v4903 = vunpack.c.l.b16 %v190
      %v4904 = vunpack.c.l.b16 %v191
      %v4905 = vunpack.c.l.b16 %v192
      %v4906 = vunpack.c.l.b16 %v193
      %v4907 = vunpack.c.l.b16 %v194
      %v4908 = vunpack.c.l.b16 %v195
      %v4909 = vunpack.c.l.b16 %v196
      %v4910 = vunpack.c.l.b16 %v197
      %v4911 = vunpack.c.l.b16 %v198
      %v4912 = vunpack.c.l.b16 %v199
      %v4913 = vunpack.c.l.b16 %v200
      %v4914 = vunpack.c.l.b16 %v201
      %v4915 = vunpack.c.l.b16 %v202
      %v4916 = vunpack.c.l.b16 %v203
      %v4917 = vunpack.c.l.b16 %v204
      %v4918 = vunpack.c.l.b16 %v205
      %v4919 = vunpack.c.l.b16 %v206
      %v4920 = vunpack.c.l.b16 %v207
      %v4921 = vunpack.c.l.b16 %v208
      %v4922 = vunpack.c.l.b16 %v209
      %v4923 = vunpack.c.l.b16 %v210
      %v4924 = vunpack.c.l.b16 %v211
      %v4925 = vunpack.c.l.b16 %v212
      %v4926 = vunpack.c.l.b16 %v213
      %v4927 = vunpack.c.l.b16 %v214
      %v4928 = vunpack.c.l.b16 %v215
      %v4929 = vunpack.c.l.b16 %v216
      %v4930 = vunpack.c.l.b16 %v217
      %v4931 = vunpack.c.l.b16 %v218
      %v4932 = vunpack.c.l.b16 %v219
      %v4933 = vunpack.c.l.b16 %v220
      %v4934 = vunpack.c.l.b16 %v221
      %v4935 = vunpack.c.l.b16 %v222
      %v4936 = vunpack.c.l.b16 %v223
      %v4937 = vunpack.c.l.b16 %v224
      %v4938 = vunpack.c.l.b16 %v225
      %v4939 = vunpack.c.l.b16 %v226
      %v4940 = vunpack.c.l.b16 %v227
      %v4941 = vunpack.c.l.b16 %v228
      %v4942 = vunpack.c.l.b16 %v229
      %v4943 = vunpack.c.l.b16 %v230
      %v4944 = vunpack.c.l.b16 %v231
      %v4945 = vunpack.c.l.b16 %v232
      %v4946 = vunpack.c.l.b16 %v233
      %v4947 = vunpack.c.l.b16 %v234
      %v4948 = vunpack.c.l.b16 %v235
      %v4949 = vunpack.c.l.b16 %v236
      %v4950 = vunpack.c.l.b16 %v237
      %v4951 = vunpack.c.l.b16 %v238
      %v4952 = vunpack.c.l.b16 %v239
      %v4953 = vunpack.c.l.b16 %v240
      %v4954 = vunpack.c.l.b16 %v241
      %v4955 = vunpack.c.l.b16 %v242
      %v4956 = vunpack.c.l.b16 %v243
      %v4957 = vunpack.c.l.b16 %v244
      %v4958 = vunpack.c.l.b16 %v245
      %v4959 = vunpack.c.l.b16 %v246
      %v4960 = vunpack.c.l.b16 %v247
      %v4961 = vunpack.c.l.b16 %v248
      %v4962 = vunpack.c.l.b16 %v249
      %v4963 = vunpack.c.l.b16 %v250
      %v4964 = vunpack.c.l.b16 %v251
      %v4965 = vunpack.c.l.b16 %v252
      %v4966 = vunpack.c.l.b16 %v253
      %v4967 = vunpack.c.l.b16 %v254
      %v4968 = vunpack.c.l.b16 %v255
      %v4969 = vunpack.c.l.b16 %v256
      %v4970 = vunpack.c.l.b16 %v257
      %v4971 = vunpack.c.l.b16 %v258
      %v4972 = vunpack.c.l.b16 %v259
      %v4973 = vunpack.c.l.b16 %v260
      %v4974 = vunpack.c.l.b16 %v261
      %v4975 = vunpack.c.l.b16 %v262
      %v4976 = vunpack.c.l.b16 %v263
      %v4977 = vunpack.c.l.b16 %v264
      %v4978 = vunpack.c.l.b16 %v265
      %v4979 = vunpack.c.l.b16 %v266
      %v4980 = vunpack.c.l.b16 %v267
      %v4981 = vunpack.c.l.b16 %v268
      %v4982 = vunpack.c.l.b16 %v269
      %v4983 = vunpack.c.l.b16 %v270
      %v4984 = vunpack.c.l.b16 %v271
      %v4985 = vunpack.c.l.b16 %v272
      %v4986 = vunpack.c.l.b16 %v273
      %v4987 = vunpack.c.l.b16 %v274
      %v4988 = vunpack.c.l.b16 %v275
      %v4989 = vunpack.c.l.b16 %v276
      %v4990 = vunpack.c.l.b16 %v277
      %v4991 = vunpack.c.l.b16 %v278
      %v4992 = vunpack.c.l.b16 %v279
      %v4993 = vunpack.c.l.b16 %v280
      %v4994 = vunpack.c.l.b16 %v281
      %v4995 = vunpack.c.l.b16 %v282
      %v4996 = vunpack.c.l.b16 %v283
      %v4997 = vunpack.c.l.b16 %v284
      %v4998 = vunpack.c.l.b16 %v285
      %v4999 = vunpack.c.l.b16 %v286
      %v5000 = vunpack.c.l.b16 %v287
      %v5001 = vunpack.c.l.b16 %v288
      %v5002 = vunpack.c.l.b16 %v289
      %v5003 = vunpack.c.l.b16 %v290
      %v5004 = vunpack.c.l.b16 %v291
      %v5005 = vunpack.c.l.b16 %v292
      %v5006 = vunpack.c.l.b16 %v293
      %v5007 = vunpack.c.l.b16 %v294
      %v5008 = vunpack.c.l.b16 %v295
      %v5009 = vunpack.c.l.b16 %v296
      %v5010 = vunpack.c.l.b16 %v297
      %v5011 = vunpack.c.l.b16 %v298
      %v5012 = vunpack.c.l.b16 %v299
      %v5013 = vunpack.c.l.b16 %v300
      %v5014 = vunpack.c.l.b16 %v301
      %v5015 = vunpack.c.l.b16 %v302
      %v5016 = vunpack.c.l.b16 %v303
      %v5017 = vunpack.c.l.b16 %v304
      %v5018 = vunpack.c.l.b16 %v305
      %v5019 = vunpack.c.l.b16 %v306
      %v5020 = vunpack.c.l.b16 %v307
      %v5021 = vunpack.c.l.b16 %v308
      %v5022 = vunpack.c.l.b16 %v309
      %v5023 = vunpack.c.l.b16 %v310
      %v5024 = vunpack.c.l.b16 %v311
      %v5025 = vunpack.c.l.b16 %v312
      %v5026 = vunpack.c.l.b16 %v313
      %v5027 = vunpack.c.l.b16 %v314
      %v5028 = vunpack.c.l.b16 %v315
      %v5029 = vunpack.c.l.b16 %v316
      %v5030 = vunpack.c.l.b16 %v317
      %v5031 = vunpack.c.l.b16 %v318
      %v5032 = vunpack.c.l.b16 %v319
      %v5033 = vunpack.c.l.b16 %v320
      %v5034 = vunpack.c.l.b16 %v321
      %v5035 = vunpack.c.l.b16 %v322
      %v5036 = vunpack.c.l.b16 %v323
      %v5037 = vunpack.c.l.b16 %v324
      %v5038 = vunpack.c.l.b16 %v325
      %v5039 = vunpack.c.l.b16 %v326
      %v5040 = vunpack.c.l.b16 %v327
      %v5041 = vunpack.c.l.b16 %v328
      %v5042 = vunpack.c.l.b16 %v329
      %v5043 = vunpack.c.l.b16 %v330
      %v5044 = vunpack.c.l.b16 %v331
      %v5045 = vunpack.c.l.b16 %v332
      %v5046 = vunpack.c.l.b16 %v333
      %v5047 = vunpack.c.l.b16 %v334
      %v5048 = vunpack.c.l.b16 %v335
      %v5049 = vunpack.c.l.b16 %v336
      %v5050 = vunpack.c.l.b16 %v337
      %v5051 = vunpack.c.l.b16 %v338
      %v5052 = vunpack.c.l.b16 %v339
      %v5053 = vunpack.c.l.b16 %v340
      %v5054 = vunpack.c.l.b16 %v341
      %v5055 = vunpack.c.l.b16 %v342
      %v5056 = vunpack.c.l.b16 %v343
      %v5057 = vunpack.c.l.b16 %v344
      %v5058 = vunpack.c.l.b16 %v345
      %v5059 = vunpack.c.l.b16 %v346
      %v5060 = vunpack.c.l.b16 %v347
      %v5061 = vunpack.c.l.b16 %v348
      %v5062 = vunpack.c.l.b16 %v349
      %v5063 = vunpack.c.l.b16 %v350
      %v5064 = vunpack.c.l.b16 %v351
      %v5065 = vunpack.c.l.b16 %v352
      %v5066 = vunpack.c.l.b16 %v353
      %v5067 = vunpack.c.l.b16 %v354
      %v5068 = vunpack.c.l.b16 %v355
      %v5069 = vunpack.c.l.b16 %v356
      %v5070 = vunpack.c.l.b16 %v357
      %v5071 = vunpack.c.l.b16 %v358
      %v5072 = vunpack.c.l.b16 %v359
      %v5073 = vunpack.c.l.b16 %v360
      %v5074 = vunpack.c.l.b16 %v361
      %v5075 = vunpack.c.l.b16 %v362
      %v5076 = vunpack.c.l.b16 %v363
      %v5077 = vunpack.c.l.b16 %v364
      %v5078 = vunpack.c.l.b16 %v365
      %v5079 = vunpack.c.l.b16 %v366
      %v5080 = vunpack.c.l.b16 %v367
      %v5081 = vunpack.c.l.b16 %v368
      %v5082 = vunpack.c.l.b16 %v369
      %v5083 = vunpack.c.l.b16 %v370
      %v5084 = vunpack.c.l.b16 %v371
      %v5085 = vunpack.c.l.b16 %v372
      %v5086 = vunpack.c.l.b16 %v373
      %v5087 = vunpack.c.l.b16 %v374
      %v5088 = vunpack.c.l.b16 %v375
      %v5089 = vunpack.c.l.b16 %v376
      %v5090 = vunpack.c.l.b16 %v377
      %v5091 = vunpack.c.l.b16 %v378
      %v5092 = vunpack.c.l.b16 %v379
      %v5093 = vunpack.c.l.b16 %v380
      %v5094 = vunpack.c.l.b16 %v381
      %v5095 = vunpack.c.l.b16 %v382
      %v5096 = vunpack.c.l.b16 %v383
      %v5097 = vunpack.c.l.b16 %v384
      %v5098 = vunpack.c.l.b16 %v385
      %v5099 = vunpack.c.l.b16 %v386
      %v5100 = vunpack.c.l.b16 %v387
      %v5101 = vunpack.c.l.b16 %v388
      %v5102 = vunpack.c.l.b16 %v389
      %v5103 = vunpack.c.l.b16 %v390
      %v5104 = vunpack.c.l.b16 %v391
      %v5105 = vunpack.c.l.b16 %v392
      %v5106 = vunpack.c.l.b16 %v393
      %v5107 = vunpack.c.l.b16 %v394
      %v5108 = vunpack.c.l.b16 %v395
      %v5109 = vunpack.c.l.b16 %v396
      %v5110 = vunpack.c.l.b16 %v397
      %v5111 = vunpack.c.l.b16 %v398
      %v5112 = vunpack.c.l.b16 %v399
      %v5113 = vunpack.c.l.b16 %v400
      %v5114 = vunpack.c.l.b16 %v401
      %v5115 = vunpack.c.l.b16 %v402
      %v5116 = vunpack.c.l.b16 %v403
      %v5117 = vunpack.c.l.b16 %v404
      %v5118 = vunpack.c.l.b16 %v405
      %v5119 = vunpack.c.l.b16 %v406
      %v5120 = vunpack.c.l.b16 %v407
      %v5121 = vunpack.c.l.b16 %v408
      %v5122 = vunpack.c.l.b16 %v409
      %v5123 = vunpack.c.l.b16 %v410
      %v5124 = vunpack.c.l.b16 %v411
      %v5125 = vunpack.c.l.b16 %v412
      %v5126 = vunpack.c.l.b16 %v413
      %v5127 = vunpack.c.l.b16 %v414
      %v5128 = vunpack.c.l.b16 %v415
      %v5129 = vunpack.c.l.b16 %v416
      %v5130 = vunpack.c.l.b16 %v417
      %v5131 = vunpack.c.l.b16 %v418
      %v5132 = vunpack.c.l.b16 %v419
      %v5133 = vunpack.c.l.b16 %v420
      %v5134 = vunpack.c.l.b16 %v421
      %v5135 = vunpack.c.l.b16 %v422
      %v5136 = vunpack.c.l.b16 %v423
      %v5137 = vunpack.c.l.b16 %v424
      %v5138 = vunpack.c.l.b16 %v425
      %v5139 = vunpack.c.l.b16 %v426
      %v5140 = vunpack.c.l.b16 %v427
      %v5141 = vunpack.c.l.b16 %v428
      %v5142 = vunpack.c.l.b16 %v429
      %v5143 = vunpack.c.l.b16 %v430
      %v5144 = vunpack.c.l.b16 %v431
      %v5145 = vunpack.c.l.b16 %v432
      %v5146 = vunpack.c.l.b16 %v433
      %v5147 = vunpack.c.l.b16 %v434
      %v5148 = vunpack.c.l.b16 %v435
      %v5149 = vunpack.c.l.b16 %v436
      %v5150 = vunpack.c.l.b16 %v437
      %v5151 = vunpack.c.l.b16 %v438
      %v5152 = vunpack.c.l.b16 %v439
      %v5153 = vunpack.c.l.b16 %v440
      %v5154 = vunpack.c.l.b16 %v441
      %v5155 = vunpack.c.l.b16 %v442
      %v5156 = vunpack.c.l.b16 %v443
      %v5157 = vunpack.c.l.b16 %v444
      %v5158 = vunpack.c.l.b16 %v445
      %v5159 = vunpack.c.l.b16 %v446
      %v5160 = vunpack.c.l.b16 %v447
      %v5161 = vunpack.c.l.b16 %v448
      %v5162 = vunpack.c.l.b16 %v449
      %v5163 = vunpack.c.l.b16 %v450
      %v5164 = vunpack.c.l.b16 %v451
      %v5165 = vunpack.c.l.b16 %v452
      %v5166 = vunpack.c.l.b16 %v453
      %v5167 = vunpack.c.l.b16 %v454
      %v5168 = vunpack.c.l.b16 %v455
      %v5169 = vunpack.c.l.b16 %v456
      %v5170 = vunpack.c.l.b16 %v457
      %v5171 = vunpack.c.l.b16 %v458
      %v5172 = vunpack.c.l.b16 %v459
      %v5173 = vunpack.c.l.b16 %v460
      %v5174 = vunpack.c.l.b16 %v461
      %v5175 = vunpack.c.l.b16 %v462
      %v5176 = vunpack.c.l.b16 %v463
      %v5177 = vunpack.c.l.b16 %v464
      %v5178 = vunpack.c.l.b16 %v465
      %v5179 = vunpack.c.l.b16 %v466
      %v5180 = vunpack.c.l.b16 %v467
      %v5181 = vunpack.c.l.b16 %v468
      %v5182 = vunpack.c.l.b16 %v469
      %v5183 = vunpack.c.l.b16 %v470
      %v5184 = vunpack.c.l.b16 %v471
      %v5185 = vunpack.c.l.b16 %v472
      %v5186 = vunpack.c.l.b16 %v473
      %v5187 = vunpack.c.l.b16 %v474
      %v5188 = vunpack.c.l.b16 %v475
      %v5189 = vunpack.c.l.b16 %v476
      %v5190 = vunpack.c.l.b16 %v477
      %v5191 = vunpack.c.l.b16 %v478
      %v5192 = vunpack.c.l.b16 %v479
      %v5193 = vunpack.c.l.b16 %v480
      %v5194 = vpack.c.b16 %v4891, %v4890
      %v5195 = vpack.c.b16 %v4893, %v4892
      %v5196 = vpack.c.b16 %v4895, %v4894
      %v5197 = vpack.c.b16 %v4897, %v4896
      %v5198 = vpack.c.b16 %v4899, %v4898
      %v5199 = vpack.c.b16 %v4901, %v4900
      %v5200 = vpack.c.b16 %v4903, %v4902
      %v5201 = vpack.c.b16 %v4905, %v4904
      %v5202 = vpack.c.b16 %v4907, %v4906
      %v5203 = vpack.c.b16 %v4909, %v4908
      %v5204 = vpack.c.b16 %v4911, %v4910
      %v5205 = vpack.c.b16 %v4913, %v4912
      %v5206 = vpack.c.b16 %v4915, %v4914
      %v5207 = vpack.c.b16 %v4917, %v4916
      %v5208 = vpack.c.b16 %v4919, %v4918
      %v5209 = vpack.c.b16 %v4921, %v4920
      %v5210 = vpack.c.b16 %v4923, %v4922
      %v5211 = vpack.c.b16 %v4925, %v4924
      %v5212 = vpack.c.b16 %v4927, %v4926
      %v5213 = vpack.c.b16 %v4929, %v4928
      %v5214 = vpack.c.b16 %v4931, %v4930
      %v5215 = vpack.c.b16 %v4933, %v4932
      %v5216 = vpack.c.b16 %v4935, %v4934
      %v5217 = vpack.c.b16 %v4937, %v4936
      %v5218 = vpack.c.b16 %v4939, %v4938
      %v5219 = vpack.c.b16 %v4941, %v4940
      %v5220 = vpack.c.b16 %v4943, %v4942
      %v5221 = vpack.c.b16 %v4945, %v4944
      %v5222 = vpack.c.b16 %v4947, %v4946
      %v5223 = vpack.c.b16 %v4949, %v4948
      %v5224 = vpack.c.b16 %v4951, %v4950
      %v5225 = vpack.c.b16 %v4953, %v4952
      %v5226 = vpack.c.b16 %v4955, %v4954
      %v5227 = vpack.c.b16 %v4957, %v4956
      %v5228 = vpack.c.b16 %v4959, %v4958
      %v5229 = vpack.c.b16 %v4961, %v4960
      %v5230 = vpack.c.b16 %v4963, %v4962
      %v5231 = vpack.c.b16 %v4965, %v4964
      %v5232 = vpack.c.b16 %v4967, %v4966
      %v5233 = vpack.c.b16 %v4969, %v4968
      %v5234 = vpack.c.b16 %v4971, %v4970
      %v5235 = vpack.c.b16 %v4973, %v4972
      %v5236 = vpack.c.b16 %v4975, %v4974
      %v5237 = vpack.c.b16 %v4977, %v4976
      %v5238 = vpack.c.b16 %v4979, %v4978
      %v5239 = vpack.c.b16 %v4981, %v4980
      %v5240 = vpack.c.b16 %v4983, %v4982
      %v5241 = vpack.c.b16 %v4985, %v4984
      %v5242 = vpack.c.b16 %v4987, %v4986
      %v5243 = vpack.c.b16 %v4989, %v4988
      %v5244 = vpack.c.b16 %v4991, %v4990
      %v5245 = vpack.c.b16 %v4993, %v4992
      %v5246 = vpack.c.b16 %v4995, %v4994
      %v5247 = vpack.c.b16 %v4997, %v4996
      %v5248 = vpack.c.b16 %v4999, %v4998
      %v5249 = vpack.c.b16 %v5001, %v5000
      %v5250 = vpack.c.b16 %v5003, %v5002
      %v5251 = vpack.c.b16 %v5005, %v5004
      %v5252 = vpack.c.b16 %v5007, %v5006
      %v5253 = vpack.c.b16 %v5009, %v5008
      %v5254 = vpack.c.b16 %v5011, %v5010
      %v5255 = vpack.c.b16 %v5013, %v5012
      %v5256 = vpack.c.b16 %v5015, %v5014
      %v5257 = vpack.c.b16 %v5017, %v5016
      %v5258 = vpack.c.b16 %v5019, %v5018
      %v5259 = vpack.c.b16 %v5021, %v5020
      %v5260 = vpack.c.b16 %v5023, %v5022
      %v5261 = vpack.c.b16 %v5025, %v5024
      %v5262 = vpack.c.b16 %v5027, %v5026
      %v5263 = vpack.c.b16 %v5029, %v5028
      %v5264 = vpack.c.b16 %v5031, %v5030
      %v5265 = vpack.c.b16 %v5033, %v5032
      %v5266 = vpack.c.b16 %v5035, %v5034
      %v5267 = vpack.c.b16 %v5037, %v5036
      %v5268 = vpack.c.b16 %v5039, %v5038
      %v5269 = vpack.c.b16 %v5041, %v5040
      %v5270 = vpack.c.b16 %v5043, %v5042
      %v5271 = vpack.c.b16 %v5045, %v5044
      %v5272 = vpack.c.b16 %v5047, %v5046
      %v5273 = vpack.c.b16 %v5049, %v5048
      %v5274 = vpack.c.b16 %v5051, %v5050
      %v5275 = vpack.c.b16 %v5053, %v5052
      %v5276 = vpack.c.b16 %v5055, %v5054
      %v5277 = vpack.c.b16 %v5057, %v5056
      %v5278 = vpack.c.b16 %v5059, %v5058
      %v5279 = vpack.c.b16 %v5061, %v5060
      %v5280 = vpack.c.b16 %v5063, %v5062
      %v5281 = vpack.c.b16 %v5065, %v5064
      %v5282 = vpack.c.b16 %v5067, %v5066
      %v5283 = vpack.c.b16 %v5069, %v5068
      %v5284 = vpack.c.b16 %v5071, %v5070
      %v5285 = vpack.c.b16 %v5073, %v5072
      %v5286 = vpack.c.b16 %v5075, %v5074
      %v5287 = vpack.c.b16 %v5077, %v5076
      %v5288 = vpack.c.b16 %v5079, %v5078
      %v5289 = vpack.c.b16 %v5081, %v5080
      %v5290 = vpack.c.b16 %v5083, %v5082
      %v5291 = vpack.c.b16 %v5085, %v5084
      %v5292 = vpack.c.b16 %v5087, %v5086
      %v5293 = vpack.c.b16 %v5089, %v5088
      %v5294 = vpack.c.b16 %v5091, %v5090
      %v5295 = vpack.c.b16 %v5093, %v5092
      %v5296 = vpack.c.b16 %v5095, %v5094
      %v5297 = vpack.c.b16 %v5097, %v5096
      %v5298 = vpack.c.b16 %v5099, %v5098
      %v5299 = vpack.c.b16 %v5101, %v5100
      %v5300 = vpack.c.b16 %v5103, %v5102
      %v5301 = vpack.c.b16 %v5105, %v5104
      %v5302 = vpack.c.b16 %v5107, %v5106
      %v5303 = vpack.c.b16 %v5109, %v5108
      %v5304 = vpack.c.b16 %v5111, %v5110
      %v5305 = vpack.c.b16 %v5113, %v5112
      %v5306 = vpack.c.b16 %v5115, %v5114
      %v5307 = vpack.c.b16 %v5117, %v5116
      %v5308 = vpack.c.b16 %v5119, %v5118
      %v5309 = vpack.c.b16 %v5121, %v5120
      %v5310 = vpack.c.b16 %v5123, %v5122
      %v5311 = vpack.c.b16 %v5125, %v5124
      %v5312 = vpack.c.b16 %v5127, %v5126
      %v5313 = vpack.c.b16 %v5129, %v5128
      %v5314 = vpack.c.b16 %v5131, %v5130
      %v5315 = vpack.c.b16 %v5133, %v5132
      %v5316 = vpack.c.b16 %v5135, %v5134
      %v5317 = vpack.c.b16 %v5137, %v5136
      %v5318 = vpack.c.b16 %v5139, %v5138
      %v5319 = vpack.c.b16 %v5141, %v5140
      %v5320 = vpack.c.b16 %v5143, %v5142
      %v5321 = vpack.c.b16 %v5145, %v5144
      %v5322 = vpack.c.b16 %v5147, %v5146
      %v5323 = vpack.c.b16 %v5149, %v5148
      %v5324 = vpack.c.b16 %v5151, %v5150
      %v5325 = vpack.c.b16 %v5153, %v5152
      %v5326 = vpack.c.b16 %v5155, %v5154
      %v5327 = vpack.c.b16 %v5157, %v5156
      %v5328 = vpack.c.b16 %v5159, %v5158
      %v5329 = vpack.c.b16 %v5161, %v5160
      %v5330 = vpack.c.b16 %v5163, %v5162
      %v5331 = vpack.c.b16 %v5165, %v5164
      %v5332 = vpack.c.b16 %v5167, %v5166
      %v5333 = vpack.c.b16 %v5169, %v5168
      %v5334 = vpack.c.b16 %v5171, %v5170
      %v5335 = vpack.c.b16 %v5173, %v5172
      %v5336 = vpack.c.b16 %v5175, %v5174
      %v5337 = vpack.c.b16 %v5177, %v5176
      %v5338 = vpack.c.b16 %v5179, %v5178
      %v5339 = vpack.c.b16 %v5181, %v5180
      %v5340 = vpack.c.b16 %v5183, %v5182
      %v5341 = vpack.c.b16 %v5185, %v5184
      %v5342 = vpack.c.b16 %v5187, %v5186
      %v5343 = vpack.c.b16 %v5189, %v5188
      %v5344 = vpack.c.b16 %v5191, %v5190
      %v5345 = vpack.c.b16 %v5193, %v5192
      %5498 = vmatprep.subr.bf16.mxu0 0
      %5499 = vmatpush1.bf16.msra.mxu0 %v5194
      %5500 = vmatprep.subr.bf16.mxu0 0
      %5501 = vmatpush1.bf16.msra.mxu0 %v5195
      %5502 = vmatprep.subr.bf16.mxu0 0
      %5503 = vmatpush1.bf16.msra.mxu0 %v5196
      %5504 = vmatprep.subr.bf16.mxu0 0
      %5505 = vmatpush1.bf16.msra.mxu0 %v5197
      %5506 = vmatprep.subr.bf16.mxu0 0
      %5507 = vmatpush1.bf16.msra.mxu0 %v5198
      %5508 = vmatprep.subr.bf16.mxu0 0
      %5509 = vmatpush1.bf16.msra.mxu0 %v5199
      %5510 = vmatprep.subr.bf16.mxu0 0
      %5511 = vmatpush1.bf16.msra.mxu0 %v5200
      %5512 = vmatprep.subr.bf16.mxu0 0
      %5513 = vmatpush1.bf16.msra.mxu0 %v5201
      %5514 = vmatprep.subr.bf16.mxu0 0
      %5515 = vmatpush1.bf16.msra.mxu0 %v5202
      %5516 = vmatprep.subr.bf16.mxu0 0
      %5517 = vmatpush1.bf16.msra.mxu0 %v5203
      %5518 = vmatprep.subr.bf16.mxu0 0
      %5519 = vmatpush1.bf16.msra.mxu0 %v5204
      %5520 = vmatprep.subr.bf16.mxu0 0
      %5521 = vmatpush1.bf16.msra.mxu0 %v5205
      %5522 = vmatprep.subr.bf16.mxu0 0
      %5523 = vmatpush1.bf16.msra.mxu0 %v5206
      %5524 = vmatprep.subr.bf16.mxu0 0
      %5525 = vmatpush1.bf16.msra.mxu0 %v5207
      %5526 = vmatprep.subr.bf16.mxu0 0
      %5527 = vmatpush1.bf16.msra.mxu0 %v5208
      %5528 = vmatprep.subr.bf16.mxu0 0
      %5529 = vmatpush1.bf16.msra.mxu0 %v5209
      %5530 = vmatprep.mubr.bf16.mxu0 %v585
      %5531 = vmatmul.mubr.bf16.gmra.mrb[0].mxu0 %v584
      %v5532 = vpop.f32.mrb[0].mxu0
      %v5533 = vadd.f32 %v4508, %v5532
      %v5534 = vpop.f32.mrb[0].mxu0
      %v5535 = vpop.f32.mrb[0].mxu0
      %v5536 = vadd.f32 %v4511, %v5535
      %v5537 = vpop.f32.mrb[0].mxu0
      %5538 = vmatprep.mubr.bf16.mxu0 %v672
      %5539 = vmatmul.mubr.bf16.gmra.mrb[0].mxu0 %v671
      %v5540 = vpop.f32.mrb[0].mxu0
      %v5541 = vadd.f32 %v4516, %v5540
      %v5542 = vpop.f32.mrb[0].mxu0
      %v5543 = vpop.f32.mrb[0].mxu0
      %v5544 = vadd.f32 %v4519, %v5543
      %v5545 = vpop.f32.mrb[0].mxu0
      %5546 = vmatprep.mubr.bf16.mxu0 %v751
      %5547 = vmatmul.mubr.bf16.gmra.mrb[0].mxu0 %v750
      %v5548 = vpop.f32.mrb[0].mxu0
      %v5549 = vadd.f32 %v4524, %v5548
      %v5550 = vpop.f32.mrb[0].mxu0
      %v5551 = vpop.f32.mrb[0].mxu0
      %v5552 = vadd.f32 %v4527, %v5551
      %v5553 = vpop.f32.mrb[0].mxu0
      %5554 = vmatprep.mubr.bf16.mxu0 %v830
      %5555 = vmatmul.mubr.bf16.gmra.mrb[0].mxu0 %v829
      %v5556 = vpop.f32.mrb[0].mxu0
      %v5557 = vadd.f32 %v4532, %v5556
      %v5558 = vpop.f32.mrb[0].mxu0
      %v5559 = vpop.f32.mrb[0].mxu0
      %v5560 = vadd.f32 %v4535, %v5559
      %v5561 = vpop.f32.mrb[0].mxu0
      %5562 = vmatprep.mubr.bf16.mxu0 %v909
      %5563 = vmatmul.mubr.bf16.gmra.mrb[0].mxu0 %v908
      %v5564 = vpop.f32.mrb[0].mxu0
      %v5565 = vadd.f32 %v4540, %v5564
      %v5566 = vpop.f32.mrb[0].mxu0
      %v5567 = vpop.f32.mrb[0].mxu0
      %v5568 = vadd.f32 %v4543, %v5567
      %v5569 = vpop.f32.mrb[0].mxu0
      %5570 = vmatprep.mubr.bf16.mxu0 %v1005
      %5571 = vmatmul.mubr.bf16.gmra.mrb[0].mxu0 %v1004
      %v5572 = vpop.f32.mrb[0].mxu0
      %v5573 = vadd.f32 %v4548, %v5572
      %v5574 = vpop.f32.mrb[0].mxu0
      %v5575 = vpop.f32.mrb[0].mxu0
      %v5576 = vadd.f32 %v4551, %v5575
      %v5577 = vpop.f32.mrb[0].mxu0
      %5578 = vmatprep.mubr.bf16.mxu0 %v1091
      %5579 = vmatmul.mubr.bf16.gmra.mrb[0].mxu0 %v1090
      %v5580 = vpop.f32.mrb[0].mxu0
      %v5581 = vadd.f32 %v4556, %v5580
      %v5582 = vpop.f32.mrb[0].mxu0
      %v5583 = vpop.f32.mrb[0].mxu0
      %v5584 = vadd.f32 %v4559, %v5583
      %v5585 = vpop.f32.mrb[0].mxu0
      %5586 = vmatprep.mubr.bf16.mxu0 %v1169
      %5587 = vmatmul.mubr.bf16.gmra.mrb[0].mxu0 %v1168
      %v5588 = vpop.f32.mrb[0].mxu0
      %v5589 = vadd.f32 %v4564, %v5588
      %v5590 = vpop.f32.mrb[0].mxu0
      %v5591 = vpop.f32.mrb[0].mxu0
      %v5592 = vadd.f32 %v4567, %v5591
      %v5593 = vpop.f32.mrb[0].mxu0
      %5594 = vmatprep.mubr.bf16.mxu0 %v1247
      %5595 = vmatmul.mubr.bf16.gmra.mrb[0].mxu0 %v1246
      %v5596 = vpop.f32.mrb[0].mxu0
      %v5597 = vadd.f32 %v4572, %v5596
      %v5598 = vpop.f32.mrb[0].mxu0
      %v5599 = vpop.f32.mrb[0].mxu0
      %v5600 = vadd.f32 %v4575, %v5599
      %v5601 = vpop.f32.mrb[0].mxu0
      %5602 = vmatprep.mubr.bf16.mxu0 %v1325
      %5603 = vmatmul.mubr.bf16.gmra.mrb[0].mxu0 %v1324
      %v5604 = vpop.f32.mrb[0].mxu0
      %v5605 = vadd.f32 %v4580, %v5604
      %v5606 = vpop.f32.mrb[0].mxu0
      %v5607 = vpop.f32.mrb[0].mxu0
      %v5608 = vadd.f32 %v4583, %v5607
      %v5609 = vpop.f32.mrb[0].mxu0
      %5610 = vdwg.mxu0
      %5611 = vmatprep.subr.bf16.mxu0 0
      %5612 = vmatpush1.bf16.msra.mxu0 %v5210
      %5613 = vmatprep.subr.bf16.mxu0 0
      %5614 = vmatpush1.bf16.msra.mxu0 %v5211
      %5615 = vmatprep.subr.bf16.mxu0 0
      %5616 = vmatpush1.bf16.msra.mxu0 %v5212
      %5617 = vmatprep.subr.bf16.mxu0 0
      %5618 = vmatpush1.bf16.msra.mxu0 %v5213
      %5619 = vmatprep.subr.bf16.mxu0 0
      %5620 = vmatpush1.bf16.msra.mxu0 %v5214
      %5621 = vmatprep.subr.bf16.mxu0 0
      %5622 = vmatpush1.bf16.msra.mxu0 %v5215
      %5623 = vmatprep.subr.bf16.mxu0 0
      %5624 = vmatpush1.bf16.msra.mxu0 %v5216
      %5625 = vmatprep.subr.bf16.mxu0 0
      %5626 = vmatpush1.bf16.msra.mxu0 %v5217
      %5627 = vmatprep.subr.bf16.mxu0 0
      %5628 = vmatpush1.bf16.msra.mxu0 %v5218
      %5629 = vmatprep.subr.bf16.mxu0 0
      %5630 = vmatpush1.bf16.msra.mxu0 %v5219
      %5631 = vmatprep.subr.bf16.mxu0 0
      %5632 = vmatpush1.bf16.msra.mxu0 %v5220
      %5633 = vmatprep.subr.bf16.mxu0 0
      %5634 = vmatpush1.bf16.msra.mxu0 %v5221
      %5635 = vmatprep.subr.bf16.mxu0 0
      %5636 = vmatpush1.bf16.msra.mxu0 %v5222
      %5637 = vmatprep.subr.bf16.mxu0 0
      %5638 = vmatpush1.bf16.msra.mxu0 %v5223
      %5639 = vmatprep.subr.bf16.mxu0 0
      %5640 = vmatpush1.bf16.msra.mxu0 %v5224
      %5641 = vmatprep.subr.bf16.mxu0 0
      %5642 = vmatpush1.bf16.msra.mxu0 %v5225
      %5643 = vmatprep.mubr.bf16.mxu0 %v587
      %5644 = vmatmul.mubr.bf16.gmra.mrb[0].mxu0 %v586
      %v5645 = vpop.f32.mrb[0].mxu0
      %v5646 = vadd.f32 %v5533, %v5645
      %v5647 = vpop.f32.mrb[0].mxu0
      %v5648 = vpop.f32.mrb[0].mxu0
      %v5649 = vadd.f32 %v5536, %v5648
      %v5650 = vpop.f32.mrb[0].mxu0
      %5651 = vmatprep.mubr.bf16.mxu0 %v674
      %5652 = vmatmul.mubr.bf16.gmra.mrb[0].mxu0 %v673
      %v5653 = vpop.f32.mrb[0].mxu0
      %v5654 = vadd.f32 %v5541, %v5653
      %v5655 = vpop.f32.mrb[0].mxu0
      %v5656 = vpop.f32.mrb[0].mxu0
      %v5657 = vadd.f32 %v5544, %v5656
      %v5658 = vpop.f32.mrb[0].mxu0
      %5659 = vmatprep.mubr.bf16.mxu0 %v753
      %5660 = vmatmul.mubr.bf16.gmra.mrb[0].mxu0 %v752
      %v5661 = vpop.f32.mrb[0].mxu0
      %v5662 = vadd.f32 %v5549, %v5661
      %v5663 = vpop.f32.mrb[0].mxu0
      %v5664 = vpop.f32.mrb[0].mxu0
      %v5665 = vadd.f32 %v5552, %v5664
      %v5666 = vpop.f32.mrb[0].mxu0
      %5667 = vmatprep.mubr.bf16.mxu0 %v832
      %5668 = vmatmul.mubr.bf16.gmra.mrb[0].mxu0 %v831
      %v5669 = vpop.f32.mrb[0].mxu0
      %v5670 = vadd.f32 %v5557, %v5669
      %v5671 = vpop.f32.mrb[0].mxu0
      %v5672 = vpop.f32.mrb[0].mxu0
      %v5673 = vadd.f32 %v5560, %v5672
      %v5674 = vpop.f32.mrb[0].mxu0
      %5675 = vmatprep.mubr.bf16.mxu0 %v911
      %5676 = vmatmul.mubr.bf16.gmra.mrb[0].mxu0 %v910
      %v5677 = vpop.f32.mrb[0].mxu0
      %v5678 = vadd.f32 %v5565, %v5677
      %v5679 = vpop.f32.mrb[0].mxu0
      %v5680 = vpop.f32.mrb[0].mxu0
      %v5681 = vadd.f32 %v5568, %v5680
      %v5682 = vpop.f32.mrb[0].mxu0
      %5683 = vmatprep.mubr.bf16.mxu0 %v1007
      %5684 = vmatmul.mubr.bf16.gmra.mrb[0].mxu0 %v1006
      %v5685 = vpop.f32.mrb[0].mxu0
      %v5686 = vadd.f32 %v5573, %v5685
      %v5687 = vpop.f32.mrb[0].mxu0
      %v5688 = vpop.f32.mrb[0].mxu0
      %v5689 = vadd.f32 %v5576, %v5688
      %v5690 = vpop.f32.mrb[0].mxu0
      %5691 = vmatprep.mubr.bf16.mxu0 %v1093
      %5692 = vmatmul.mubr.bf16.gmra.mrb[0].mxu0 %v1092
      %v5693 = vpop.f32.mrb[0].mxu0
      %v5694 = vadd.f32 %v5581, %v5693
      %v5695 = vpop.f32.mrb[0].mxu0
      %v5696 = vpop.f32.mrb[0].mxu0
      %v5697 = vadd.f32 %v5584, %v5696
      %v5698 = vpop.f32.mrb[0].mxu0
      %5699 = vmatprep.mubr.bf16.mxu0 %v1171
      %5700 = vmatmul.mubr.bf16.gmra.mrb[0].mxu0 %v1170
      %v5701 = vpop.f32.mrb[0].mxu0
      %v5702 = vadd.f32 %v5589, %v5701
      %v5703 = vpop.f32.mrb[0].mxu0
      %v5704 = vpop.f32.mrb[0].mxu0
      %v5705 = vadd.f32 %v5592, %v5704
      %v5706 = vpop.f32.mrb[0].mxu0
      %5707 = vmatprep.mubr.bf16.mxu0 %v1249
      %5708 = vmatmul.mubr.bf16.gmra.mrb[0].mxu0 %v1248
      %v5709 = vpop.f32.mrb[0].mxu0
      %v5710 = vadd.f32 %v5597, %v5709
      %v5711 = vpop.f32.mrb[0].mxu0
      %v5712 = vpop.f32.mrb[0].mxu0
      %v5713 = vadd.f32 %v5600, %v5712
      %v5714 = vpop.f32.mrb[0].mxu0
      %5715 = vmatprep.mubr.bf16.mxu0 %v1327
      %5716 = vmatmul.mubr.bf16.gmra.mrb[0].mxu0 %v1326
      %v5717 = vpop.f32.mrb[0].mxu0
      %v5718 = vadd.f32 %v5605, %v5717
      %v5719 = vpop.f32.mrb[0].mxu0
      %v5720 = vpop.f32.mrb[0].mxu0
      %v5721 = vadd.f32 %v5608, %v5720
      %v5722 = vpop.f32.mrb[0].mxu0
      %5723 = vdwg.mxu0
      %5724 = vmatprep.subr.bf16.mxu0 0
      %5725 = vmatpush1.bf16.msra.mxu0 %v5226
      %5726 = vmatprep.subr.bf16.mxu0 0
      %5727 = vmatpush1.bf16.msra.mxu0 %v5227
      %5728 = vmatprep.subr.bf16.mxu0 0
      %5729 = vmatpush1.bf16.msra.mxu0 %v5228
      %5730 = vmatprep.subr.bf16.mxu0 0
      %5731 = vmatpush1.bf16.msra.mxu0 %v5229
      %5732 = vmatprep.subr.bf16.mxu0 0
      %5733 = vmatpush1.bf16.msra.mxu0 %v5230
      %5734 = vmatprep.subr.bf16.mxu0 0
      %5735 = vmatpush1.bf16.msra.mxu0 %v5231
      %5736 = vmatprep.subr.bf16.mxu0 0
      %5737 = vmatpush1.bf16.msra.mxu0 %v5232
      %5738 = vmatprep.subr.bf16.mxu0 0
      %5739 = vmatpush1.bf16.msra.mxu0 %v5233
      %5740 = vmatprep.subr.bf16.mxu0 0
      %5741 = vmatpush1.bf16.msra.mxu0 %v5234
      %5742 = vmatprep.subr.bf16.mxu0 0
      %5743 = vmatpush1.bf16.msra.mxu0 %v5235
      %5744 = vmatprep.subr.bf16.mxu0 0
      %5745 = vmatpush1.bf16.msra.mxu0 %v5236
      %5746 = vmatprep.subr.bf16.mxu0 0
      %5747 = vmatpush1.bf16.msra.mxu0 %v5237
      %5748 = vmatprep.subr.bf16.mxu0 0
      %5749 = vmatpush1.bf16.msra.mxu0 %v5238
      %5750 = vmatprep.subr.bf16.mxu0 0
      %5751 = vmatpush1.bf16.msra.mxu0 %v5239
      %5752 = vmatprep.subr.bf16.mxu0 0
      %5753 = vmatpush1.bf16.msra.mxu0 %v5240
      %5754 = vmatprep.subr.bf16.mxu0 0
      %5755 = vmatpush1.bf16.msra.mxu0 %v5241
      %5756 = vmatprep.mubr.bf16.mxu0 %v589
      %5757 = vmatmul.mubr.bf16.gmra.mrb[0].mxu0 %v588
      %v5758 = vpop.f32.mrb[0].mxu0
      %v5759 = vadd.f32 %v5646, %v5758
      %v5760 = vpop.f32.mrb[0].mxu0
      %v5761 = vpop.f32.mrb[0].mxu0
      %v5762 = vadd.f32 %v5649, %v5761
      %v5763 = vpop.f32.mrb[0].mxu0
      %5764 = vmatprep.mubr.bf16.mxu0 %v676
      %5765 = vmatmul.mubr.bf16.gmra.mrb[0].mxu0 %v675
      %v5766 = vpop.f32.mrb[0].mxu0
      %v5767 = vadd.f32 %v5654, %v5766
      %v5768 = vpop.f32.mrb[0].mxu0
      %v5769 = vpop.f32.mrb[0].mxu0
      %v5770 = vadd.f32 %v5657, %v5769
      %v5771 = vpop.f32.mrb[0].mxu0
      %5772 = vmatprep.mubr.bf16.mxu0 %v755
      %5773 = vmatmul.mubr.bf16.gmra.mrb[0].mxu0 %v754
      %v5774 = vpop.f32.mrb[0].mxu0
      %v5775 = vadd.f32 %v5662, %v5774
      %v5776 = vpop.f32.mrb[0].mxu0
      %v5777 = vpop.f32.mrb[0].mxu0
      %v5778 = vadd.f32 %v5665, %v5777
      %v5779 = vpop.f32.mrb[0].mxu0
      %5780 = vmatprep.mubr.bf16.mxu0 %v834
      %5781 = vmatmul.mubr.bf16.gmra.mrb[0].mxu0 %v833
      %v5782 = vpop.f32.mrb[0].mxu0
      %v5783 = vadd.f32 %v5670, %v5782
      %v5784 = vpop.f32.mrb[0].mxu0
      %v5785 = vpop.f32.mrb[0].mxu0
      %v5786 = vadd.f32 %v5673, %v5785
      %v5787 = vpop.f32.mrb[0].mxu0
      %5788 = vmatprep.mubr.bf16.mxu0 %v913
      %5789 = vmatmul.mubr.bf16.gmra.mrb[0].mxu0 %v912
      %v5790 = vpop.f32.mrb[0].mxu0
      %v5791 = vadd.f32 %v5678, %v5790
      %v5792 = vpop.f32.mrb[0].mxu0
      %v5793 = vpop.f32.mrb[0].mxu0
      %v5794 = vadd.f32 %v5681, %v5793
      %v5795 = vpop.f32.mrb[0].mxu0
      %5796 = vmatprep.mubr.bf16.mxu0 %v1009
      %5797 = vmatmul.mubr.bf16.gmra.mrb[0].mxu0 %v1008
      %v5798 = vpop.f32.mrb[0].mxu0
      %v5799 = vadd.f32 %v5686, %v5798
      %v5800 = vpop.f32.mrb[0].mxu0
      %v5801 = vpop.f32.mrb[0].mxu0
      %v5802 = vadd.f32 %v5689, %v5801
      %v5803 = vpop.f32.mrb[0].mxu0
      %5804 = vmatprep.mubr.bf16.mxu0 %v1095
      %5805 = vmatmul.mubr.bf16.gmra.mrb[0].mxu0 %v1094
      %v5806 = vpop.f32.mrb[0].mxu0
      %v5807 = vadd.f32 %v5694, %v5806
      %v5808 = vpop.f32.mrb[0].mxu0
      %v5809 = vpop.f32.mrb[0].mxu0
      %v5810 = vadd.f32 %v5697, %v5809
      %v5811 = vpop.f32.mrb[0].mxu0
      %5812 = vmatprep.mubr.bf16.mxu0 %v1173
      %5813 = vmatmul.mubr.bf16.gmra.mrb[0].mxu0 %v1172
      %v5814 = vpop.f32.mrb[0].mxu0
      %v5815 = vadd.f32 %v5702, %v5814
      %v5816 = vpop.f32.mrb[0].mxu0
      %v5817 = vpop.f32.mrb[0].mxu0
      %v5818 = vadd.f32 %v5705, %v5817
      %v5819 = vpop.f32.mrb[0].mxu0
      %5820 = vmatprep.mubr.bf16.mxu0 %v1251
      %5821 = vmatmul.mubr.bf16.gmra.mrb[0].mxu0 %v1250
      %v5822 = vpop.f32.mrb[0].mxu0
      %v5823 = vadd.f32 %v5710, %v5822
      %v5824 = vpop.f32.mrb[0].mxu0
      %v5825 = vpop.f32.mrb[0].mxu0
      %v5826 = vadd.f32 %v5713, %v5825
      %v5827 = vpop.f32.mrb[0].mxu0
      %5828 = vmatprep.mubr.bf16.mxu0 %v1329
      %5829 = vmatmul.mubr.bf16.gmra.mrb[0].mxu0 %v1328
      %v5830 = vpop.f32.mrb[0].mxu0
      %v5831 = vadd.f32 %v5718, %v5830
      %v5832 = vpop.f32.mrb[0].mxu0
      %v5833 = vpop.f32.mrb[0].mxu0
      %v5834 = vadd.f32 %v5721, %v5833
      %v5835 = vpop.f32.mrb[0].mxu0
      %5836 = vdwg.mxu0
      %5837 = vmatprep.subr.bf16.mxu0 0
      %5838 = vmatpush1.bf16.msra.mxu0 %v5242
      %5839 = vmatprep.subr.bf16.mxu0 0
      %5840 = vmatpush1.bf16.msra.mxu0 %v5243
      %5841 = vmatprep.subr.bf16.mxu0 0
      %5842 = vmatpush1.bf16.msra.mxu0 %v5244
      %5843 = vmatprep.subr.bf16.mxu0 0
      %5844 = vmatpush1.bf16.msra.mxu0 %v5245
      %5845 = vmatprep.subr.bf16.mxu0 0
      %5846 = vmatpush1.bf16.msra.mxu0 %v5246
      %5847 = vmatprep.subr.bf16.mxu0 0
      %5848 = vmatpush1.bf16.msra.mxu0 %v5247
      %5849 = vmatprep.subr.bf16.mxu0 0
      %5850 = vmatpush1.bf16.msra.mxu0 %v5248
      %5851 = vmatprep.subr.bf16.mxu0 0
      %5852 = vmatpush1.bf16.msra.mxu0 %v5249
      %5853 = vmatprep.subr.bf16.mxu0 0
      %5854 = vmatpush1.bf16.msra.mxu0 %v5250
      %5855 = vmatprep.subr.bf16.mxu0 0
      %5856 = vmatpush1.bf16.msra.mxu0 %v5251
      %5857 = vmatprep.subr.bf16.mxu0 0
      %5858 = vmatpush1.bf16.msra.mxu0 %v5252
      %5859 = vmatprep.subr.bf16.mxu0 0
      %5860 = vmatpush1.bf16.msra.mxu0 %v5253
      %5861 = vmatprep.subr.bf16.mxu0 0
      %5862 = vmatpush1.bf16.msra.mxu0 %v5254
      %5863 = vmatprep.subr.bf16.mxu0 0
      %5864 = vmatpush1.bf16.msra.mxu0 %v5255
      %5865 = vmatprep.subr.bf16.mxu0 0
      %5866 = vmatpush1.bf16.msra.mxu0 %v5256
      %5867 = vmatprep.subr.bf16.mxu0 0
      %5868 = vmatpush1.bf16.msra.mxu0 %v5257
      %5869 = vmatprep.mubr.bf16.mxu0 %v591
      %5870 = vmatmul.mubr.bf16.gmra.mrb[0].mxu0 %v590
      %v5871 = vpop.f32.mrb[0].mxu0
      %v5872 = vadd.f32 %v5759, %v5871
      %v5873 = vpop.f32.mrb[0].mxu0
      %v5874 = vpop.f32.mrb[0].mxu0
      %v5875 = vadd.f32 %v5762, %v5874
      %v5876 = vpop.f32.mrb[0].mxu0
      %5877 = vmatprep.mubr.bf16.mxu0 %v678
      %5878 = vmatmul.mubr.bf16.gmra.mrb[0].mxu0 %v677
      %v5879 = vpop.f32.mrb[0].mxu0
      %v5880 = vadd.f32 %v5767, %v5879
      %v5881 = vpop.f32.mrb[0].mxu0
      %v5882 = vpop.f32.mrb[0].mxu0
      %v5883 = vadd.f32 %v5770, %v5882
      %v5884 = vpop.f32.mrb[0].mxu0
      %5885 = vmatprep.mubr.bf16.mxu0 %v757
      %5886 = vmatmul.mubr.bf16.gmra.mrb[0].mxu0 %v756
      %v5887 = vpop.f32.mrb[0].mxu0
      %v5888 = vadd.f32 %v5775, %v5887
      %v5889 = vpop.f32.mrb[0].mxu0
      %v5890 = vpop.f32.mrb[0].mxu0
      %v5891 = vadd.f32 %v5778, %v5890
      %v5892 = vpop.f32.mrb[0].mxu0
      %5893 = vmatprep.mubr.bf16.mxu0 %v836
      %5894 = vmatmul.mubr.bf16.gmra.mrb[0].mxu0 %v835
      %v5895 = vpop.f32.mrb[0].mxu0
      %v5896 = vadd.f32 %v5783, %v5895
      %v5897 = vpop.f32.mrb[0].mxu0
      %v5898 = vpop.f32.mrb[0].mxu0
      %v5899 = vadd.f32 %v5786, %v5898
      %v5900 = vpop.f32.mrb[0].mxu0
      %5901 = vmatprep.mubr.bf16.mxu0 %v915
      %5902 = vmatmul.mubr.bf16.gmra.mrb[0].mxu0 %v914
      %v5903 = vpop.f32.mrb[0].mxu0
      %v5904 = vadd.f32 %v5791, %v5903
      %v5905 = vpop.f32.mrb[0].mxu0
      %v5906 = vpop.f32.mrb[0].mxu0
      %v5907 = vadd.f32 %v5794, %v5906
      %v5908 = vpop.f32.mrb[0].mxu0
      %5909 = vmatprep.mubr.bf16.mxu0 %v1011
      %5910 = vmatmul.mubr.bf16.gmra.mrb[0].mxu0 %v1010
      %v5911 = vpop.f32.mrb[0].mxu0
      %v5912 = vadd.f32 %v5799, %v5911
      %v5913 = vpop.f32.mrb[0].mxu0
      %v5914 = vpop.f32.mrb[0].mxu0
      %v5915 = vadd.f32 %v5802, %v5914
      %v5916 = vpop.f32.mrb[0].mxu0
      %5917 = vmatprep.mubr.bf16.mxu0 %v1097
      %5918 = vmatmul.mubr.bf16.gmra.mrb[0].mxu0 %v1096
      %v5919 = vpop.f32.mrb[0].mxu0
      %v5920 = vadd.f32 %v5807, %v5919
      %v5921 = vpop.f32.mrb[0].mxu0
      %v5922 = vpop.f32.mrb[0].mxu0
      %v5923 = vadd.f32 %v5810, %v5922
      %v5924 = vpop.f32.mrb[0].mxu0
      %5925 = vmatprep.mubr.bf16.mxu0 %v1175
      %5926 = vmatmul.mubr.bf16.gmra.mrb[0].mxu0 %v1174
      %v5927 = vpop.f32.mrb[0].mxu0
      %v5928 = vadd.f32 %v5815, %v5927
      %v5929 = vpop.f32.mrb[0].mxu0
      %v5930 = vpop.f32.mrb[0].mxu0
      %v5931 = vadd.f32 %v5818, %v5930
      %v5932 = vpop.f32.mrb[0].mxu0
      %5933 = vmatprep.mubr.bf16.mxu0 %v1253
      %5934 = vmatmul.mubr.bf16.gmra.mrb[0].mxu0 %v1252
      %v5935 = vpop.f32.mrb[0].mxu0
      %v5936 = vadd.f32 %v5823, %v5935
      %v5937 = vpop.f32.mrb[0].mxu0
      %v5938 = vpop.f32.mrb[0].mxu0
      %v5939 = vadd.f32 %v5826, %v5938
      %v5940 = vpop.f32.mrb[0].mxu0
      %5941 = vmatprep.mubr.bf16.mxu0 %v1331
      %5942 = vmatmul.mubr.bf16.gmra.mrb[0].mxu0 %v1330
      %v5943 = vpop.f32.mrb[0].mxu0
      %v5944 = vadd.f32 %v5831, %v5943
      %v5945 = vpop.f32.mrb[0].mxu0
      %v5946 = vpop.f32.mrb[0].mxu0
      %v5947 = vadd.f32 %v5834, %v5946
      %v5948 = vpop.f32.mrb[0].mxu0
      %5949 = vdwg.mxu0
      %5950 = vmatprep.subr.bf16.mxu0 0
      %5951 = vmatpush1.bf16.msra.mxu0 %v5258
      %5952 = vmatprep.subr.bf16.mxu0 0
      %5953 = vmatpush1.bf16.msra.mxu0 %v5259
      %5954 = vmatprep.subr.bf16.mxu0 0
      %5955 = vmatpush1.bf16.msra.mxu0 %v5260
      %5956 = vmatprep.subr.bf16.mxu0 0
      %5957 = vmatpush1.bf16.msra.mxu0 %v5261
      %5958 = vmatprep.subr.bf16.mxu0 0
      %5959 = vmatpush1.bf16.msra.mxu0 %v5262
      %5960 = vmatprep.subr.bf16.mxu0 0
      %5961 = vmatpush1.bf16.msra.mxu0 %v5263
      %5962 = vmatprep.subr.bf16.mxu0 0
      %5963 = vmatpush1.bf16.msra.mxu0 %v5264
      %5964 = vmatprep.subr.bf16.mxu0 0
      %5965 = vmatpush1.bf16.msra.mxu0 %v5265
      %5966 = vmatprep.subr.bf16.mxu0 0
      %5967 = vmatpush1.bf16.msra.mxu0 %v5266
      %5968 = vmatprep.subr.bf16.mxu0 0
      %5969 = vmatpush1.bf16.msra.mxu0 %v5267
      %5970 = vmatprep.subr.bf16.mxu0 0
      %5971 = vmatpush1.bf16.msra.mxu0 %v5268
      %5972 = vmatprep.subr.bf16.mxu0 0
      %5973 = vmatpush1.bf16.msra.mxu0 %v5269
      %5974 = vmatprep.subr.bf16.mxu0 0
      %5975 = vmatpush1.bf16.msra.mxu0 %v5270
      %5976 = vmatprep.subr.bf16.mxu0 0
      %5977 = vmatpush1.bf16.msra.mxu0 %v5271
      %5978 = vmatprep.subr.bf16.mxu0 0
      %5979 = vmatpush1.bf16.msra.mxu0 %v5272
      %5980 = vmatprep.subr.bf16.mxu0 0
      %5981 = vmatpush1.bf16.msra.mxu0 %v5273
      %5982 = vmatprep.mubr.bf16.mxu0 %v593
      %5983 = vmatmul.mubr.bf16.gmra.mrb[0].mxu0 %v592
      %v5984 = vpop.f32.mrb[0].mxu0
      %v5985 = vadd.f32 %v5872, %v5984
      %v5986 = vpop.f32.mrb[0].mxu0
      %v5987 = vpop.f32.mrb[0].mxu0
      %v5988 = vadd.f32 %v5875, %v5987
      %v5989 = vpop.f32.mrb[0].mxu0
      %5990 = vmatprep.mubr.bf16.mxu0 %v680
      %5991 = vmatmul.mubr.bf16.gmra.mrb[0].mxu0 %v679
      %v5992 = vpop.f32.mrb[0].mxu0
      %v5993 = vadd.f32 %v5880, %v5992
      %v5994 = vpop.f32.mrb[0].mxu0
      %v5995 = vpop.f32.mrb[0].mxu0
      %v5996 = vadd.f32 %v5883, %v5995
      %v5997 = vpop.f32.mrb[0].mxu0
      %5998 = vmatprep.mubr.bf16.mxu0 %v759
      %5999 = vmatmul.mubr.bf16.gmra.mrb[0].mxu0 %v758
      %v6000 = vpop.f32.mrb[0].mxu0
      %v6001 = vadd.f32 %v5888, %v6000
      %v6002 = vpop.f32.mrb[0].mxu0
      %v6003 = vpop.f32.mrb[0].mxu0
      %v6004 = vadd.f32 %v5891, %v6003
      %v6005 = vpop.f32.mrb[0].mxu0
      %6006 = vmatprep.mubr.bf16.mxu0 %v838
      %6007 = vmatmul.mubr.bf16.gmra.mrb[0].mxu0 %v837
      %v6008 = vpop.f32.mrb[0].mxu0
      %v6009 = vadd.f32 %v5896, %v6008
      %v6010 = vpop.f32.mrb[0].mxu0
      %v6011 = vpop.f32.mrb[0].mxu0
      %v6012 = vadd.f32 %v5899, %v6011
      %v6013 = vpop.f32.mrb[0].mxu0
      %6014 = vmatprep.mubr.bf16.mxu0 %v917
      %6015 = vmatmul.mubr.bf16.gmra.mrb[0].mxu0 %v916
      %v6016 = vpop.f32.mrb[0].mxu0
      %v6017 = vadd.f32 %v5904, %v6016
      %v6018 = vpop.f32.mrb[0].mxu0
      %v6019 = vpop.f32.mrb[0].mxu0
      %v6020 = vadd.f32 %v5907, %v6019
      %v6021 = vpop.f32.mrb[0].mxu0
      %6022 = vmatprep.mubr.bf16.mxu0 %v1013
      %6023 = vmatmul.mubr.bf16.gmra.mrb[0].mxu0 %v1012
      %v6024 = vpop.f32.mrb[0].mxu0
      %v6025 = vadd.f32 %v5912, %v6024
      %v6026 = vpop.f32.mrb[0].mxu0
      %v6027 = vpop.f32.mrb[0].mxu0
      %v6028 = vadd.f32 %v5915, %v6027
      %v6029 = vpop.f32.mrb[0].mxu0
      %6030 = vmatprep.mubr.bf16.mxu0 %v1099
      %6031 = vmatmul.mubr.bf16.gmra.mrb[0].mxu0 %v1098
      %v6032 = vpop.f32.mrb[0].mxu0
      %v6033 = vadd.f32 %v5920, %v6032
      %v6034 = vpop.f32.mrb[0].mxu0
      %v6035 = vpop.f32.mrb[0].mxu0
      %v6036 = vadd.f32 %v5923, %v6035
      %v6037 = vpop.f32.mrb[0].mxu0
      %6038 = vmatprep.mubr.bf16.mxu0 %v1177
      %6039 = vmatmul.mubr.bf16.gmra.mrb[0].mxu0 %v1176
      %v6040 = vpop.f32.mrb[0].mxu0
      %v6041 = vadd.f32 %v5928, %v6040
      %v6042 = vpop.f32.mrb[0].mxu0
      %v6043 = vpop.f32.mrb[0].mxu0
      %v6044 = vadd.f32 %v5931, %v6043
      %v6045 = vpop.f32.mrb[0].mxu0
      %6046 = vmatprep.mubr.bf16.mxu0 %v1255
      %6047 = vmatmul.mubr.bf16.gmra.mrb[0].mxu0 %v1254
      %v6048 = vpop.f32.mrb[0].mxu0
      %v6049 = vadd.f32 %v5936, %v6048
      %v6050 = vpop.f32.mrb[0].mxu0
      %v6051 = vpop.f32.mrb[0].mxu0
      %v6052 = vadd.f32 %v5939, %v6051
      %v6053 = vpop.f32.mrb[0].mxu0
      %6054 = vmatprep.mubr.bf16.mxu0 %v1333
      %6055 = vmatmul.mubr.bf16.gmra.mrb[0].mxu0 %v1332
      %v6056 = vpop.f32.mrb[0].mxu0
      %v6057 = vadd.f32 %v5944, %v6056
      %v6058 = vpop.f32.mrb[0].mxu0
      %v6059 = vpop.f32.mrb[0].mxu0
      %v6060 = vadd.f32 %v5947, %v6059
      %v6061 = vpop.f32.mrb[0].mxu0
      %6062 = vdwg.mxu0
      %6063 = vmatprep.subr.bf16.mxu0 0
      %6064 = vmatpush1.bf16.msra.mxu0 %v5274
      %6065 = vmatprep.subr.bf16.mxu0 0
      %6066 = vmatpush1.bf16.msra.mxu0 %v5275
      %6067 = vmatprep.subr.bf16.mxu0 0
      %6068 = vmatpush1.bf16.msra.mxu0 %v5276
      %6069 = vmatprep.subr.bf16.mxu0 0
      %6070 = vmatpush1.bf16.msra.mxu0 %v5277
      %6071 = vmatprep.subr.bf16.mxu0 0
      %6072 = vmatpush1.bf16.msra.mxu0 %v5278
      %6073 = vmatprep.subr.bf16.mxu0 0
      %6074 = vmatpush1.bf16.msra.mxu0 %v5279
      %6075 = vmatprep.subr.bf16.mxu0 0
      %6076 = vmatpush1.bf16.msra.mxu0 %v5280
      %6077 = vmatprep.subr.bf16.mxu0 0
      %6078 = vmatpush1.bf16.msra.mxu0 %v5281
      %6079 = vmatprep.subr.bf16.mxu0 0
      %6080 = vmatpush1.bf16.msra.mxu0 %v5282
      %6081 = vmatprep.subr.bf16.mxu0 0
      %6082 = vmatpush1.bf16.msra.mxu0 %v5283
      %6083 = vmatprep.subr.bf16.mxu0 0
      %6084 = vmatpush1.bf16.msra.mxu0 %v5284
      %6085 = vmatprep.subr.bf16.mxu0 0
      %6086 = vmatpush1.bf16.msra.mxu0 %v5285
      %6087 = vmatprep.subr.bf16.mxu0 0
      %6088 = vmatpush1.bf16.msra.mxu0 %v5286
      %6089 = vmatprep.subr.bf16.mxu0 0
      %6090 = vmatpush1.bf16.msra.mxu0 %v5287
      %6091 = vmatprep.subr.bf16.mxu0 0
      %6092 = vmatpush1.bf16.msra.mxu0 %v5288
      %6093 = vmatprep.subr.bf16.mxu0 0
      %6094 = vmatpush1.bf16.msra.mxu0 %v5289
      %6095 = vmatprep.mubr.bf16.mxu0 %v595
      %6096 = vmatmul.mubr.bf16.gmra.mrb[0].mxu0 %v594
      %v6097 = vpop.f32.mrb[0].mxu0
      %v6098 = vadd.f32 %v5985, %v6097
      %v6099 = vpop.f32.mrb[0].mxu0
      %v6100 = vpop.f32.mrb[0].mxu0
      %v6101 = vadd.f32 %v5988, %v6100
      %v6102 = vpop.f32.mrb[0].mxu0
      %6103 = vmatprep.mubr.bf16.mxu0 %v682
      %6104 = vmatmul.mubr.bf16.gmra.mrb[0].mxu0 %v681
      %v6105 = vpop.f32.mrb[0].mxu0
      %v6106 = vadd.f32 %v5993, %v6105
      %v6107 = vpop.f32.mrb[0].mxu0
      %v6108 = vpop.f32.mrb[0].mxu0
      %v6109 = vadd.f32 %v5996, %v6108
      %v6110 = vpop.f32.mrb[0].mxu0
      %6111 = vmatprep.mubr.bf16.mxu0 %v761
      %6112 = vmatmul.mubr.bf16.gmra.mrb[0].mxu0 %v760
      %v6113 = vpop.f32.mrb[0].mxu0
      %v6114 = vadd.f32 %v6001, %v6113
      %v6115 = vpop.f32.mrb[0].mxu0
      %v6116 = vpop.f32.mrb[0].mxu0
      %v6117 = vadd.f32 %v6004, %v6116
      %v6118 = vpop.f32.mrb[0].mxu0
      %6119 = vmatprep.mubr.bf16.mxu0 %v840
      %6120 = vmatmul.mubr.bf16.gmra.mrb[0].mxu0 %v839
      %v6121 = vpop.f32.mrb[0].mxu0
      %v6122 = vadd.f32 %v6009, %v6121
      %v6123 = vpop.f32.mrb[0].mxu0
      %v6124 = vpop.f32.mrb[0].mxu0
      %v6125 = vadd.f32 %v6012, %v6124
      %v6126 = vpop.f32.mrb[0].mxu0
      %6127 = vmatprep.mubr.bf16.mxu0 %v919
      %6128 = vmatmul.mubr.bf16.gmra.mrb[0].mxu0 %v918
      %v6129 = vpop.f32.mrb[0].mxu0
      %v6130 = vadd.f32 %v6017, %v6129
      %v6131 = vpop.f32.mrb[0].mxu0
      %v6132 = vpop.f32.mrb[0].mxu0
      %v6133 = vadd.f32 %v6020, %v6132
      %v6134 = vpop.f32.mrb[0].mxu0
      %6135 = vmatprep.mubr.bf16.mxu0 %v1015
      %6136 = vmatmul.mubr.bf16.gmra.mrb[0].mxu0 %v1014
      %v6137 = vpop.f32.mrb[0].mxu0
      %v6138 = vadd.f32 %v6025, %v6137
      %v6139 = vpop.f32.mrb[0].mxu0
      %v6140 = vpop.f32.mrb[0].mxu0
      %v6141 = vadd.f32 %v6028, %v6140
      %v6142 = vpop.f32.mrb[0].mxu0
      %6143 = vmatprep.mubr.bf16.mxu0 %v1101
      %6144 = vmatmul.mubr.bf16.gmra.mrb[0].mxu0 %v1100
      %v6145 = vpop.f32.mrb[0].mxu0
      %v6146 = vadd.f32 %v6033, %v6145
      %v6147 = vpop.f32.mrb[0].mxu0
      %v6148 = vpop.f32.mrb[0].mxu0
      %v6149 = vadd.f32 %v6036, %v6148
      %v6150 = vpop.f32.mrb[0].mxu0
      %6151 = vmatprep.mubr.bf16.mxu0 %v1179
      %6152 = vmatmul.mubr.bf16.gmra.mrb[0].mxu0 %v1178
      %v6153 = vpop.f32.mrb[0].mxu0
      %v6154 = vadd.f32 %v6041, %v6153
      %v6155 = vpop.f32.mrb[0].mxu0
      %v6156 = vpop.f32.mrb[0].mxu0
      %v6157 = vadd.f32 %v6044, %v6156
      %v6158 = vpop.f32.mrb[0].mxu0
      %6159 = vmatprep.mubr.bf16.mxu0 %v1257
      %6160 = vmatmul.mubr.bf16.gmra.mrb[0].mxu0 %v1256
      %v6161 = vpop.f32.mrb[0].mxu0
      %v6162 = vadd.f32 %v6049, %v6161
      %v6163 = vpop.f32.mrb[0].mxu0
      %v6164 = vpop.f32.mrb[0].mxu0
      %v6165 = vadd.f32 %v6052, %v6164
      %v6166 = vpop.f32.mrb[0].mxu0
      %6167 = vmatprep.mubr.bf16.mxu0 %v1335
      %6168 = vmatmul.mubr.bf16.gmra.mrb[0].mxu0 %v1334
      %v6169 = vpop.f32.mrb[0].mxu0
      %v6170 = vadd.f32 %v6057, %v6169
      %v6171 = vpop.f32.mrb[0].mxu0
      %v6172 = vpop.f32.mrb[0].mxu0
      %v6173 = vadd.f32 %v6060, %v6172
      %v6174 = vpop.f32.mrb[0].mxu0
      %6175 = vdwg.mxu0
      %6176 = vmatprep.subr.bf16.mxu0 0
      %6177 = vmatpush1.bf16.msra.mxu0 %v5290
      %6178 = vmatprep.subr.bf16.mxu0 0
      %6179 = vmatpush1.bf16.msra.mxu0 %v5291
      %6180 = vmatprep.subr.bf16.mxu0 0
      %6181 = vmatpush1.bf16.msra.mxu0 %v5292
      %6182 = vmatprep.subr.bf16.mxu0 0
      %6183 = vmatpush1.bf16.msra.mxu0 %v5293
      %6184 = vmatprep.subr.bf16.mxu0 0
      %6185 = vmatpush1.bf16.msra.mxu0 %v5294
      %6186 = vmatprep.subr.bf16.mxu0 0
      %6187 = vmatpush1.bf16.msra.mxu0 %v5295
      %6188 = vmatprep.subr.bf16.mxu0 0
      %6189 = vmatpush1.bf16.msra.mxu0 %v5296
      %6190 = vmatprep.subr.bf16.mxu0 0
      %6191 = vmatpush1.bf16.msra.mxu0 %v5297
      %6192 = vmatprep.subr.bf16.mxu0 0
      %6193 = vmatpush1.bf16.msra.mxu0 %v5298
      %6194 = vmatprep.subr.bf16.mxu0 0
      %6195 = vmatpush1.bf16.msra.mxu0 %v5299
      %6196 = vmatprep.subr.bf16.mxu0 0
      %6197 = vmatpush1.bf16.msra.mxu0 %v5300
      %6198 = vmatprep.subr.bf16.mxu0 0
      %6199 = vmatpush1.bf16.msra.mxu0 %v5301
      %6200 = vmatprep.subr.bf16.mxu0 0
      %6201 = vmatpush1.bf16.msra.mxu0 %v5302
      %6202 = vmatprep.subr.bf16.mxu0 0
      %6203 = vmatpush1.bf16.msra.mxu0 %v5303
      %6204 = vmatprep.subr.bf16.mxu0 0
      %6205 = vmatpush1.bf16.msra.mxu0 %v5304
      %6206 = vmatprep.subr.bf16.mxu0 0
      %6207 = vmatpush1.bf16.msra.mxu0 %v5305
      %6208 = vmatprep.mubr.bf16.mxu0 %v597
      %6209 = vmatmul.mubr.bf16.gmra.mrb[0].mxu0 %v596
      %v6210 = vpop.f32.mrb[0].mxu0
      %v6211 = vadd.f32 %v6098, %v6210
      %v6212 = vpop.f32.mrb[0].mxu0
      %v6213 = vpop.f32.mrb[0].mxu0
      %v6214 = vadd.f32 %v6101, %v6213
      %v6215 = vpop.f32.mrb[0].mxu0
      %6216 = vmatprep.mubr.bf16.mxu0 %v684
      %6217 = vmatmul.mubr.bf16.gmra.mrb[0].mxu0 %v683
      %v6218 = vpop.f32.mrb[0].mxu0
      %v6219 = vadd.f32 %v6106, %v6218
      %v6220 = vpop.f32.mrb[0].mxu0
      %v6221 = vpop.f32.mrb[0].mxu0
      %v6222 = vadd.f32 %v6109, %v6221
      %v6223 = vpop.f32.mrb[0].mxu0
      %6224 = vmatprep.mubr.bf16.mxu0 %v763
      %6225 = vmatmul.mubr.bf16.gmra.mrb[0].mxu0 %v762
      %v6226 = vpop.f32.mrb[0].mxu0
      %v6227 = vadd.f32 %v6114, %v6226
      %v6228 = vpop.f32.mrb[0].mxu0
      %v6229 = vpop.f32.mrb[0].mxu0
      %v6230 = vadd.f32 %v6117, %v6229
      %v6231 = vpop.f32.mrb[0].mxu0
      %6232 = vmatprep.mubr.bf16.mxu0 %v842
      %6233 = vmatmul.mubr.bf16.gmra.mrb[0].mxu0 %v841
      %v6234 = vpop.f32.mrb[0].mxu0
      %v6235 = vadd.f32 %v6122, %v6234
      %v6236 = vpop.f32.mrb[0].mxu0
      %v6237 = vpop.f32.mrb[0].mxu0
      %v6238 = vadd.f32 %v6125, %v6237
      %v6239 = vpop.f32.mrb[0].mxu0
      %6240 = vmatprep.mubr.bf16.mxu0 %v921
      %6241 = vmatmul.mubr.bf16.gmra.mrb[0].mxu0 %v920
      %v6242 = vpop.f32.mrb[0].mxu0
      %v6243 = vadd.f32 %v6130, %v6242
      %v6244 = vpop.f32.mrb[0].mxu0
      %v6245 = vpop.f32.mrb[0].mxu0
      %v6246 = vadd.f32 %v6133, %v6245
      %v6247 = vpop.f32.mrb[0].mxu0
      %6248 = vmatprep.mubr.bf16.mxu0 %v1017
      %6249 = vmatmul.mubr.bf16.gmra.mrb[0].mxu0 %v1016
      %v6250 = vpop.f32.mrb[0].mxu0
      %v6251 = vadd.f32 %v6138, %v6250
      %v6252 = vpop.f32.mrb[0].mxu0
      %v6253 = vpop.f32.mrb[0].mxu0
      %v6254 = vadd.f32 %v6141, %v6253
      %v6255 = vpop.f32.mrb[0].mxu0
      %6256 = vmatprep.mubr.bf16.mxu0 %v1103
      %6257 = vmatmul.mubr.bf16.gmra.mrb[0].mxu0 %v1102
      %v6258 = vpop.f32.mrb[0].mxu0
      %v6259 = vadd.f32 %v6146, %v6258
      %v6260 = vpop.f32.mrb[0].mxu0
      %v6261 = vpop.f32.mrb[0].mxu0
      %v6262 = vadd.f32 %v6149, %v6261
      %v6263 = vpop.f32.mrb[0].mxu0
      %6264 = vmatprep.mubr.bf16.mxu0 %v1181
      %6265 = vmatmul.mubr.bf16.gmra.mrb[0].mxu0 %v1180
      %v6266 = vpop.f32.mrb[0].mxu0
      %v6267 = vadd.f32 %v6154, %v6266
      %v6268 = vpop.f32.mrb[0].mxu0
      %v6269 = vpop.f32.mrb[0].mxu0
      %v6270 = vadd.f32 %v6157, %v6269
      %v6271 = vpop.f32.mrb[0].mxu0
      %6272 = vmatprep.mubr.bf16.mxu0 %v1259
      %6273 = vmatmul.mubr.bf16.gmra.mrb[0].mxu0 %v1258
      %v6274 = vpop.f32.mrb[0].mxu0
      %v6275 = vadd.f32 %v6162, %v6274
      %v6276 = vpop.f32.mrb[0].mxu0
      %v6277 = vpop.f32.mrb[0].mxu0
      %v6278 = vadd.f32 %v6165, %v6277
      %v6279 = vpop.f32.mrb[0].mxu0
      %6280 = vmatprep.mubr.bf16.mxu0 %v1337
      %6281 = vmatmul.mubr.bf16.gmra.mrb[0].mxu0 %v1336
      %v6282 = vpop.f32.mrb[0].mxu0
      %v6283 = vadd.f32 %v6170, %v6282
      %v6284 = vpop.f32.mrb[0].mxu0
      %v6285 = vpop.f32.mrb[0].mxu0
      %v6286 = vadd.f32 %v6173, %v6285
      %v6287 = vpop.f32.mrb[0].mxu0
      %6288 = vdwg.mxu0
      %6289 = vmatprep.subr.bf16.mxu0 0
      %6290 = vmatpush1.bf16.msra.mxu0 %v5306
      %6291 = vmatprep.subr.bf16.mxu0 0
      %6292 = vmatpush1.bf16.msra.mxu0 %v5307
      %6293 = vmatprep.subr.bf16.mxu0 0
      %6294 = vmatpush1.bf16.msra.mxu0 %v5308
      %6295 = vmatprep.subr.bf16.mxu0 0
      %6296 = vmatpush1.bf16.msra.mxu0 %v5309
      %6297 = vmatprep.subr.bf16.mxu0 0
      %6298 = vmatpush1.bf16.msra.mxu0 %v5310
      %6299 = vmatprep.subr.bf16.mxu0 0
      %6300 = vmatpush1.bf16.msra.mxu0 %v5311
      %6301 = vmatprep.subr.bf16.mxu0 0
      %6302 = vmatpush1.bf16.msra.mxu0 %v5312
      %6303 = vmatprep.subr.bf16.mxu0 0
      %6304 = vmatpush1.bf16.msra.mxu0 %v5313
      %6305 = vmatprep.subr.bf16.mxu0 0
      %6306 = vmatpush1.bf16.msra.mxu0 %v5314
      %6307 = vmatprep.subr.bf16.mxu0 0
      %6308 = vmatpush1.bf16.msra.mxu0 %v5315
      %6309 = vmatprep.subr.bf16.mxu0 0
      %6310 = vmatpush1.bf16.msra.mxu0 %v5316
      %6311 = vmatprep.subr.bf16.mxu0 0
      %6312 = vmatpush1.bf16.msra.mxu0 %v5317
      %6313 = vmatprep.subr.bf16.mxu0 0
      %6314 = vmatpush1.bf16.msra.mxu0 %v5318
      %6315 = vmatprep.subr.bf16.mxu0 0
      %6316 = vmatpush1.bf16.msra.mxu0 %v5319
      %6317 = vmatprep.subr.bf16.mxu0 0
      %6318 = vmatpush1.bf16.msra.mxu0 %v5320
      %6319 = vmatprep.subr.bf16.mxu0 0
      %6320 = vmatpush1.bf16.msra.mxu0 %v5321
      %6321 = vmatprep.mubr.bf16.mxu0 %v599
      %6322 = vmatmul.mubr.bf16.gmra.mrb[0].mxu0 %v598
      %v6323 = vpop.f32.mrb[0].mxu0
      %v6324 = vadd.f32 %v6211, %v6323
      %v6325 = vpop.f32.mrb[0].mxu0
      %v6326 = vpop.f32.mrb[0].mxu0
      %v6327 = vadd.f32 %v6214, %v6326
      %v6328 = vpop.f32.mrb[0].mxu0
      %6329 = vmatprep.mubr.bf16.mxu0 %v686
      %6330 = vmatmul.mubr.bf16.gmra.mrb[0].mxu0 %v685
      %v6331 = vpop.f32.mrb[0].mxu0
      %v6332 = vadd.f32 %v6219, %v6331
      %v6333 = vpop.f32.mrb[0].mxu0
      %v6334 = vpop.f32.mrb[0].mxu0
      %v6335 = vadd.f32 %v6222, %v6334
      %v6336 = vpop.f32.mrb[0].mxu0
      %6337 = vmatprep.mubr.bf16.mxu0 %v765
      %6338 = vmatmul.mubr.bf16.gmra.mrb[0].mxu0 %v764
      %v6339 = vpop.f32.mrb[0].mxu0
      %v6340 = vadd.f32 %v6227, %v6339
      %v6341 = vpop.f32.mrb[0].mxu0
      %v6342 = vpop.f32.mrb[0].mxu0
      %v6343 = vadd.f32 %v6230, %v6342
      %v6344 = vpop.f32.mrb[0].mxu0
      %6345 = vmatprep.mubr.bf16.mxu0 %v844
      %6346 = vmatmul.mubr.bf16.gmra.mrb[0].mxu0 %v843
      %v6347 = vpop.f32.mrb[0].mxu0
      %v6348 = vadd.f32 %v6235, %v6347
      %v6349 = vpop.f32.mrb[0].mxu0
      %v6350 = vpop.f32.mrb[0].mxu0
      %v6351 = vadd.f32 %v6238, %v6350
      %v6352 = vpop.f32.mrb[0].mxu0
      %6353 = vmatprep.mubr.bf16.mxu0 %v923
      %6354 = vmatmul.mubr.bf16.gmra.mrb[0].mxu0 %v922
      %v6355 = vpop.f32.mrb[0].mxu0
      %v6356 = vadd.f32 %v6243, %v6355
      %v6357 = vpop.f32.mrb[0].mxu0
      %v6358 = vpop.f32.mrb[0].mxu0
      %v6359 = vadd.f32 %v6246, %v6358
      %v6360 = vpop.f32.mrb[0].mxu0
      %6361 = vmatprep.mubr.bf16.mxu0 %v1019
      %6362 = vmatmul.mubr.bf16.gmra.mrb[0].mxu0 %v1018
      %v6363 = vpop.f32.mrb[0].mxu0
      %v6364 = vadd.f32 %v6251, %v6363
      %v6365 = vpop.f32.mrb[0].mxu0
      %v6366 = vpop.f32.mrb[0].mxu0
      %v6367 = vadd.f32 %v6254, %v6366
      %v6368 = vpop.f32.mrb[0].mxu0
      %6369 = vmatprep.mubr.bf16.mxu0 %v1105
      %6370 = vmatmul.mubr.bf16.gmra.mrb[0].mxu0 %v1104
      %v6371 = vpop.f32.mrb[0].mxu0
      %v6372 = vadd.f32 %v6259, %v6371
      %v6373 = vpop.f32.mrb[0].mxu0
      %v6374 = vpop.f32.mrb[0].mxu0
      %v6375 = vadd.f32 %v6262, %v6374
      %v6376 = vpop.f32.mrb[0].mxu0
      %6377 = vmatprep.mubr.bf16.mxu0 %v1183
      %6378 = vmatmul.mubr.bf16.gmra.mrb[0].mxu0 %v1182
      %v6379 = vpop.f32.mrb[0].mxu0
      %v6380 = vadd.f32 %v6267, %v6379
      %v6381 = vpop.f32.mrb[0].mxu0
      %v6382 = vpop.f32.mrb[0].mxu0
      %v6383 = vadd.f32 %v6270, %v6382
      %v6384 = vpop.f32.mrb[0].mxu0
      %6385 = vmatprep.mubr.bf16.mxu0 %v1261
      %6386 = vmatmul.mubr.bf16.gmra.mrb[0].mxu0 %v1260
      %v6387 = vpop.f32.mrb[0].mxu0
      %v6388 = vadd.f32 %v6275, %v6387
      %v6389 = vpop.f32.mrb[0].mxu0
      %v6390 = vpop.f32.mrb[0].mxu0
      %v6391 = vadd.f32 %v6278, %v6390
      %v6392 = vpop.f32.mrb[0].mxu0
      %6393 = vmatprep.mubr.bf16.mxu0 %v1339
      %6394 = vmatmul.mubr.bf16.gmra.mrb[0].mxu0 %v1338
      %v6395 = vpop.f32.mrb[0].mxu0
      %v6396 = vadd.f32 %v6283, %v6395
      %v6397 = vpop.f32.mrb[0].mxu0
      %v6398 = vpop.f32.mrb[0].mxu0
      %v6399 = vadd.f32 %v6286, %v6398
      %v6400 = vpop.f32.mrb[0].mxu0
      %6401 = vdwg.mxu0
      %6402 = vmatprep.subr.bf16.mxu0 0
      %6403 = vmatpush1.bf16.msra.mxu0 %v5322
      %6404 = vmatprep.subr.bf16.mxu0 0
      %6405 = vmatpush1.bf16.msra.mxu0 %v5323
      %6406 = vmatprep.subr.bf16.mxu0 0
      %6407 = vmatpush1.bf16.msra.mxu0 %v5324
      %6408 = vmatprep.subr.bf16.mxu0 0
      %6409 = vmatpush1.bf16.msra.mxu0 %v5325
      %6410 = vmatprep.subr.bf16.mxu0 0
      %6411 = vmatpush1.bf16.msra.mxu0 %v5326
      %6412 = vmatprep.subr.bf16.mxu0 0
      %6413 = vmatpush1.bf16.msra.mxu0 %v5327
      %6414 = vmatprep.subr.bf16.mxu0 0
      %6415 = vmatpush1.bf16.msra.mxu0 %v5328
      %6416 = vmatprep.subr.bf16.mxu0 0
      %6417 = vmatpush1.bf16.msra.mxu0 %v5329
      %6418 = vmatprep.subr.bf16.mxu0 0
      %6419 = vmatpush1.bf16.msra.mxu0 %v5330
      %6420 = vmatprep.subr.bf16.mxu0 0
      %6421 = vmatpush1.bf16.msra.mxu0 %v5331
      %6422 = vmatprep.subr.bf16.mxu0 0
      %6423 = vmatpush1.bf16.msra.mxu0 %v5332
      %6424 = vmatprep.subr.bf16.mxu0 0
      %6425 = vmatpush1.bf16.msra.mxu0 %v5333
      %6426 = vmatprep.subr.bf16.mxu0 0
      %6427 = vmatpush1.bf16.msra.mxu0 %v5334
      %6428 = vmatprep.subr.bf16.mxu0 0
      %6429 = vmatpush1.bf16.msra.mxu0 %v5335
      %6430 = vmatprep.subr.bf16.mxu0 0
      %6431 = vmatpush1.bf16.msra.mxu0 %v5336
      %6432 = vmatprep.subr.bf16.mxu0 0
      %6433 = vmatpush1.bf16.msra.mxu0 %v5337
      %6434 = vmatprep.mubr.bf16.mxu0 %v601
      %6435 = vmatmul.mubr.bf16.gmra.mrb[0].mxu0 %v600
      %v6436 = vpop.f32.mrb[0].mxu0
      %v6437 = vadd.f32 %v6324, %v6436
      %v6438 = vpop.f32.mrb[0].mxu0
      %v6439 = vpop.f32.mrb[0].mxu0
      %v6440 = vadd.f32 %v6327, %v6439
      %v6441 = vpop.f32.mrb[0].mxu0
      %6442 = vmatprep.mubr.bf16.mxu0 %v688
      %6443 = vmatmul.mubr.bf16.gmra.mrb[0].mxu0 %v687
      %v6444 = vpop.f32.mrb[0].mxu0
      %v6445 = vadd.f32 %v6332, %v6444
      %v6446 = vpop.f32.mrb[0].mxu0
      %v6447 = vpop.f32.mrb[0].mxu0
      %v6448 = vadd.f32 %v6335, %v6447
      %v6449 = vpop.f32.mrb[0].mxu0
      %6450 = vmatprep.mubr.bf16.mxu0 %v767
      %6451 = vmatmul.mubr.bf16.gmra.mrb[0].mxu0 %v766
      %v6452 = vpop.f32.mrb[0].mxu0
      %v6453 = vadd.f32 %v6340, %v6452
      %v6454 = vpop.f32.mrb[0].mxu0
      %v6455 = vpop.f32.mrb[0].mxu0
      %v6456 = vadd.f32 %v6343, %v6455
      %v6457 = vpop.f32.mrb[0].mxu0
      %6458 = vmatprep.mubr.bf16.mxu0 %v846
      %6459 = vmatmul.mubr.bf16.gmra.mrb[0].mxu0 %v845
      %v6460 = vpop.f32.mrb[0].mxu0
      %v6461 = vadd.f32 %v6348, %v6460
      %v6462 = vpop.f32.mrb[0].mxu0
      %v6463 = vpop.f32.mrb[0].mxu0
      %v6464 = vadd.f32 %v6351, %v6463
      %v6465 = vpop.f32.mrb[0].mxu0
      %6466 = vmatprep.mubr.bf16.mxu0 %v925
      %6467 = vmatmul.mubr.bf16.gmra.mrb[0].mxu0 %v924
      %v6468 = vpop.f32.mrb[0].mxu0
      %v6469 = vadd.f32 %v6356, %v6468
      %v6470 = vpop.f32.mrb[0].mxu0
      %v6471 = vpop.f32.mrb[0].mxu0
      %v6472 = vadd.f32 %v6359, %v6471
      %v6473 = vpop.f32.mrb[0].mxu0
      %6474 = vmatprep.mubr.bf16.mxu0 %v1021
      %6475 = vmatmul.mubr.bf16.gmra.mrb[0].mxu0 %v1020
      %v6476 = vpop.f32.mrb[0].mxu0
      %v6477 = vadd.f32 %v6364, %v6476
      %v6478 = vpop.f32.mrb[0].mxu0
      %v6479 = vpop.f32.mrb[0].mxu0
      %v6480 = vadd.f32 %v6367, %v6479
      %v6481 = vpop.f32.mrb[0].mxu0
      %6482 = vmatprep.mubr.bf16.mxu0 %v1107
      %6483 = vmatmul.mubr.bf16.gmra.mrb[0].mxu0 %v1106
      %v6484 = vpop.f32.mrb[0].mxu0
      %v6485 = vadd.f32 %v6372, %v6484
      %v6486 = vpop.f32.mrb[0].mxu0
      %v6487 = vpop.f32.mrb[0].mxu0
      %v6488 = vadd.f32 %v6375, %v6487
      %v6489 = vpop.f32.mrb[0].mxu0
      %6490 = vmatprep.mubr.bf16.mxu0 %v1185
      %6491 = vmatmul.mubr.bf16.gmra.mrb[0].mxu0 %v1184
      %v6492 = vpop.f32.mrb[0].mxu0
      %v6493 = vadd.f32 %v6380, %v6492
      %v6494 = vpop.f32.mrb[0].mxu0
      %v6495 = vpop.f32.mrb[0].mxu0
      %v6496 = vadd.f32 %v6383, %v6495
      %v6497 = vpop.f32.mrb[0].mxu0
      %6498 = vmatprep.mubr.bf16.mxu0 %v1263
      %6499 = vmatmul.mubr.bf16.gmra.mrb[0].mxu0 %v1262
      %v6500 = vpop.f32.mrb[0].mxu0
      %v6501 = vadd.f32 %v6388, %v6500
      %v6502 = vpop.f32.mrb[0].mxu0
      %v6503 = vpop.f32.mrb[0].mxu0
      %v6504 = vadd.f32 %v6391, %v6503
      %v6505 = vpop.f32.mrb[0].mxu0
      %6506 = vmatprep.mubr.bf16.mxu0 %v1341
      %6507 = vmatmul.mubr.bf16.gmra.mrb[0].mxu0 %v1340
      %v6508 = vpop.f32.mrb[0].mxu0
      %v6509 = vadd.f32 %v6396, %v6508
      %v6510 = vpop.f32.mrb[0].mxu0
      %v6511 = vpop.f32.mrb[0].mxu0
      %v6512 = vadd.f32 %v6399, %v6511
      %v6513 = vpop.f32.mrb[0].mxu0
      %6514 = vdwg.mxu0
      %6515 = vmatprep.subr.bf16.mxu0 0
      %6516 = vmatpush1.bf16.msra.mxu0 %v5338
      %6517 = vmatprep.subr.bf16.mxu0 0
      %6518 = vmatpush1.bf16.msra.mxu0 %v5339
      %6519 = vmatprep.subr.bf16.mxu0 0
      %6520 = vmatpush1.bf16.msra.mxu0 %v5340
      %6521 = vmatprep.subr.bf16.mxu0 0
      %6522 = vmatpush1.bf16.msra.mxu0 %v5341
      %6523 = vmatprep.subr.bf16.mxu0 0
      %6524 = vmatpush1.bf16.msra.mxu0 %v5342
      %6525 = vmatprep.subr.bf16.mxu0 0
      %6526 = vmatpush1.bf16.msra.mxu0 %v5343
      %6527 = vmatprep.subr.bf16.mxu0 0
      %6528 = vmatpush1.bf16.msra.mxu0 %v5344
      %6529 = vmatprep.subr.bf16.mxu0 0
      %6530 = vmatpush1.bf16.msra.mxu0 %v5345
      %6531 = vmatprep.subr.bf16.mxu0 0
      %6532 = vmatpush1.bf16.msra.mxu0 0
      %6533 = vmatprep.subr.bf16.mxu0 0
      %6534 = vmatpush1.bf16.msra.mxu0 0
      %6535 = vmatprep.subr.bf16.mxu0 0
      %6536 = vmatpush1.bf16.msra.mxu0 0
      %6537 = vmatprep.subr.bf16.mxu0 0
      %6538 = vmatpush1.bf16.msra.mxu0 0
      %6539 = vmatprep.subr.bf16.mxu0 0
      %6540 = vmatpush1.bf16.msra.mxu0 0
      %6541 = vmatprep.subr.bf16.mxu0 0
      %6542 = vmatpush1.bf16.msra.mxu0 0
      %6543 = vmatprep.subr.bf16.mxu0 0
      %6544 = vmatpush1.bf16.msra.mxu0 0
      %6545 = vmatprep.subr.bf16.mxu0 0
      %6546 = vmatpush1.bf16.msra.mxu0 0
      %6547 = vmatprep.mubr.bf16.mxu0 0
      %6548 = vmatmul.mubr.bf16.gmra.mrb[0].mxu0 %v602
      %v6549 = vpop.f32.mrb[0].mxu0
      %v6550 = vadd.f32 %v6437, %v6549
      %v6551 = vpop.f32.mrb[0].mxu0
      %v6552 = vpop.f32.mrb[0].mxu0
      %v6553 = vadd.f32 %v6440, %v6552
      %v6554 = vpop.f32.mrb[0].mxu0
      %6555 = vmatprep.mubr.bf16.mxu0 0
      %6556 = vmatmul.mubr.bf16.gmra.mrb[0].mxu0 %v689
      %v6557 = vpop.f32.mrb[0].mxu0
      %v6558 = vadd.f32 %v6445, %v6557
      %v6559 = vpop.f32.mrb[0].mxu0
      %v6560 = vpop.f32.mrb[0].mxu0
      %v6561 = vadd.f32 %v6448, %v6560
      %v6562 = vpop.f32.mrb[0].mxu0
      %6563 = vmatprep.mubr.bf16.mxu0 0
      %6564 = vmatmul.mubr.bf16.gmra.mrb[0].mxu0 %v768
      %v6565 = vpop.f32.mrb[0].mxu0
      %v6566 = vadd.f32 %v6453, %v6565
      %v6567 = vpop.f32.mrb[0].mxu0
      %v6568 = vpop.f32.mrb[0].mxu0
      %v6569 = vadd.f32 %v6456, %v6568
      %v6570 = vpop.f32.mrb[0].mxu0
      %6571 = vmatprep.mubr.bf16.mxu0 0
      %6572 = vmatmul.mubr.bf16.gmra.mrb[0].mxu0 %v847
      %v6573 = vpop.f32.mrb[0].mxu0
      %v6574 = vadd.f32 %v6461, %v6573
      %v6575 = vpop.f32.mrb[0].mxu0
      %v6576 = vpop.f32.mrb[0].mxu0
      %v6577 = vadd.f32 %v6464, %v6576
      %v6578 = vpop.f32.mrb[0].mxu0
      %6579 = vmatprep.mubr.bf16.mxu0 0
      %6580 = vmatmul.mubr.bf16.gmra.mrb[0].mxu0 %v926
      %v6581 = vpop.f32.mrb[0].mxu0
      %v6582 = vadd.f32 %v6469, %v6581
      %v6583 = vpop.f32.mrb[0].mxu0
      %v6584 = vpop.f32.mrb[0].mxu0
      %v6585 = vadd.f32 %v6472, %v6584
      %v6586 = vpop.f32.mrb[0].mxu0
      %6587 = vmatprep.mubr.bf16.mxu0 0
      %6588 = vmatmul.mubr.bf16.gmra.mrb[0].mxu0 %v1022
      %v6589 = vpop.f32.mrb[0].mxu0
      %v6590 = vadd.f32 %v6477, %v6589
      %v6591 = vpop.f32.mrb[0].mxu0
      %v6592 = vpop.f32.mrb[0].mxu0
      %v6593 = vadd.f32 %v6480, %v6592
      %v6594 = vpop.f32.mrb[0].mxu0
      %6595 = vmatprep.mubr.bf16.mxu0 0
      %6596 = vmatmul.mubr.bf16.gmra.mrb[0].mxu0 %v1108
      %v6597 = vpop.f32.mrb[0].mxu0
      %v6598 = vadd.f32 %v6485, %v6597
      %v6599 = vpop.f32.mrb[0].mxu0
      %v6600 = vpop.f32.mrb[0].mxu0
      %v6601 = vadd.f32 %v6488, %v6600
      %v6602 = vpop.f32.mrb[0].mxu0
      %6603 = vmatprep.mubr.bf16.mxu0 0
      %6604 = vmatmul.mubr.bf16.gmra.mrb[0].mxu0 %v1186
      %v6605 = vpop.f32.mrb[0].mxu0
      %v6606 = vadd.f32 %v6493, %v6605
      %v6607 = vpop.f32.mrb[0].mxu0
      %v6608 = vpop.f32.mrb[0].mxu0
      %v6609 = vadd.f32 %v6496, %v6608
      %v6610 = vpop.f32.mrb[0].mxu0
      %6611 = vmatprep.mubr.bf16.mxu0 0
      %6612 = vmatmul.mubr.bf16.gmra.mrb[0].mxu0 %v1264
      %v6613 = vpop.f32.mrb[0].mxu0
      %v6614 = vadd.f32 %v6501, %v6613
      %v6615 = vpop.f32.mrb[0].mxu0
      %v6616 = vpop.f32.mrb[0].mxu0
      %v6617 = vadd.f32 %v6504, %v6616
      %v6618 = vpop.f32.mrb[0].mxu0
      %6619 = vmatprep.mubr.bf16.mxu0 0
      %6620 = vmatmul.mubr.bf16.gmra.mrb[0].mxu0 %v1342
      %v6621 = vpop.f32.mrb[0].mxu0
      %v6622 = vadd.f32 %v6509, %v6621
      %v6623 = vpop.f32.mrb[0].mxu0
      %v6624 = vpop.f32.mrb[0].mxu0
      %v6625 = vadd.f32 %v6512, %v6624
      %v6626 = vpop.f32.mrb[0].mxu0
      %6627 = vdwg.mxu0
      %v6628 = vld [vmem:[%s175 + $0x980] sm:$0xf]
      %v6629 = vld [vmem:[%s175 + $0x984] sm:$0xf]
      %v6630 = vld [vmem:[%s175 + $0x988] sm:$0xf]
      %v6631 = vld [vmem:[%s175 + $0x98c] sm:$0xf]
      %v6632 = vld [vmem:[%s175 + $0x990] sm:$0xf]
      %v6633 = vld [vmem:[%s175 + $0x994] sm:$0xf]
      %v6634 = vld [vmem:[%s175 + $0x998] sm:$0xf]
      %v6635 = vld [vmem:[%s175 + $0x99c] sm:$0xf]
      %v6636 = vld [vmem:[%s175 + $0x9a0] sm:$0xf]
      %v6637 = vld [vmem:[%s175 + $0x9a4] sm:$0xf]
      %v6638 = vld [vmem:[%s175 + $0x9a8] sm:$0xf]
      %v6639 = vld [vmem:[%s175 + $0x9ac] sm:$0xf]
      %v6640 = vld [vmem:[%s175 + $0x9b0] sm:$0xf]
      %v6641 = vld [vmem:[%s175 + $0x9b4] sm:$0xf]
      %v6642 = vld [vmem:[%s175 + $0x9b8] sm:$0xf]
      %v6643 = vld [vmem:[%s175 + $0x9bc] sm:$0xf]
      %v6644 = vld [vmem:[%s175 + $0x9c0] sm:$0xf]
      %v6645 = vld [vmem:[%s175 + $0x9c4] sm:$0xf]
      %v6646 = vld [vmem:[%s175 + $0x9c8] sm:$0xf]
      %v6647 = vld [vmem:[%s175 + $0x9cc] sm:$0xf]
      %v6648 = vld [vmem:[%s175 + $0x9d0] sm:$0xf]
      %v6649 = vld [vmem:[%s175 + $0x9d4] sm:$0xf]
      %v6650 = vld [vmem:[%s175 + $0x9d8] sm:$0xf]
      %v6651 = vld [vmem:[%s175 + $0x9dc] sm:$0xf]
      %v6652 = vld [vmem:[%s175 + $0x9e0] sm:$0xf]
      %v6653 = vld [vmem:[%s175 + $0x9e4] sm:$0xf]
      %v6654 = vld [vmem:[%s175 + $0x9e8] sm:$0xf]
      %v6655 = vld [vmem:[%s175 + $0x9ec] sm:$0xf]
      %v6656 = vld [vmem:[%s175 + $0x9f0] sm:$0xf]
      %v6657 = vld [vmem:[%s175 + $0x9f4] sm:$0xf]
      %v6658 = vld [vmem:[%s175 + $0x9f8] sm:$0xf]
      %v6659 = vld [vmem:[%s175 + $0x9fc] sm:$0xf]
      %v6660 = vld [vmem:[%s175 + $0xa00] sm:$0xf]
      %v6661 = vld [vmem:[%s175 + $0xa04] sm:$0xf]
      %v6662 = vld [vmem:[%s175 + $0xa08] sm:$0xf]
      %v6663 = vld [vmem:[%s175 + $0xa0c] sm:$0xf]
      %v6664 = vld [vmem:[%s175 + $0xa10] sm:$0xf]
      %v6665 = vld [vmem:[%s175 + $0xa14] sm:$0xf]
      %v6666 = vld [vmem:[%s175 + $0xa18] sm:$0xf]
      %v6667 = vld [vmem:[%s175 + $0xa1c] sm:$0xf]
      %v6668 = vld [vmem:[%s175 + $0xa20] sm:$0xf]
      %v6669 = vld [vmem:[%s175 + $0xa24] sm:$0xf]
      %v6670 = vld [vmem:[%s175 + $0xa28] sm:$0xf]
      %v6671 = vld [vmem:[%s175 + $0xa2c] sm:$0xf]
      %v6672 = vld [vmem:[%s175 + $0xa30] sm:$0xf]
      %v6673 = vld [vmem:[%s175 + $0xa34] sm:$0xf]
      %v6674 = vld [vmem:[%s175 + $0xa38] sm:$0xf]
      %v6675 = vld [vmem:[%s175 + $0xa3c] sm:$0xf]
      %v6676 = vld [vmem:[%s175 + $0xa40] sm:$0xf]
      %v6677 = vld [vmem:[%s175 + $0xa44] sm:$0xf]
      %v6678 = vld [vmem:[%s175 + $0xa48] sm:$0xf]
      %v6679 = vld [vmem:[%s175 + $0xa4c] sm:$0xf]
      %v6680 = vld [vmem:[%s175 + $0xa50] sm:$0xf]
      %v6681 = vld [vmem:[%s175 + $0xa54] sm:$0xf]
      %v6682 = vld [vmem:[%s175 + $0xa58] sm:$0xf]
      %v6683 = vld [vmem:[%s175 + $0xa5c] sm:$0xf]
      %v6684 = vld [vmem:[%s175 + $0xa60] sm:$0xf]
      %v6685 = vld [vmem:[%s175 + $0xa64] sm:$0xf]
      %v6686 = vld [vmem:[%s175 + $0xa68] sm:$0xf]
      %v6687 = vld [vmem:[%s175 + $0xa6c] sm:$0xf]
      %v6688 = vld [vmem:[%s175 + $0xa70] sm:$0xf]
      %v6689 = vld [vmem:[%s175 + $0xa74] sm:$0xf]
      %v6690 = vld [vmem:[%s175 + $0xa78] sm:$0xf]
      %v6691 = vld [vmem:[%s175 + $0xa7c] sm:$0xf]
      %v6692 = vld [vmem:[%s175 + $0xa80] sm:$0xf]
      %v6693 = vld [vmem:[%s175 + $0xa84] sm:$0xf]
      %v6694 = vld [vmem:[%s175 + $0xa88] sm:$0xf]
      %v6695 = vld [vmem:[%s175 + $0xa8c] sm:$0xf]
      %v6696 = vld [vmem:[%s175 + $0xa90] sm:$0xf]
      %v6697 = vld [vmem:[%s175 + $0xa94] sm:$0xf]
      %v6698 = vld [vmem:[%s175 + $0xa98] sm:$0xf]
      %v6699 = vld [vmem:[%s175 + $0xa9c] sm:$0xf]
      %v6700 = vld [vmem:[%s175 + $0xaa0] sm:$0xf]
      %v6701 = vld [vmem:[%s175 + $0xaa4] sm:$0xf]
      %v6702 = vld [vmem:[%s175 + $0xaa8] sm:$0xf]
      %v6703 = vld [vmem:[%s175 + $0xaac] sm:$0xf]
      %v6704 = vld [vmem:[%s175 + $0xab0] sm:$0xf]
      %v6705 = vld [vmem:[%s175 + $0xab4] sm:$0xf]
      %v6706 = vld [vmem:[%s175 + $0xab8] sm:$0xf]
      %v6707 = vld [vmem:[%s175 + $0xabc] sm:$0xf]
      %v6708 = vld [vmem:[%s175 + $0xac0] sm:$0xf]
      %v6709 = vld [vmem:[%s175 + $0xac4] sm:$0xf]
      %v6710 = vld [vmem:[%s175 + $0xac8] sm:$0xf]
      %v6711 = vld [vmem:[%s175 + $0xacc] sm:$0xf]
      %v6712 = vld [vmem:[%s175 + $0xad0] sm:$0xf]
      %v6713 = vld [vmem:[%s175 + $0xad4] sm:$0xf]
      %v6714 = vld [vmem:[%s175 + $0xad8] sm:$0xf]
      %v6715 = vld [vmem:[%s175 + $0xadc] sm:$0xf]
      %v6716 = vld [vmem:[%s175 + $0xae0] sm:$0xf]
      %v6717 = vld [vmem:[%s175 + $0xae4] sm:$0xf]
      %v6718 = vld [vmem:[%s175 + $0xae8] sm:$0xf]
      %v6719 = vld [vmem:[%s175 + $0xaec] sm:$0xf]
      %v6720 = vld [vmem:[%s175 + $0xaf0] sm:$0xf]
      %v6721 = vld [vmem:[%s175 + $0xaf4] sm:$0xf]
      %v6722 = vld [vmem:[%s175 + $0xaf8] sm:$0xf]
      %v6723 = vld [vmem:[%s175 + $0xafc] sm:$0xf]
      %v6724 = vld [vmem:[%s175 + $0xb00] sm:$0xf]
      %v6725 = vld [vmem:[%s175 + $0xb04] sm:$0xf]
      %v6726 = vld [vmem:[%s175 + $0xb08] sm:$0xf]
      %v6727 = vld [vmem:[%s175 + $0xb0c] sm:$0xf]
      %v6728 = vld [vmem:[%s175 + $0xb10] sm:$0xf]
      %v6729 = vld [vmem:[%s175 + $0xb14] sm:$0xf]
      %v6730 = vld [vmem:[%s175 + $0xb18] sm:$0xf]
      %v6731 = vld [vmem:[%s175 + $0xb1c] sm:$0xf]
      %v6732 = vld [vmem:[%s175 + $0xb20] sm:$0xf]
      %v6733 = vld [vmem:[%s175 + $0xb24] sm:$0xf]
      %v6734 = vld [vmem:[%s175 + $0xb28] sm:$0xf]
      %v6735 = vld [vmem:[%s175 + $0xb2c] sm:$0xf]
      %v6736 = vld [vmem:[%s175 + $0xb30] sm:$0xf]
      %v6737 = vld [vmem:[%s175 + $0xb34] sm:$0xf]
      %v6738 = vld [vmem:[%s175 + $0xb38] sm:$0xf]
      %v6739 = vld [vmem:[%s175 + $0xb3c] sm:$0xf]
      %v6740 = vld [vmem:[%s175 + $0xb40] sm:$0xf]
      %v6741 = vld [vmem:[%s175 + $0xb44] sm:$0xf]
      %v6742 = vld [vmem:[%s175 + $0xb48] sm:$0xf]
      %v6743 = vld [vmem:[%s175 + $0xb4c] sm:$0xf]
      %v6744 = vld [vmem:[%s175 + $0xb50] sm:$0xf]
      %v6745 = vld [vmem:[%s175 + $0xb54] sm:$0xf]
      %v6746 = vld [vmem:[%s175 + $0xb58] sm:$0xf]
      %v6747 = vld [vmem:[%s175 + $0xb5c] sm:$0xf]
      %v6748 = vld [vmem:[%s175 + $0xb60] sm:$0xf]
      %v6749 = vld [vmem:[%s175 + $0xb64] sm:$0xf]
      %v6750 = vld [vmem:[%s175 + $0xb68] sm:$0xf]
      %v6751 = vld [vmem:[%s175 + $0xb6c] sm:$0xf]
      %v6752 = vld [vmem:[%s175 + $0xb70] sm:$0xf]
      %v6753 = vld [vmem:[%s175 + $0xb74] sm:$0xf]
      %v6754 = vld [vmem:[%s175 + $0xb78] sm:$0xf]
      %v6755 = vld [vmem:[%s175 + $0xb7c] sm:$0xf]
      %v6756 = vld [vmem:[%s175 + $0xb80] sm:$0xf]
      %v6757 = vld [vmem:[%s175 + $0xb84] sm:$0xf]
      %v6758 = vld [vmem:[%s175 + $0xb88] sm:$0xf]
      %v6759 = vld [vmem:[%s175 + $0xb8c] sm:$0xf]
      %v6760 = vld [vmem:[%s175 + $0xb90] sm:$0xf]
      %v6761 = vld [vmem:[%s175 + $0xb94] sm:$0xf]
      %v6762 = vld [vmem:[%s175 + $0xb98] sm:$0xf]
      %v6763 = vld [vmem:[%s175 + $0xb9c] sm:$0xf]
      %v6764 = vld [vmem:[%s175 + $0xba0] sm:$0xf]
      %v6765 = vld [vmem:[%s175 + $0xba4] sm:$0xf]
      %v6766 = vld [vmem:[%s175 + $0xba8] sm:$0xf]
      %v6767 = vld [vmem:[%s175 + $0xbac] sm:$0xf]
      %v6768 = vld [vmem:[%s175 + $0xbb0] sm:$0xf]
      %v6769 = vld [vmem:[%s175 + $0xbb4] sm:$0xf]
      %v6770 = vld [vmem:[%s175 + $0xbb8] sm:$0xf]
      %v6771 = vld [vmem:[%s175 + $0xbbc] sm:$0xf]
      %v6772 = vld [vmem:[%s175 + $0xbc0] sm:$0xf]
      %v6773 = vld [vmem:[%s175 + $0xbc4] sm:$0xf]
      %v6774 = vld [vmem:[%s175 + $0xbc8] sm:$0xf]
      %v6775 = vld [vmem:[%s175 + $0xbcc] sm:$0xf]
      %v6776 = vld [vmem:[%s175 + $0xbd0] sm:$0xf]
      %v6777 = vld [vmem:[%s175 + $0xbd4] sm:$0xf]
      %v6778 = vld [vmem:[%s175 + $0xbd8] sm:$0xf]
      %v6779 = vld [vmem:[%s175 + $0xbdc] sm:$0xf]
      %v6780 = vld [vmem:[%s175 + $0xbe0] sm:$0xf]
      %v6781 = vld [vmem:[%s175 + $0xbe4] sm:$0xf]
      %v6782 = vld [vmem:[%s175 + $0xbe8] sm:$0xf]
      %v6783 = vld [vmem:[%s175 + $0xbec] sm:$0xf]
      %v6784 = vld [vmem:[%s175 + $0xbf0] sm:$0xf]
      %v6785 = vld [vmem:[%s175 + $0xbf4] sm:$0xf]
      %v6786 = vld [vmem:[%s175 + $0xbf8] sm:$0xf]
      %v6787 = vld [vmem:[%s175 + $0xbfc] sm:$0xf]
      %v6788 = vld [vmem:[%s175 + $0xc00] sm:$0xf]
      %v6789 = vld [vmem:[%s175 + $0xc04] sm:$0xf]
      %v6790 = vld [vmem:[%s175 + $0xc08] sm:$0xf]
      %v6791 = vld [vmem:[%s175 + $0xc0c] sm:$0xf]
      %v6792 = vld [vmem:[%s175 + $0xc10] sm:$0xf]
      %v6793 = vld [vmem:[%s175 + $0xc14] sm:$0xf]
      %v6794 = vld [vmem:[%s175 + $0xc18] sm:$0xf]
      %v6795 = vld [vmem:[%s175 + $0xc1c] sm:$0xf]
      %v6796 = vld [vmem:[%s175 + $0xc20] sm:$0xf]
      %v6797 = vld [vmem:[%s175 + $0xc24] sm:$0xf]
      %v6798 = vld [vmem:[%s175 + $0xc28] sm:$0xf]
      %v6799 = vld [vmem:[%s175 + $0xc2c] sm:$0xf]
      %v6800 = vld [vmem:[%s175 + $0xc30] sm:$0xf]
      %v6801 = vld [vmem:[%s175 + $0xc34] sm:$0xf]
      %v6802 = vld [vmem:[%s175 + $0xc38] sm:$0xf]
      %v6803 = vld [vmem:[%s175 + $0xc3c] sm:$0xf]
      %v6804 = vld [vmem:[%s175 + $0xc40] sm:$0xf]
      %v6805 = vld [vmem:[%s175 + $0xc44] sm:$0xf]
      %v6806 = vld [vmem:[%s175 + $0xc48] sm:$0xf]
      %v6807 = vld [vmem:[%s175 + $0xc4c] sm:$0xf]
      %v6808 = vld [vmem:[%s175 + $0xc50] sm:$0xf]
      %v6809 = vld [vmem:[%s175 + $0xc54] sm:$0xf]
      %v6810 = vld [vmem:[%s175 + $0xc58] sm:$0xf]
      %v6811 = vld [vmem:[%s175 + $0xc5c] sm:$0xf]
      %v6812 = vld [vmem:[%s175 + $0xc60] sm:$0xf]
      %v6813 = vld [vmem:[%s175 + $0xc64] sm:$0xf]
      %v6814 = vld [vmem:[%s175 + $0xc68] sm:$0xf]
      %v6815 = vld [vmem:[%s175 + $0xc6c] sm:$0xf]
      %v6816 = vld [vmem:[%s175 + $0xc70] sm:$0xf]
      %v6817 = vld [vmem:[%s175 + $0xc74] sm:$0xf]
      %v6818 = vld [vmem:[%s175 + $0xc78] sm:$0xf]
      %v6819 = vld [vmem:[%s175 + $0xc7c] sm:$0xf]
      %v6820 = vld [vmem:[%s175 + $0xc80] sm:$0xf]
      %v6821 = vld [vmem:[%s175 + $0xc84] sm:$0xf]
      %v6822 = vld [vmem:[%s175 + $0xc88] sm:$0xf]
      %v6823 = vld [vmem:[%s175 + $0xc8c] sm:$0xf]
      %v6824 = vld [vmem:[%s175 + $0xc90] sm:$0xf]
      %v6825 = vld [vmem:[%s175 + $0xc94] sm:$0xf]
      %v6826 = vld [vmem:[%s175 + $0xc98] sm:$0xf]
      %v6827 = vld [vmem:[%s175 + $0xc9c] sm:$0xf]
      %v6828 = vld [vmem:[%s175 + $0xca0] sm:$0xf]
      %v6829 = vld [vmem:[%s175 + $0xca4] sm:$0xf]
      %v6830 = vld [vmem:[%s175 + $0xca8] sm:$0xf]
      %v6831 = vld [vmem:[%s175 + $0xcac] sm:$0xf]
      %v6832 = vld [vmem:[%s175 + $0xcb0] sm:$0xf]
      %v6833 = vld [vmem:[%s175 + $0xcb4] sm:$0xf]
      %v6834 = vld [vmem:[%s175 + $0xcb8] sm:$0xf]
      %v6835 = vld [vmem:[%s175 + $0xcbc] sm:$0xf]
      %v6836 = vld [vmem:[%s175 + $0xcc0] sm:$0xf]
      %v6837 = vld [vmem:[%s175 + $0xcc4] sm:$0xf]
      %v6838 = vld [vmem:[%s175 + $0xcc8] sm:$0xf]
      %v6839 = vld [vmem:[%s175 + $0xccc] sm:$0xf]
      %v6840 = vld [vmem:[%s175 + $0xcd0] sm:$0xf]
      %v6841 = vld [vmem:[%s175 + $0xcd4] sm:$0xf]
      %v6842 = vld [vmem:[%s175 + $0xcd8] sm:$0xf]
      %v6843 = vld [vmem:[%s175 + $0xcdc] sm:$0xf]
      %v6844 = vld [vmem:[%s175 + $0xce0] sm:$0xf]
      %v6845 = vld [vmem:[%s175 + $0xce4] sm:$0xf]
      %v6846 = vld [vmem:[%s175 + $0xce8] sm:$0xf]
      %v6847 = vld [vmem:[%s175 + $0xcec] sm:$0xf]
      %v6848 = vld [vmem:[%s175 + $0xcf0] sm:$0xf]
      %v6849 = vld [vmem:[%s175 + $0xcf4] sm:$0xf]
      %v6850 = vld [vmem:[%s175 + $0xcf8] sm:$0xf]
      %v6851 = vld [vmem:[%s175 + $0xcfc] sm:$0xf]
      %v6852 = vld [vmem:[%s175 + $0xd00] sm:$0xf]
      %v6853 = vld [vmem:[%s175 + $0xd04] sm:$0xf]
      %v6854 = vld [vmem:[%s175 + $0xd08] sm:$0xf]
      %v6855 = vld [vmem:[%s175 + $0xd0c] sm:$0xf]
      %v6856 = vld [vmem:[%s175 + $0xd10] sm:$0xf]
      %v6857 = vld [vmem:[%s175 + $0xd14] sm:$0xf]
      %v6858 = vld [vmem:[%s175 + $0xd18] sm:$0xf]
      %v6859 = vld [vmem:[%s175 + $0xd1c] sm:$0xf]
      %v6860 = vld [vmem:[%s175 + $0xd20] sm:$0xf]
      %v6861 = vld [vmem:[%s175 + $0xd24] sm:$0xf]
      %v6862 = vld [vmem:[%s175 + $0xd28] sm:$0xf]
      %v6863 = vld [vmem:[%s175 + $0xd2c] sm:$0xf]
      %v6864 = vld [vmem:[%s175 + $0xd30] sm:$0xf]
      %v6865 = vld [vmem:[%s175 + $0xd34] sm:$0xf]
      %v6866 = vld [vmem:[%s175 + $0xd38] sm:$0xf]
      %v6867 = vld [vmem:[%s175 + $0xd3c] sm:$0xf]
      %v6868 = vld [vmem:[%s175 + $0xd40] sm:$0xf]
      %v6869 = vld [vmem:[%s175 + $0xd44] sm:$0xf]
      %v6870 = vld [vmem:[%s175 + $0xd48] sm:$0xf]
      %v6871 = vld [vmem:[%s175 + $0xd4c] sm:$0xf]
      %v6872 = vld [vmem:[%s175 + $0xd50] sm:$0xf]
      %v6873 = vld [vmem:[%s175 + $0xd54] sm:$0xf]
      %v6874 = vld [vmem:[%s175 + $0xd58] sm:$0xf]
      %v6875 = vld [vmem:[%s175 + $0xd5c] sm:$0xf]
      %v6876 = vld [vmem:[%s175 + $0xd60] sm:$0xf]
      %v6877 = vld [vmem:[%s175 + $0xd64] sm:$0xf]
      %v6878 = vld [vmem:[%s175 + $0xd68] sm:$0xf]
      %v6879 = vld [vmem:[%s175 + $0xd6c] sm:$0xf]
      %v6880 = vld [vmem:[%s175 + $0xd70] sm:$0xf]
      %v6881 = vld [vmem:[%s175 + $0xd74] sm:$0xf]
      %v6882 = vld [vmem:[%s175 + $0xd78] sm:$0xf]
      %v6883 = vld [vmem:[%s175 + $0xd7c] sm:$0xf]
      %v6884 = vld [vmem:[%s175 + $0xd80] sm:$0xf]
      %v6885 = vld [vmem:[%s175 + $0xd84] sm:$0xf]
      %v6886 = vld [vmem:[%s175 + $0xd88] sm:$0xf]
      %v6887 = vld [vmem:[%s175 + $0xd8c] sm:$0xf]
      %v6888 = vld [vmem:[%s175 + $0xd90] sm:$0xf]
      %v6889 = vld [vmem:[%s175 + $0xd94] sm:$0xf]
      %v6890 = vld [vmem:[%s175 + $0xd98] sm:$0xf]
      %v6891 = vld [vmem:[%s175 + $0xd9c] sm:$0xf]
      %v6892 = vld [vmem:[%s175 + $0xda0] sm:$0xf]
      %v6893 = vld [vmem:[%s175 + $0xda4] sm:$0xf]
      %v6894 = vld [vmem:[%s175 + $0xda8] sm:$0xf]
      %v6895 = vld [vmem:[%s175 + $0xdac] sm:$0xf]
      %v6896 = vld [vmem:[%s175 + $0xdb0] sm:$0xf]
      %v6897 = vld [vmem:[%s175 + $0xdb4] sm:$0xf]
      %v6898 = vld [vmem:[%s175 + $0xdb8] sm:$0xf]
      %v6899 = vld [vmem:[%s175 + $0xdbc] sm:$0xf]
      %v6900 = vld [vmem:[%s175 + $0xdc0] sm:$0xf]
      %v6901 = vld [vmem:[%s175 + $0xdc4] sm:$0xf]
      %v6902 = vld [vmem:[%s175 + $0xdc8] sm:$0xf]
      %v6903 = vld [vmem:[%s175 + $0xdcc] sm:$0xf]
      %v6904 = vld [vmem:[%s175 + $0xdd0] sm:$0xf]
      %v6905 = vld [vmem:[%s175 + $0xdd4] sm:$0xf]
      %v6906 = vld [vmem:[%s175 + $0xdd8] sm:$0xf]
      %v6907 = vld [vmem:[%s175 + $0xddc] sm:$0xf]
      %v6908 = vld [vmem:[%s175 + $0xde0] sm:$0xf]
      %v6909 = vld [vmem:[%s175 + $0xde4] sm:$0xf]
      %v6910 = vld [vmem:[%s175 + $0xde8] sm:$0xf]
      %v6911 = vld [vmem:[%s175 + $0xdec] sm:$0xf]
      %v6912 = vld [vmem:[%s175 + $0xdf0] sm:$0xf]
      %v6913 = vld [vmem:[%s175 + $0xdf4] sm:$0xf]
      %v6914 = vld [vmem:[%s175 + $0xdf8] sm:$0xf]
      %v6915 = vld [vmem:[%s175 + $0xdfc] sm:$0xf]
      %v6916 = vld [vmem:[%s175 + $0xe00] sm:$0xf]
      %v6917 = vld [vmem:[%s175 + $0xe04] sm:$0xf]
      %v6918 = vld [vmem:[%s175 + $0xe08] sm:$0xf]
      %v6919 = vld [vmem:[%s175 + $0xe0c] sm:$0xf]
      %v6920 = vld [vmem:[%s175 + $0xe10] sm:$0xf]
      %v6921 = vld [vmem:[%s175 + $0xe14] sm:$0xf]
      %v6922 = vld [vmem:[%s175 + $0xe18] sm:$0xf]
      %v6923 = vld [vmem:[%s175 + $0xe1c] sm:$0xf]
      %v6924 = vld [vmem:[%s175 + $0xe20] sm:$0xf]
      %v6925 = vld [vmem:[%s175 + $0xe24] sm:$0xf]
      %v6926 = vld [vmem:[%s175 + $0xe28] sm:$0xf]
      %v6927 = vld [vmem:[%s175 + $0xe2c] sm:$0xf]
      %v6928 = vld [vmem:[%s175 + $0xe30] sm:$0xf]
      %v6929 = vld [vmem:[%s175 + $0xe34] sm:$0xf]
      %v6930 = vld [vmem:[%s175 + $0xe38] sm:$0xf]
      %v6931 = vld [vmem:[%s175 + $0xe3c] sm:$0xf]
      %s6932 = scalar_lea.vmem %s170, 640
      %v6933 = vld [vmem:[%s6932] sm:$0xff]
      %v6934 = vld [vmem:[%s6932 + $0x8] sm:$0xff]
      %v6935 = vld [vmem:[%s6932 + $0x10] sm:$0xff]
      %v6936 = vld [vmem:[%s6932 + $0x18] sm:$0xff]
      %v6937 = vld [vmem:[%s6932 + $0x20] sm:$0xff]
      %v6938 = vld [vmem:[%s6932 + $0x28] sm:$0xff]
      %v6939 = vld [vmem:[%s6932 + $0x30] sm:$0xff]
      %v6940 = vld [vmem:[%s6932 + $0x38] sm:$0xff]
      %v6941 = vld [vmem:[%s6932 + $0x40] sm:$0xff]
      %v6942 = vld [vmem:[%s6932 + $0x48] sm:$0xf]
      %v6943 = vld [vmem:[%s6932 + $0x50] sm:$0xff]
      %v6944 = vld [vmem:[%s6932 + $0x58] sm:$0xff]
      %v6945 = vld [vmem:[%s6932 + $0x60] sm:$0xff]
      %v6946 = vld [vmem:[%s6932 + $0x68] sm:$0xff]
      %v6947 = vld [vmem:[%s6932 + $0x70] sm:$0xff]
      %v6948 = vld [vmem:[%s6932 + $0x78] sm:$0xff]
      %v6949 = vld [vmem:[%s6932 + $0x80] sm:$0xff]
      %v6950 = vld [vmem:[%s6932 + $0x88] sm:$0xff]
      %v6951 = vld [vmem:[%s6932 + $0x90] sm:$0xff]
      %v6952 = vld [vmem:[%s6932 + $0x98] sm:$0xf]
      %v6953 = vld [vmem:[%s6932 + $0x48] sm:$0xff]
      %v6954 = vld [vmem:[%s6932 + $0x98] sm:$0xff]
      %s6955 = scalar_lea.vmem %s170, 800
      %v6956 = vld [vmem:[%s6955] sm:$0xff]
      %v6957 = vld [vmem:[%s6955 + $0x8] sm:$0xff]
      %v6958 = vld [vmem:[%s6955 + $0x10] sm:$0xff]
      %v6959 = vld [vmem:[%s6955 + $0x18] sm:$0xff]
      %v6960 = vld [vmem:[%s6955 + $0x20] sm:$0xff]
      %v6961 = vld [vmem:[%s6955 + $0x28] sm:$0xff]
      %v6962 = vld [vmem:[%s6955 + $0x30] sm:$0xff]
      %v6963 = vld [vmem:[%s6955 + $0x38] sm:$0xff]
      %v6964 = vld [vmem:[%s6955 + $0x40] sm:$0xff]
      %v6965 = vld [vmem:[%s6955 + $0x48] sm:$0xf]
      %v6966 = vld [vmem:[%s6955 + $0x50] sm:$0xff]
      %v6967 = vld [vmem:[%s6955 + $0x58] sm:$0xff]
      %v6968 = vld [vmem:[%s6955 + $0x60] sm:$0xff]
      %v6969 = vld [vmem:[%s6955 + $0x68] sm:$0xff]
      %v6970 = vld [vmem:[%s6955 + $0x70] sm:$0xff]
      %v6971 = vld [vmem:[%s6955 + $0x78] sm:$0xff]
      %v6972 = vld [vmem:[%s6955 + $0x80] sm:$0xff]
      %v6973 = vld [vmem:[%s6955 + $0x88] sm:$0xff]
      %v6974 = vld [vmem:[%s6955 + $0x90] sm:$0xff]
      %v6975 = vld [vmem:[%s6955 + $0x98] sm:$0xf]
      %v6976 = vld [vmem:[%s6955 + $0x48] sm:$0xff]
      %v6977 = vld [vmem:[%s6955 + $0x98] sm:$0xff]
      %v6998 = vunpack.c.l.b16 %v6933
      %v6999 = vunpack.c.h.b16 %v6933
      %v7000 = vunpack.c.l.b16 %v6934
      %v7001 = vunpack.c.h.b16 %v6934
      %v7002 = vunpack.c.l.b16 %v6935
      %v7003 = vunpack.c.h.b16 %v6935
      %v7004 = vunpack.c.l.b16 %v6936
      %v7005 = vunpack.c.h.b16 %v6936
      %v7006 = vunpack.c.l.b16 %v6937
      %v7007 = vunpack.c.h.b16 %v6937
      %v7008 = vunpack.c.l.b16 %v6938
      %v7009 = vunpack.c.h.b16 %v6938
      %v7010 = vunpack.c.l.b16 %v6939
      %v7011 = vunpack.c.h.b16 %v6939
      %v7012 = vunpack.c.l.b16 %v6940
      %v7013 = vunpack.c.h.b16 %v6940
      %v7014 = vunpack.c.l.b16 %v6941
      %v7015 = vunpack.c.h.b16 %v6941
      %v7016 = vunpack.c.l.b16 %v6942
      %v7017 = vunpack.c.l.b16 %v6943
      %v7018 = vunpack.c.h.b16 %v6943
      %v7019 = vunpack.c.l.b16 %v6944
      %v7020 = vunpack.c.h.b16 %v6944
      %v7021 = vunpack.c.l.b16 %v6945
      %v7022 = vunpack.c.h.b16 %v6945
      %v7023 = vunpack.c.l.b16 %v6946
      %v7024 = vunpack.c.h.b16 %v6946
      %v7025 = vunpack.c.l.b16 %v6947
      %v7026 = vunpack.c.h.b16 %v6947
      %v7027 = vunpack.c.l.b16 %v6948
      %v7028 = vunpack.c.h.b16 %v6948
      %v7029 = vunpack.c.l.b16 %v6949
      %v7030 = vunpack.c.h.b16 %v6949
      %v7031 = vunpack.c.l.b16 %v6950
      %v7032 = vunpack.c.h.b16 %v6950
      %v7033 = vunpack.c.l.b16 %v6951
      %v7034 = vunpack.c.h.b16 %v6951
      %v7035 = vunpack.c.l.b16 %v6952
      %v7036 = vpack.c.b16 %v7017, %v6998
      %v7037 = vpack.c.b16 %v7018, %v6999
      %v7038 = vpack.c.b16 %v7019, %v7000
      %v7039 = vpack.c.b16 %v7020, %v7001
      %v7040 = vpack.c.b16 %v7021, %v7002
      %v7041 = vpack.c.b16 %v7022, %v7003
      %v7042 = vpack.c.b16 %v7023, %v7004
      %v7043 = vpack.c.b16 %v7024, %v7005
      %v7044 = vpack.c.b16 %v7025, %v7006
      %v7045 = vpack.c.b16 %v7026, %v7007
      %v7046 = vpack.c.b16 %v7027, %v7008
      %v7047 = vpack.c.b16 %v7028, %v7009
      %v7048 = vpack.c.b16 %v7029, %v7010
      %v7049 = vpack.c.b16 %v7030, %v7011
      %v7050 = vpack.c.b16 %v7031, %v7012
      %v7051 = vpack.c.b16 %v7032, %v7013
      %v7052 = vpack.c.b16 %v7033, %v7014
      %v7053 = vpack.c.b16 %v7034, %v7015
      %v7054 = vpack.c.b16 %v7035, %v7016
      %v7076 = vunpack.c.l.b16 %v6953
      %v7077 = vunpack.c.h.b16 %v6953
      %v7078 = vunpack.c.l.b16 %v6954
      %v7079 = vunpack.c.h.b16 %v6954
      %v7080 = vpack.c.b16 %v7078, %v7076
      %v7081 = vpack.c.b16 %v7079, %v7077
      %7082 = vrot.lane.b32.xlu0 %v7036, 112
      %v7083 = vpop.permute.xlu0 %7082
      %7084 = vrot.lane.b32.xlu0 %v7037, 112
      %v7085 = vpop.permute.xlu0 %7084
      %7086 = vrot.lane.b32.xlu0 %v7038, 112
      %v7087 = vpop.permute.xlu0 %7086
      %7088 = vrot.lane.b32.xlu0 %v7039, 112
      %v7089 = vpop.permute.xlu0 %7088
      %7090 = vrot.lane.b32.xlu0 %v7040, 112
      %v7091 = vpop.permute.xlu0 %7090
      %7092 = vrot.lane.b32.xlu0 %v7041, 112
      %v7093 = vpop.permute.xlu0 %7092
      %7094 = vrot.lane.b32.xlu0 %v7042, 112
      %v7095 = vpop.permute.xlu0 %7094
      %7096 = vrot.lane.b32.xlu0 %v7043, 112
      %v7097 = vpop.permute.xlu0 %7096
      %7098 = vrot.lane.b32.xlu0 %v7044, 112
      %v7099 = vpop.permute.xlu0 %7098
      %7100 = vrot.lane.b32.xlu0 %v7045, 112
      %v7101 = vpop.permute.xlu0 %7100
      %7102 = vrot.lane.b32.xlu0 %v7046, 112
      %v7103 = vpop.permute.xlu0 %7102
      %7104 = vrot.lane.b32.xlu0 %v7047, 112
      %v7105 = vpop.permute.xlu0 %7104
      %7106 = vrot.lane.b32.xlu0 %v7048, 112
      %v7107 = vpop.permute.xlu0 %7106
      %7108 = vrot.lane.b32.xlu0 %v7049, 112
      %v7109 = vpop.permute.xlu0 %7108
      %7110 = vrot.lane.b32.xlu0 %v7050, 112
      %v7111 = vpop.permute.xlu0 %7110
      %7112 = vrot.lane.b32.xlu0 %v7051, 112
      %v7113 = vpop.permute.xlu0 %7112
      %7114 = vrot.lane.b32.xlu0 %v7052, 112
      %v7115 = vpop.permute.xlu0 %7114
      %7116 = vrot.lane.b32.xlu0 %v7053, 112
      %v7117 = vpop.permute.xlu0 %7116
      %7118 = vrot.lane.b32.xlu0 %v7080, 112
      %v7119 = vpop.permute.xlu0 %7118
      %7120 = vrot.lane.b32.xlu0 %v7081, 112
      %v7121 = vpop.permute.xlu0 %7120
      %v7122 = vsel %vm670, %v7083, %v7085
      %v7123 = vsel %vm670, %v7085, %v7087
      %v7124 = vsel %vm670, %v7087, %v7089
      %v7125 = vsel %vm670, %v7089, %v7091
      %v7126 = vsel %vm670, %v7091, %v7093
      %v7127 = vsel %vm670, %v7093, %v7095
      %v7128 = vsel %vm670, %v7095, %v7097
      %v7129 = vsel %vm670, %v7097, %v7099
      %v7130 = vsel %vm670, %v7099, %v7101
      %v7131 = vsel %vm670, %v7101, %v7103
      %v7132 = vsel %vm670, %v7103, %v7105
      %v7133 = vsel %vm670, %v7105, %v7107
      %v7134 = vsel %vm670, %v7107, %v7109
      %v7135 = vsel %vm670, %v7109, %v7111
      %v7136 = vsel %vm670, %v7111, %v7113
      %v7137 = vsel %vm670, %v7113, %v7115
      %v7138 = vsel %vm670, %v7115, %v7117
      %v7139 = vsel %vm670, %v7117, %v7119
      %v7140 = vsel %vm670, %v7119, %v7121
      %7160 = vrot.lane.b32.xlu0 %v7036, 96
      %v7161 = vpop.permute.xlu0 %7160
      %7162 = vrot.lane.b32.xlu0 %v7037, 96
      %v7163 = vpop.permute.xlu0 %7162
      %7164 = vrot.lane.b32.xlu0 %v7038, 96
      %v7165 = vpop.permute.xlu0 %7164
      %7166 = vrot.lane.b32.xlu0 %v7039, 96
      %v7167 = vpop.permute.xlu0 %7166
      %7168 = vrot.lane.b32.xlu0 %v7040, 96
      %v7169 = vpop.permute.xlu0 %7168
      %7170 = vrot.lane.b32.xlu0 %v7041, 96
      %v7171 = vpop.permute.xlu0 %7170
      %7172 = vrot.lane.b32.xlu0 %v7042, 96
      %v7173 = vpop.permute.xlu0 %7172
      %7174 = vrot.lane.b32.xlu0 %v7043, 96
      %v7175 = vpop.permute.xlu0 %7174
      %7176 = vrot.lane.b32.xlu0 %v7044, 96
      %v7177 = vpop.permute.xlu0 %7176
      %7178 = vrot.lane.b32.xlu0 %v7045, 96
      %v7179 = vpop.permute.xlu0 %7178
      %7180 = vrot.lane.b32.xlu0 %v7046, 96
      %v7181 = vpop.permute.xlu0 %7180
      %7182 = vrot.lane.b32.xlu0 %v7047, 96
      %v7183 = vpop.permute.xlu0 %7182
      %7184 = vrot.lane.b32.xlu0 %v7048, 96
      %v7185 = vpop.permute.xlu0 %7184
      %7186 = vrot.lane.b32.xlu0 %v7049, 96
      %v7187 = vpop.permute.xlu0 %7186
      %7188 = vrot.lane.b32.xlu0 %v7050, 96
      %v7189 = vpop.permute.xlu0 %7188
      %7190 = vrot.lane.b32.xlu0 %v7051, 96
      %v7191 = vpop.permute.xlu0 %7190
      %7192 = vrot.lane.b32.xlu0 %v7052, 96
      %v7193 = vpop.permute.xlu0 %7192
      %7194 = vrot.lane.b32.xlu0 %v7053, 96
      %v7195 = vpop.permute.xlu0 %7194
      %7196 = vrot.lane.b32.xlu0 %v7080, 96
      %v7197 = vpop.permute.xlu0 %7196
      %7198 = vrot.lane.b32.xlu0 %v7081, 96
      %v7199 = vpop.permute.xlu0 %7198
      %v7200 = vsel %vm749, %v7161, %v7163
      %v7201 = vsel %vm749, %v7163, %v7165
      %v7202 = vsel %vm749, %v7165, %v7167
      %v7203 = vsel %vm749, %v7167, %v7169
      %v7204 = vsel %vm749, %v7169, %v7171
      %v7205 = vsel %vm749, %v7171, %v7173
      %v7206 = vsel %vm749, %v7173, %v7175
      %v7207 = vsel %vm749, %v7175, %v7177
      %v7208 = vsel %vm749, %v7177, %v7179
      %v7209 = vsel %vm749, %v7179, %v7181
      %v7210 = vsel %vm749, %v7181, %v7183
      %v7211 = vsel %vm749, %v7183, %v7185
      %v7212 = vsel %vm749, %v7185, %v7187
      %v7213 = vsel %vm749, %v7187, %v7189
      %v7214 = vsel %vm749, %v7189, %v7191
      %v7215 = vsel %vm749, %v7191, %v7193
      %v7216 = vsel %vm749, %v7193, %v7195
      %v7217 = vsel %vm749, %v7195, %v7197
      %v7218 = vsel %vm749, %v7197, %v7199
      %7238 = vrot.lane.b32.xlu0 %v7036, 80
      %v7239 = vpop.permute.xlu0 %7238
      %7240 = vrot.lane.b32.xlu0 %v7037, 80
      %v7241 = vpop.permute.xlu0 %7240
      %7242 = vrot.lane.b32.xlu0 %v7038, 80
      %v7243 = vpop.permute.xlu0 %7242
      %7244 = vrot.lane.b32.xlu0 %v7039, 80
      %v7245 = vpop.permute.xlu0 %7244
      %7246 = vrot.lane.b32.xlu0 %v7040, 80
      %v7247 = vpop.permute.xlu0 %7246
      %7248 = vrot.lane.b32.xlu0 %v7041, 80
      %v7249 = vpop.permute.xlu0 %7248
      %7250 = vrot.lane.b32.xlu0 %v7042, 80
      %v7251 = vpop.permute.xlu0 %7250
      %7252 = vrot.lane.b32.xlu0 %v7043, 80
      %v7253 = vpop.permute.xlu0 %7252
      %7254 = vrot.lane.b32.xlu0 %v7044, 80
      %v7255 = vpop.permute.xlu0 %7254
      %7256 = vrot.lane.b32.xlu0 %v7045, 80
      %v7257 = vpop.permute.xlu0 %7256
      %7258 = vrot.lane.b32.xlu0 %v7046, 80
      %v7259 = vpop.permute.xlu0 %7258
      %7260 = vrot.lane.b32.xlu0 %v7047, 80
      %v7261 = vpop.permute.xlu0 %7260
      %7262 = vrot.lane.b32.xlu0 %v7048, 80
      %v7263 = vpop.permute.xlu0 %7262
      %7264 = vrot.lane.b32.xlu0 %v7049, 80
      %v7265 = vpop.permute.xlu0 %7264
      %7266 = vrot.lane.b32.xlu0 %v7050, 80
      %v7267 = vpop.permute.xlu0 %7266
      %7268 = vrot.lane.b32.xlu0 %v7051, 80
      %v7269 = vpop.permute.xlu0 %7268
      %7270 = vrot.lane.b32.xlu0 %v7052, 80
      %v7271 = vpop.permute.xlu0 %7270
      %7272 = vrot.lane.b32.xlu0 %v7053, 80
      %v7273 = vpop.permute.xlu0 %7272
      %7274 = vrot.lane.b32.xlu0 %v7080, 80
      %v7275 = vpop.permute.xlu0 %7274
      %7276 = vrot.lane.b32.xlu0 %v7081, 80
      %v7277 = vpop.permute.xlu0 %7276
      %v7278 = vsel %vm828, %v7239, %v7241
      %v7279 = vsel %vm828, %v7241, %v7243
      %v7280 = vsel %vm828, %v7243, %v7245
      %v7281 = vsel %vm828, %v7245, %v7247
      %v7282 = vsel %vm828, %v7247, %v7249
      %v7283 = vsel %vm828, %v7249, %v7251
      %v7284 = vsel %vm828, %v7251, %v7253
      %v7285 = vsel %vm828, %v7253, %v7255
      %v7286 = vsel %vm828, %v7255, %v7257
      %v7287 = vsel %vm828, %v7257, %v7259
      %v7288 = vsel %vm828, %v7259, %v7261
      %v7289 = vsel %vm828, %v7261, %v7263
      %v7290 = vsel %vm828, %v7263, %v7265
      %v7291 = vsel %vm828, %v7265, %v7267
      %v7292 = vsel %vm828, %v7267, %v7269
      %v7293 = vsel %vm828, %v7269, %v7271
      %v7294 = vsel %vm828, %v7271, %v7273
      %v7295 = vsel %vm828, %v7273, %v7275
      %v7296 = vsel %vm828, %v7275, %v7277
      %7316 = vrot.lane.b32.xlu0 %v7036, 64
      %v7317 = vpop.permute.xlu0 %7316
      %7318 = vrot.lane.b32.xlu0 %v7037, 64
      %v7319 = vpop.permute.xlu0 %7318
      %7320 = vrot.lane.b32.xlu0 %v7038, 64
      %v7321 = vpop.permute.xlu0 %7320
      %7322 = vrot.lane.b32.xlu0 %v7039, 64
      %v7323 = vpop.permute.xlu0 %7322
      %7324 = vrot.lane.b32.xlu0 %v7040, 64
      %v7325 = vpop.permute.xlu0 %7324
      %7326 = vrot.lane.b32.xlu0 %v7041, 64
      %v7327 = vpop.permute.xlu0 %7326
      %7328 = vrot.lane.b32.xlu0 %v7042, 64
      %v7329 = vpop.permute.xlu0 %7328
      %7330 = vrot.lane.b32.xlu0 %v7043, 64
      %v7331 = vpop.permute.xlu0 %7330
      %7332 = vrot.lane.b32.xlu0 %v7044, 64
      %v7333 = vpop.permute.xlu0 %7332
      %7334 = vrot.lane.b32.xlu0 %v7045, 64
      %v7335 = vpop.permute.xlu0 %7334
      %7336 = vrot.lane.b32.xlu0 %v7046, 64
      %v7337 = vpop.permute.xlu0 %7336
      %7338 = vrot.lane.b32.xlu0 %v7047, 64
      %v7339 = vpop.permute.xlu0 %7338
      %7340 = vrot.lane.b32.xlu0 %v7048, 64
      %v7341 = vpop.permute.xlu0 %7340
      %7342 = vrot.lane.b32.xlu0 %v7049, 64
      %v7343 = vpop.permute.xlu0 %7342
      %7344 = vrot.lane.b32.xlu0 %v7050, 64
      %v7345 = vpop.permute.xlu0 %7344
      %7346 = vrot.lane.b32.xlu0 %v7051, 64
      %v7347 = vpop.permute.xlu0 %7346
      %7348 = vrot.lane.b32.xlu0 %v7052, 64
      %v7349 = vpop.permute.xlu0 %7348
      %7350 = vrot.lane.b32.xlu0 %v7053, 64
      %v7351 = vpop.permute.xlu0 %7350
      %7352 = vrot.lane.b32.xlu0 %v7080, 64
      %v7353 = vpop.permute.xlu0 %7352
      %7354 = vrot.lane.b32.xlu0 %v7081, 64
      %v7355 = vpop.permute.xlu0 %7354
      %v7356 = vsel %vm907, %v7317, %v7319
      %v7357 = vsel %vm907, %v7319, %v7321
      %v7358 = vsel %vm907, %v7321, %v7323
      %v7359 = vsel %vm907, %v7323, %v7325
      %v7360 = vsel %vm907, %v7325, %v7327
      %v7361 = vsel %vm907, %v7327, %v7329
      %v7362 = vsel %vm907, %v7329, %v7331
      %v7363 = vsel %vm907, %v7331, %v7333
      %v7364 = vsel %vm907, %v7333, %v7335
      %v7365 = vsel %vm907, %v7335, %v7337
      %v7366 = vsel %vm907, %v7337, %v7339
      %v7367 = vsel %vm907, %v7339, %v7341
      %v7368 = vsel %vm907, %v7341, %v7343
      %v7369 = vsel %vm907, %v7343, %v7345
      %v7370 = vsel %vm907, %v7345, %v7347
      %v7371 = vsel %vm907, %v7347, %v7349
      %v7372 = vsel %vm907, %v7349, %v7351
      %v7373 = vsel %vm907, %v7351, %v7353
      %v7374 = vsel %vm907, %v7353, %v7355
      %v7414 = vunpack.c.l.b16 %v6956
      %v7415 = vunpack.c.h.b16 %v6956
      %v7416 = vunpack.c.l.b16 %v6957
      %v7417 = vunpack.c.h.b16 %v6957
      %v7418 = vunpack.c.l.b16 %v6958
      %v7419 = vunpack.c.h.b16 %v6958
      %v7420 = vunpack.c.l.b16 %v6959
      %v7421 = vunpack.c.h.b16 %v6959
      %v7422 = vunpack.c.l.b16 %v6960
      %v7423 = vunpack.c.h.b16 %v6960
      %v7424 = vunpack.c.l.b16 %v6961
      %v7425 = vunpack.c.h.b16 %v6961
      %v7426 = vunpack.c.l.b16 %v6962
      %v7427 = vunpack.c.h.b16 %v6962
      %v7428 = vunpack.c.l.b16 %v6963
      %v7429 = vunpack.c.h.b16 %v6963
      %v7430 = vunpack.c.l.b16 %v6964
      %v7431 = vunpack.c.h.b16 %v6964
      %v7432 = vunpack.c.l.b16 %v6965
      %v7433 = vunpack.c.l.b16 %v6966
      %v7434 = vunpack.c.h.b16 %v6966
      %v7435 = vunpack.c.l.b16 %v6967
      %v7436 = vunpack.c.h.b16 %v6967
      %v7437 = vunpack.c.l.b16 %v6968
      %v7438 = vunpack.c.h.b16 %v6968
      %v7439 = vunpack.c.l.b16 %v6969
      %v7440 = vunpack.c.h.b16 %v6969
      %v7441 = vunpack.c.l.b16 %v6970
      %v7442 = vunpack.c.h.b16 %v6970
      %v7443 = vunpack.c.l.b16 %v6971
      %v7444 = vunpack.c.h.b16 %v6971
      %v7445 = vunpack.c.l.b16 %v6972
      %v7446 = vunpack.c.h.b16 %v6972
      %v7447 = vunpack.c.l.b16 %v6973
      %v7448 = vunpack.c.h.b16 %v6973
      %v7449 = vunpack.c.l.b16 %v6974
      %v7450 = vunpack.c.h.b16 %v6974
      %v7451 = vunpack.c.l.b16 %v6975
      %v7452 = vpack.c.b16 %v7433, %v7414
      %v7453 = vpack.c.b16 %v7434, %v7415
      %v7454 = vpack.c.b16 %v7435, %v7416
      %v7455 = vpack.c.b16 %v7436, %v7417
      %v7456 = vpack.c.b16 %v7437, %v7418
      %v7457 = vpack.c.b16 %v7438, %v7419
      %v7458 = vpack.c.b16 %v7439, %v7420
      %v7459 = vpack.c.b16 %v7440, %v7421
      %v7460 = vpack.c.b16 %v7441, %v7422
      %v7461 = vpack.c.b16 %v7442, %v7423
      %v7462 = vpack.c.b16 %v7443, %v7424
      %v7463 = vpack.c.b16 %v7444, %v7425
      %v7464 = vpack.c.b16 %v7445, %v7426
      %v7465 = vpack.c.b16 %v7446, %v7427
      %v7466 = vpack.c.b16 %v7447, %v7428
      %v7467 = vpack.c.b16 %v7448, %v7429
      %v7468 = vpack.c.b16 %v7449, %v7430
      %v7469 = vpack.c.b16 %v7450, %v7431
      %v7470 = vpack.c.b16 %v7451, %v7432
      %v7492 = vunpack.c.l.b16 %v6976
      %v7493 = vunpack.c.h.b16 %v6976
      %v7494 = vunpack.c.l.b16 %v6977
      %v7495 = vunpack.c.h.b16 %v6977
      %v7496 = vpack.c.b16 %v7494, %v7492
      %v7497 = vpack.c.b16 %v7495, %v7493
      %7498 = vrot.lane.b32.xlu0 %v7452, 112
      %v7499 = vpop.permute.xlu0 %7498
      %7500 = vrot.lane.b32.xlu0 %v7453, 112
      %v7501 = vpop.permute.xlu0 %7500
      %7502 = vrot.lane.b32.xlu0 %v7454, 112
      %v7503 = vpop.permute.xlu0 %7502
      %7504 = vrot.lane.b32.xlu0 %v7455, 112
      %v7505 = vpop.permute.xlu0 %7504
      %7506 = vrot.lane.b32.xlu0 %v7456, 112
      %v7507 = vpop.permute.xlu0 %7506
      %7508 = vrot.lane.b32.xlu0 %v7457, 112
      %v7509 = vpop.permute.xlu0 %7508
      %7510 = vrot.lane.b32.xlu0 %v7458, 112
      %v7511 = vpop.permute.xlu0 %7510
      %7512 = vrot.lane.b32.xlu0 %v7459, 112
      %v7513 = vpop.permute.xlu0 %7512
      %7514 = vrot.lane.b32.xlu0 %v7460, 112
      %v7515 = vpop.permute.xlu0 %7514
      %7516 = vrot.lane.b32.xlu0 %v7461, 112
      %v7517 = vpop.permute.xlu0 %7516
      %7518 = vrot.lane.b32.xlu0 %v7462, 112
      %v7519 = vpop.permute.xlu0 %7518
      %7520 = vrot.lane.b32.xlu0 %v7463, 112
      %v7521 = vpop.permute.xlu0 %7520
      %7522 = vrot.lane.b32.xlu0 %v7464, 112
      %v7523 = vpop.permute.xlu0 %7522
      %7524 = vrot.lane.b32.xlu0 %v7465, 112
      %v7525 = vpop.permute.xlu0 %7524
      %7526 = vrot.lane.b32.xlu0 %v7466, 112
      %v7527 = vpop.permute.xlu0 %7526
      %7528 = vrot.lane.b32.xlu0 %v7467, 112
      %v7529 = vpop.permute.xlu0 %7528
      %7530 = vrot.lane.b32.xlu0 %v7468, 112
      %v7531 = vpop.permute.xlu0 %7530
      %7532 = vrot.lane.b32.xlu0 %v7469, 112
      %v7533 = vpop.permute.xlu0 %7532
      %7534 = vrot.lane.b32.xlu0 %v7496, 112
      %v7535 = vpop.permute.xlu0 %7534
      %7536 = vrot.lane.b32.xlu0 %v7497, 112
      %v7537 = vpop.permute.xlu0 %7536
      %v7538 = vsel %vm670, %v7499, %v7501
      %v7539 = vsel %vm670, %v7501, %v7503
      %v7540 = vsel %vm670, %v7503, %v7505
      %v7541 = vsel %vm670, %v7505, %v7507
      %v7542 = vsel %vm670, %v7507, %v7509
      %v7543 = vsel %vm670, %v7509, %v7511
      %v7544 = vsel %vm670, %v7511, %v7513
      %v7545 = vsel %vm670, %v7513, %v7515
      %v7546 = vsel %vm670, %v7515, %v7517
      %v7547 = vsel %vm670, %v7517, %v7519
      %v7548 = vsel %vm670, %v7519, %v7521
      %v7549 = vsel %vm670, %v7521, %v7523
      %v7550 = vsel %vm670, %v7523, %v7525
      %v7551 = vsel %vm670, %v7525, %v7527
      %v7552 = vsel %vm670, %v7527, %v7529
      %v7553 = vsel %vm670, %v7529, %v7531
      %v7554 = vsel %vm670, %v7531, %v7533
      %v7555 = vsel %vm670, %v7533, %v7535
      %v7556 = vsel %vm670, %v7535, %v7537
      %7576 = vrot.lane.b32.xlu0 %v7452, 96
      %v7577 = vpop.permute.xlu0 %7576
      %7578 = vrot.lane.b32.xlu0 %v7453, 96
      %v7579 = vpop.permute.xlu0 %7578
      %7580 = vrot.lane.b32.xlu0 %v7454, 96
      %v7581 = vpop.permute.xlu0 %7580
      %7582 = vrot.lane.b32.xlu0 %v7455, 96
      %v7583 = vpop.permute.xlu0 %7582
      %7584 = vrot.lane.b32.xlu0 %v7456, 96
      %v7585 = vpop.permute.xlu0 %7584
      %7586 = vrot.lane.b32.xlu0 %v7457, 96
      %v7587 = vpop.permute.xlu0 %7586
      %7588 = vrot.lane.b32.xlu0 %v7458, 96
      %v7589 = vpop.permute.xlu0 %7588
      %7590 = vrot.lane.b32.xlu0 %v7459, 96
      %v7591 = vpop.permute.xlu0 %7590
      %7592 = vrot.lane.b32.xlu0 %v7460, 96
      %v7593 = vpop.permute.xlu0 %7592
      %7594 = vrot.lane.b32.xlu0 %v7461, 96
      %v7595 = vpop.permute.xlu0 %7594
      %7596 = vrot.lane.b32.xlu0 %v7462, 96
      %v7597 = vpop.permute.xlu0 %7596
      %7598 = vrot.lane.b32.xlu0 %v7463, 96
      %v7599 = vpop.permute.xlu0 %7598
      %7600 = vrot.lane.b32.xlu0 %v7464, 96
      %v7601 = vpop.permute.xlu0 %7600
      %7602 = vrot.lane.b32.xlu0 %v7465, 96
      %v7603 = vpop.permute.xlu0 %7602
      %7604 = vrot.lane.b32.xlu0 %v7466, 96
      %v7605 = vpop.permute.xlu0 %7604
      %7606 = vrot.lane.b32.xlu0 %v7467, 96
      %v7607 = vpop.permute.xlu0 %7606
      %7608 = vrot.lane.b32.xlu0 %v7468, 96
      %v7609 = vpop.permute.xlu0 %7608
      %7610 = vrot.lane.b32.xlu0 %v7469, 96
      %v7611 = vpop.permute.xlu0 %7610
      %7612 = vrot.lane.b32.xlu0 %v7496, 96
      %v7613 = vpop.permute.xlu0 %7612
      %7614 = vrot.lane.b32.xlu0 %v7497, 96
      %v7615 = vpop.permute.xlu0 %7614
      %v7616 = vsel %vm749, %v7577, %v7579
      %v7617 = vsel %vm749, %v7579, %v7581
      %v7618 = vsel %vm749, %v7581, %v7583
      %v7619 = vsel %vm749, %v7583, %v7585
      %v7620 = vsel %vm749, %v7585, %v7587
      %v7621 = vsel %vm749, %v7587, %v7589
      %v7622 = vsel %vm749, %v7589, %v7591
      %v7623 = vsel %vm749, %v7591, %v7593
      %v7624 = vsel %vm749, %v7593, %v7595
      %v7625 = vsel %vm749, %v7595, %v7597
      %v7626 = vsel %vm749, %v7597, %v7599
      %v7627 = vsel %vm749, %v7599, %v7601
      %v7628 = vsel %vm749, %v7601, %v7603
      %v7629 = vsel %vm749, %v7603, %v7605
      %v7630 = vsel %vm749, %v7605, %v7607
      %v7631 = vsel %vm749, %v7607, %v7609
      %v7632 = vsel %vm749, %v7609, %v7611
      %v7633 = vsel %vm749, %v7611, %v7613
      %v7634 = vsel %vm749, %v7613, %v7615
      %7654 = vrot.lane.b32.xlu0 %v7452, 80
      %v7655 = vpop.permute.xlu0 %7654
      %7656 = vrot.lane.b32.xlu0 %v7453, 80
      %v7657 = vpop.permute.xlu0 %7656
      %7658 = vrot.lane.b32.xlu0 %v7454, 80
      %v7659 = vpop.permute.xlu0 %7658
      %7660 = vrot.lane.b32.xlu0 %v7455, 80
      %v7661 = vpop.permute.xlu0 %7660
      %7662 = vrot.lane.b32.xlu0 %v7456, 80
      %v7663 = vpop.permute.xlu0 %7662
      %7664 = vrot.lane.b32.xlu0 %v7457, 80
      %v7665 = vpop.permute.xlu0 %7664
      %7666 = vrot.lane.b32.xlu0 %v7458, 80
      %v7667 = vpop.permute.xlu0 %7666
      %7668 = vrot.lane.b32.xlu0 %v7459, 80
      %v7669 = vpop.permute.xlu0 %7668
      %7670 = vrot.lane.b32.xlu0 %v7460, 80
      %v7671 = vpop.permute.xlu0 %7670
      %7672 = vrot.lane.b32.xlu0 %v7461, 80
      %v7673 = vpop.permute.xlu0 %7672
      %7674 = vrot.lane.b32.xlu0 %v7462, 80
      %v7675 = vpop.permute.xlu0 %7674
      %7676 = vrot.lane.b32.xlu0 %v7463, 80
      %v7677 = vpop.permute.xlu0 %7676
      %7678 = vrot.lane.b32.xlu0 %v7464, 80
      %v7679 = vpop.permute.xlu0 %7678
      %7680 = vrot.lane.b32.xlu0 %v7465, 80
      %v7681 = vpop.permute.xlu0 %7680
      %7682 = vrot.lane.b32.xlu0 %v7466, 80
      %v7683 = vpop.permute.xlu0 %7682
      %7684 = vrot.lane.b32.xlu0 %v7467, 80
      %v7685 = vpop.permute.xlu0 %7684
      %7686 = vrot.lane.b32.xlu0 %v7468, 80
      %v7687 = vpop.permute.xlu0 %7686
      %7688 = vrot.lane.b32.xlu0 %v7469, 80
      %v7689 = vpop.permute.xlu0 %7688
      %7690 = vrot.lane.b32.xlu0 %v7496, 80
      %v7691 = vpop.permute.xlu0 %7690
      %7692 = vrot.lane.b32.xlu0 %v7497, 80
      %v7693 = vpop.permute.xlu0 %7692
      %v7694 = vsel %vm828, %v7655, %v7657
      %v7695 = vsel %vm828, %v7657, %v7659
      %v7696 = vsel %vm828, %v7659, %v7661
      %v7697 = vsel %vm828, %v7661, %v7663
      %v7698 = vsel %vm828, %v7663, %v7665
      %v7699 = vsel %vm828, %v7665, %v7667
      %v7700 = vsel %vm828, %v7667, %v7669
      %v7701 = vsel %vm828, %v7669, %v7671
      %v7702 = vsel %vm828, %v7671, %v7673
      %v7703 = vsel %vm828, %v7673, %v7675
      %v7704 = vsel %vm828, %v7675, %v7677
      %v7705 = vsel %vm828, %v7677, %v7679
      %v7706 = vsel %vm828, %v7679, %v7681
      %v7707 = vsel %vm828, %v7681, %v7683
      %v7708 = vsel %vm828, %v7683, %v7685
      %v7709 = vsel %vm828, %v7685, %v7687
      %v7710 = vsel %vm828, %v7687, %v7689
      %v7711 = vsel %vm828, %v7689, %v7691
      %v7712 = vsel %vm828, %v7691, %v7693
      %7732 = vrot.lane.b32.xlu0 %v7452, 64
      %v7733 = vpop.permute.xlu0 %7732
      %7734 = vrot.lane.b32.xlu0 %v7453, 64
      %v7735 = vpop.permute.xlu0 %7734
      %7736 = vrot.lane.b32.xlu0 %v7454, 64
      %v7737 = vpop.permute.xlu0 %7736
      %7738 = vrot.lane.b32.xlu0 %v7455, 64
      %v7739 = vpop.permute.xlu0 %7738
      %7740 = vrot.lane.b32.xlu0 %v7456, 64
      %v7741 = vpop.permute.xlu0 %7740
      %7742 = vrot.lane.b32.xlu0 %v7457, 64
      %v7743 = vpop.permute.xlu0 %7742
      %7744 = vrot.lane.b32.xlu0 %v7458, 64
      %v7745 = vpop.permute.xlu0 %7744
      %7746 = vrot.lane.b32.xlu0 %v7459, 64
      %v7747 = vpop.permute.xlu0 %7746
      %7748 = vrot.lane.b32.xlu0 %v7460, 64
      %v7749 = vpop.permute.xlu0 %7748
      %7750 = vrot.lane.b32.xlu0 %v7461, 64
      %v7751 = vpop.permute.xlu0 %7750
      %7752 = vrot.lane.b32.xlu0 %v7462, 64
      %v7753 = vpop.permute.xlu0 %7752
      %7754 = vrot.lane.b32.xlu0 %v7463, 64
      %v7755 = vpop.permute.xlu0 %7754
      %7756 = vrot.lane.b32.xlu0 %v7464, 64
      %v7757 = vpop.permute.xlu0 %7756
      %7758 = vrot.lane.b32.xlu0 %v7465, 64
      %v7759 = vpop.permute.xlu0 %7758
      %7760 = vrot.lane.b32.xlu0 %v7466, 64
      %v7761 = vpop.permute.xlu0 %7760
      %7762 = vrot.lane.b32.xlu0 %v7467, 64
      %v7763 = vpop.permute.xlu0 %7762
      %7764 = vrot.lane.b32.xlu0 %v7468, 64
      %v7765 = vpop.permute.xlu0 %7764
      %7766 = vrot.lane.b32.xlu0 %v7469, 64
      %v7767 = vpop.permute.xlu0 %7766
      %7768 = vrot.lane.b32.xlu0 %v7496, 64
      %v7769 = vpop.permute.xlu0 %7768
      %7770 = vrot.lane.b32.xlu0 %v7497, 64
      %v7771 = vpop.permute.xlu0 %7770
      %v7772 = vsel %vm907, %v7733, %v7735
      %v7773 = vsel %vm907, %v7735, %v7737
      %v7774 = vsel %vm907, %v7737, %v7739
      %v7775 = vsel %vm907, %v7739, %v7741
      %v7776 = vsel %vm907, %v7741, %v7743
      %v7777 = vsel %vm907, %v7743, %v7745
      %v7778 = vsel %vm907, %v7745, %v7747
      %v7779 = vsel %vm907, %v7747, %v7749
      %v7780 = vsel %vm907, %v7749, %v7751
      %v7781 = vsel %vm907, %v7751, %v7753
      %v7782 = vsel %vm907, %v7753, %v7755
      %v7783 = vsel %vm907, %v7755, %v7757
      %v7784 = vsel %vm907, %v7757, %v7759
      %v7785 = vsel %vm907, %v7759, %v7761
      %v7786 = vsel %vm907, %v7761, %v7763
      %v7787 = vsel %vm907, %v7763, %v7765
      %v7788 = vsel %vm907, %v7765, %v7767
      %v7789 = vsel %vm907, %v7767, %v7769
      %v7790 = vsel %vm907, %v7769, %v7771
      %v8114 = vunpack.c.l.b16 %v6628
      %v8115 = vunpack.c.l.b16 %v6629
      %v8116 = vunpack.c.l.b16 %v6630
      %v8117 = vunpack.c.l.b16 %v6631
      %v8118 = vunpack.c.l.b16 %v6632
      %v8119 = vunpack.c.l.b16 %v6633
      %v8120 = vunpack.c.l.b16 %v6634
      %v8121 = vunpack.c.l.b16 %v6635
      %v8122 = vunpack.c.l.b16 %v6636
      %v8123 = vunpack.c.l.b16 %v6637
      %v8124 = vunpack.c.l.b16 %v6638
      %v8125 = vunpack.c.l.b16 %v6639
      %v8126 = vunpack.c.l.b16 %v6640
      %v8127 = vunpack.c.l.b16 %v6641
      %v8128 = vunpack.c.l.b16 %v6642
      %v8129 = vunpack.c.l.b16 %v6643
      %v8130 = vunpack.c.l.b16 %v6644
      %v8131 = vunpack.c.l.b16 %v6645
      %v8132 = vunpack.c.l.b16 %v6646
      %v8133 = vunpack.c.l.b16 %v6647
      %v8134 = vunpack.c.l.b16 %v6648
      %v8135 = vunpack.c.l.b16 %v6649
      %v8136 = vunpack.c.l.b16 %v6650
      %v8137 = vunpack.c.l.b16 %v6651
      %v8138 = vunpack.c.l.b16 %v6652
      %v8139 = vunpack.c.l.b16 %v6653
      %v8140 = vunpack.c.l.b16 %v6654
      %v8141 = vunpack.c.l.b16 %v6655
      %v8142 = vunpack.c.l.b16 %v6656
      %v8143 = vunpack.c.l.b16 %v6657
      %v8144 = vunpack.c.l.b16 %v6658
      %v8145 = vunpack.c.l.b16 %v6659
      %v8146 = vunpack.c.l.b16 %v6660
      %v8147 = vunpack.c.l.b16 %v6661
      %v8148 = vunpack.c.l.b16 %v6662
      %v8149 = vunpack.c.l.b16 %v6663
      %v8150 = vunpack.c.l.b16 %v6664
      %v8151 = vunpack.c.l.b16 %v6665
      %v8152 = vunpack.c.l.b16 %v6666
      %v8153 = vunpack.c.l.b16 %v6667
      %v8154 = vunpack.c.l.b16 %v6668
      %v8155 = vunpack.c.l.b16 %v6669
      %v8156 = vunpack.c.l.b16 %v6670
      %v8157 = vunpack.c.l.b16 %v6671
      %v8158 = vunpack.c.l.b16 %v6672
      %v8159 = vunpack.c.l.b16 %v6673
      %v8160 = vunpack.c.l.b16 %v6674
      %v8161 = vunpack.c.l.b16 %v6675
      %v8162 = vunpack.c.l.b16 %v6676
      %v8163 = vunpack.c.l.b16 %v6677
      %v8164 = vunpack.c.l.b16 %v6678
      %v8165 = vunpack.c.l.b16 %v6679
      %v8166 = vunpack.c.l.b16 %v6680
      %v8167 = vunpack.c.l.b16 %v6681
      %v8168 = vunpack.c.l.b16 %v6682
      %v8169 = vunpack.c.l.b16 %v6683
      %v8170 = vunpack.c.l.b16 %v6684
      %v8171 = vunpack.c.l.b16 %v6685
      %v8172 = vunpack.c.l.b16 %v6686
      %v8173 = vunpack.c.l.b16 %v6687
      %v8174 = vunpack.c.l.b16 %v6688
      %v8175 = vunpack.c.l.b16 %v6689
      %v8176 = vunpack.c.l.b16 %v6690
      %v8177 = vunpack.c.l.b16 %v6691
      %v8178 = vunpack.c.l.b16 %v6692
      %v8179 = vunpack.c.l.b16 %v6693
      %v8180 = vunpack.c.l.b16 %v6694
      %v8181 = vunpack.c.l.b16 %v6695
      %v8182 = vunpack.c.l.b16 %v6696
      %v8183 = vunpack.c.l.b16 %v6697
      %v8184 = vunpack.c.l.b16 %v6698
      %v8185 = vunpack.c.l.b16 %v6699
      %v8186 = vunpack.c.l.b16 %v6700
      %v8187 = vunpack.c.l.b16 %v6701
      %v8188 = vunpack.c.l.b16 %v6702
      %v8189 = vunpack.c.l.b16 %v6703
      %v8190 = vunpack.c.l.b16 %v6704
      %v8191 = vunpack.c.l.b16 %v6705
      %v8192 = vunpack.c.l.b16 %v6706
      %v8193 = vunpack.c.l.b16 %v6707
      %v8194 = vunpack.c.l.b16 %v6708
      %v8195 = vunpack.c.l.b16 %v6709
      %v8196 = vunpack.c.l.b16 %v6710
      %v8197 = vunpack.c.l.b16 %v6711
      %v8198 = vunpack.c.l.b16 %v6712
      %v8199 = vunpack.c.l.b16 %v6713
      %v8200 = vunpack.c.l.b16 %v6714
      %v8201 = vunpack.c.l.b16 %v6715
      %v8202 = vunpack.c.l.b16 %v6716
      %v8203 = vunpack.c.l.b16 %v6717
      %v8204 = vunpack.c.l.b16 %v6718
      %v8205 = vunpack.c.l.b16 %v6719
      %v8206 = vunpack.c.l.b16 %v6720
      %v8207 = vunpack.c.l.b16 %v6721
      %v8208 = vunpack.c.l.b16 %v6722
      %v8209 = vunpack.c.l.b16 %v6723
      %v8210 = vunpack.c.l.b16 %v6724
      %v8211 = vunpack.c.l.b16 %v6725
      %v8212 = vunpack.c.l.b16 %v6726
      %v8213 = vunpack.c.l.b16 %v6727
      %v8214 = vunpack.c.l.b16 %v6728
      %v8215 = vunpack.c.l.b16 %v6729
      %v8216 = vunpack.c.l.b16 %v6730
      %v8217 = vunpack.c.l.b16 %v6731
      %v8218 = vunpack.c.l.b16 %v6732
      %v8219 = vunpack.c.l.b16 %v6733
      %v8220 = vunpack.c.l.b16 %v6734
      %v8221 = vunpack.c.l.b16 %v6735
      %v8222 = vunpack.c.l.b16 %v6736
      %v8223 = vunpack.c.l.b16 %v6737
      %v8224 = vunpack.c.l.b16 %v6738
      %v8225 = vunpack.c.l.b16 %v6739
      %v8226 = vunpack.c.l.b16 %v6740
      %v8227 = vunpack.c.l.b16 %v6741
      %v8228 = vunpack.c.l.b16 %v6742
      %v8229 = vunpack.c.l.b16 %v6743
      %v8230 = vunpack.c.l.b16 %v6744
      %v8231 = vunpack.c.l.b16 %v6745
      %v8232 = vunpack.c.l.b16 %v6746
      %v8233 = vunpack.c.l.b16 %v6747
      %v8234 = vunpack.c.l.b16 %v6748
      %v8235 = vunpack.c.l.b16 %v6749
      %v8236 = vunpack.c.l.b16 %v6750
      %v8237 = vunpack.c.l.b16 %v6751
      %v8238 = vunpack.c.l.b16 %v6752
      %v8239 = vunpack.c.l.b16 %v6753
      %v8240 = vunpack.c.l.b16 %v6754
      %v8241 = vunpack.c.l.b16 %v6755
      %v8242 = vunpack.c.l.b16 %v6756
      %v8243 = vunpack.c.l.b16 %v6757
      %v8244 = vunpack.c.l.b16 %v6758
      %v8245 = vunpack.c.l.b16 %v6759
      %v8246 = vunpack.c.l.b16 %v6760
      %v8247 = vunpack.c.l.b16 %v6761
      %v8248 = vunpack.c.l.b16 %v6762
      %v8249 = vunpack.c.l.b16 %v6763
      %v8250 = vunpack.c.l.b16 %v6764
      %v8251 = vunpack.c.l.b16 %v6765
      %v8252 = vunpack.c.l.b16 %v6766
      %v8253 = vunpack.c.l.b16 %v6767
      %v8254 = vunpack.c.l.b16 %v6768
      %v8255 = vunpack.c.l.b16 %v6769
      %v8256 = vunpack.c.l.b16 %v6770
      %v8257 = vunpack.c.l.b16 %v6771
      %v8258 = vunpack.c.l.b16 %v6772
      %v8259 = vunpack.c.l.b16 %v6773
      %v8260 = vunpack.c.l.b16 %v6774
      %v8261 = vunpack.c.l.b16 %v6775
      %v8262 = vunpack.c.l.b16 %v6776
      %v8263 = vunpack.c.l.b16 %v6777
      %v8264 = vunpack.c.l.b16 %v6778
      %v8265 = vunpack.c.l.b16 %v6779
      %v8266 = vunpack.c.l.b16 %v6780
      %v8267 = vunpack.c.l.b16 %v6781
      %v8268 = vunpack.c.l.b16 %v6782
      %v8269 = vunpack.c.l.b16 %v6783
      %v8270 = vunpack.c.l.b16 %v6784
      %v8271 = vunpack.c.l.b16 %v6785
      %v8272 = vunpack.c.l.b16 %v6786
      %v8273 = vunpack.c.l.b16 %v6787
      %v8274 = vunpack.c.l.b16 %v6788
      %v8275 = vunpack.c.l.b16 %v6789
      %v8276 = vunpack.c.l.b16 %v6790
      %v8277 = vunpack.c.l.b16 %v6791
      %v8278 = vunpack.c.l.b16 %v6792
      %v8279 = vunpack.c.l.b16 %v6793
      %v8280 = vunpack.c.l.b16 %v6794
      %v8281 = vunpack.c.l.b16 %v6795
      %v8282 = vunpack.c.l.b16 %v6796
      %v8283 = vunpack.c.l.b16 %v6797
      %v8284 = vunpack.c.l.b16 %v6798
      %v8285 = vunpack.c.l.b16 %v6799
      %v8286 = vunpack.c.l.b16 %v6800
      %v8287 = vunpack.c.l.b16 %v6801
      %v8288 = vunpack.c.l.b16 %v6802
      %v8289 = vunpack.c.l.b16 %v6803
      %v8290 = vunpack.c.l.b16 %v6804
      %v8291 = vunpack.c.l.b16 %v6805
      %v8292 = vunpack.c.l.b16 %v6806
      %v8293 = vunpack.c.l.b16 %v6807
      %v8294 = vunpack.c.l.b16 %v6808
      %v8295 = vunpack.c.l.b16 %v6809
      %v8296 = vunpack.c.l.b16 %v6810
      %v8297 = vunpack.c.l.b16 %v6811
      %v8298 = vunpack.c.l.b16 %v6812
      %v8299 = vunpack.c.l.b16 %v6813
      %v8300 = vunpack.c.l.b16 %v6814
      %v8301 = vunpack.c.l.b16 %v6815
      %v8302 = vunpack.c.l.b16 %v6816
      %v8303 = vunpack.c.l.b16 %v6817
      %v8304 = vunpack.c.l.b16 %v6818
      %v8305 = vunpack.c.l.b16 %v6819
      %v8306 = vunpack.c.l.b16 %v6820
      %v8307 = vunpack.c.l.b16 %v6821
      %v8308 = vunpack.c.l.b16 %v6822
      %v8309 = vunpack.c.l.b16 %v6823
      %v8310 = vunpack.c.l.b16 %v6824
      %v8311 = vunpack.c.l.b16 %v6825
      %v8312 = vunpack.c.l.b16 %v6826
      %v8313 = vunpack.c.l.b16 %v6827
      %v8314 = vunpack.c.l.b16 %v6828
      %v8315 = vunpack.c.l.b16 %v6829
      %v8316 = vunpack.c.l.b16 %v6830
      %v8317 = vunpack.c.l.b16 %v6831
      %v8318 = vunpack.c.l.b16 %v6832
      %v8319 = vunpack.c.l.b16 %v6833
      %v8320 = vunpack.c.l.b16 %v6834
      %v8321 = vunpack.c.l.b16 %v6835
      %v8322 = vunpack.c.l.b16 %v6836
      %v8323 = vunpack.c.l.b16 %v6837
      %v8324 = vunpack.c.l.b16 %v6838
      %v8325 = vunpack.c.l.b16 %v6839
      %v8326 = vunpack.c.l.b16 %v6840
      %v8327 = vunpack.c.l.b16 %v6841
      %v8328 = vunpack.c.l.b16 %v6842
      %v8329 = vunpack.c.l.b16 %v6843
      %v8330 = vunpack.c.l.b16 %v6844
      %v8331 = vunpack.c.l.b16 %v6845
      %v8332 = vunpack.c.l.b16 %v6846
      %v8333 = vunpack.c.l.b16 %v6847
      %v8334 = vunpack.c.l.b16 %v6848
      %v8335 = vunpack.c.l.b16 %v6849
      %v8336 = vunpack.c.l.b16 %v6850
      %v8337 = vunpack.c.l.b16 %v6851
      %v8338 = vunpack.c.l.b16 %v6852
      %v8339 = vunpack.c.l.b16 %v6853
      %v8340 = vunpack.c.l.b16 %v6854
      %v8341 = vunpack.c.l.b16 %v6855
      %v8342 = vunpack.c.l.b16 %v6856
      %v8343 = vunpack.c.l.b16 %v6857
      %v8344 = vunpack.c.l.b16 %v6858
      %v8345 = vunpack.c.l.b16 %v6859
      %v8346 = vunpack.c.l.b16 %v6860
      %v8347 = vunpack.c.l.b16 %v6861
      %v8348 = vunpack.c.l.b16 %v6862
      %v8349 = vunpack.c.l.b16 %v6863
      %v8350 = vunpack.c.l.b16 %v6864
      %v8351 = vunpack.c.l.b16 %v6865
      %v8352 = vunpack.c.l.b16 %v6866
      %v8353 = vunpack.c.l.b16 %v6867
      %v8354 = vunpack.c.l.b16 %v6868
      %v8355 = vunpack.c.l.b16 %v6869
      %v8356 = vunpack.c.l.b16 %v6870
      %v8357 = vunpack.c.l.b16 %v6871
      %v8358 = vunpack.c.l.b16 %v6872
      %v8359 = vunpack.c.l.b16 %v6873
      %v8360 = vunpack.c.l.b16 %v6874
      %v8361 = vunpack.c.l.b16 %v6875
      %v8362 = vunpack.c.l.b16 %v6876
      %v8363 = vunpack.c.l.b16 %v6877
      %v8364 = vunpack.c.l.b16 %v6878
      %v8365 = vunpack.c.l.b16 %v6879
      %v8366 = vunpack.c.l.b16 %v6880
      %v8367 = vunpack.c.l.b16 %v6881
      %v8368 = vunpack.c.l.b16 %v6882
      %v8369 = vunpack.c.l.b16 %v6883
      %v8370 = vunpack.c.l.b16 %v6884
      %v8371 = vunpack.c.l.b16 %v6885
      %v8372 = vunpack.c.l.b16 %v6886
      %v8373 = vunpack.c.l.b16 %v6887
      %v8374 = vunpack.c.l.b16 %v6888
      %v8375 = vunpack.c.l.b16 %v6889
      %v8376 = vunpack.c.l.b16 %v6890
      %v8377 = vunpack.c.l.b16 %v6891
      %v8378 = vunpack.c.l.b16 %v6892
      %v8379 = vunpack.c.l.b16 %v6893
      %v8380 = vunpack.c.l.b16 %v6894
      %v8381 = vunpack.c.l.b16 %v6895
      %v8382 = vunpack.c.l.b16 %v6896
      %v8383 = vunpack.c.l.b16 %v6897
      %v8384 = vunpack.c.l.b16 %v6898
      %v8385 = vunpack.c.l.b16 %v6899
      %v8386 = vunpack.c.l.b16 %v6900
      %v8387 = vunpack.c.l.b16 %v6901
      %v8388 = vunpack.c.l.b16 %v6902
      %v8389 = vunpack.c.l.b16 %v6903
      %v8390 = vunpack.c.l.b16 %v6904
      %v8391 = vunpack.c.l.b16 %v6905
      %v8392 = vunpack.c.l.b16 %v6906
      %v8393 = vunpack.c.l.b16 %v6907
      %v8394 = vunpack.c.l.b16 %v6908
      %v8395 = vunpack.c.l.b16 %v6909
      %v8396 = vunpack.c.l.b16 %v6910
      %v8397 = vunpack.c.l.b16 %v6911
      %v8398 = vunpack.c.l.b16 %v6912
      %v8399 = vunpack.c.l.b16 %v6913
      %v8400 = vunpack.c.l.b16 %v6914
      %v8401 = vunpack.c.l.b16 %v6915
      %v8402 = vunpack.c.l.b16 %v6916
      %v8403 = vunpack.c.l.b16 %v6917
      %v8404 = vunpack.c.l.b16 %v6918
      %v8405 = vunpack.c.l.b16 %v6919
      %v8406 = vunpack.c.l.b16 %v6920
      %v8407 = vunpack.c.l.b16 %v6921
      %v8408 = vunpack.c.l.b16 %v6922
      %v8409 = vunpack.c.l.b16 %v6923
      %v8410 = vunpack.c.l.b16 %v6924
      %v8411 = vunpack.c.l.b16 %v6925
      %v8412 = vunpack.c.l.b16 %v6926
      %v8413 = vunpack.c.l.b16 %v6927
      %v8414 = vunpack.c.l.b16 %v6928
      %v8415 = vunpack.c.l.b16 %v6929
      %v8416 = vunpack.c.l.b16 %v6930
      %v8417 = vunpack.c.l.b16 %v6931
      %v8418 = vpack.c.b16 %v8115, %v8114
      %v8419 = vpack.c.b16 %v8117, %v8116
      %v8420 = vpack.c.b16 %v8119, %v8118
      %v8421 = vpack.c.b16 %v8121, %v8120
      %v8422 = vpack.c.b16 %v8123, %v8122
      %v8423 = vpack.c.b16 %v8125, %v8124
      %v8424 = vpack.c.b16 %v8127, %v8126
      %v8425 = vpack.c.b16 %v8129, %v8128
      %v8426 = vpack.c.b16 %v8131, %v8130
      %v8427 = vpack.c.b16 %v8133, %v8132
      %v8428 = vpack.c.b16 %v8135, %v8134
      %v8429 = vpack.c.b16 %v8137, %v8136
      %v8430 = vpack.c.b16 %v8139, %v8138
      %v8431 = vpack.c.b16 %v8141, %v8140
      %v8432 = vpack.c.b16 %v8143, %v8142
      %v8433 = vpack.c.b16 %v8145, %v8144
      %v8434 = vpack.c.b16 %v8147, %v8146
      %v8435 = vpack.c.b16 %v8149, %v8148
      %v8436 = vpack.c.b16 %v8151, %v8150
      %v8437 = vpack.c.b16 %v8153, %v8152
      %v8438 = vpack.c.b16 %v8155, %v8154
      %v8439 = vpack.c.b16 %v8157, %v8156
      %v8440 = vpack.c.b16 %v8159, %v8158
      %v8441 = vpack.c.b16 %v8161, %v8160
      %v8442 = vpack.c.b16 %v8163, %v8162
      %v8443 = vpack.c.b16 %v8165, %v8164
      %v8444 = vpack.c.b16 %v8167, %v8166
      %v8445 = vpack.c.b16 %v8169, %v8168
      %v8446 = vpack.c.b16 %v8171, %v8170
      %v8447 = vpack.c.b16 %v8173, %v8172
      %v8448 = vpack.c.b16 %v8175, %v8174
      %v8449 = vpack.c.b16 %v8177, %v8176
      %v8450 = vpack.c.b16 %v8179, %v8178
      %v8451 = vpack.c.b16 %v8181, %v8180
      %v8452 = vpack.c.b16 %v8183, %v8182
      %v8453 = vpack.c.b16 %v8185, %v8184
      %v8454 = vpack.c.b16 %v8187, %v8186
      %v8455 = vpack.c.b16 %v8189, %v8188
      %v8456 = vpack.c.b16 %v8191, %v8190
      %v8457 = vpack.c.b16 %v8193, %v8192
      %v8458 = vpack.c.b16 %v8195, %v8194
      %v8459 = vpack.c.b16 %v8197, %v8196
      %v8460 = vpack.c.b16 %v8199, %v8198
      %v8461 = vpack.c.b16 %v8201, %v8200
      %v8462 = vpack.c.b16 %v8203, %v8202
      %v8463 = vpack.c.b16 %v8205, %v8204
      %v8464 = vpack.c.b16 %v8207, %v8206
      %v8465 = vpack.c.b16 %v8209, %v8208
      %v8466 = vpack.c.b16 %v8211, %v8210
      %v8467 = vpack.c.b16 %v8213, %v8212
      %v8468 = vpack.c.b16 %v8215, %v8214
      %v8469 = vpack.c.b16 %v8217, %v8216
      %v8470 = vpack.c.b16 %v8219, %v8218
      %v8471 = vpack.c.b16 %v8221, %v8220
      %v8472 = vpack.c.b16 %v8223, %v8222
      %v8473 = vpack.c.b16 %v8225, %v8224
      %v8474 = vpack.c.b16 %v8227, %v8226
      %v8475 = vpack.c.b16 %v8229, %v8228
      %v8476 = vpack.c.b16 %v8231, %v8230
      %v8477 = vpack.c.b16 %v8233, %v8232
      %v8478 = vpack.c.b16 %v8235, %v8234
      %v8479 = vpack.c.b16 %v8237, %v8236
      %v8480 = vpack.c.b16 %v8239, %v8238
      %v8481 = vpack.c.b16 %v8241, %v8240
      %v8482 = vpack.c.b16 %v8243, %v8242
      %v8483 = vpack.c.b16 %v8245, %v8244
      %v8484 = vpack.c.b16 %v8247, %v8246
      %v8485 = vpack.c.b16 %v8249, %v8248
      %v8486 = vpack.c.b16 %v8251, %v8250
      %v8487 = vpack.c.b16 %v8253, %v8252
      %v8488 = vpack.c.b16 %v8255, %v8254
      %v8489 = vpack.c.b16 %v8257, %v8256
      %v8490 = vpack.c.b16 %v8259, %v8258
      %v8491 = vpack.c.b16 %v8261, %v8260
      %v8492 = vpack.c.b16 %v8263, %v8262
      %v8493 = vpack.c.b16 %v8265, %v8264
      %v8494 = vpack.c.b16 %v8267, %v8266
      %v8495 = vpack.c.b16 %v8269, %v8268
      %v8496 = vpack.c.b16 %v8271, %v8270
      %v8497 = vpack.c.b16 %v8273, %v8272
      %v8498 = vpack.c.b16 %v8275, %v8274
      %v8499 = vpack.c.b16 %v8277, %v8276
      %v8500 = vpack.c.b16 %v8279, %v8278
      %v8501 = vpack.c.b16 %v8281, %v8280
      %v8502 = vpack.c.b16 %v8283, %v8282
      %v8503 = vpack.c.b16 %v8285, %v8284
      %v8504 = vpack.c.b16 %v8287, %v8286
      %v8505 = vpack.c.b16 %v8289, %v8288
      %v8506 = vpack.c.b16 %v8291, %v8290
      %v8507 = vpack.c.b16 %v8293, %v8292
      %v8508 = vpack.c.b16 %v8295, %v8294
      %v8509 = vpack.c.b16 %v8297, %v8296
      %v8510 = vpack.c.b16 %v8299, %v8298
      %v8511 = vpack.c.b16 %v8301, %v8300
      %v8512 = vpack.c.b16 %v8303, %v8302
      %v8513 = vpack.c.b16 %v8305, %v8304
      %v8514 = vpack.c.b16 %v8307, %v8306
      %v8515 = vpack.c.b16 %v8309, %v8308
      %v8516 = vpack.c.b16 %v8311, %v8310
      %v8517 = vpack.c.b16 %v8313, %v8312
      %v8518 = vpack.c.b16 %v8315, %v8314
      %v8519 = vpack.c.b16 %v8317, %v8316
      %v8520 = vpack.c.b16 %v8319, %v8318
      %v8521 = vpack.c.b16 %v8321, %v8320
      %v8522 = vpack.c.b16 %v8323, %v8322
      %v8523 = vpack.c.b16 %v8325, %v8324
      %v8524 = vpack.c.b16 %v8327, %v8326
      %v8525 = vpack.c.b16 %v8329, %v8328
      %v8526 = vpack.c.b16 %v8331, %v8330
      %v8527 = vpack.c.b16 %v8333, %v8332
      %v8528 = vpack.c.b16 %v8335, %v8334
      %v8529 = vpack.c.b16 %v8337, %v8336
      %v8530 = vpack.c.b16 %v8339, %v8338
      %v8531 = vpack.c.b16 %v8341, %v8340
      %v8532 = vpack.c.b16 %v8343, %v8342
      %v8533 = vpack.c.b16 %v8345, %v8344
      %v8534 = vpack.c.b16 %v8347, %v8346
      %v8535 = vpack.c.b16 %v8349, %v8348
      %v8536 = vpack.c.b16 %v8351, %v8350
      %v8537 = vpack.c.b16 %v8353, %v8352
      %v8538 = vpack.c.b16 %v8355, %v8354
      %v8539 = vpack.c.b16 %v8357, %v8356
      %v8540 = vpack.c.b16 %v8359, %v8358
      %v8541 = vpack.c.b16 %v8361, %v8360
      %v8542 = vpack.c.b16 %v8363, %v8362
      %v8543 = vpack.c.b16 %v8365, %v8364
      %v8544 = vpack.c.b16 %v8367, %v8366
      %v8545 = vpack.c.b16 %v8369, %v8368
      %v8546 = vpack.c.b16 %v8371, %v8370
      %v8547 = vpack.c.b16 %v8373, %v8372
      %v8548 = vpack.c.b16 %v8375, %v8374
      %v8549 = vpack.c.b16 %v8377, %v8376
      %v8550 = vpack.c.b16 %v8379, %v8378
      %v8551 = vpack.c.b16 %v8381, %v8380
      %v8552 = vpack.c.b16 %v8383, %v8382
      %v8553 = vpack.c.b16 %v8385, %v8384
      %v8554 = vpack.c.b16 %v8387, %v8386
      %v8555 = vpack.c.b16 %v8389, %v8388
      %v8556 = vpack.c.b16 %v8391, %v8390
      %v8557 = vpack.c.b16 %v8393, %v8392
      %v8558 = vpack.c.b16 %v8395, %v8394
      %v8559 = vpack.c.b16 %v8397, %v8396
      %v8560 = vpack.c.b16 %v8399, %v8398
      %v8561 = vpack.c.b16 %v8401, %v8400
      %v8562 = vpack.c.b16 %v8403, %v8402
      %v8563 = vpack.c.b16 %v8405, %v8404
      %v8564 = vpack.c.b16 %v8407, %v8406
      %v8565 = vpack.c.b16 %v8409, %v8408
      %v8566 = vpack.c.b16 %v8411, %v8410
      %v8567 = vpack.c.b16 %v8413, %v8412
      %v8568 = vpack.c.b16 %v8415, %v8414
      %v8569 = vpack.c.b16 %v8417, %v8416
      %8722 = vmatprep.subr.bf16.mxu0 0
      %8723 = vmatpush1.bf16.msra.mxu0 %v8418
      %8724 = vmatprep.subr.bf16.mxu0 0
      %8725 = vmatpush1.bf16.msra.mxu0 %v8419
      %8726 = vmatprep.subr.bf16.mxu0 0
      %8727 = vmatpush1.bf16.msra.mxu0 %v8420
      %8728 = vmatprep.subr.bf16.mxu0 0
      %8729 = vmatpush1.bf16.msra.mxu0 %v8421
      %8730 = vmatprep.subr.bf16.mxu0 0
      %8731 = vmatpush1.bf16.msra.mxu0 %v8422
      %8732 = vmatprep.subr.bf16.mxu0 0
      %8733 = vmatpush1.bf16.msra.mxu0 %v8423
      %8734 = vmatprep.subr.bf16.mxu0 0
      %8735 = vmatpush1.bf16.msra.mxu0 %v8424
      %8736 = vmatprep.subr.bf16.mxu0 0
      %8737 = vmatpush1.bf16.msra.mxu0 %v8425
      %8738 = vmatprep.subr.bf16.mxu0 0
      %8739 = vmatpush1.bf16.msra.mxu0 %v8426
      %8740 = vmatprep.subr.bf16.mxu0 0
      %8741 = vmatpush1.bf16.msra.mxu0 %v8427
      %8742 = vmatprep.subr.bf16.mxu0 0
      %8743 = vmatpush1.bf16.msra.mxu0 %v8428
      %8744 = vmatprep.subr.bf16.mxu0 0
      %8745 = vmatpush1.bf16.msra.mxu0 %v8429
      %8746 = vmatprep.subr.bf16.mxu0 0
      %8747 = vmatpush1.bf16.msra.mxu0 %v8430
      %8748 = vmatprep.subr.bf16.mxu0 0
      %8749 = vmatpush1.bf16.msra.mxu0 %v8431
      %8750 = vmatprep.subr.bf16.mxu0 0
      %8751 = vmatpush1.bf16.msra.mxu0 %v8432
      %8752 = vmatprep.subr.bf16.mxu0 0
      %8753 = vmatpush1.bf16.msra.mxu0 %v8433
      %8754 = vmatprep.mubr.bf16.mxu0 %v7037
      %8755 = vmatmul.mubr.bf16.gmra.mrb[0].mxu0 %v7036
      %v8756 = vpop.f32.mrb[0].mxu0
      %v8757 = vadd.f32 0.0, %v8756
      %v8758 = vpop.f32.mrb[0].mxu0
      %v8759 = vpop.f32.mrb[0].mxu0
      %v8760 = vadd.f32 0.0, %v8759
      %v8761 = vpop.f32.mrb[0].mxu0
      %8762 = vmatprep.mubr.bf16.mxu0 %v7123
      %8763 = vmatmul.mubr.bf16.gmra.mrb[0].mxu0 %v7122
      %v8764 = vpop.f32.mrb[0].mxu0
      %v8765 = vadd.f32 0.0, %v8764
      %v8766 = vpop.f32.mrb[0].mxu0
      %v8767 = vpop.f32.mrb[0].mxu0
      %v8768 = vadd.f32 0.0, %v8767
      %v8769 = vpop.f32.mrb[0].mxu0
      %8770 = vmatprep.mubr.bf16.mxu0 %v7201
      %8771 = vmatmul.mubr.bf16.gmra.mrb[0].mxu0 %v7200
      %v8772 = vpop.f32.mrb[0].mxu0
      %v8773 = vadd.f32 0.0, %v8772
      %v8774 = vpop.f32.mrb[0].mxu0
      %v8775 = vpop.f32.mrb[0].mxu0
      %v8776 = vadd.f32 0.0, %v8775
      %v8777 = vpop.f32.mrb[0].mxu0
      %8778 = vmatprep.mubr.bf16.mxu0 %v7279
      %8779 = vmatmul.mubr.bf16.gmra.mrb[0].mxu0 %v7278
      %v8780 = vpop.f32.mrb[0].mxu0
      %v8781 = vadd.f32 0.0, %v8780
      %v8782 = vpop.f32.mrb[0].mxu0
      %v8783 = vpop.f32.mrb[0].mxu0
      %v8784 = vadd.f32 0.0, %v8783
      %v8785 = vpop.f32.mrb[0].mxu0
      %8786 = vmatprep.mubr.bf16.mxu0 %v7357
      %8787 = vmatmul.mubr.bf16.gmra.mrb[0].mxu0 %v7356
      %v8788 = vpop.f32.mrb[0].mxu0
      %v8789 = vadd.f32 0.0, %v8788
      %v8790 = vpop.f32.mrb[0].mxu0
      %v8791 = vpop.f32.mrb[0].mxu0
      %v8792 = vadd.f32 0.0, %v8791
      %v8793 = vpop.f32.mrb[0].mxu0
      %8794 = vmatprep.mubr.bf16.mxu0 %v7453
      %8795 = vmatmul.mubr.bf16.gmra.mrb[0].mxu0 %v7452
      %v8796 = vpop.f32.mrb[0].mxu0
      %v8797 = vadd.f32 0.0, %v8796
      %v8798 = vpop.f32.mrb[0].mxu0
      %v8799 = vpop.f32.mrb[0].mxu0
      %v8800 = vadd.f32 0.0, %v8799
      %v8801 = vpop.f32.mrb[0].mxu0
      %8802 = vmatprep.mubr.bf16.mxu0 %v7539
      %8803 = vmatmul.mubr.bf16.gmra.mrb[0].mxu0 %v7538
      %v8804 = vpop.f32.mrb[0].mxu0
      %v8805 = vadd.f32 0.0, %v8804
      %v8806 = vpop.f32.mrb[0].mxu0
      %v8807 = vpop.f32.mrb[0].mxu0
      %v8808 = vadd.f32 0.0, %v8807
      %v8809 = vpop.f32.mrb[0].mxu0
      %8810 = vmatprep.mubr.bf16.mxu0 %v7617
      %8811 = vmatmul.mubr.bf16.gmra.mrb[0].mxu0 %v7616
      %v8812 = vpop.f32.mrb[0].mxu0
      %v8813 = vadd.f32 0.0, %v8812
      %v8814 = vpop.f32.mrb[0].mxu0
      %v8815 = vpop.f32.mrb[0].mxu0
      %v8816 = vadd.f32 0.0, %v8815
      %v8817 = vpop.f32.mrb[0].mxu0
      %8818 = vmatprep.mubr.bf16.mxu0 %v7695
      %8819 = vmatmul.mubr.bf16.gmra.mrb[0].mxu0 %v7694
      %v8820 = vpop.f32.mrb[0].mxu0
      %v8821 = vadd.f32 0.0, %v8820
      %v8822 = vpop.f32.mrb[0].mxu0
      %v8823 = vpop.f32.mrb[0].mxu0
      %v8824 = vadd.f32 0.0, %v8823
      %v8825 = vpop.f32.mrb[0].mxu0
      %8826 = vmatprep.mubr.bf16.mxu0 %v7773
      %8827 = vmatmul.mubr.bf16.gmra.mrb[0].mxu0 %v7772
      %v8828 = vpop.f32.mrb[0].mxu0
      %v8829 = vadd.f32 0.0, %v8828
      %v8830 = vpop.f32.mrb[0].mxu0
      %v8831 = vpop.f32.mrb[0].mxu0
      %v8832 = vadd.f32 0.0, %v8831
      %v8833 = vpop.f32.mrb[0].mxu0
      %8834 = vdwg.mxu0
      %8835 = vmatprep.subr.bf16.mxu0 0
      %8836 = vmatpush1.bf16.msra.mxu0 %v8434
      %8837 = vmatprep.subr.bf16.mxu0 0
      %8838 = vmatpush1.bf16.msra.mxu0 %v8435
      %8839 = vmatprep.subr.bf16.mxu0 0
      %8840 = vmatpush1.bf16.msra.mxu0 %v8436
      %8841 = vmatprep.subr.bf16.mxu0 0
      %8842 = vmatpush1.bf16.msra.mxu0 %v8437
      %8843 = vmatprep.subr.bf16.mxu0 0
      %8844 = vmatpush1.bf16.msra.mxu0 %v8438
      %8845 = vmatprep.subr.bf16.mxu0 0
      %8846 = vmatpush1.bf16.msra.mxu0 %v8439
      %8847 = vmatprep.subr.bf16.mxu0 0
      %8848 = vmatpush1.bf16.msra.mxu0 %v8440
      %8849 = vmatprep.subr.bf16.mxu0 0
      %8850 = vmatpush1.bf16.msra.mxu0 %v8441
      %8851 = vmatprep.subr.bf16.mxu0 0
      %8852 = vmatpush1.bf16.msra.mxu0 %v8442
      %8853 = vmatprep.subr.bf16.mxu0 0
      %8854 = vmatpush1.bf16.msra.mxu0 %v8443
      %8855 = vmatprep.subr.bf16.mxu0 0
      %8856 = vmatpush1.bf16.msra.mxu0 %v8444
      %8857 = vmatprep.subr.bf16.mxu0 0
      %8858 = vmatpush1.bf16.msra.mxu0 %v8445
      %8859 = vmatprep.subr.bf16.mxu0 0
      %8860 = vmatpush1.bf16.msra.mxu0 %v8446
      %8861 = vmatprep.subr.bf16.mxu0 0
      %8862 = vmatpush1.bf16.msra.mxu0 %v8447
      %8863 = vmatprep.subr.bf16.mxu0 0
      %8864 = vmatpush1.bf16.msra.mxu0 %v8448
      %8865 = vmatprep.subr.bf16.mxu0 0
      %8866 = vmatpush1.bf16.msra.mxu0 %v8449
      %8867 = vmatprep.mubr.bf16.mxu0 %v7039
      %8868 = vmatmul.mubr.bf16.gmra.mrb[0].mxu0 %v7038
      %v8869 = vpop.f32.mrb[0].mxu0
      %v8870 = vadd.f32 %v8757, %v8869
      %v8871 = vpop.f32.mrb[0].mxu0
      %v8872 = vpop.f32.mrb[0].mxu0
      %v8873 = vadd.f32 %v8760, %v8872
      %v8874 = vpop.f32.mrb[0].mxu0
      %8875 = vmatprep.mubr.bf16.mxu0 %v7125
      %8876 = vmatmul.mubr.bf16.gmra.mrb[0].mxu0 %v7124
      %v8877 = vpop.f32.mrb[0].mxu0
      %v8878 = vadd.f32 %v8765, %v8877
      %v8879 = vpop.f32.mrb[0].mxu0
      %v8880 = vpop.f32.mrb[0].mxu0
      %v8881 = vadd.f32 %v8768, %v8880
      %v8882 = vpop.f32.mrb[0].mxu0
      %8883 = vmatprep.mubr.bf16.mxu0 %v7203
      %8884 = vmatmul.mubr.bf16.gmra.mrb[0].mxu0 %v7202
      %v8885 = vpop.f32.mrb[0].mxu0
      %v8886 = vadd.f32 %v8773, %v8885
      %v8887 = vpop.f32.mrb[0].mxu0
      %v8888 = vpop.f32.mrb[0].mxu0
      %v8889 = vadd.f32 %v8776, %v8888
      %v8890 = vpop.f32.mrb[0].mxu0
      %8891 = vmatprep.mubr.bf16.mxu0 %v7281
      %8892 = vmatmul.mubr.bf16.gmra.mrb[0].mxu0 %v7280
      %v8893 = vpop.f32.mrb[0].mxu0
      %v8894 = vadd.f32 %v8781, %v8893
      %v8895 = vpop.f32.mrb[0].mxu0
      %v8896 = vpop.f32.mrb[0].mxu0
      %v8897 = vadd.f32 %v8784, %v8896
      %v8898 = vpop.f32.mrb[0].mxu0
      %8899 = vmatprep.mubr.bf16.mxu0 %v7359
      %8900 = vmatmul.mubr.bf16.gmra.mrb[0].mxu0 %v7358
      %v8901 = vpop.f32.mrb[0].mxu0
      %v8902 = vadd.f32 %v8789, %v8901
      %v8903 = vpop.f32.mrb[0].mxu0
      %v8904 = vpop.f32.mrb[0].mxu0
      %v8905 = vadd.f32 %v8792, %v8904
      %v8906 = vpop.f32.mrb[0].mxu0
      %8907 = vmatprep.mubr.bf16.mxu0 %v7455
      %8908 = vmatmul.mubr.bf16.gmra.mrb[0].mxu0 %v7454
      %v8909 = vpop.f32.mrb[0].mxu0
      %v8910 = vadd.f32 %v8797, %v8909
      %v8911 = vpop.f32.mrb[0].mxu0
      %v8912 = vpop.f32.mrb[0].mxu0
      %v8913 = vadd.f32 %v8800, %v8912
      %v8914 = vpop.f32.mrb[0].mxu0
      %8915 = vmatprep.mubr.bf16.mxu0 %v7541
      %8916 = vmatmul.mubr.bf16.gmra.mrb[0].mxu0 %v7540
      %v8917 = vpop.f32.mrb[0].mxu0
      %v8918 = vadd.f32 %v8805, %v8917
      %v8919 = vpop.f32.mrb[0].mxu0
      %v8920 = vpop.f32.mrb[0].mxu0
      %v8921 = vadd.f32 %v8808, %v8920
      %v8922 = vpop.f32.mrb[0].mxu0
      %8923 = vmatprep.mubr.bf16.mxu0 %v7619
      %8924 = vmatmul.mubr.bf16.gmra.mrb[0].mxu0 %v7618
      %v8925 = vpop.f32.mrb[0].mxu0
      %v8926 = vadd.f32 %v8813, %v8925
      %v8927 = vpop.f32.mrb[0].mxu0
      %v8928 = vpop.f32.mrb[0].mxu0
      %v8929 = vadd.f32 %v8816, %v8928
      %v8930 = vpop.f32.mrb[0].mxu0
      %8931 = vmatprep.mubr.bf16.mxu0 %v7697
      %8932 = vmatmul.mubr.bf16.gmra.mrb[0].mxu0 %v7696
      %v8933 = vpop.f32.mrb[0].mxu0
      %v8934 = vadd.f32 %v8821, %v8933
      %v8935 = vpop.f32.mrb[0].mxu0
      %v8936 = vpop.f32.mrb[0].mxu0
      %v8937 = vadd.f32 %v8824, %v8936
      %v8938 = vpop.f32.mrb[0].mxu0
      %8939 = vmatprep.mubr.bf16.mxu0 %v7775
      %8940 = vmatmul.mubr.bf16.gmra.mrb[0].mxu0 %v7774
      %v8941 = vpop.f32.mrb[0].mxu0
      %v8942 = vadd.f32 %v8829, %v8941
      %v8943 = vpop.f32.mrb[0].mxu0
      %v8944 = vpop.f32.mrb[0].mxu0
      %v8945 = vadd.f32 %v8832, %v8944
      %v8946 = vpop.f32.mrb[0].mxu0
      %8947 = vdwg.mxu0
      %8948 = vmatprep.subr.bf16.mxu0 0
      %8949 = vmatpush1.bf16.msra.mxu0 %v8450
      %8950 = vmatprep.subr.bf16.mxu0 0
      %8951 = vmatpush1.bf16.msra.mxu0 %v8451
      %8952 = vmatprep.subr.bf16.mxu0 0
      %8953 = vmatpush1.bf16.msra.mxu0 %v8452
      %8954 = vmatprep.subr.bf16.mxu0 0
      %8955 = vmatpush1.bf16.msra.mxu0 %v8453
      %8956 = vmatprep.subr.bf16.mxu0 0
      %8957 = vmatpush1.bf16.msra.mxu0 %v8454
      %8958 = vmatprep.subr.bf16.mxu0 0
      %8959 = vmatpush1.bf16.msra.mxu0 %v8455
      %8960 = vmatprep.subr.bf16.mxu0 0
      %8961 = vmatpush1.bf16.msra.mxu0 %v8456
      %8962 = vmatprep.subr.bf16.mxu0 0
      %8963 = vmatpush1.bf16.msra.mxu0 %v8457
      %8964 = vmatprep.subr.bf16.mxu0 0
      %8965 = vmatpush1.bf16.msra.mxu0 %v8458
      %8966 = vmatprep.subr.bf16.mxu0 0
      %8967 = vmatpush1.bf16.msra.mxu0 %v8459
      %8968 = vmatprep.subr.bf16.mxu0 0
      %8969 = vmatpush1.bf16.msra.mxu0 %v8460
      %8970 = vmatprep.subr.bf16.mxu0 0
      %8971 = vmatpush1.bf16.msra.mxu0 %v8461
      %8972 = vmatprep.subr.bf16.mxu0 0
      %8973 = vmatpush1.bf16.msra.mxu0 %v8462
      %8974 = vmatprep.subr.bf16.mxu0 0
      %8975 = vmatpush1.bf16.msra.mxu0 %v8463
      %8976 = vmatprep.subr.bf16.mxu0 0
      %8977 = vmatpush1.bf16.msra.mxu0 %v8464
      %8978 = vmatprep.subr.bf16.mxu0 0
      %8979 = vmatpush1.bf16.msra.mxu0 %v8465
      %8980 = vmatprep.mubr.bf16.mxu0 %v7041
      %8981 = vmatmul.mubr.bf16.gmra.mrb[0].mxu0 %v7040
      %v8982 = vpop.f32.mrb[0].mxu0
      %v8983 = vadd.f32 %v8870, %v8982
      %v8984 = vpop.f32.mrb[0].mxu0
      %v8985 = vpop.f32.mrb[0].mxu0
      %v8986 = vadd.f32 %v8873, %v8985
      %v8987 = vpop.f32.mrb[0].mxu0
      %8988 = vmatprep.mubr.bf16.mxu0 %v7127
      %8989 = vmatmul.mubr.bf16.gmra.mrb[0].mxu0 %v7126
      %v8990 = vpop.f32.mrb[0].mxu0
      %v8991 = vadd.f32 %v8878, %v8990
      %v8992 = vpop.f32.mrb[0].mxu0
      %v8993 = vpop.f32.mrb[0].mxu0
      %v8994 = vadd.f32 %v8881, %v8993
      %v8995 = vpop.f32.mrb[0].mxu0
      %8996 = vmatprep.mubr.bf16.mxu0 %v7205
      %8997 = vmatmul.mubr.bf16.gmra.mrb[0].mxu0 %v7204
      %v8998 = vpop.f32.mrb[0].mxu0
      %v8999 = vadd.f32 %v8886, %v8998
      %v9000 = vpop.f32.mrb[0].mxu0
      %v9001 = vpop.f32.mrb[0].mxu0
      %v9002 = vadd.f32 %v8889, %v9001
      %v9003 = vpop.f32.mrb[0].mxu0
      %9004 = vmatprep.mubr.bf16.mxu0 %v7283
      %9005 = vmatmul.mubr.bf16.gmra.mrb[0].mxu0 %v7282
      %v9006 = vpop.f32.mrb[0].mxu0
      %v9007 = vadd.f32 %v8894, %v9006
      %v9008 = vpop.f32.mrb[0].mxu0
      %v9009 = vpop.f32.mrb[0].mxu0
      %v9010 = vadd.f32 %v8897, %v9009
      %v9011 = vpop.f32.mrb[0].mxu0
      %9012 = vmatprep.mubr.bf16.mxu0 %v7361
      %9013 = vmatmul.mubr.bf16.gmra.mrb[0].mxu0 %v7360
      %v9014 = vpop.f32.mrb[0].mxu0
      %v9015 = vadd.f32 %v8902, %v9014
      %v9016 = vpop.f32.mrb[0].mxu0
      %v9017 = vpop.f32.mrb[0].mxu0
      %v9018 = vadd.f32 %v8905, %v9017
      %v9019 = vpop.f32.mrb[0].mxu0
      %9020 = vmatprep.mubr.bf16.mxu0 %v7457
      %9021 = vmatmul.mubr.bf16.gmra.mrb[0].mxu0 %v7456
      %v9022 = vpop.f32.mrb[0].mxu0
      %v9023 = vadd.f32 %v8910, %v9022
      %v9024 = vpop.f32.mrb[0].mxu0
      %v9025 = vpop.f32.mrb[0].mxu0
      %v9026 = vadd.f32 %v8913, %v9025
      %v9027 = vpop.f32.mrb[0].mxu0
      %9028 = vmatprep.mubr.bf16.mxu0 %v7543
      %9029 = vmatmul.mubr.bf16.gmra.mrb[0].mxu0 %v7542
      %v9030 = vpop.f32.mrb[0].mxu0
      %v9031 = vadd.f32 %v8918, %v9030
      %v9032 = vpop.f32.mrb[0].mxu0
      %v9033 = vpop.f32.mrb[0].mxu0
      %v9034 = vadd.f32 %v8921, %v9033
      %v9035 = vpop.f32.mrb[0].mxu0
      %9036 = vmatprep.mubr.bf16.mxu0 %v7621
      %9037 = vmatmul.mubr.bf16.gmra.mrb[0].mxu0 %v7620
      %v9038 = vpop.f32.mrb[0].mxu0
      %v9039 = vadd.f32 %v8926, %v9038
      %v9040 = vpop.f32.mrb[0].mxu0
      %v9041 = vpop.f32.mrb[0].mxu0
      %v9042 = vadd.f32 %v8929, %v9041
      %v9043 = vpop.f32.mrb[0].mxu0
      %9044 = vmatprep.mubr.bf16.mxu0 %v7699
      %9045 = vmatmul.mubr.bf16.gmra.mrb[0].mxu0 %v7698
      %v9046 = vpop.f32.mrb[0].mxu0
      %v9047 = vadd.f32 %v8934, %v9046
      %v9048 = vpop.f32.mrb[0].mxu0
      %v9049 = vpop.f32.mrb[0].mxu0
      %v9050 = vadd.f32 %v8937, %v9049
      %v9051 = vpop.f32.mrb[0].mxu0
      %9052 = vmatprep.mubr.bf16.mxu0 %v7777
      %9053 = vmatmul.mubr.bf16.gmra.mrb[0].mxu0 %v7776
      %v9054 = vpop.f32.mrb[0].mxu0
      %v9055 = vadd.f32 %v8942, %v9054
      %v9056 = vpop.f32.mrb[0].mxu0
      %v9057 = vpop.f32.mrb[0].mxu0
      %v9058 = vadd.f32 %v8945, %v9057
      %v9059 = vpop.f32.mrb[0].mxu0
      %9060 = vdwg.mxu0
      %9061 = vmatprep.subr.bf16.mxu0 0
      %9062 = vmatpush1.bf16.msra.mxu0 %v8466
      %9063 = vmatprep.subr.bf16.mxu0 0
      %9064 = vmatpush1.bf16.msra.mxu0 %v8467
      %9065 = vmatprep.subr.bf16.mxu0 0
      %9066 = vmatpush1.bf16.msra.mxu0 %v8468
      %9067 = vmatprep.subr.bf16.mxu0 0
      %9068 = vmatpush1.bf16.msra.mxu0 %v8469
      %9069 = vmatprep.subr.bf16.mxu0 0
      %9070 = vmatpush1.bf16.msra.mxu0 %v8470
      %9071 = vmatprep.subr.bf16.mxu0 0
      %9072 = vmatpush1.bf16.msra.mxu0 %v8471
      %9073 = vmatprep.subr.bf16.mxu0 0
      %9074 = vmatpush1.bf16.msra.mxu0 %v8472
      %9075 = vmatprep.subr.bf16.mxu0 0
      %9076 = vmatpush1.bf16.msra.mxu0 %v8473
      %9077 = vmatprep.subr.bf16.mxu0 0
      %9078 = vmatpush1.bf16.msra.mxu0 %v8474
      %9079 = vmatprep.subr.bf16.mxu0 0
      %9080 = vmatpush1.bf16.msra.mxu0 %v8475
      %9081 = vmatprep.subr.bf16.mxu0 0
      %9082 = vmatpush1.bf16.msra.mxu0 %v8476
      %9083 = vmatprep.subr.bf16.mxu0 0
      %9084 = vmatpush1.bf16.msra.mxu0 %v8477
      %9085 = vmatprep.subr.bf16.mxu0 0
      %9086 = vmatpush1.bf16.msra.mxu0 %v8478
      %9087 = vmatprep.subr.bf16.mxu0 0
      %9088 = vmatpush1.bf16.msra.mxu0 %v8479
      %9089 = vmatprep.subr.bf16.mxu0 0
      %9090 = vmatpush1.bf16.msra.mxu0 %v8480
      %9091 = vmatprep.subr.bf16.mxu0 0
      %9092 = vmatpush1.bf16.msra.mxu0 %v8481
      %9093 = vmatprep.mubr.bf16.mxu0 %v7043
      %9094 = vmatmul.mubr.bf16.gmra.mrb[0].mxu0 %v7042
      %v9095 = vpop.f32.mrb[0].mxu0
      %v9096 = vadd.f32 %v8983, %v9095
      %v9097 = vpop.f32.mrb[0].mxu0
      %v9098 = vpop.f32.mrb[0].mxu0
      %v9099 = vadd.f32 %v8986, %v9098
      %v9100 = vpop.f32.mrb[0].mxu0
      %9101 = vmatprep.mubr.bf16.mxu0 %v7129
      %9102 = vmatmul.mubr.bf16.gmra.mrb[0].mxu0 %v7128
      %v9103 = vpop.f32.mrb[0].mxu0
      %v9104 = vadd.f32 %v8991, %v9103
      %v9105 = vpop.f32.mrb[0].mxu0
      %v9106 = vpop.f32.mrb[0].mxu0
      %v9107 = vadd.f32 %v8994, %v9106
      %v9108 = vpop.f32.mrb[0].mxu0
      %9109 = vmatprep.mubr.bf16.mxu0 %v7207
      %9110 = vmatmul.mubr.bf16.gmra.mrb[0].mxu0 %v7206
      %v9111 = vpop.f32.mrb[0].mxu0
      %v9112 = vadd.f32 %v8999, %v9111
      %v9113 = vpop.f32.mrb[0].mxu0
      %v9114 = vpop.f32.mrb[0].mxu0
      %v9115 = vadd.f32 %v9002, %v9114
      %v9116 = vpop.f32.mrb[0].mxu0
      %9117 = vmatprep.mubr.bf16.mxu0 %v7285
      %9118 = vmatmul.mubr.bf16.gmra.mrb[0].mxu0 %v7284
      %v9119 = vpop.f32.mrb[0].mxu0
      %v9120 = vadd.f32 %v9007, %v9119
      %v9121 = vpop.f32.mrb[0].mxu0
      %v9122 = vpop.f32.mrb[0].mxu0
      %v9123 = vadd.f32 %v9010, %v9122
      %v9124 = vpop.f32.mrb[0].mxu0
      %9125 = vmatprep.mubr.bf16.mxu0 %v7363
      %9126 = vmatmul.mubr.bf16.gmra.mrb[0].mxu0 %v7362
      %v9127 = vpop.f32.mrb[0].mxu0
      %v9128 = vadd.f32 %v9015, %v9127
      %v9129 = vpop.f32.mrb[0].mxu0
      %v9130 = vpop.f32.mrb[0].mxu0
      %v9131 = vadd.f32 %v9018, %v9130
      %v9132 = vpop.f32.mrb[0].mxu0
      %9133 = vmatprep.mubr.bf16.mxu0 %v7459
      %9134 = vmatmul.mubr.bf16.gmra.mrb[0].mxu0 %v7458
      %v9135 = vpop.f32.mrb[0].mxu0
      %v9136 = vadd.f32 %v9023, %v9135
      %v9137 = vpop.f32.mrb[0].mxu0
      %v9138 = vpop.f32.mrb[0].mxu0
      %v9139 = vadd.f32 %v9026, %v9138
      %v9140 = vpop.f32.mrb[0].mxu0
      %9141 = vmatprep.mubr.bf16.mxu0 %v7545
      %9142 = vmatmul.mubr.bf16.gmra.mrb[0].mxu0 %v7544
      %v9143 = vpop.f32.mrb[0].mxu0
      %v9144 = vadd.f32 %v9031, %v9143
      %v9145 = vpop.f32.mrb[0].mxu0
      %v9146 = vpop.f32.mrb[0].mxu0
      %v9147 = vadd.f32 %v9034, %v9146
      %v9148 = vpop.f32.mrb[0].mxu0
      %9149 = vmatprep.mubr.bf16.mxu0 %v7623
      %9150 = vmatmul.mubr.bf16.gmra.mrb[0].mxu0 %v7622
      %v9151 = vpop.f32.mrb[0].mxu0
      %v9152 = vadd.f32 %v9039, %v9151
      %v9153 = vpop.f32.mrb[0].mxu0
      %v9154 = vpop.f32.mrb[0].mxu0
      %v9155 = vadd.f32 %v9042, %v9154
      %v9156 = vpop.f32.mrb[0].mxu0
      %9157 = vmatprep.mubr.bf16.mxu0 %v7701
      %9158 = vmatmul.mubr.bf16.gmra.mrb[0].mxu0 %v7700
      %v9159 = vpop.f32.mrb[0].mxu0
      %v9160 = vadd.f32 %v9047, %v9159
      %v9161 = vpop.f32.mrb[0].mxu0
      %v9162 = vpop.f32.mrb[0].mxu0
      %v9163 = vadd.f32 %v9050, %v9162
      %v9164 = vpop.f32.mrb[0].mxu0
      %9165 = vmatprep.mubr.bf16.mxu0 %v7779
      %9166 = vmatmul.mubr.bf16.gmra.mrb[0].mxu0 %v7778
      %v9167 = vpop.f32.mrb[0].mxu0
      %v9168 = vadd.f32 %v9055, %v9167
      %v9169 = vpop.f32.mrb[0].mxu0
      %v9170 = vpop.f32.mrb[0].mxu0
      %v9171 = vadd.f32 %v9058, %v9170
      %v9172 = vpop.f32.mrb[0].mxu0
      %9173 = vdwg.mxu0
      %9174 = vmatprep.subr.bf16.mxu0 0
      %9175 = vmatpush1.bf16.msra.mxu0 %v8482
      %9176 = vmatprep.subr.bf16.mxu0 0
      %9177 = vmatpush1.bf16.msra.mxu0 %v8483
      %9178 = vmatprep.subr.bf16.mxu0 0
      %9179 = vmatpush1.bf16.msra.mxu0 %v8484
      %9180 = vmatprep.subr.bf16.mxu0 0
      %9181 = vmatpush1.bf16.msra.mxu0 %v8485
      %9182 = vmatprep.subr.bf16.mxu0 0
      %9183 = vmatpush1.bf16.msra.mxu0 %v8486
      %9184 = vmatprep.subr.bf16.mxu0 0
      %9185 = vmatpush1.bf16.msra.mxu0 %v8487
      %9186 = vmatprep.subr.bf16.mxu0 0
      %9187 = vmatpush1.bf16.msra.mxu0 %v8488
      %9188 = vmatprep.subr.bf16.mxu0 0
      %9189 = vmatpush1.bf16.msra.mxu0 %v8489
      %9190 = vmatprep.subr.bf16.mxu0 0
      %9191 = vmatpush1.bf16.msra.mxu0 %v8490
      %9192 = vmatprep.subr.bf16.mxu0 0
      %9193 = vmatpush1.bf16.msra.mxu0 %v8491
      %9194 = vmatprep.subr.bf16.mxu0 0
      %9195 = vmatpush1.bf16.msra.mxu0 %v8492
      %9196 = vmatprep.subr.bf16.mxu0 0
      %9197 = vmatpush1.bf16.msra.mxu0 %v8493
      %9198 = vmatprep.subr.bf16.mxu0 0
      %9199 = vmatpush1.bf16.msra.mxu0 %v8494
      %9200 = vmatprep.subr.bf16.mxu0 0
      %9201 = vmatpush1.bf16.msra.mxu0 %v8495
      %9202 = vmatprep.subr.bf16.mxu0 0
      %9203 = vmatpush1.bf16.msra.mxu0 %v8496
      %9204 = vmatprep.subr.bf16.mxu0 0
      %9205 = vmatpush1.bf16.msra.mxu0 %v8497
      %9206 = vmatprep.mubr.bf16.mxu0 %v7045
      %9207 = vmatmul.mubr.bf16.gmra.mrb[0].mxu0 %v7044
      %v9208 = vpop.f32.mrb[0].mxu0
      %v9209 = vadd.f32 %v9096, %v9208
      %v9210 = vpop.f32.mrb[0].mxu0
      %v9211 = vpop.f32.mrb[0].mxu0
      %v9212 = vadd.f32 %v9099, %v9211
      %v9213 = vpop.f32.mrb[0].mxu0
      %9214 = vmatprep.mubr.bf16.mxu0 %v7131
      %9215 = vmatmul.mubr.bf16.gmra.mrb[0].mxu0 %v7130
      %v9216 = vpop.f32.mrb[0].mxu0
      %v9217 = vadd.f32 %v9104, %v9216
      %v9218 = vpop.f32.mrb[0].mxu0
      %v9219 = vpop.f32.mrb[0].mxu0
      %v9220 = vadd.f32 %v9107, %v9219
      %v9221 = vpop.f32.mrb[0].mxu0
      %9222 = vmatprep.mubr.bf16.mxu0 %v7209
      %9223 = vmatmul.mubr.bf16.gmra.mrb[0].mxu0 %v7208
      %v9224 = vpop.f32.mrb[0].mxu0
      %v9225 = vadd.f32 %v9112, %v9224
      %v9226 = vpop.f32.mrb[0].mxu0
      %v9227 = vpop.f32.mrb[0].mxu0
      %v9228 = vadd.f32 %v9115, %v9227
      %v9229 = vpop.f32.mrb[0].mxu0
      %9230 = vmatprep.mubr.bf16.mxu0 %v7287
      %9231 = vmatmul.mubr.bf16.gmra.mrb[0].mxu0 %v7286
      %v9232 = vpop.f32.mrb[0].mxu0
      %v9233 = vadd.f32 %v9120, %v9232
      %v9234 = vpop.f32.mrb[0].mxu0
      %v9235 = vpop.f32.mrb[0].mxu0
      %v9236 = vadd.f32 %v9123, %v9235
      %v9237 = vpop.f32.mrb[0].mxu0
      %9238 = vmatprep.mubr.bf16.mxu0 %v7365
      %9239 = vmatmul.mubr.bf16.gmra.mrb[0].mxu0 %v7364
      %v9240 = vpop.f32.mrb[0].mxu0
      %v9241 = vadd.f32 %v9128, %v9240
      %v9242 = vpop.f32.mrb[0].mxu0
      %v9243 = vpop.f32.mrb[0].mxu0
      %v9244 = vadd.f32 %v9131, %v9243
      %v9245 = vpop.f32.mrb[0].mxu0
      %9246 = vmatprep.mubr.bf16.mxu0 %v7461
      %9247 = vmatmul.mubr.bf16.gmra.mrb[0].mxu0 %v7460
      %v9248 = vpop.f32.mrb[0].mxu0
      %v9249 = vadd.f32 %v9136, %v9248
      %v9250 = vpop.f32.mrb[0].mxu0
      %v9251 = vpop.f32.mrb[0].mxu0
      %v9252 = vadd.f32 %v9139, %v9251
      %v9253 = vpop.f32.mrb[0].mxu0
      %9254 = vmatprep.mubr.bf16.mxu0 %v7547
      %9255 = vmatmul.mubr.bf16.gmra.mrb[0].mxu0 %v7546
      %v9256 = vpop.f32.mrb[0].mxu0
      %v9257 = vadd.f32 %v9144, %v9256
      %v9258 = vpop.f32.mrb[0].mxu0
      %v9259 = vpop.f32.mrb[0].mxu0
      %v9260 = vadd.f32 %v9147, %v9259
      %v9261 = vpop.f32.mrb[0].mxu0
      %9262 = vmatprep.mubr.bf16.mxu0 %v7625
      %9263 = vmatmul.mubr.bf16.gmra.mrb[0].mxu0 %v7624
      %v9264 = vpop.f32.mrb[0].mxu0
      %v9265 = vadd.f32 %v9152, %v9264
      %v9266 = vpop.f32.mrb[0].mxu0
      %v9267 = vpop.f32.mrb[0].mxu0
      %v9268 = vadd.f32 %v9155, %v9267
      %v9269 = vpop.f32.mrb[0].mxu0
      %9270 = vmatprep.mubr.bf16.mxu0 %v7703
      %9271 = vmatmul.mubr.bf16.gmra.mrb[0].mxu0 %v7702
      %v9272 = vpop.f32.mrb[0].mxu0
      %v9273 = vadd.f32 %v9160, %v9272
      %v9274 = vpop.f32.mrb[0].mxu0
      %v9275 = vpop.f32.mrb[0].mxu0
      %v9276 = vadd.f32 %v9163, %v9275
      %v9277 = vpop.f32.mrb[0].mxu0
      %9278 = vmatprep.mubr.bf16.mxu0 %v7781
      %9279 = vmatmul.mubr.bf16.gmra.mrb[0].mxu0 %v7780
      %v9280 = vpop.f32.mrb[0].mxu0
      %v9281 = vadd.f32 %v9168, %v9280
      %v9282 = vpop.f32.mrb[0].mxu0
      %v9283 = vpop.f32.mrb[0].mxu0
      %v9284 = vadd.f32 %v9171, %v9283
      %v9285 = vpop.f32.mrb[0].mxu0
      %9286 = vdwg.mxu0
      %9287 = vmatprep.subr.bf16.mxu0 0
      %9288 = vmatpush1.bf16.msra.mxu0 %v8498
      %9289 = vmatprep.subr.bf16.mxu0 0
      %9290 = vmatpush1.bf16.msra.mxu0 %v8499
      %9291 = vmatprep.subr.bf16.mxu0 0
      %9292 = vmatpush1.bf16.msra.mxu0 %v8500
      %9293 = vmatprep.subr.bf16.mxu0 0
      %9294 = vmatpush1.bf16.msra.mxu0 %v8501
      %9295 = vmatprep.subr.bf16.mxu0 0
      %9296 = vmatpush1.bf16.msra.mxu0 %v8502
      %9297 = vmatprep.subr.bf16.mxu0 0
      %9298 = vmatpush1.bf16.msra.mxu0 %v8503
      %9299 = vmatprep.subr.bf16.mxu0 0
      %9300 = vmatpush1.bf16.msra.mxu0 %v8504
      %9301 = vmatprep.subr.bf16.mxu0 0
      %9302 = vmatpush1.bf16.msra.mxu0 %v8505
      %9303 = vmatprep.subr.bf16.mxu0 0
      %9304 = vmatpush1.bf16.msra.mxu0 %v8506
      %9305 = vmatprep.subr.bf16.mxu0 0
      %9306 = vmatpush1.bf16.msra.mxu0 %v8507
      %9307 = vmatprep.subr.bf16.mxu0 0
      %9308 = vmatpush1.bf16.msra.mxu0 %v8508
      %9309 = vmatprep.subr.bf16.mxu0 0
      %9310 = vmatpush1.bf16.msra.mxu0 %v8509
      %9311 = vmatprep.subr.bf16.mxu0 0
      %9312 = vmatpush1.bf16.msra.mxu0 %v8510
      %9313 = vmatprep.subr.bf16.mxu0 0
      %9314 = vmatpush1.bf16.msra.mxu0 %v8511
      %9315 = vmatprep.subr.bf16.mxu0 0
      %9316 = vmatpush1.bf16.msra.mxu0 %v8512
      %9317 = vmatprep.subr.bf16.mxu0 0
      %9318 = vmatpush1.bf16.msra.mxu0 %v8513
      %9319 = vmatprep.mubr.bf16.mxu0 %v7047
      %9320 = vmatmul.mubr.bf16.gmra.mrb[0].mxu0 %v7046
      %v9321 = vpop.f32.mrb[0].mxu0
      %v9322 = vadd.f32 %v9209, %v9321
      %v9323 = vpop.f32.mrb[0].mxu0
      %v9324 = vpop.f32.mrb[0].mxu0
      %v9325 = vadd.f32 %v9212, %v9324
      %v9326 = vpop.f32.mrb[0].mxu0
      %9327 = vmatprep.mubr.bf16.mxu0 %v7133
      %9328 = vmatmul.mubr.bf16.gmra.mrb[0].mxu0 %v7132
      %v9329 = vpop.f32.mrb[0].mxu0
      %v9330 = vadd.f32 %v9217, %v9329
      %v9331 = vpop.f32.mrb[0].mxu0
      %v9332 = vpop.f32.mrb[0].mxu0
      %v9333 = vadd.f32 %v9220, %v9332
      %v9334 = vpop.f32.mrb[0].mxu0
      %9335 = vmatprep.mubr.bf16.mxu0 %v7211
      %9336 = vmatmul.mubr.bf16.gmra.mrb[0].mxu0 %v7210
      %v9337 = vpop.f32.mrb[0].mxu0
      %v9338 = vadd.f32 %v9225, %v9337
      %v9339 = vpop.f32.mrb[0].mxu0
      %v9340 = vpop.f32.mrb[0].mxu0
      %v9341 = vadd.f32 %v9228, %v9340
      %v9342 = vpop.f32.mrb[0].mxu0
      %9343 = vmatprep.mubr.bf16.mxu0 %v7289
      %9344 = vmatmul.mubr.bf16.gmra.mrb[0].mxu0 %v7288
      %v9345 = vpop.f32.mrb[0].mxu0
      %v9346 = vadd.f32 %v9233, %v9345
      %v9347 = vpop.f32.mrb[0].mxu0
      %v9348 = vpop.f32.mrb[0].mxu0
      %v9349 = vadd.f32 %v9236, %v9348
      %v9350 = vpop.f32.mrb[0].mxu0
      %9351 = vmatprep.mubr.bf16.mxu0 %v7367
      %9352 = vmatmul.mubr.bf16.gmra.mrb[0].mxu0 %v7366
      %v9353 = vpop.f32.mrb[0].mxu0
      %v9354 = vadd.f32 %v9241, %v9353
      %v9355 = vpop.f32.mrb[0].mxu0
      %v9356 = vpop.f32.mrb[0].mxu0
      %v9357 = vadd.f32 %v9244, %v9356
      %v9358 = vpop.f32.mrb[0].mxu0
      %9359 = vmatprep.mubr.bf16.mxu0 %v7463
      %9360 = vmatmul.mubr.bf16.gmra.mrb[0].mxu0 %v7462
      %v9361 = vpop.f32.mrb[0].mxu0
      %v9362 = vadd.f32 %v9249, %v9361
      %v9363 = vpop.f32.mrb[0].mxu0
      %v9364 = vpop.f32.mrb[0].mxu0
      %v9365 = vadd.f32 %v9252, %v9364
      %v9366 = vpop.f32.mrb[0].mxu0
      %9367 = vmatprep.mubr.bf16.mxu0 %v7549
      %9368 = vmatmul.mubr.bf16.gmra.mrb[0].mxu0 %v7548
      %v9369 = vpop.f32.mrb[0].mxu0
      %v9370 = vadd.f32 %v9257, %v9369
      %v9371 = vpop.f32.mrb[0].mxu0
      %v9372 = vpop.f32.mrb[0].mxu0
      %v9373 = vadd.f32 %v9260, %v9372
      %v9374 = vpop.f32.mrb[0].mxu0
      %9375 = vmatprep.mubr.bf16.mxu0 %v7627
      %9376 = vmatmul.mubr.bf16.gmra.mrb[0].mxu0 %v7626
      %v9377 = vpop.f32.mrb[0].mxu0
      %v9378 = vadd.f32 %v9265, %v9377
      %v9379 = vpop.f32.mrb[0].mxu0
      %v9380 = vpop.f32.mrb[0].mxu0
      %v9381 = vadd.f32 %v9268, %v9380
      %v9382 = vpop.f32.mrb[0].mxu0
      %9383 = vmatprep.mubr.bf16.mxu0 %v7705
      %9384 = vmatmul.mubr.bf16.gmra.mrb[0].mxu0 %v7704
      %v9385 = vpop.f32.mrb[0].mxu0
      %v9386 = vadd.f32 %v9273, %v9385
      %v9387 = vpop.f32.mrb[0].mxu0
      %v9388 = vpop.f32.mrb[0].mxu0
      %v9389 = vadd.f32 %v9276, %v9388
      %v9390 = vpop.f32.mrb[0].mxu0
      %9391 = vmatprep.mubr.bf16.mxu0 %v7783
      %9392 = vmatmul.mubr.bf16.gmra.mrb[0].mxu0 %v7782
      %v9393 = vpop.f32.mrb[0].mxu0
      %v9394 = vadd.f32 %v9281, %v9393
      %v9395 = vpop.f32.mrb[0].mxu0
      %v9396 = vpop.f32.mrb[0].mxu0
      %v9397 = vadd.f32 %v9284, %v9396
      %v9398 = vpop.f32.mrb[0].mxu0
      %9399 = vdwg.mxu0
      %9400 = vmatprep.subr.bf16.mxu0 0
      %9401 = vmatpush1.bf16.msra.mxu0 %v8514
      %9402 = vmatprep.subr.bf16.mxu0 0
      %9403 = vmatpush1.bf16.msra.mxu0 %v8515
      %9404 = vmatprep.subr.bf16.mxu0 0
      %9405 = vmatpush1.bf16.msra.mxu0 %v8516
      %9406 = vmatprep.subr.bf16.mxu0 0
      %9407 = vmatpush1.bf16.msra.mxu0 %v8517
      %9408 = vmatprep.subr.bf16.mxu0 0
      %9409 = vmatpush1.bf16.msra.mxu0 %v8518
      %9410 = vmatprep.subr.bf16.mxu0 0
      %9411 = vmatpush1.bf16.msra.mxu0 %v8519
      %9412 = vmatprep.subr.bf16.mxu0 0
      %9413 = vmatpush1.bf16.msra.mxu0 %v8520
      %9414 = vmatprep.subr.bf16.mxu0 0
      %9415 = vmatpush1.bf16.msra.mxu0 %v8521
      %9416 = vmatprep.subr.bf16.mxu0 0
      %9417 = vmatpush1.bf16.msra.mxu0 %v8522
      %9418 = vmatprep.subr.bf16.mxu0 0
      %9419 = vmatpush1.bf16.msra.mxu0 %v8523
      %9420 = vmatprep.subr.bf16.mxu0 0
      %9421 = vmatpush1.bf16.msra.mxu0 %v8524
      %9422 = vmatprep.subr.bf16.mxu0 0
      %9423 = vmatpush1.bf16.msra.mxu0 %v8525
      %9424 = vmatprep.subr.bf16.mxu0 0
      %9425 = vmatpush1.bf16.msra.mxu0 %v8526
      %9426 = vmatprep.subr.bf16.mxu0 0
      %9427 = vmatpush1.bf16.msra.mxu0 %v8527
      %9428 = vmatprep.subr.bf16.mxu0 0
      %9429 = vmatpush1.bf16.msra.mxu0 %v8528
      %9430 = vmatprep.subr.bf16.mxu0 0
      %9431 = vmatpush1.bf16.msra.mxu0 %v8529
      %9432 = vmatprep.mubr.bf16.mxu0 %v7049
      %9433 = vmatmul.mubr.bf16.gmra.mrb[0].mxu0 %v7048
      %v9434 = vpop.f32.mrb[0].mxu0
      %v9435 = vadd.f32 %v9322, %v9434
      %v9436 = vpop.f32.mrb[0].mxu0
      %v9437 = vpop.f32.mrb[0].mxu0
      %v9438 = vadd.f32 %v9325, %v9437
      %v9439 = vpop.f32.mrb[0].mxu0
      %9440 = vmatprep.mubr.bf16.mxu0 %v7135
      %9441 = vmatmul.mubr.bf16.gmra.mrb[0].mxu0 %v7134
      %v9442 = vpop.f32.mrb[0].mxu0
      %v9443 = vadd.f32 %v9330, %v9442
      %v9444 = vpop.f32.mrb[0].mxu0
      %v9445 = vpop.f32.mrb[0].mxu0
      %v9446 = vadd.f32 %v9333, %v9445
      %v9447 = vpop.f32.mrb[0].mxu0
      %9448 = vmatprep.mubr.bf16.mxu0 %v7213
      %9449 = vmatmul.mubr.bf16.gmra.mrb[0].mxu0 %v7212
      %v9450 = vpop.f32.mrb[0].mxu0
      %v9451 = vadd.f32 %v9338, %v9450
      %v9452 = vpop.f32.mrb[0].mxu0
      %v9453 = vpop.f32.mrb[0].mxu0
      %v9454 = vadd.f32 %v9341, %v9453
      %v9455 = vpop.f32.mrb[0].mxu0
      %9456 = vmatprep.mubr.bf16.mxu0 %v7291
      %9457 = vmatmul.mubr.bf16.gmra.mrb[0].mxu0 %v7290
      %v9458 = vpop.f32.mrb[0].mxu0
      %v9459 = vadd.f32 %v9346, %v9458
      %v9460 = vpop.f32.mrb[0].mxu0
      %v9461 = vpop.f32.mrb[0].mxu0
      %v9462 = vadd.f32 %v9349, %v9461
      %v9463 = vpop.f32.mrb[0].mxu0
      %9464 = vmatprep.mubr.bf16.mxu0 %v7369
      %9465 = vmatmul.mubr.bf16.gmra.mrb[0].mxu0 %v7368
      %v9466 = vpop.f32.mrb[0].mxu0
      %v9467 = vadd.f32 %v9354, %v9466
      %v9468 = vpop.f32.mrb[0].mxu0
      %v9469 = vpop.f32.mrb[0].mxu0
      %v9470 = vadd.f32 %v9357, %v9469
      %v9471 = vpop.f32.mrb[0].mxu0
      %9472 = vmatprep.mubr.bf16.mxu0 %v7465
      %9473 = vmatmul.mubr.bf16.gmra.mrb[0].mxu0 %v7464
      %v9474 = vpop.f32.mrb[0].mxu0
      %v9475 = vadd.f32 %v9362, %v9474
      %v9476 = vpop.f32.mrb[0].mxu0
      %v9477 = vpop.f32.mrb[0].mxu0
      %v9478 = vadd.f32 %v9365, %v9477
      %v9479 = vpop.f32.mrb[0].mxu0
      %9480 = vmatprep.mubr.bf16.mxu0 %v7551
      %9481 = vmatmul.mubr.bf16.gmra.mrb[0].mxu0 %v7550
      %v9482 = vpop.f32.mrb[0].mxu0
      %v9483 = vadd.f32 %v9370, %v9482
      %v9484 = vpop.f32.mrb[0].mxu0
      %v9485 = vpop.f32.mrb[0].mxu0
      %v9486 = vadd.f32 %v9373, %v9485
      %v9487 = vpop.f32.mrb[0].mxu0
      %9488 = vmatprep.mubr.bf16.mxu0 %v7629
      %9489 = vmatmul.mubr.bf16.gmra.mrb[0].mxu0 %v7628
      %v9490 = vpop.f32.mrb[0].mxu0
      %v9491 = vadd.f32 %v9378, %v9490
      %v9492 = vpop.f32.mrb[0].mxu0
      %v9493 = vpop.f32.mrb[0].mxu0
      %v9494 = vadd.f32 %v9381, %v9493
      %v9495 = vpop.f32.mrb[0].mxu0
      %9496 = vmatprep.mubr.bf16.mxu0 %v7707
      %9497 = vmatmul.mubr.bf16.gmra.mrb[0].mxu0 %v7706
      %v9498 = vpop.f32.mrb[0].mxu0
      %v9499 = vadd.f32 %v9386, %v9498
      %v9500 = vpop.f32.mrb[0].mxu0
      %v9501 = vpop.f32.mrb[0].mxu0
      %v9502 = vadd.f32 %v9389, %v9501
      %v9503 = vpop.f32.mrb[0].mxu0
      %9504 = vmatprep.mubr.bf16.mxu0 %v7785
      %9505 = vmatmul.mubr.bf16.gmra.mrb[0].mxu0 %v7784
      %v9506 = vpop.f32.mrb[0].mxu0
      %v9507 = vadd.f32 %v9394, %v9506
      %v9508 = vpop.f32.mrb[0].mxu0
      %v9509 = vpop.f32.mrb[0].mxu0
      %v9510 = vadd.f32 %v9397, %v9509
      %v9511 = vpop.f32.mrb[0].mxu0
      %9512 = vdwg.mxu0
      %9513 = vmatprep.subr.bf16.mxu0 0
      %9514 = vmatpush1.bf16.msra.mxu0 %v8530
      %9515 = vmatprep.subr.bf16.mxu0 0
      %9516 = vmatpush1.bf16.msra.mxu0 %v8531
      %9517 = vmatprep.subr.bf16.mxu0 0
      %9518 = vmatpush1.bf16.msra.mxu0 %v8532
      %9519 = vmatprep.subr.bf16.mxu0 0
      %9520 = vmatpush1.bf16.msra.mxu0 %v8533
      %9521 = vmatprep.subr.bf16.mxu0 0
      %9522 = vmatpush1.bf16.msra.mxu0 %v8534
      %9523 = vmatprep.subr.bf16.mxu0 0
      %9524 = vmatpush1.bf16.msra.mxu0 %v8535
      %9525 = vmatprep.subr.bf16.mxu0 0
      %9526 = vmatpush1.bf16.msra.mxu0 %v8536
      %9527 = vmatprep.subr.bf16.mxu0 0
      %9528 = vmatpush1.bf16.msra.mxu0 %v8537
      %9529 = vmatprep.subr.bf16.mxu0 0
      %9530 = vmatpush1.bf16.msra.mxu0 %v8538
      %9531 = vmatprep.subr.bf16.mxu0 0
      %9532 = vmatpush1.bf16.msra.mxu0 %v8539
      %9533 = vmatprep.subr.bf16.mxu0 0
      %9534 = vmatpush1.bf16.msra.mxu0 %v8540
      %9535 = vmatprep.subr.bf16.mxu0 0
      %9536 = vmatpush1.bf16.msra.mxu0 %v8541
      %9537 = vmatprep.subr.bf16.mxu0 0
      %9538 = vmatpush1.bf16.msra.mxu0 %v8542
      %9539 = vmatprep.subr.bf16.mxu0 0
      %9540 = vmatpush1.bf16.msra.mxu0 %v8543
      %9541 = vmatprep.subr.bf16.mxu0 0
      %9542 = vmatpush1.bf16.msra.mxu0 %v8544
      %9543 = vmatprep.subr.bf16.mxu0 0
      %9544 = vmatpush1.bf16.msra.mxu0 %v8545
      %9545 = vmatprep.mubr.bf16.mxu0 %v7051
      %9546 = vmatmul.mubr.bf16.gmra.mrb[0].mxu0 %v7050
      %v9547 = vpop.f32.mrb[0].mxu0
      %v9548 = vadd.f32 %v9435, %v9547
      %v9549 = vpop.f32.mrb[0].mxu0
      %v9550 = vpop.f32.mrb[0].mxu0
      %v9551 = vadd.f32 %v9438, %v9550
      %v9552 = vpop.f32.mrb[0].mxu0
      %9553 = vmatprep.mubr.bf16.mxu0 %v7137
      %9554 = vmatmul.mubr.bf16.gmra.mrb[0].mxu0 %v7136
      %v9555 = vpop.f32.mrb[0].mxu0
      %v9556 = vadd.f32 %v9443, %v9555
      %v9557 = vpop.f32.mrb[0].mxu0
      %v9558 = vpop.f32.mrb[0].mxu0
      %v9559 = vadd.f32 %v9446, %v9558
      %v9560 = vpop.f32.mrb[0].mxu0
      %9561 = vmatprep.mubr.bf16.mxu0 %v7215
      %9562 = vmatmul.mubr.bf16.gmra.mrb[0].mxu0 %v7214
      %v9563 = vpop.f32.mrb[0].mxu0
      %v9564 = vadd.f32 %v9451, %v9563
      %v9565 = vpop.f32.mrb[0].mxu0
      %v9566 = vpop.f32.mrb[0].mxu0
      %v9567 = vadd.f32 %v9454, %v9566
      %v9568 = vpop.f32.mrb[0].mxu0
      %9569 = vmatprep.mubr.bf16.mxu0 %v7293
      %9570 = vmatmul.mubr.bf16.gmra.mrb[0].mxu0 %v7292
      %v9571 = vpop.f32.mrb[0].mxu0
      %v9572 = vadd.f32 %v9459, %v9571
      %v9573 = vpop.f32.mrb[0].mxu0
      %v9574 = vpop.f32.mrb[0].mxu0
      %v9575 = vadd.f32 %v9462, %v9574
      %v9576 = vpop.f32.mrb[0].mxu0
      %9577 = vmatprep.mubr.bf16.mxu0 %v7371
      %9578 = vmatmul.mubr.bf16.gmra.mrb[0].mxu0 %v7370
      %v9579 = vpop.f32.mrb[0].mxu0
      %v9580 = vadd.f32 %v9467, %v9579
      %v9581 = vpop.f32.mrb[0].mxu0
      %v9582 = vpop.f32.mrb[0].mxu0
      %v9583 = vadd.f32 %v9470, %v9582
      %v9584 = vpop.f32.mrb[0].mxu0
      %9585 = vmatprep.mubr.bf16.mxu0 %v7467
      %9586 = vmatmul.mubr.bf16.gmra.mrb[0].mxu0 %v7466
      %v9587 = vpop.f32.mrb[0].mxu0
      %v9588 = vadd.f32 %v9475, %v9587
      %v9589 = vpop.f32.mrb[0].mxu0
      %v9590 = vpop.f32.mrb[0].mxu0
      %v9591 = vadd.f32 %v9478, %v9590
      %v9592 = vpop.f32.mrb[0].mxu0
      %9593 = vmatprep.mubr.bf16.mxu0 %v7553
      %9594 = vmatmul.mubr.bf16.gmra.mrb[0].mxu0 %v7552
      %v9595 = vpop.f32.mrb[0].mxu0
      %v9596 = vadd.f32 %v9483, %v9595
      %v9597 = vpop.f32.mrb[0].mxu0
      %v9598 = vpop.f32.mrb[0].mxu0
      %v9599 = vadd.f32 %v9486, %v9598
      %v9600 = vpop.f32.mrb[0].mxu0
      %9601 = vmatprep.mubr.bf16.mxu0 %v7631
      %9602 = vmatmul.mubr.bf16.gmra.mrb[0].mxu0 %v7630
      %v9603 = vpop.f32.mrb[0].mxu0
      %v9604 = vadd.f32 %v9491, %v9603
      %v9605 = vpop.f32.mrb[0].mxu0
      %v9606 = vpop.f32.mrb[0].mxu0
      %v9607 = vadd.f32 %v9494, %v9606
      %v9608 = vpop.f32.mrb[0].mxu0
      %9609 = vmatprep.mubr.bf16.mxu0 %v7709
      %9610 = vmatmul.mubr.bf16.gmra.mrb[0].mxu0 %v7708
      %v9611 = vpop.f32.mrb[0].mxu0
      %v9612 = vadd.f32 %v9499, %v9611
      %v9613 = vpop.f32.mrb[0].mxu0
      %v9614 = vpop.f32.mrb[0].mxu0
      %v9615 = vadd.f32 %v9502, %v9614
      %v9616 = vpop.f32.mrb[0].mxu0
      %9617 = vmatprep.mubr.bf16.mxu0 %v7787
      %9618 = vmatmul.mubr.bf16.gmra.mrb[0].mxu0 %v7786
      %v9619 = vpop.f32.mrb[0].mxu0
      %v9620 = vadd.f32 %v9507, %v9619
      %v9621 = vpop.f32.mrb[0].mxu0
      %v9622 = vpop.f32.mrb[0].mxu0
      %v9623 = vadd.f32 %v9510, %v9622
      %v9624 = vpop.f32.mrb[0].mxu0
      %9625 = vdwg.mxu0
      %9626 = vmatprep.subr.bf16.mxu0 0
      %9627 = vmatpush1.bf16.msra.mxu0 %v8546
      %9628 = vmatprep.subr.bf16.mxu0 0
      %9629 = vmatpush1.bf16.msra.mxu0 %v8547
      %9630 = vmatprep.subr.bf16.mxu0 0
      %9631 = vmatpush1.bf16.msra.mxu0 %v8548
      %9632 = vmatprep.subr.bf16.mxu0 0
      %9633 = vmatpush1.bf16.msra.mxu0 %v8549
      %9634 = vmatprep.subr.bf16.mxu0 0
      %9635 = vmatpush1.bf16.msra.mxu0 %v8550
      %9636 = vmatprep.subr.bf16.mxu0 0
      %9637 = vmatpush1.bf16.msra.mxu0 %v8551
      %9638 = vmatprep.subr.bf16.mxu0 0
      %9639 = vmatpush1.bf16.msra.mxu0 %v8552
      %9640 = vmatprep.subr.bf16.mxu0 0
      %9641 = vmatpush1.bf16.msra.mxu0 %v8553
      %9642 = vmatprep.subr.bf16.mxu0 0
      %9643 = vmatpush1.bf16.msra.mxu0 %v8554
      %9644 = vmatprep.subr.bf16.mxu0 0
      %9645 = vmatpush1.bf16.msra.mxu0 %v8555
      %9646 = vmatprep.subr.bf16.mxu0 0
      %9647 = vmatpush1.bf16.msra.mxu0 %v8556
      %9648 = vmatprep.subr.bf16.mxu0 0
      %9649 = vmatpush1.bf16.msra.mxu0 %v8557
      %9650 = vmatprep.subr.bf16.mxu0 0
      %9651 = vmatpush1.bf16.msra.mxu0 %v8558
      %9652 = vmatprep.subr.bf16.mxu0 0
      %9653 = vmatpush1.bf16.msra.mxu0 %v8559
      %9654 = vmatprep.subr.bf16.mxu0 0
      %9655 = vmatpush1.bf16.msra.mxu0 %v8560
      %9656 = vmatprep.subr.bf16.mxu0 0
      %9657 = vmatpush1.bf16.msra.mxu0 %v8561
      %9658 = vmatprep.mubr.bf16.mxu0 %v7053
      %9659 = vmatmul.mubr.bf16.gmra.mrb[0].mxu0 %v7052
      %v9660 = vpop.f32.mrb[0].mxu0
      %v9661 = vadd.f32 %v9548, %v9660
      %v9662 = vpop.f32.mrb[0].mxu0
      %v9663 = vpop.f32.mrb[0].mxu0
      %v9664 = vadd.f32 %v9551, %v9663
      %v9665 = vpop.f32.mrb[0].mxu0
      %9666 = vmatprep.mubr.bf16.mxu0 %v7139
      %9667 = vmatmul.mubr.bf16.gmra.mrb[0].mxu0 %v7138
      %v9668 = vpop.f32.mrb[0].mxu0
      %v9669 = vadd.f32 %v9556, %v9668
      %v9670 = vpop.f32.mrb[0].mxu0
      %v9671 = vpop.f32.mrb[0].mxu0
      %v9672 = vadd.f32 %v9559, %v9671
      %v9673 = vpop.f32.mrb[0].mxu0
      %9674 = vmatprep.mubr.bf16.mxu0 %v7217
      %9675 = vmatmul.mubr.bf16.gmra.mrb[0].mxu0 %v7216
      %v9676 = vpop.f32.mrb[0].mxu0
      %v9677 = vadd.f32 %v9564, %v9676
      %v9678 = vpop.f32.mrb[0].mxu0
      %v9679 = vpop.f32.mrb[0].mxu0
      %v9680 = vadd.f32 %v9567, %v9679
      %v9681 = vpop.f32.mrb[0].mxu0
      %9682 = vmatprep.mubr.bf16.mxu0 %v7295
      %9683 = vmatmul.mubr.bf16.gmra.mrb[0].mxu0 %v7294
      %v9684 = vpop.f32.mrb[0].mxu0
      %v9685 = vadd.f32 %v9572, %v9684
      %v9686 = vpop.f32.mrb[0].mxu0
      %v9687 = vpop.f32.mrb[0].mxu0
      %v9688 = vadd.f32 %v9575, %v9687
      %v9689 = vpop.f32.mrb[0].mxu0
      %9690 = vmatprep.mubr.bf16.mxu0 %v7373
      %9691 = vmatmul.mubr.bf16.gmra.mrb[0].mxu0 %v7372
      %v9692 = vpop.f32.mrb[0].mxu0
      %v9693 = vadd.f32 %v9580, %v9692
      %v9694 = vpop.f32.mrb[0].mxu0
      %v9695 = vpop.f32.mrb[0].mxu0
      %v9696 = vadd.f32 %v9583, %v9695
      %v9697 = vpop.f32.mrb[0].mxu0
      %9698 = vmatprep.mubr.bf16.mxu0 %v7469
      %9699 = vmatmul.mubr.bf16.gmra.mrb[0].mxu0 %v7468
      %v9700 = vpop.f32.mrb[0].mxu0
      %v9701 = vadd.f32 %v9588, %v9700
      %v9702 = vpop.f32.mrb[0].mxu0
      %v9703 = vpop.f32.mrb[0].mxu0
      %v9704 = vadd.f32 %v9591, %v9703
      %v9705 = vpop.f32.mrb[0].mxu0
      %9706 = vmatprep.mubr.bf16.mxu0 %v7555
      %9707 = vmatmul.mubr.bf16.gmra.mrb[0].mxu0 %v7554
      %v9708 = vpop.f32.mrb[0].mxu0
      %v9709 = vadd.f32 %v9596, %v9708
      %v9710 = vpop.f32.mrb[0].mxu0
      %v9711 = vpop.f32.mrb[0].mxu0
      %v9712 = vadd.f32 %v9599, %v9711
      %v9713 = vpop.f32.mrb[0].mxu0
      %9714 = vmatprep.mubr.bf16.mxu0 %v7633
      %9715 = vmatmul.mubr.bf16.gmra.mrb[0].mxu0 %v7632
      %v9716 = vpop.f32.mrb[0].mxu0
      %v9717 = vadd.f32 %v9604, %v9716
      %v9718 = vpop.f32.mrb[0].mxu0
      %v9719 = vpop.f32.mrb[0].mxu0
      %v9720 = vadd.f32 %v9607, %v9719
      %v9721 = vpop.f32.mrb[0].mxu0
      %9722 = vmatprep.mubr.bf16.mxu0 %v7711
      %9723 = vmatmul.mubr.bf16.gmra.mrb[0].mxu0 %v7710
      %v9724 = vpop.f32.mrb[0].mxu0
      %v9725 = vadd.f32 %v9612, %v9724
      %v9726 = vpop.f32.mrb[0].mxu0
      %v9727 = vpop.f32.mrb[0].mxu0
      %v9728 = vadd.f32 %v9615, %v9727
      %v9729 = vpop.f32.mrb[0].mxu0
      %9730 = vmatprep.mubr.bf16.mxu0 %v7789
      %9731 = vmatmul.mubr.bf16.gmra.mrb[0].mxu0 %v7788
      %v9732 = vpop.f32.mrb[0].mxu0
      %v9733 = vadd.f32 %v9620, %v9732
      %v9734 = vpop.f32.mrb[0].mxu0
      %v9735 = vpop.f32.mrb[0].mxu0
      %v9736 = vadd.f32 %v9623, %v9735
      %v9737 = vpop.f32.mrb[0].mxu0
      %9738 = vdwg.mxu0
      %9739 = vmatprep.subr.bf16.mxu0 0
      %9740 = vmatpush1.bf16.msra.mxu0 %v8562
      %9741 = vmatprep.subr.bf16.mxu0 0
      %9742 = vmatpush1.bf16.msra.mxu0 %v8563
      %9743 = vmatprep.subr.bf16.mxu0 0
      %9744 = vmatpush1.bf16.msra.mxu0 %v8564
      %9745 = vmatprep.subr.bf16.mxu0 0
      %9746 = vmatpush1.bf16.msra.mxu0 %v8565
      %9747 = vmatprep.subr.bf16.mxu0 0
      %9748 = vmatpush1.bf16.msra.mxu0 %v8566
      %9749 = vmatprep.subr.bf16.mxu0 0
      %9750 = vmatpush1.bf16.msra.mxu0 %v8567
      %9751 = vmatprep.subr.bf16.mxu0 0
      %9752 = vmatpush1.bf16.msra.mxu0 %v8568
      %9753 = vmatprep.subr.bf16.mxu0 0
      %9754 = vmatpush1.bf16.msra.mxu0 %v8569
      %9755 = vmatprep.subr.bf16.mxu0 0
      %9756 = vmatpush1.bf16.msra.mxu0 0
      %9757 = vmatprep.subr.bf16.mxu0 0
      %9758 = vmatpush1.bf16.msra.mxu0 0
      %9759 = vmatprep.subr.bf16.mxu0 0
      %9760 = vmatpush1.bf16.msra.mxu0 0
      %9761 = vmatprep.subr.bf16.mxu0 0
      %9762 = vmatpush1.bf16.msra.mxu0 0
      %9763 = vmatprep.subr.bf16.mxu0 0
      %9764 = vmatpush1.bf16.msra.mxu0 0
      %9765 = vmatprep.subr.bf16.mxu0 0
      %9766 = vmatpush1.bf16.msra.mxu0 0
      %9767 = vmatprep.subr.bf16.mxu0 0
      %9768 = vmatpush1.bf16.msra.mxu0 0
      %9769 = vmatprep.subr.bf16.mxu0 0
      %9770 = vmatpush1.bf16.msra.mxu0 0
      %9771 = vmatprep.mubr.bf16.mxu0 0
      %9772 = vmatmul.mubr.bf16.gmra.mrb[0].mxu0 %v7054
      %v9773 = vpop.f32.mrb[0].mxu0
      %v9774 = vadd.f32 %v9661, %v9773
      %v9775 = vpop.f32.mrb[0].mxu0
      %v9776 = vpop.f32.mrb[0].mxu0
      %v9777 = vadd.f32 %v9664, %v9776
      %v9778 = vpop.f32.mrb[0].mxu0
      %9779 = vmatprep.mubr.bf16.mxu0 0
      %9780 = vmatmul.mubr.bf16.gmra.mrb[0].mxu0 %v7140
      %v9781 = vpop.f32.mrb[0].mxu0
      %v9782 = vadd.f32 %v9669, %v9781
      %v9783 = vpop.f32.mrb[0].mxu0
      %v9784 = vpop.f32.mrb[0].mxu0
      %v9785 = vadd.f32 %v9672, %v9784
      %v9786 = vpop.f32.mrb[0].mxu0
      %9787 = vmatprep.mubr.bf16.mxu0 0
      %9788 = vmatmul.mubr.bf16.gmra.mrb[0].mxu0 %v7218
      %v9789 = vpop.f32.mrb[0].mxu0
      %v9790 = vadd.f32 %v9677, %v9789
      %v9791 = vpop.f32.mrb[0].mxu0
      %v9792 = vpop.f32.mrb[0].mxu0
      %v9793 = vadd.f32 %v9680, %v9792
      %v9794 = vpop.f32.mrb[0].mxu0
      %9795 = vmatprep.mubr.bf16.mxu0 0
      %9796 = vmatmul.mubr.bf16.gmra.mrb[0].mxu0 %v7296
      %v9797 = vpop.f32.mrb[0].mxu0
      %v9798 = vadd.f32 %v9685, %v9797
      %v9799 = vpop.f32.mrb[0].mxu0
      %v9800 = vpop.f32.mrb[0].mxu0
      %v9801 = vadd.f32 %v9688, %v9800
      %v9802 = vpop.f32.mrb[0].mxu0
      %9803 = vmatprep.mubr.bf16.mxu0 0
      %9804 = vmatmul.mubr.bf16.gmra.mrb[0].mxu0 %v7374
      %v9805 = vpop.f32.mrb[0].mxu0
      %v9806 = vadd.f32 %v9693, %v9805
      %v9807 = vpop.f32.mrb[0].mxu0
      %v9808 = vpop.f32.mrb[0].mxu0
      %v9809 = vadd.f32 %v9696, %v9808
      %v9810 = vpop.f32.mrb[0].mxu0
      %9811 = vmatprep.mubr.bf16.mxu0 0
      %9812 = vmatmul.mubr.bf16.gmra.mrb[0].mxu0 %v7470
      %v9813 = vpop.f32.mrb[0].mxu0
      %v9814 = vadd.f32 %v9701, %v9813
      %v9815 = vpop.f32.mrb[0].mxu0
      %v9816 = vpop.f32.mrb[0].mxu0
      %v9817 = vadd.f32 %v9704, %v9816
      %v9818 = vpop.f32.mrb[0].mxu0
      %9819 = vmatprep.mubr.bf16.mxu0 0
      %9820 = vmatmul.mubr.bf16.gmra.mrb[0].mxu0 %v7556
      %v9821 = vpop.f32.mrb[0].mxu0
      %v9822 = vadd.f32 %v9709, %v9821
      %v9823 = vpop.f32.mrb[0].mxu0
      %v9824 = vpop.f32.mrb[0].mxu0
      %v9825 = vadd.f32 %v9712, %v9824
      %v9826 = vpop.f32.mrb[0].mxu0
      %9827 = vmatprep.mubr.bf16.mxu0 0
      %9828 = vmatmul.mubr.bf16.gmra.mrb[0].mxu0 %v7634
      %v9829 = vpop.f32.mrb[0].mxu0
      %v9830 = vadd.f32 %v9717, %v9829
      %v9831 = vpop.f32.mrb[0].mxu0
      %v9832 = vpop.f32.mrb[0].mxu0
      %v9833 = vadd.f32 %v9720, %v9832
      %v9834 = vpop.f32.mrb[0].mxu0
      %9835 = vmatprep.mubr.bf16.mxu0 0
      %9836 = vmatmul.mubr.bf16.gmra.mrb[0].mxu0 %v7712
      %v9837 = vpop.f32.mrb[0].mxu0
      %v9838 = vadd.f32 %v9725, %v9837
      %v9839 = vpop.f32.mrb[0].mxu0
      %v9840 = vpop.f32.mrb[0].mxu0
      %v9841 = vadd.f32 %v9728, %v9840
      %v9842 = vpop.f32.mrb[0].mxu0
      %9843 = vmatprep.mubr.bf16.mxu0 0
      %9844 = vmatmul.mubr.bf16.gmra.mrb[0].mxu0 %v7790
      %v9845 = vpop.f32.mrb[0].mxu0
      %v9846 = vadd.f32 %v9733, %v9845
      %v9847 = vpop.f32.mrb[0].mxu0
      %v9848 = vpop.f32.mrb[0].mxu0
      %v9849 = vadd.f32 %v9736, %v9848
      %v9850 = vpop.f32.mrb[0].mxu0
      %9851 = vdwg.mxu0
      %v9852 = vadd.f32 %v6550, %v9774
      %v9853 = vadd.f32 %v6553, %v9777
      %v9854 = vadd.f32 %v6558, %v9782
      %v9855 = vadd.f32 %v6561, %v9785
      %v9856 = vadd.f32 %v6566, %v9790
      %v9857 = vadd.f32 %v6569, %v9793
      %v9858 = vadd.f32 %v6574, %v9798
      %v9859 = vadd.f32 %v6577, %v9801
      %v9860 = vadd.f32 %v6582, %v9806
      %v9861 = vadd.f32 %v6585, %v9809
      %v9862 = vadd.f32 %v6590, %v9814
      %v9863 = vadd.f32 %v6593, %v9817
      %v9864 = vadd.f32 %v6598, %v9822
      %v9865 = vadd.f32 %v6601, %v9825
      %v9866 = vadd.f32 %v6606, %v9830
      %v9867 = vadd.f32 %v6609, %v9833
      %v9868 = vadd.f32 %v6614, %v9838
      %v9869 = vadd.f32 %v6617, %v9841
      %v9870 = vadd.f32 %v6622, %v9846
      %v9871 = vadd.f32 %v6625, %v9849
      %v9872 = vld [vmem:[%s175 + $0xe40] sm:$0xf]
      %v9873 = vld [vmem:[%s175 + $0xe44] sm:$0xf]
      %v9874 = vld [vmem:[%s175 + $0xe48] sm:$0xf]
      %v9875 = vld [vmem:[%s175 + $0xe4c] sm:$0xf]
      %v9876 = vld [vmem:[%s175 + $0xe50] sm:$0xf]
      %v9877 = vld [vmem:[%s175 + $0xe54] sm:$0xf]
      %v9878 = vld [vmem:[%s175 + $0xe58] sm:$0xf]
      %v9879 = vld [vmem:[%s175 + $0xe5c] sm:$0xf]
      %v9880 = vld [vmem:[%s175 + $0xe60] sm:$0xf]
      %v9881 = vld [vmem:[%s175 + $0xe64] sm:$0xf]
      %v9882 = vld [vmem:[%s175 + $0xe68] sm:$0xf]
      %v9883 = vld [vmem:[%s175 + $0xe6c] sm:$0xf]
      %v9884 = vld [vmem:[%s175 + $0xe70] sm:$0xf]
      %v9885 = vld [vmem:[%s175 + $0xe74] sm:$0xf]
      %v9886 = vld [vmem:[%s175 + $0xe78] sm:$0xf]
      %v9887 = vld [vmem:[%s175 + $0xe7c] sm:$0xf]
      %v9888 = vld [vmem:[%s175 + $0xe80] sm:$0xf]
      %v9889 = vld [vmem:[%s175 + $0xe84] sm:$0xf]
      %v9890 = vld [vmem:[%s175 + $0xe88] sm:$0xf]
      %v9891 = vld [vmem:[%s175 + $0xe8c] sm:$0xf]
      %v9892 = vld [vmem:[%s175 + $0xe90] sm:$0xf]
      %v9893 = vld [vmem:[%s175 + $0xe94] sm:$0xf]
      %v9894 = vld [vmem:[%s175 + $0xe98] sm:$0xf]
      %v9895 = vld [vmem:[%s175 + $0xe9c] sm:$0xf]
      %v9896 = vld [vmem:[%s175 + $0xea0] sm:$0xf]
      %v9897 = vld [vmem:[%s175 + $0xea4] sm:$0xf]
      %v9898 = vld [vmem:[%s175 + $0xea8] sm:$0xf]
      %v9899 = vld [vmem:[%s175 + $0xeac] sm:$0xf]
      %v9900 = vld [vmem:[%s175 + $0xeb0] sm:$0xf]
      %v9901 = vld [vmem:[%s175 + $0xeb4] sm:$0xf]
      %v9902 = vld [vmem:[%s175 + $0xeb8] sm:$0xf]
      %v9903 = vld [vmem:[%s175 + $0xebc] sm:$0xf]
      %v9904 = vld [vmem:[%s175 + $0xec0] sm:$0xf]
      %v9905 = vld [vmem:[%s175 + $0xec4] sm:$0xf]
      %v9906 = vld [vmem:[%s175 + $0xec8] sm:$0xf]
      %v9907 = vld [vmem:[%s175 + $0xecc] sm:$0xf]
      %v9908 = vld [vmem:[%s175 + $0xed0] sm:$0xf]
      %v9909 = vld [vmem:[%s175 + $0xed4] sm:$0xf]
      %v9910 = vld [vmem:[%s175 + $0xed8] sm:$0xf]
      %v9911 = vld [vmem:[%s175 + $0xedc] sm:$0xf]
      %v9912 = vld [vmem:[%s175 + $0xee0] sm:$0xf]
      %v9913 = vld [vmem:[%s175 + $0xee4] sm:$0xf]
      %v9914 = vld [vmem:[%s175 + $0xee8] sm:$0xf]
      %v9915 = vld [vmem:[%s175 + $0xeec] sm:$0xf]
      %v9916 = vld [vmem:[%s175 + $0xef0] sm:$0xf]
      %v9917 = vld [vmem:[%s175 + $0xef4] sm:$0xf]
      %v9918 = vld [vmem:[%s175 + $0xef8] sm:$0xf]
      %v9919 = vld [vmem:[%s175 + $0xefc] sm:$0xf]
      %v9920 = vld [vmem:[%s175 + $0xf00] sm:$0xf]
      %v9921 = vld [vmem:[%s175 + $0xf04] sm:$0xf]
      %v9922 = vld [vmem:[%s175 + $0xf08] sm:$0xf]
      %v9923 = vld [vmem:[%s175 + $0xf0c] sm:$0xf]
      %v9924 = vld [vmem:[%s175 + $0xf10] sm:$0xf]
      %v9925 = vld [vmem:[%s175 + $0xf14] sm:$0xf]
      %v9926 = vld [vmem:[%s175 + $0xf18] sm:$0xf]
      %v9927 = vld [vmem:[%s175 + $0xf1c] sm:$0xf]
      %v9928 = vld [vmem:[%s175 + $0xf20] sm:$0xf]
      %v9929 = vld [vmem:[%s175 + $0xf24] sm:$0xf]
      %v9930 = vld [vmem:[%s175 + $0xf28] sm:$0xf]
      %v9931 = vld [vmem:[%s175 + $0xf2c] sm:$0xf]
      %v9932 = vld [vmem:[%s175 + $0xf30] sm:$0xf]
      %v9933 = vld [vmem:[%s175 + $0xf34] sm:$0xf]
      %v9934 = vld [vmem:[%s175 + $0xf38] sm:$0xf]
      %v9935 = vld [vmem:[%s175 + $0xf3c] sm:$0xf]
      %v9936 = vld [vmem:[%s175 + $0xf40] sm:$0xf]
      %v9937 = vld [vmem:[%s175 + $0xf44] sm:$0xf]
      %v9938 = vld [vmem:[%s175 + $0xf48] sm:$0xf]
      %v9939 = vld [vmem:[%s175 + $0xf4c] sm:$0xf]
      %v9940 = vld [vmem:[%s175 + $0xf50] sm:$0xf]
      %v9941 = vld [vmem:[%s175 + $0xf54] sm:$0xf]
      %v9942 = vld [vmem:[%s175 + $0xf58] sm:$0xf]
      %v9943 = vld [vmem:[%s175 + $0xf5c] sm:$0xf]
      %v9944 = vld [vmem:[%s175 + $0xf60] sm:$0xf]
      %v9945 = vld [vmem:[%s175 + $0xf64] sm:$0xf]
      %v9946 = vld [vmem:[%s175 + $0xf68] sm:$0xf]
      %v9947 = vld [vmem:[%s175 + $0xf6c] sm:$0xf]
      %v9948 = vld [vmem:[%s175 + $0xf70] sm:$0xf]
      %v9949 = vld [vmem:[%s175 + $0xf74] sm:$0xf]
      %v9950 = vld [vmem:[%s175 + $0xf78] sm:$0xf]
      %v9951 = vld [vmem:[%s175 + $0xf7c] sm:$0xf]
      %v9952 = vld [vmem:[%s175 + $0xf80] sm:$0xf]
      %v9953 = vld [vmem:[%s175 + $0xf84] sm:$0xf]
      %v9954 = vld [vmem:[%s175 + $0xf88] sm:$0xf]
      %v9955 = vld [vmem:[%s175 + $0xf8c] sm:$0xf]
      %v9956 = vld [vmem:[%s175 + $0xf90] sm:$0xf]
      %v9957 = vld [vmem:[%s175 + $0xf94] sm:$0xf]
      %v9958 = vld [vmem:[%s175 + $0xf98] sm:$0xf]
      %v9959 = vld [vmem:[%s175 + $0xf9c] sm:$0xf]
      %v9960 = vld [vmem:[%s175 + $0xfa0] sm:$0xf]
      %v9961 = vld [vmem:[%s175 + $0xfa4] sm:$0xf]
      %v9962 = vld [vmem:[%s175 + $0xfa8] sm:$0xf]
      %v9963 = vld [vmem:[%s175 + $0xfac] sm:$0xf]
      %v9964 = vld [vmem:[%s175 + $0xfb0] sm:$0xf]
      %v9965 = vld [vmem:[%s175 + $0xfb4] sm:$0xf]
      %v9966 = vld [vmem:[%s175 + $0xfb8] sm:$0xf]
      %v9967 = vld [vmem:[%s175 + $0xfbc] sm:$0xf]
      %v9968 = vld [vmem:[%s175 + $0xfc0] sm:$0xf]
      %v9969 = vld [vmem:[%s175 + $0xfc4] sm:$0xf]
      %v9970 = vld [vmem:[%s175 + $0xfc8] sm:$0xf]
      %v9971 = vld [vmem:[%s175 + $0xfcc] sm:$0xf]
      %v9972 = vld [vmem:[%s175 + $0xfd0] sm:$0xf]
      %v9973 = vld [vmem:[%s175 + $0xfd4] sm:$0xf]
      %v9974 = vld [vmem:[%s175 + $0xfd8] sm:$0xf]
      %v9975 = vld [vmem:[%s175 + $0xfdc] sm:$0xf]
      %v9976 = vld [vmem:[%s175 + $0xfe0] sm:$0xf]
      %v9977 = vld [vmem:[%s175 + $0xfe4] sm:$0xf]
      %v9978 = vld [vmem:[%s175 + $0xfe8] sm:$0xf]
      %v9979 = vld [vmem:[%s175 + $0xfec] sm:$0xf]
      %v9980 = vld [vmem:[%s175 + $0xff0] sm:$0xf]
      %v9981 = vld [vmem:[%s175 + $0xff4] sm:$0xf]
      %v9982 = vld [vmem:[%s175 + $0xff8] sm:$0xf]
      %v9983 = vld [vmem:[%s175 + $0xffc] sm:$0xf]
      %v9984 = vld [vmem:[%s175 + $0x1000] sm:$0xf]
      %v9985 = vld [vmem:[%s175 + $0x1004] sm:$0xf]
      %v9986 = vld [vmem:[%s175 + $0x1008] sm:$0xf]
      %v9987 = vld [vmem:[%s175 + $0x100c] sm:$0xf]
      %v9988 = vld [vmem:[%s175 + $0x1010] sm:$0xf]
      %v9989 = vld [vmem:[%s175 + $0x1014] sm:$0xf]
      %v9990 = vld [vmem:[%s175 + $0x1018] sm:$0xf]
      %v9991 = vld [vmem:[%s175 + $0x101c] sm:$0xf]
      %v9992 = vld [vmem:[%s175 + $0x1020] sm:$0xf]
      %v9993 = vld [vmem:[%s175 + $0x1024] sm:$0xf]
      %v9994 = vld [vmem:[%s175 + $0x1028] sm:$0xf]
      %v9995 = vld [vmem:[%s175 + $0x102c] sm:$0xf]
      %v9996 = vld [vmem:[%s175 + $0x1030] sm:$0xf]
      %v9997 = vld [vmem:[%s175 + $0x1034] sm:$0xf]
      %v9998 = vld [vmem:[%s175 + $0x1038] sm:$0xf]
      %v9999 = vld [vmem:[%s175 + $0x103c] sm:$0xf]
      %v10000 = vld [vmem:[%s175 + $0x1040] sm:$0xf]
      %v10001 = vld [vmem:[%s175 + $0x1044] sm:$0xf]
      %v10002 = vld [vmem:[%s175 + $0x1048] sm:$0xf]
      %v10003 = vld [vmem:[%s175 + $0x104c] sm:$0xf]
      %v10004 = vld [vmem:[%s175 + $0x1050] sm:$0xf]
      %v10005 = vld [vmem:[%s175 + $0x1054] sm:$0xf]
      %v10006 = vld [vmem:[%s175 + $0x1058] sm:$0xf]
      %v10007 = vld [vmem:[%s175 + $0x105c] sm:$0xf]
      %v10008 = vld [vmem:[%s175 + $0x1060] sm:$0xf]
      %v10009 = vld [vmem:[%s175 + $0x1064] sm:$0xf]
      %v10010 = vld [vmem:[%s175 + $0x1068] sm:$0xf]
      %v10011 = vld [vmem:[%s175 + $0x106c] sm:$0xf]
      %v10012 = vld [vmem:[%s175 + $0x1070] sm:$0xf]
      %v10013 = vld [vmem:[%s175 + $0x1074] sm:$0xf]
      %v10014 = vld [vmem:[%s175 + $0x1078] sm:$0xf]
      %v10015 = vld [vmem:[%s175 + $0x107c] sm:$0xf]
      %v10016 = vld [vmem:[%s175 + $0x1080] sm:$0xf]
      %v10017 = vld [vmem:[%s175 + $0x1084] sm:$0xf]
      %v10018 = vld [vmem:[%s175 + $0x1088] sm:$0xf]
      %v10019 = vld [vmem:[%s175 + $0x108c] sm:$0xf]
      %v10020 = vld [vmem:[%s175 + $0x1090] sm:$0xf]
      %v10021 = vld [vmem:[%s175 + $0x1094] sm:$0xf]
      %v10022 = vld [vmem:[%s175 + $0x1098] sm:$0xf]
      %v10023 = vld [vmem:[%s175 + $0x109c] sm:$0xf]
      %v10024 = vld [vmem:[%s175 + $0x10a0] sm:$0xf]
      %v10025 = vld [vmem:[%s175 + $0x10a4] sm:$0xf]
      %v10026 = vld [vmem:[%s175 + $0x10a8] sm:$0xf]
      %v10027 = vld [vmem:[%s175 + $0x10ac] sm:$0xf]
      %v10028 = vld [vmem:[%s175 + $0x10b0] sm:$0xf]
      %v10029 = vld [vmem:[%s175 + $0x10b4] sm:$0xf]
      %v10030 = vld [vmem:[%s175 + $0x10b8] sm:$0xf]
      %v10031 = vld [vmem:[%s175 + $0x10bc] sm:$0xf]
      %v10032 = vld [vmem:[%s175 + $0x10c0] sm:$0xf]
      %v10033 = vld [vmem:[%s175 + $0x10c4] sm:$0xf]
      %v10034 = vld [vmem:[%s175 + $0x10c8] sm:$0xf]
      %v10035 = vld [vmem:[%s175 + $0x10cc] sm:$0xf]
      %v10036 = vld [vmem:[%s175 + $0x10d0] sm:$0xf]
      %v10037 = vld [vmem:[%s175 + $0x10d4] sm:$0xf]
      %v10038 = vld [vmem:[%s175 + $0x10d8] sm:$0xf]
      %v10039 = vld [vmem:[%s175 + $0x10dc] sm:$0xf]
      %v10040 = vld [vmem:[%s175 + $0x10e0] sm:$0xf]
      %v10041 = vld [vmem:[%s175 + $0x10e4] sm:$0xf]
      %v10042 = vld [vmem:[%s175 + $0x10e8] sm:$0xf]
      %v10043 = vld [vmem:[%s175 + $0x10ec] sm:$0xf]
      %v10044 = vld [vmem:[%s175 + $0x10f0] sm:$0xf]
      %v10045 = vld [vmem:[%s175 + $0x10f4] sm:$0xf]
      %v10046 = vld [vmem:[%s175 + $0x10f8] sm:$0xf]
      %v10047 = vld [vmem:[%s175 + $0x10fc] sm:$0xf]
      %v10048 = vld [vmem:[%s175 + $0x1100] sm:$0xf]
      %v10049 = vld [vmem:[%s175 + $0x1104] sm:$0xf]
      %v10050 = vld [vmem:[%s175 + $0x1108] sm:$0xf]
      %v10051 = vld [vmem:[%s175 + $0x110c] sm:$0xf]
      %v10052 = vld [vmem:[%s175 + $0x1110] sm:$0xf]
      %v10053 = vld [vmem:[%s175 + $0x1114] sm:$0xf]
      %v10054 = vld [vmem:[%s175 + $0x1118] sm:$0xf]
      %v10055 = vld [vmem:[%s175 + $0x111c] sm:$0xf]
      %v10056 = vld [vmem:[%s175 + $0x1120] sm:$0xf]
      %v10057 = vld [vmem:[%s175 + $0x1124] sm:$0xf]
      %v10058 = vld [vmem:[%s175 + $0x1128] sm:$0xf]
      %v10059 = vld [vmem:[%s175 + $0x112c] sm:$0xf]
      %v10060 = vld [vmem:[%s175 + $0x1130] sm:$0xf]
      %v10061 = vld [vmem:[%s175 + $0x1134] sm:$0xf]
      %v10062 = vld [vmem:[%s175 + $0x1138] sm:$0xf]
      %v10063 = vld [vmem:[%s175 + $0x113c] sm:$0xf]
      %v10064 = vld [vmem:[%s175 + $0x1140] sm:$0xf]
      %v10065 = vld [vmem:[%s175 + $0x1144] sm:$0xf]
      %v10066 = vld [vmem:[%s175 + $0x1148] sm:$0xf]
      %v10067 = vld [vmem:[%s175 + $0x114c] sm:$0xf]
      %v10068 = vld [vmem:[%s175 + $0x1150] sm:$0xf]
      %v10069 = vld [vmem:[%s175 + $0x1154] sm:$0xf]
      %v10070 = vld [vmem:[%s175 + $0x1158] sm:$0xf]
      %v10071 = vld [vmem:[%s175 + $0x115c] sm:$0xf]
      %v10072 = vld [vmem:[%s175 + $0x1160] sm:$0xf]
      %v10073 = vld [vmem:[%s175 + $0x1164] sm:$0xf]
      %v10074 = vld [vmem:[%s175 + $0x1168] sm:$0xf]
      %v10075 = vld [vmem:[%s175 + $0x116c] sm:$0xf]
      %v10076 = vld [vmem:[%s175 + $0x1170] sm:$0xf]
      %v10077 = vld [vmem:[%s175 + $0x1174] sm:$0xf]
      %v10078 = vld [vmem:[%s175 + $0x1178] sm:$0xf]
      %v10079 = vld [vmem:[%s175 + $0x117c] sm:$0xf]
      %v10080 = vld [vmem:[%s175 + $0x1180] sm:$0xf]
      %v10081 = vld [vmem:[%s175 + $0x1184] sm:$0xf]
      %v10082 = vld [vmem:[%s175 + $0x1188] sm:$0xf]
      %v10083 = vld [vmem:[%s175 + $0x118c] sm:$0xf]
      %v10084 = vld [vmem:[%s175 + $0x1190] sm:$0xf]
      %v10085 = vld [vmem:[%s175 + $0x1194] sm:$0xf]
      %v10086 = vld [vmem:[%s175 + $0x1198] sm:$0xf]
      %v10087 = vld [vmem:[%s175 + $0x119c] sm:$0xf]
      %v10088 = vld [vmem:[%s175 + $0x11a0] sm:$0xf]
      %v10089 = vld [vmem:[%s175 + $0x11a4] sm:$0xf]
      %v10090 = vld [vmem:[%s175 + $0x11a8] sm:$0xf]
      %v10091 = vld [vmem:[%s175 + $0x11ac] sm:$0xf]
      %v10092 = vld [vmem:[%s175 + $0x11b0] sm:$0xf]
      %v10093 = vld [vmem:[%s175 + $0x11b4] sm:$0xf]
      %v10094 = vld [vmem:[%s175 + $0x11b8] sm:$0xf]
      %v10095 = vld [vmem:[%s175 + $0x11bc] sm:$0xf]
      %v10096 = vld [vmem:[%s175 + $0x11c0] sm:$0xf]
      %v10097 = vld [vmem:[%s175 + $0x11c4] sm:$0xf]
      %v10098 = vld [vmem:[%s175 + $0x11c8] sm:$0xf]
      %v10099 = vld [vmem:[%s175 + $0x11cc] sm:$0xf]
      %v10100 = vld [vmem:[%s175 + $0x11d0] sm:$0xf]
      %v10101 = vld [vmem:[%s175 + $0x11d4] sm:$0xf]
      %v10102 = vld [vmem:[%s175 + $0x11d8] sm:$0xf]
      %v10103 = vld [vmem:[%s175 + $0x11dc] sm:$0xf]
      %v10104 = vld [vmem:[%s175 + $0x11e0] sm:$0xf]
      %v10105 = vld [vmem:[%s175 + $0x11e4] sm:$0xf]
      %v10106 = vld [vmem:[%s175 + $0x11e8] sm:$0xf]
      %v10107 = vld [vmem:[%s175 + $0x11ec] sm:$0xf]
      %v10108 = vld [vmem:[%s175 + $0x11f0] sm:$0xf]
      %v10109 = vld [vmem:[%s175 + $0x11f4] sm:$0xf]
      %v10110 = vld [vmem:[%s175 + $0x11f8] sm:$0xf]
      %v10111 = vld [vmem:[%s175 + $0x11fc] sm:$0xf]
      %v10112 = vld [vmem:[%s175 + $0x1200] sm:$0xf]
      %v10113 = vld [vmem:[%s175 + $0x1204] sm:$0xf]
      %v10114 = vld [vmem:[%s175 + $0x1208] sm:$0xf]
      %v10115 = vld [vmem:[%s175 + $0x120c] sm:$0xf]
      %v10116 = vld [vmem:[%s175 + $0x1210] sm:$0xf]
      %v10117 = vld [vmem:[%s175 + $0x1214] sm:$0xf]
      %v10118 = vld [vmem:[%s175 + $0x1218] sm:$0xf]
      %v10119 = vld [vmem:[%s175 + $0x121c] sm:$0xf]
      %v10120 = vld [vmem:[%s175 + $0x1220] sm:$0xf]
      %v10121 = vld [vmem:[%s175 + $0x1224] sm:$0xf]
      %v10122 = vld [vmem:[%s175 + $0x1228] sm:$0xf]
      %v10123 = vld [vmem:[%s175 + $0x122c] sm:$0xf]
      %v10124 = vld [vmem:[%s175 + $0x1230] sm:$0xf]
      %v10125 = vld [vmem:[%s175 + $0x1234] sm:$0xf]
      %v10126 = vld [vmem:[%s175 + $0x1238] sm:$0xf]
      %v10127 = vld [vmem:[%s175 + $0x123c] sm:$0xf]
      %v10128 = vld [vmem:[%s175 + $0x1240] sm:$0xf]
      %v10129 = vld [vmem:[%s175 + $0x1244] sm:$0xf]
      %v10130 = vld [vmem:[%s175 + $0x1248] sm:$0xf]
      %v10131 = vld [vmem:[%s175 + $0x124c] sm:$0xf]
      %v10132 = vld [vmem:[%s175 + $0x1250] sm:$0xf]
      %v10133 = vld [vmem:[%s175 + $0x1254] sm:$0xf]
      %v10134 = vld [vmem:[%s175 + $0x1258] sm:$0xf]
      %v10135 = vld [vmem:[%s175 + $0x125c] sm:$0xf]
      %v10136 = vld [vmem:[%s175 + $0x1260] sm:$0xf]
      %v10137 = vld [vmem:[%s175 + $0x1264] sm:$0xf]
      %v10138 = vld [vmem:[%s175 + $0x1268] sm:$0xf]
      %v10139 = vld [vmem:[%s175 + $0x126c] sm:$0xf]
      %v10140 = vld [vmem:[%s175 + $0x1270] sm:$0xf]
      %v10141 = vld [vmem:[%s175 + $0x1274] sm:$0xf]
      %v10142 = vld [vmem:[%s175 + $0x1278] sm:$0xf]
      %v10143 = vld [vmem:[%s175 + $0x127c] sm:$0xf]
      %v10144 = vld [vmem:[%s175 + $0x1280] sm:$0xf]
      %v10145 = vld [vmem:[%s175 + $0x1284] sm:$0xf]
      %v10146 = vld [vmem:[%s175 + $0x1288] sm:$0xf]
      %v10147 = vld [vmem:[%s175 + $0x128c] sm:$0xf]
      %v10148 = vld [vmem:[%s175 + $0x1290] sm:$0xf]
      %v10149 = vld [vmem:[%s175 + $0x1294] sm:$0xf]
      %v10150 = vld [vmem:[%s175 + $0x1298] sm:$0xf]
      %v10151 = vld [vmem:[%s175 + $0x129c] sm:$0xf]
      %v10152 = vld [vmem:[%s175 + $0x12a0] sm:$0xf]
      %v10153 = vld [vmem:[%s175 + $0x12a4] sm:$0xf]
      %v10154 = vld [vmem:[%s175 + $0x12a8] sm:$0xf]
      %v10155 = vld [vmem:[%s175 + $0x12ac] sm:$0xf]
      %v10156 = vld [vmem:[%s175 + $0x12b0] sm:$0xf]
      %v10157 = vld [vmem:[%s175 + $0x12b4] sm:$0xf]
      %v10158 = vld [vmem:[%s175 + $0x12b8] sm:$0xf]
      %v10159 = vld [vmem:[%s175 + $0x12bc] sm:$0xf]
      %v10160 = vld [vmem:[%s175 + $0x12c0] sm:$0xf]
      %v10161 = vld [vmem:[%s175 + $0x12c4] sm:$0xf]
      %v10162 = vld [vmem:[%s175 + $0x12c8] sm:$0xf]
      %v10163 = vld [vmem:[%s175 + $0x12cc] sm:$0xf]
      %v10164 = vld [vmem:[%s175 + $0x12d0] sm:$0xf]
      %v10165 = vld [vmem:[%s175 + $0x12d4] sm:$0xf]
      %v10166 = vld [vmem:[%s175 + $0x12d8] sm:$0xf]
      %v10167 = vld [vmem:[%s175 + $0x12dc] sm:$0xf]
      %v10168 = vld [vmem:[%s175 + $0x12e0] sm:$0xf]
      %v10169 = vld [vmem:[%s175 + $0x12e4] sm:$0xf]
      %v10170 = vld [vmem:[%s175 + $0x12e8] sm:$0xf]
      %v10171 = vld [vmem:[%s175 + $0x12ec] sm:$0xf]
      %v10172 = vld [vmem:[%s175 + $0x12f0] sm:$0xf]
      %v10173 = vld [vmem:[%s175 + $0x12f4] sm:$0xf]
      %v10174 = vld [vmem:[%s175 + $0x12f8] sm:$0xf]
      %v10175 = vld [vmem:[%s175 + $0x12fc] sm:$0xf]
      %s10176 = scalar_lea.vmem %s170, 960
      %v10177 = vld [vmem:[%s10176] sm:$0xff]
      %v10178 = vld [vmem:[%s10176 + $0x8] sm:$0xff]
      %v10179 = vld [vmem:[%s10176 + $0x10] sm:$0xff]
      %v10180 = vld [vmem:[%s10176 + $0x18] sm:$0xff]
      %v10181 = vld [vmem:[%s10176 + $0x20] sm:$0xff]
      %v10182 = vld [vmem:[%s10176 + $0x28] sm:$0xff]
      %v10183 = vld [vmem:[%s10176 + $0x30] sm:$0xff]
      %v10184 = vld [vmem:[%s10176 + $0x38] sm:$0xff]
      %v10185 = vld [vmem:[%s10176 + $0x40] sm:$0xff]
      %v10186 = vld [vmem:[%s10176 + $0x48] sm:$0xf]
      %v10187 = vld [vmem:[%s10176 + $0x50] sm:$0xff]
      %v10188 = vld [vmem:[%s10176 + $0x58] sm:$0xff]
      %v10189 = vld [vmem:[%s10176 + $0x60] sm:$0xff]
      %v10190 = vld [vmem:[%s10176 + $0x68] sm:$0xff]
      %v10191 = vld [vmem:[%s10176 + $0x70] sm:$0xff]
      %v10192 = vld [vmem:[%s10176 + $0x78] sm:$0xff]
      %v10193 = vld [vmem:[%s10176 + $0x80] sm:$0xff]
      %v10194 = vld [vmem:[%s10176 + $0x88] sm:$0xff]
      %v10195 = vld [vmem:[%s10176 + $0x90] sm:$0xff]
      %v10196 = vld [vmem:[%s10176 + $0x98] sm:$0xf]
      %v10197 = vld [vmem:[%s10176 + $0x48] sm:$0xff]
      %v10198 = vld [vmem:[%s10176 + $0x98] sm:$0xff]
      %s10199 = scalar_lea.vmem %s170, 1120
      %v10200 = vld [vmem:[%s10199] sm:$0xff]
      %v10201 = vld [vmem:[%s10199 + $0x8] sm:$0xff]
      %v10202 = vld [vmem:[%s10199 + $0x10] sm:$0xff]
      %v10203 = vld [vmem:[%s10199 + $0x18] sm:$0xff]
      %v10204 = vld [vmem:[%s10199 + $0x20] sm:$0xff]
      %v10205 = vld [vmem:[%s10199 + $0x28] sm:$0xff]
      %v10206 = vld [vmem:[%s10199 + $0x30] sm:$0xff]
      %v10207 = vld [vmem:[%s10199 + $0x38] sm:$0xff]
      %v10208 = vld [vmem:[%s10199 + $0x40] sm:$0xff]
      %v10209 = vld [vmem:[%s10199 + $0x48] sm:$0xf]
      %v10210 = vld [vmem:[%s10199 + $0x50] sm:$0xff]
      %v10211 = vld [vmem:[%s10199 + $0x58] sm:$0xff]
      %v10212 = vld [vmem:[%s10199 + $0x60] sm:$0xff]
      %v10213 = vld [vmem:[%s10199 + $0x68] sm:$0xff]
      %v10214 = vld [vmem:[%s10199 + $0x70] sm:$0xff]
      %v10215 = vld [vmem:[%s10199 + $0x78] sm:$0xff]
      %v10216 = vld [vmem:[%s10199 + $0x80] sm:$0xff]
      %v10217 = vld [vmem:[%s10199 + $0x88] sm:$0xff]
      %v10218 = vld [vmem:[%s10199 + $0x90] sm:$0xff]
      %v10219 = vld [vmem:[%s10199 + $0x98] sm:$0xf]
      %v10220 = vld [vmem:[%s10199 + $0x48] sm:$0xff]
      %v10221 = vld [vmem:[%s10199 + $0x98] sm:$0xff]
      %v10242 = vunpack.c.l.b16 %v10177
      %v10243 = vunpack.c.h.b16 %v10177
      %v10244 = vunpack.c.l.b16 %v10178
      %v10245 = vunpack.c.h.b16 %v10178
      %v10246 = vunpack.c.l.b16 %v10179
      %v10247 = vunpack.c.h.b16 %v10179
      %v10248 = vunpack.c.l.b16 %v10180
      %v10249 = vunpack.c.h.b16 %v10180
      %v10250 = vunpack.c.l.b16 %v10181
      %v10251 = vunpack.c.h.b16 %v10181
      %v10252 = vunpack.c.l.b16 %v10182
      %v10253 = vunpack.c.h.b16 %v10182
      %v10254 = vunpack.c.l.b16 %v10183
      %v10255 = vunpack.c.h.b16 %v10183
      %v10256 = vunpack.c.l.b16 %v10184
      %v10257 = vunpack.c.h.b16 %v10184
      %v10258 = vunpack.c.l.b16 %v10185
      %v10259 = vunpack.c.h.b16 %v10185
      %v10260 = vunpack.c.l.b16 %v10186
      %v10261 = vunpack.c.l.b16 %v10187
      %v10262 = vunpack.c.h.b16 %v10187
      %v10263 = vunpack.c.l.b16 %v10188
      %v10264 = vunpack.c.h.b16 %v10188
      %v10265 = vunpack.c.l.b16 %v10189
      %v10266 = vunpack.c.h.b16 %v10189
      %v10267 = vunpack.c.l.b16 %v10190
      %v10268 = vunpack.c.h.b16 %v10190
      %v10269 = vunpack.c.l.b16 %v10191
      %v10270 = vunpack.c.h.b16 %v10191
      %v10271 = vunpack.c.l.b16 %v10192
      %v10272 = vunpack.c.h.b16 %v10192
      %v10273 = vunpack.c.l.b16 %v10193
      %v10274 = vunpack.c.h.b16 %v10193
      %v10275 = vunpack.c.l.b16 %v10194
      %v10276 = vunpack.c.h.b16 %v10194
      %v10277 = vunpack.c.l.b16 %v10195
      %v10278 = vunpack.c.h.b16 %v10195
      %v10279 = vunpack.c.l.b16 %v10196
      %v10280 = vpack.c.b16 %v10261, %v10242
      %v10281 = vpack.c.b16 %v10262, %v10243
      %v10282 = vpack.c.b16 %v10263, %v10244
      %v10283 = vpack.c.b16 %v10264, %v10245
      %v10284 = vpack.c.b16 %v10265, %v10246
      %v10285 = vpack.c.b16 %v10266, %v10247
      %v10286 = vpack.c.b16 %v10267, %v10248
      %v10287 = vpack.c.b16 %v10268, %v10249
      %v10288 = vpack.c.b16 %v10269, %v10250
      %v10289 = vpack.c.b16 %v10270, %v10251
      %v10290 = vpack.c.b16 %v10271, %v10252
      %v10291 = vpack.c.b16 %v10272, %v10253
      %v10292 = vpack.c.b16 %v10273, %v10254
      %v10293 = vpack.c.b16 %v10274, %v10255
      %v10294 = vpack.c.b16 %v10275, %v10256
      %v10295 = vpack.c.b16 %v10276, %v10257
      %v10296 = vpack.c.b16 %v10277, %v10258
      %v10297 = vpack.c.b16 %v10278, %v10259
      %v10298 = vpack.c.b16 %v10279, %v10260
      %v10320 = vunpack.c.l.b16 %v10197
      %v10321 = vunpack.c.h.b16 %v10197
      %v10322 = vunpack.c.l.b16 %v10198
      %v10323 = vunpack.c.h.b16 %v10198
      %v10324 = vpack.c.b16 %v10322, %v10320
      %v10325 = vpack.c.b16 %v10323, %v10321
      %10326 = vrot.lane.b32.xlu0 %v10280, 112
      %v10327 = vpop.permute.xlu0 %10326
      %10328 = vrot.lane.b32.xlu0 %v10281, 112
      %v10329 = vpop.permute.xlu0 %10328
      %10330 = vrot.lane.b32.xlu0 %v10282, 112
      %v10331 = vpop.permute.xlu0 %10330
      %10332 = vrot.lane.b32.xlu0 %v10283, 112
      %v10333 = vpop.permute.xlu0 %10332
      %10334 = vrot.lane.b32.xlu0 %v10284, 112
      %v10335 = vpop.permute.xlu0 %10334
      %10336 = vrot.lane.b32.xlu0 %v10285, 112
      %v10337 = vpop.permute.xlu0 %10336
      %10338 = vrot.lane.b32.xlu0 %v10286, 112
      %v10339 = vpop.permute.xlu0 %10338
      %10340 = vrot.lane.b32.xlu0 %v10287, 112
      %v10341 = vpop.permute.xlu0 %10340
      %10342 = vrot.lane.b32.xlu0 %v10288, 112
      %v10343 = vpop.permute.xlu0 %10342
      %10344 = vrot.lane.b32.xlu0 %v10289, 112
      %v10345 = vpop.permute.xlu0 %10344
      %10346 = vrot.lane.b32.xlu0 %v10290, 112
      %v10347 = vpop.permute.xlu0 %10346
      %10348 = vrot.lane.b32.xlu0 %v10291, 112
      %v10349 = vpop.permute.xlu0 %10348
      %10350 = vrot.lane.b32.xlu0 %v10292, 112
      %v10351 = vpop.permute.xlu0 %10350
      %10352 = vrot.lane.b32.xlu0 %v10293, 112
      %v10353 = vpop.permute.xlu0 %10352
      %10354 = vrot.lane.b32.xlu0 %v10294, 112
      %v10355 = vpop.permute.xlu0 %10354
      %10356 = vrot.lane.b32.xlu0 %v10295, 112
      %v10357 = vpop.permute.xlu0 %10356
      %10358 = vrot.lane.b32.xlu0 %v10296, 112
      %v10359 = vpop.permute.xlu0 %10358
      %10360 = vrot.lane.b32.xlu0 %v10297, 112
      %v10361 = vpop.permute.xlu0 %10360
      %10362 = vrot.lane.b32.xlu0 %v10324, 112
      %v10363 = vpop.permute.xlu0 %10362
      %10364 = vrot.lane.b32.xlu0 %v10325, 112
      %v10365 = vpop.permute.xlu0 %10364
      %v10366 = vsel %vm670, %v10327, %v10329
      %v10367 = vsel %vm670, %v10329, %v10331
      %v10368 = vsel %vm670, %v10331, %v10333
      %v10369 = vsel %vm670, %v10333, %v10335
      %v10370 = vsel %vm670, %v10335, %v10337
      %v10371 = vsel %vm670, %v10337, %v10339
      %v10372 = vsel %vm670, %v10339, %v10341
      %v10373 = vsel %vm670, %v10341, %v10343
      %v10374 = vsel %vm670, %v10343, %v10345
      %v10375 = vsel %vm670, %v10345, %v10347
      %v10376 = vsel %vm670, %v10347, %v10349
      %v10377 = vsel %vm670, %v10349, %v10351
      %v10378 = vsel %vm670, %v10351, %v10353
      %v10379 = vsel %vm670, %v10353, %v10355
      %v10380 = vsel %vm670, %v10355, %v10357
      %v10381 = vsel %vm670, %v10357, %v10359
      %v10382 = vsel %vm670, %v10359, %v10361
      %v10383 = vsel %vm670, %v10361, %v10363
      %v10384 = vsel %vm670, %v10363, %v10365
      %10404 = vrot.lane.b32.xlu0 %v10280, 96
      %v10405 = vpop.permute.xlu0 %10404
      %10406 = vrot.lane.b32.xlu0 %v10281, 96
      %v10407 = vpop.permute.xlu0 %10406
      %10408 = vrot.lane.b32.xlu0 %v10282, 96
      %v10409 = vpop.permute.xlu0 %10408
      %10410 = vrot.lane.b32.xlu0 %v10283, 96
      %v10411 = vpop.permute.xlu0 %10410
      %10412 = vrot.lane.b32.xlu0 %v10284, 96
      %v10413 = vpop.permute.xlu0 %10412
      %10414 = vrot.lane.b32.xlu0 %v10285, 96
      %v10415 = vpop.permute.xlu0 %10414
      %10416 = vrot.lane.b32.xlu0 %v10286, 96
      %v10417 = vpop.permute.xlu0 %10416
      %10418 = vrot.lane.b32.xlu0 %v10287, 96
      %v10419 = vpop.permute.xlu0 %10418
      %10420 = vrot.lane.b32.xlu0 %v10288, 96
      %v10421 = vpop.permute.xlu0 %10420
      %10422 = vrot.lane.b32.xlu0 %v10289, 96
      %v10423 = vpop.permute.xlu0 %10422
      %10424 = vrot.lane.b32.xlu0 %v10290, 96
      %v10425 = vpop.permute.xlu0 %10424
      %10426 = vrot.lane.b32.xlu0 %v10291, 96
      %v10427 = vpop.permute.xlu0 %10426
      %10428 = vrot.lane.b32.xlu0 %v10292, 96
      %v10429 = vpop.permute.xlu0 %10428
      %10430 = vrot.lane.b32.xlu0 %v10293, 96
      %v10431 = vpop.permute.xlu0 %10430
      %10432 = vrot.lane.b32.xlu0 %v10294, 96
      %v10433 = vpop.permute.xlu0 %10432
      %10434 = vrot.lane.b32.xlu0 %v10295, 96
      %v10435 = vpop.permute.xlu0 %10434
      %10436 = vrot.lane.b32.xlu0 %v10296, 96
      %v10437 = vpop.permute.xlu0 %10436
      %10438 = vrot.lane.b32.xlu0 %v10297, 96
      %v10439 = vpop.permute.xlu0 %10438
      %10440 = vrot.lane.b32.xlu0 %v10324, 96
      %v10441 = vpop.permute.xlu0 %10440
      %10442 = vrot.lane.b32.xlu0 %v10325, 96
      %v10443 = vpop.permute.xlu0 %10442
      %v10444 = vsel %vm749, %v10405, %v10407
      %v10445 = vsel %vm749, %v10407, %v10409
      %v10446 = vsel %vm749, %v10409, %v10411
      %v10447 = vsel %vm749, %v10411, %v10413
      %v10448 = vsel %vm749, %v10413, %v10415
      %v10449 = vsel %vm749, %v10415, %v10417
      %v10450 = vsel %vm749, %v10417, %v10419
      %v10451 = vsel %vm749, %v10419, %v10421
      %v10452 = vsel %vm749, %v10421, %v10423
      %v10453 = vsel %vm749, %v10423, %v10425
      %v10454 = vsel %vm749, %v10425, %v10427
      %v10455 = vsel %vm749, %v10427, %v10429
      %v10456 = vsel %vm749, %v10429, %v10431
      %v10457 = vsel %vm749, %v10431, %v10433
      %v10458 = vsel %vm749, %v10433, %v10435
      %v10459 = vsel %vm749, %v10435, %v10437
      %v10460 = vsel %vm749, %v10437, %v10439
      %v10461 = vsel %vm749, %v10439, %v10441
      %v10462 = vsel %vm749, %v10441, %v10443
      %10482 = vrot.lane.b32.xlu0 %v10280, 80
      %v10483 = vpop.permute.xlu0 %10482
      %10484 = vrot.lane.b32.xlu0 %v10281, 80
      %v10485 = vpop.permute.xlu0 %10484
      %10486 = vrot.lane.b32.xlu0 %v10282, 80
      %v10487 = vpop.permute.xlu0 %10486
      %10488 = vrot.lane.b32.xlu0 %v10283, 80
      %v10489 = vpop.permute.xlu0 %10488
      %10490 = vrot.lane.b32.xlu0 %v10284, 80
      %v10491 = vpop.permute.xlu0 %10490
      %10492 = vrot.lane.b32.xlu0 %v10285, 80
      %v10493 = vpop.permute.xlu0 %10492
      %10494 = vrot.lane.b32.xlu0 %v10286, 80
      %v10495 = vpop.permute.xlu0 %10494
      %10496 = vrot.lane.b32.xlu0 %v10287, 80
      %v10497 = vpop.permute.xlu0 %10496
      %10498 = vrot.lane.b32.xlu0 %v10288, 80
      %v10499 = vpop.permute.xlu0 %10498
      %10500 = vrot.lane.b32.xlu0 %v10289, 80
      %v10501 = vpop.permute.xlu0 %10500
      %10502 = vrot.lane.b32.xlu0 %v10290, 80
      %v10503 = vpop.permute.xlu0 %10502
      %10504 = vrot.lane.b32.xlu0 %v10291, 80
      %v10505 = vpop.permute.xlu0 %10504
      %10506 = vrot.lane.b32.xlu0 %v10292, 80
      %v10507 = vpop.permute.xlu0 %10506
      %10508 = vrot.lane.b32.xlu0 %v10293, 80
      %v10509 = vpop.permute.xlu0 %10508
      %10510 = vrot.lane.b32.xlu0 %v10294, 80
      %v10511 = vpop.permute.xlu0 %10510
      %10512 = vrot.lane.b32.xlu0 %v10295, 80
      %v10513 = vpop.permute.xlu0 %10512
      %10514 = vrot.lane.b32.xlu0 %v10296, 80
      %v10515 = vpop.permute.xlu0 %10514
      %10516 = vrot.lane.b32.xlu0 %v10297, 80
      %v10517 = vpop.permute.xlu0 %10516
      %10518 = vrot.lane.b32.xlu0 %v10324, 80
      %v10519 = vpop.permute.xlu0 %10518
      %10520 = vrot.lane.b32.xlu0 %v10325, 80
      %v10521 = vpop.permute.xlu0 %10520
      %v10522 = vsel %vm828, %v10483, %v10485
      %v10523 = vsel %vm828, %v10485, %v10487
      %v10524 = vsel %vm828, %v10487, %v10489
      %v10525 = vsel %vm828, %v10489, %v10491
      %v10526 = vsel %vm828, %v10491, %v10493
      %v10527 = vsel %vm828, %v10493, %v10495
      %v10528 = vsel %vm828, %v10495, %v10497
      %v10529 = vsel %vm828, %v10497, %v10499
      %v10530 = vsel %vm828, %v10499, %v10501
      %v10531 = vsel %vm828, %v10501, %v10503
      %v10532 = vsel %vm828, %v10503, %v10505
      %v10533 = vsel %vm828, %v10505, %v10507
      %v10534 = vsel %vm828, %v10507, %v10509
      %v10535 = vsel %vm828, %v10509, %v10511
      %v10536 = vsel %vm828, %v10511, %v10513
      %v10537 = vsel %vm828, %v10513, %v10515
      %v10538 = vsel %vm828, %v10515, %v10517
      %v10539 = vsel %vm828, %v10517, %v10519
      %v10540 = vsel %vm828, %v10519, %v10521
      %10560 = vrot.lane.b32.xlu0 %v10280, 64
      %v10561 = vpop.permute.xlu0 %10560
      %10562 = vrot.lane.b32.xlu0 %v10281, 64
      %v10563 = vpop.permute.xlu0 %10562
      %10564 = vrot.lane.b32.xlu0 %v10282, 64
      %v10565 = vpop.permute.xlu0 %10564
      %10566 = vrot.lane.b32.xlu0 %v10283, 64
      %v10567 = vpop.permute.xlu0 %10566
      %10568 = vrot.lane.b32.xlu0 %v10284, 64
      %v10569 = vpop.permute.xlu0 %10568
      %10570 = vrot.lane.b32.xlu0 %v10285, 64
      %v10571 = vpop.permute.xlu0 %10570
      %10572 = vrot.lane.b32.xlu0 %v10286, 64
      %v10573 = vpop.permute.xlu0 %10572
      %10574 = vrot.lane.b32.xlu0 %v10287, 64
      %v10575 = vpop.permute.xlu0 %10574
      %10576 = vrot.lane.b32.xlu0 %v10288, 64
      %v10577 = vpop.permute.xlu0 %10576
      %10578 = vrot.lane.b32.xlu0 %v10289, 64
      %v10579 = vpop.permute.xlu0 %10578
      %10580 = vrot.lane.b32.xlu0 %v10290, 64
      %v10581 = vpop.permute.xlu0 %10580
      %10582 = vrot.lane.b32.xlu0 %v10291, 64
      %v10583 = vpop.permute.xlu0 %10582
      %10584 = vrot.lane.b32.xlu0 %v10292, 64
      %v10585 = vpop.permute.xlu0 %10584
      %10586 = vrot.lane.b32.xlu0 %v10293, 64
      %v10587 = vpop.permute.xlu0 %10586
      %10588 = vrot.lane.b32.xlu0 %v10294, 64
      %v10589 = vpop.permute.xlu0 %10588
      %10590 = vrot.lane.b32.xlu0 %v10295, 64
      %v10591 = vpop.permute.xlu0 %10590
      %10592 = vrot.lane.b32.xlu0 %v10296, 64
      %v10593 = vpop.permute.xlu0 %10592
      %10594 = vrot.lane.b32.xlu0 %v10297, 64
      %v10595 = vpop.permute.xlu0 %10594
      %10596 = vrot.lane.b32.xlu0 %v10324, 64
      %v10597 = vpop.permute.xlu0 %10596
      %10598 = vrot.lane.b32.xlu0 %v10325, 64
      %v10599 = vpop.permute.xlu0 %10598
      %v10600 = vsel %vm907, %v10561, %v10563
      %v10601 = vsel %vm907, %v10563, %v10565
      %v10602 = vsel %vm907, %v10565, %v10567
      %v10603 = vsel %vm907, %v10567, %v10569
      %v10604 = vsel %vm907, %v10569, %v10571
      %v10605 = vsel %vm907, %v10571, %v10573
      %v10606 = vsel %vm907, %v10573, %v10575
      %v10607 = vsel %vm907, %v10575, %v10577
      %v10608 = vsel %vm907, %v10577, %v10579
      %v10609 = vsel %vm907, %v10579, %v10581
      %v10610 = vsel %vm907, %v10581, %v10583
      %v10611 = vsel %vm907, %v10583, %v10585
      %v10612 = vsel %vm907, %v10585, %v10587
      %v10613 = vsel %vm907, %v10587, %v10589
      %v10614 = vsel %vm907, %v10589, %v10591
      %v10615 = vsel %vm907, %v10591, %v10593
      %v10616 = vsel %vm907, %v10593, %v10595
      %v10617 = vsel %vm907, %v10595, %v10597
      %v10618 = vsel %vm907, %v10597, %v10599
      %v10658 = vunpack.c.l.b16 %v10200
      %v10659 = vunpack.c.h.b16 %v10200
      %v10660 = vunpack.c.l.b16 %v10201
      %v10661 = vunpack.c.h.b16 %v10201
      %v10662 = vunpack.c.l.b16 %v10202
      %v10663 = vunpack.c.h.b16 %v10202
      %v10664 = vunpack.c.l.b16 %v10203
      %v10665 = vunpack.c.h.b16 %v10203
      %v10666 = vunpack.c.l.b16 %v10204
      %v10667 = vunpack.c.h.b16 %v10204
      %v10668 = vunpack.c.l.b16 %v10205
      %v10669 = vunpack.c.h.b16 %v10205
      %v10670 = vunpack.c.l.b16 %v10206
      %v10671 = vunpack.c.h.b16 %v10206
      %v10672 = vunpack.c.l.b16 %v10207
      %v10673 = vunpack.c.h.b16 %v10207
      %v10674 = vunpack.c.l.b16 %v10208
      %v10675 = vunpack.c.h.b16 %v10208
      %v10676 = vunpack.c.l.b16 %v10209
      %v10677 = vunpack.c.l.b16 %v10210
      %v10678 = vunpack.c.h.b16 %v10210
      %v10679 = vunpack.c.l.b16 %v10211
      %v10680 = vunpack.c.h.b16 %v10211
      %v10681 = vunpack.c.l.b16 %v10212
      %v10682 = vunpack.c.h.b16 %v10212
      %v10683 = vunpack.c.l.b16 %v10213
      %v10684 = vunpack.c.h.b16 %v10213
      %v10685 = vunpack.c.l.b16 %v10214
      %v10686 = vunpack.c.h.b16 %v10214
      %v10687 = vunpack.c.l.b16 %v10215
      %v10688 = vunpack.c.h.b16 %v10215
      %v10689 = vunpack.c.l.b16 %v10216
      %v10690 = vunpack.c.h.b16 %v10216
      %v10691 = vunpack.c.l.b16 %v10217
      %v10692 = vunpack.c.h.b16 %v10217
      %v10693 = vunpack.c.l.b16 %v10218
      %v10694 = vunpack.c.h.b16 %v10218
      %v10695 = vunpack.c.l.b16 %v10219
      %v10696 = vpack.c.b16 %v10677, %v10658
      %v10697 = vpack.c.b16 %v10678, %v10659
      %v10698 = vpack.c.b16 %v10679, %v10660
      %v10699 = vpack.c.b16 %v10680, %v10661
      %v10700 = vpack.c.b16 %v10681, %v10662
      %v10701 = vpack.c.b16 %v10682, %v10663
      %v10702 = vpack.c.b16 %v10683, %v10664
      %v10703 = vpack.c.b16 %v10684, %v10665
      %v10704 = vpack.c.b16 %v10685, %v10666
      %v10705 = vpack.c.b16 %v10686, %v10667
      %v10706 = vpack.c.b16 %v10687, %v10668
      %v10707 = vpack.c.b16 %v10688, %v10669
      %v10708 = vpack.c.b16 %v10689, %v10670
      %v10709 = vpack.c.b16 %v10690, %v10671
      %v10710 = vpack.c.b16 %v10691, %v10672
      %v10711 = vpack.c.b16 %v10692, %v10673
      %v10712 = vpack.c.b16 %v10693, %v10674
      %v10713 = vpack.c.b16 %v10694, %v10675
      %v10714 = vpack.c.b16 %v10695, %v10676
      %v10736 = vunpack.c.l.b16 %v10220
      %v10737 = vunpack.c.h.b16 %v10220
      %v10738 = vunpack.c.l.b16 %v10221
      %v10739 = vunpack.c.h.b16 %v10221
      %v10740 = vpack.c.b16 %v10738, %v10736
      %v10741 = vpack.c.b16 %v10739, %v10737
      %10742 = vrot.lane.b32.xlu0 %v10696, 112
      %v10743 = vpop.permute.xlu0 %10742
      %10744 = vrot.lane.b32.xlu0 %v10697, 112
      %v10745 = vpop.permute.xlu0 %10744
      %10746 = vrot.lane.b32.xlu0 %v10698, 112
      %v10747 = vpop.permute.xlu0 %10746
      %10748 = vrot.lane.b32.xlu0 %v10699, 112
      %v10749 = vpop.permute.xlu0 %10748
      %10750 = vrot.lane.b32.xlu0 %v10700, 112
      %v10751 = vpop.permute.xlu0 %10750
      %10752 = vrot.lane.b32.xlu0 %v10701, 112
      %v10753 = vpop.permute.xlu0 %10752
      %10754 = vrot.lane.b32.xlu0 %v10702, 112
      %v10755 = vpop.permute.xlu0 %10754
      %10756 = vrot.lane.b32.xlu0 %v10703, 112
      %v10757 = vpop.permute.xlu0 %10756
      %10758 = vrot.lane.b32.xlu0 %v10704, 112
      %v10759 = vpop.permute.xlu0 %10758
      %10760 = vrot.lane.b32.xlu0 %v10705, 112
      %v10761 = vpop.permute.xlu0 %10760
      %10762 = vrot.lane.b32.xlu0 %v10706, 112
      %v10763 = vpop.permute.xlu0 %10762
      %10764 = vrot.lane.b32.xlu0 %v10707, 112
      %v10765 = vpop.permute.xlu0 %10764
      %10766 = vrot.lane.b32.xlu0 %v10708, 112
      %v10767 = vpop.permute.xlu0 %10766
      %10768 = vrot.lane.b32.xlu0 %v10709, 112
      %v10769 = vpop.permute.xlu0 %10768
      %10770 = vrot.lane.b32.xlu0 %v10710, 112
      %v10771 = vpop.permute.xlu0 %10770
      %10772 = vrot.lane.b32.xlu0 %v10711, 112
      %v10773 = vpop.permute.xlu0 %10772
      %10774 = vrot.lane.b32.xlu0 %v10712, 112
      %v10775 = vpop.permute.xlu0 %10774
      %10776 = vrot.lane.b32.xlu0 %v10713, 112
      %v10777 = vpop.permute.xlu0 %10776
      %10778 = vrot.lane.b32.xlu0 %v10740, 112
      %v10779 = vpop.permute.xlu0 %10778
      %10780 = vrot.lane.b32.xlu0 %v10741, 112
      %v10781 = vpop.permute.xlu0 %10780
      %v10782 = vsel %vm670, %v10743, %v10745
      %v10783 = vsel %vm670, %v10745, %v10747
      %v10784 = vsel %vm670, %v10747, %v10749
      %v10785 = vsel %vm670, %v10749, %v10751
      %v10786 = vsel %vm670, %v10751, %v10753
      %v10787 = vsel %vm670, %v10753, %v10755
      %v10788 = vsel %vm670, %v10755, %v10757
      %v10789 = vsel %vm670, %v10757, %v10759
      %v10790 = vsel %vm670, %v10759, %v10761
      %v10791 = vsel %vm670, %v10761, %v10763
      %v10792 = vsel %vm670, %v10763, %v10765
      %v10793 = vsel %vm670, %v10765, %v10767
      %v10794 = vsel %vm670, %v10767, %v10769
      %v10795 = vsel %vm670, %v10769, %v10771
      %v10796 = vsel %vm670, %v10771, %v10773
      %v10797 = vsel %vm670, %v10773, %v10775
      %v10798 = vsel %vm670, %v10775, %v10777
      %v10799 = vsel %vm670, %v10777, %v10779
      %v10800 = vsel %vm670, %v10779, %v10781
      %10820 = vrot.lane.b32.xlu0 %v10696, 96
      %v10821 = vpop.permute.xlu0 %10820
      %10822 = vrot.lane.b32.xlu0 %v10697, 96
      %v10823 = vpop.permute.xlu0 %10822
      %10824 = vrot.lane.b32.xlu0 %v10698, 96
      %v10825 = vpop.permute.xlu0 %10824
      %10826 = vrot.lane.b32.xlu0 %v10699, 96
      %v10827 = vpop.permute.xlu0 %10826
      %10828 = vrot.lane.b32.xlu0 %v10700, 96
      %v10829 = vpop.permute.xlu0 %10828
      %10830 = vrot.lane.b32.xlu0 %v10701, 96
      %v10831 = vpop.permute.xlu0 %10830
      %10832 = vrot.lane.b32.xlu0 %v10702, 96
      %v10833 = vpop.permute.xlu0 %10832
      %10834 = vrot.lane.b32.xlu0 %v10703, 96
      %v10835 = vpop.permute.xlu0 %10834
      %10836 = vrot.lane.b32.xlu0 %v10704, 96
      %v10837 = vpop.permute.xlu0 %10836
      %10838 = vrot.lane.b32.xlu0 %v10705, 96
      %v10839 = vpop.permute.xlu0 %10838
      %10840 = vrot.lane.b32.xlu0 %v10706, 96
      %v10841 = vpop.permute.xlu0 %10840
      %10842 = vrot.lane.b32.xlu0 %v10707, 96
      %v10843 = vpop.permute.xlu0 %10842
      %10844 = vrot.lane.b32.xlu0 %v10708, 96
      %v10845 = vpop.permute.xlu0 %10844
      %10846 = vrot.lane.b32.xlu0 %v10709, 96
      %v10847 = vpop.permute.xlu0 %10846
      %10848 = vrot.lane.b32.xlu0 %v10710, 96
      %v10849 = vpop.permute.xlu0 %10848
      %10850 = vrot.lane.b32.xlu0 %v10711, 96
      %v10851 = vpop.permute.xlu0 %10850
      %10852 = vrot.lane.b32.xlu0 %v10712, 96
      %v10853 = vpop.permute.xlu0 %10852
      %10854 = vrot.lane.b32.xlu0 %v10713, 96
      %v10855 = vpop.permute.xlu0 %10854
      %10856 = vrot.lane.b32.xlu0 %v10740, 96
      %v10857 = vpop.permute.xlu0 %10856
      %10858 = vrot.lane.b32.xlu0 %v10741, 96
      %v10859 = vpop.permute.xlu0 %10858
      %v10860 = vsel %vm749, %v10821, %v10823
      %v10861 = vsel %vm749, %v10823, %v10825
      %v10862 = vsel %vm749, %v10825, %v10827
      %v10863 = vsel %vm749, %v10827, %v10829
      %v10864 = vsel %vm749, %v10829, %v10831
      %v10865 = vsel %vm749, %v10831, %v10833
      %v10866 = vsel %vm749, %v10833, %v10835
      %v10867 = vsel %vm749, %v10835, %v10837
      %v10868 = vsel %vm749, %v10837, %v10839
      %v10869 = vsel %vm749, %v10839, %v10841
      %v10870 = vsel %vm749, %v10841, %v10843
      %v10871 = vsel %vm749, %v10843, %v10845
      %v10872 = vsel %vm749, %v10845, %v10847
      %v10873 = vsel %vm749, %v10847, %v10849
      %v10874 = vsel %vm749, %v10849, %v10851
      %v10875 = vsel %vm749, %v10851, %v10853
      %v10876 = vsel %vm749, %v10853, %v10855
      %v10877 = vsel %vm749, %v10855, %v10857
      %v10878 = vsel %vm749, %v10857, %v10859
      %10898 = vrot.lane.b32.xlu0 %v10696, 80
      %v10899 = vpop.permute.xlu0 %10898
      %10900 = vrot.lane.b32.xlu0 %v10697, 80
      %v10901 = vpop.permute.xlu0 %10900
      %10902 = vrot.lane.b32.xlu0 %v10698, 80
      %v10903 = vpop.permute.xlu0 %10902
      %10904 = vrot.lane.b32.xlu0 %v10699, 80
      %v10905 = vpop.permute.xlu0 %10904
      %10906 = vrot.lane.b32.xlu0 %v10700, 80
      %v10907 = vpop.permute.xlu0 %10906
      %10908 = vrot.lane.b32.xlu0 %v10701, 80
      %v10909 = vpop.permute.xlu0 %10908
      %10910 = vrot.lane.b32.xlu0 %v10702, 80
      %v10911 = vpop.permute.xlu0 %10910
      %10912 = vrot.lane.b32.xlu0 %v10703, 80
      %v10913 = vpop.permute.xlu0 %10912
      %10914 = vrot.lane.b32.xlu0 %v10704, 80
      %v10915 = vpop.permute.xlu0 %10914
      %10916 = vrot.lane.b32.xlu0 %v10705, 80
      %v10917 = vpop.permute.xlu0 %10916
      %10918 = vrot.lane.b32.xlu0 %v10706, 80
      %v10919 = vpop.permute.xlu0 %10918
      %10920 = vrot.lane.b32.xlu0 %v10707, 80
      %v10921 = vpop.permute.xlu0 %10920
      %10922 = vrot.lane.b32.xlu0 %v10708, 80
      %v10923 = vpop.permute.xlu0 %10922
      %10924 = vrot.lane.b32.xlu0 %v10709, 80
      %v10925 = vpop.permute.xlu0 %10924
      %10926 = vrot.lane.b32.xlu0 %v10710, 80
      %v10927 = vpop.permute.xlu0 %10926
      %10928 = vrot.lane.b32.xlu0 %v10711, 80
      %v10929 = vpop.permute.xlu0 %10928
      %10930 = vrot.lane.b32.xlu0 %v10712, 80
      %v10931 = vpop.permute.xlu0 %10930
      %10932 = vrot.lane.b32.xlu0 %v10713, 80
      %v10933 = vpop.permute.xlu0 %10932
      %10934 = vrot.lane.b32.xlu0 %v10740, 80
      %v10935 = vpop.permute.xlu0 %10934
      %10936 = vrot.lane.b32.xlu0 %v10741, 80
      %v10937 = vpop.permute.xlu0 %10936
      %v10938 = vsel %vm828, %v10899, %v10901
      %v10939 = vsel %vm828, %v10901, %v10903
      %v10940 = vsel %vm828, %v10903, %v10905
      %v10941 = vsel %vm828, %v10905, %v10907
      %v10942 = vsel %vm828, %v10907, %v10909
      %v10943 = vsel %vm828, %v10909, %v10911
      %v10944 = vsel %vm828, %v10911, %v10913
      %v10945 = vsel %vm828, %v10913, %v10915
      %v10946 = vsel %vm828, %v10915, %v10917
      %v10947 = vsel %vm828, %v10917, %v10919
      %v10948 = vsel %vm828, %v10919, %v10921
      %v10949 = vsel %vm828, %v10921, %v10923
      %v10950 = vsel %vm828, %v10923, %v10925
      %v10951 = vsel %vm828, %v10925, %v10927
      %v10952 = vsel %vm828, %v10927, %v10929
      %v10953 = vsel %vm828, %v10929, %v10931
      %v10954 = vsel %vm828, %v10931, %v10933
      %v10955 = vsel %vm828, %v10933, %v10935
      %v10956 = vsel %vm828, %v10935, %v10937
      %10976 = vrot.lane.b32.xlu0 %v10696, 64
      %v10977 = vpop.permute.xlu0 %10976
      %10978 = vrot.lane.b32.xlu0 %v10697, 64
      %v10979 = vpop.permute.xlu0 %10978
      %10980 = vrot.lane.b32.xlu0 %v10698, 64
      %v10981 = vpop.permute.xlu0 %10980
      %10982 = vrot.lane.b32.xlu0 %v10699, 64
      %v10983 = vpop.permute.xlu0 %10982
      %10984 = vrot.lane.b32.xlu0 %v10700, 64
      %v10985 = vpop.permute.xlu0 %10984
      %10986 = vrot.lane.b32.xlu0 %v10701, 64
      %v10987 = vpop.permute.xlu0 %10986
      %10988 = vrot.lane.b32.xlu0 %v10702, 64
      %v10989 = vpop.permute.xlu0 %10988
      %10990 = vrot.lane.b32.xlu0 %v10703, 64
      %v10991 = vpop.permute.xlu0 %10990
      %10992 = vrot.lane.b32.xlu0 %v10704, 64
      %v10993 = vpop.permute.xlu0 %10992
      %10994 = vrot.lane.b32.xlu0 %v10705, 64
      %v10995 = vpop.permute.xlu0 %10994
      %10996 = vrot.lane.b32.xlu0 %v10706, 64
      %v10997 = vpop.permute.xlu0 %10996
      %10998 = vrot.lane.b32.xlu0 %v10707, 64
      %v10999 = vpop.permute.xlu0 %10998
      %11000 = vrot.lane.b32.xlu0 %v10708, 64
      %v11001 = vpop.permute.xlu0 %11000
      %11002 = vrot.lane.b32.xlu0 %v10709, 64
      %v11003 = vpop.permute.xlu0 %11002
      %11004 = vrot.lane.b32.xlu0 %v10710, 64
      %v11005 = vpop.permute.xlu0 %11004
      %11006 = vrot.lane.b32.xlu0 %v10711, 64
      %v11007 = vpop.permute.xlu0 %11006
      %11008 = vrot.lane.b32.xlu0 %v10712, 64
      %v11009 = vpop.permute.xlu0 %11008
      %11010 = vrot.lane.b32.xlu0 %v10713, 64
      %v11011 = vpop.permute.xlu0 %11010
      %11012 = vrot.lane.b32.xlu0 %v10740, 64
      %v11013 = vpop.permute.xlu0 %11012
      %11014 = vrot.lane.b32.xlu0 %v10741, 64
      %v11015 = vpop.permute.xlu0 %11014
      %v11016 = vsel %vm907, %v10977, %v10979
      %v11017 = vsel %vm907, %v10979, %v10981
      %v11018 = vsel %vm907, %v10981, %v10983
      %v11019 = vsel %vm907, %v10983, %v10985
      %v11020 = vsel %vm907, %v10985, %v10987
      %v11021 = vsel %vm907, %v10987, %v10989
      %v11022 = vsel %vm907, %v10989, %v10991
      %v11023 = vsel %vm907, %v10991, %v10993
      %v11024 = vsel %vm907, %v10993, %v10995
      %v11025 = vsel %vm907, %v10995, %v10997
      %v11026 = vsel %vm907, %v10997, %v10999
      %v11027 = vsel %vm907, %v10999, %v11001
      %v11028 = vsel %vm907, %v11001, %v11003
      %v11029 = vsel %vm907, %v11003, %v11005
      %v11030 = vsel %vm907, %v11005, %v11007
      %v11031 = vsel %vm907, %v11007, %v11009
      %v11032 = vsel %vm907, %v11009, %v11011
      %v11033 = vsel %vm907, %v11011, %v11013
      %v11034 = vsel %vm907, %v11013, %v11015
      %v11358 = vunpack.c.l.b16 %v9872
      %v11359 = vunpack.c.l.b16 %v9873
      %v11360 = vunpack.c.l.b16 %v9874
      %v11361 = vunpack.c.l.b16 %v9875
      %v11362 = vunpack.c.l.b16 %v9876
      %v11363 = vunpack.c.l.b16 %v9877
      %v11364 = vunpack.c.l.b16 %v9878
      %v11365 = vunpack.c.l.b16 %v9879
      %v11366 = vunpack.c.l.b16 %v9880
      %v11367 = vunpack.c.l.b16 %v9881
      %v11368 = vunpack.c.l.b16 %v9882
      %v11369 = vunpack.c.l.b16 %v9883
      %v11370 = vunpack.c.l.b16 %v9884
      %v11371 = vunpack.c.l.b16 %v9885
      %v11372 = vunpack.c.l.b16 %v9886
      %v11373 = vunpack.c.l.b16 %v9887
      %v11374 = vunpack.c.l.b16 %v9888
      %v11375 = vunpack.c.l.b16 %v9889
      %v11376 = vunpack.c.l.b16 %v9890
      %v11377 = vunpack.c.l.b16 %v9891
      %v11378 = vunpack.c.l.b16 %v9892
      %v11379 = vunpack.c.l.b16 %v9893
      %v11380 = vunpack.c.l.b16 %v9894
      %v11381 = vunpack.c.l.b16 %v9895
      %v11382 = vunpack.c.l.b16 %v9896
      %v11383 = vunpack.c.l.b16 %v9897
      %v11384 = vunpack.c.l.b16 %v9898
      %v11385 = vunpack.c.l.b16 %v9899
      %v11386 = vunpack.c.l.b16 %v9900
      %v11387 = vunpack.c.l.b16 %v9901
      %v11388 = vunpack.c.l.b16 %v9902
      %v11389 = vunpack.c.l.b16 %v9903
      %v11390 = vunpack.c.l.b16 %v9904
      %v11391 = vunpack.c.l.b16 %v9905
      %v11392 = vunpack.c.l.b16 %v9906
      %v11393 = vunpack.c.l.b16 %v9907
      %v11394 = vunpack.c.l.b16 %v9908
      %v11395 = vunpack.c.l.b16 %v9909
      %v11396 = vunpack.c.l.b16 %v9910
      %v11397 = vunpack.c.l.b16 %v9911
      %v11398 = vunpack.c.l.b16 %v9912
      %v11399 = vunpack.c.l.b16 %v9913
      %v11400 = vunpack.c.l.b16 %v9914
      %v11401 = vunpack.c.l.b16 %v9915
      %v11402 = vunpack.c.l.b16 %v9916
      %v11403 = vunpack.c.l.b16 %v9917
      %v11404 = vunpack.c.l.b16 %v9918
      %v11405 = vunpack.c.l.b16 %v9919
      %v11406 = vunpack.c.l.b16 %v9920
      %v11407 = vunpack.c.l.b16 %v9921
      %v11408 = vunpack.c.l.b16 %v9922
      %v11409 = vunpack.c.l.b16 %v9923
      %v11410 = vunpack.c.l.b16 %v9924
      %v11411 = vunpack.c.l.b16 %v9925
      %v11412 = vunpack.c.l.b16 %v9926
      %v11413 = vunpack.c.l.b16 %v9927
      %v11414 = vunpack.c.l.b16 %v9928
      %v11415 = vunpack.c.l.b16 %v9929
      %v11416 = vunpack.c.l.b16 %v9930
      %v11417 = vunpack.c.l.b16 %v9931
      %v11418 = vunpack.c.l.b16 %v9932
      %v11419 = vunpack.c.l.b16 %v9933
      %v11420 = vunpack.c.l.b16 %v9934
      %v11421 = vunpack.c.l.b16 %v9935
      %v11422 = vunpack.c.l.b16 %v9936
      %v11423 = vunpack.c.l.b16 %v9937
      %v11424 = vunpack.c.l.b16 %v9938
      %v11425 = vunpack.c.l.b16 %v9939
      %v11426 = vunpack.c.l.b16 %v9940
      %v11427 = vunpack.c.l.b16 %v9941
      %v11428 = vunpack.c.l.b16 %v9942
      %v11429 = vunpack.c.l.b16 %v9943
      %v11430 = vunpack.c.l.b16 %v9944
      %v11431 = vunpack.c.l.b16 %v9945
      %v11432 = vunpack.c.l.b16 %v9946
      %v11433 = vunpack.c.l.b16 %v9947
      %v11434 = vunpack.c.l.b16 %v9948
      %v11435 = vunpack.c.l.b16 %v9949
      %v11436 = vunpack.c.l.b16 %v9950
      %v11437 = vunpack.c.l.b16 %v9951
      %v11438 = vunpack.c.l.b16 %v9952
      %v11439 = vunpack.c.l.b16 %v9953
      %v11440 = vunpack.c.l.b16 %v9954
      %v11441 = vunpack.c.l.b16 %v9955
      %v11442 = vunpack.c.l.b16 %v9956
      %v11443 = vunpack.c.l.b16 %v9957
      %v11444 = vunpack.c.l.b16 %v9958
      %v11445 = vunpack.c.l.b16 %v9959
      %v11446 = vunpack.c.l.b16 %v9960
      %v11447 = vunpack.c.l.b16 %v9961
      %v11448 = vunpack.c.l.b16 %v9962
      %v11449 = vunpack.c.l.b16 %v9963
      %v11450 = vunpack.c.l.b16 %v9964
      %v11451 = vunpack.c.l.b16 %v9965
      %v11452 = vunpack.c.l.b16 %v9966
      %v11453 = vunpack.c.l.b16 %v9967
      %v11454 = vunpack.c.l.b16 %v9968
      %v11455 = vunpack.c.l.b16 %v9969
      %v11456 = vunpack.c.l.b16 %v9970
      %v11457 = vunpack.c.l.b16 %v9971
      %v11458 = vunpack.c.l.b16 %v9972
      %v11459 = vunpack.c.l.b16 %v9973
      %v11460 = vunpack.c.l.b16 %v9974
      %v11461 = vunpack.c.l.b16 %v9975
      %v11462 = vunpack.c.l.b16 %v9976
      %v11463 = vunpack.c.l.b16 %v9977
      %v11464 = vunpack.c.l.b16 %v9978
      %v11465 = vunpack.c.l.b16 %v9979
      %v11466 = vunpack.c.l.b16 %v9980
      %v11467 = vunpack.c.l.b16 %v9981
      %v11468 = vunpack.c.l.b16 %v9982
      %v11469 = vunpack.c.l.b16 %v9983
      %v11470 = vunpack.c.l.b16 %v9984
      %v11471 = vunpack.c.l.b16 %v9985
      %v11472 = vunpack.c.l.b16 %v9986
      %v11473 = vunpack.c.l.b16 %v9987
      %v11474 = vunpack.c.l.b16 %v9988
      %v11475 = vunpack.c.l.b16 %v9989
      %v11476 = vunpack.c.l.b16 %v9990
      %v11477 = vunpack.c.l.b16 %v9991
      %v11478 = vunpack.c.l.b16 %v9992
      %v11479 = vunpack.c.l.b16 %v9993
      %v11480 = vunpack.c.l.b16 %v9994
      %v11481 = vunpack.c.l.b16 %v9995
      %v11482 = vunpack.c.l.b16 %v9996
      %v11483 = vunpack.c.l.b16 %v9997
      %v11484 = vunpack.c.l.b16 %v9998
      %v11485 = vunpack.c.l.b16 %v9999
      %v11486 = vunpack.c.l.b16 %v10000
      %v11487 = vunpack.c.l.b16 %v10001
      %v11488 = vunpack.c.l.b16 %v10002
      %v11489 = vunpack.c.l.b16 %v10003
      %v11490 = vunpack.c.l.b16 %v10004
      %v11491 = vunpack.c.l.b16 %v10005
      %v11492 = vunpack.c.l.b16 %v10006
      %v11493 = vunpack.c.l.b16 %v10007
      %v11494 = vunpack.c.l.b16 %v10008
      %v11495 = vunpack.c.l.b16 %v10009
      %v11496 = vunpack.c.l.b16 %v10010
      %v11497 = vunpack.c.l.b16 %v10011
      %v11498 = vunpack.c.l.b16 %v10012
      %v11499 = vunpack.c.l.b16 %v10013
      %v11500 = vunpack.c.l.b16 %v10014
      %v11501 = vunpack.c.l.b16 %v10015
      %v11502 = vunpack.c.l.b16 %v10016
      %v11503 = vunpack.c.l.b16 %v10017
      %v11504 = vunpack.c.l.b16 %v10018
      %v11505 = vunpack.c.l.b16 %v10019
      %v11506 = vunpack.c.l.b16 %v10020
      %v11507 = vunpack.c.l.b16 %v10021
      %v11508 = vunpack.c.l.b16 %v10022
      %v11509 = vunpack.c.l.b16 %v10023
      %v11510 = vunpack.c.l.b16 %v10024
      %v11511 = vunpack.c.l.b16 %v10025
      %v11512 = vunpack.c.l.b16 %v10026
      %v11513 = vunpack.c.l.b16 %v10027
      %v11514 = vunpack.c.l.b16 %v10028
      %v11515 = vunpack.c.l.b16 %v10029
      %v11516 = vunpack.c.l.b16 %v10030
      %v11517 = vunpack.c.l.b16 %v10031
      %v11518 = vunpack.c.l.b16 %v10032
      %v11519 = vunpack.c.l.b16 %v10033
      %v11520 = vunpack.c.l.b16 %v10034
      %v11521 = vunpack.c.l.b16 %v10035
      %v11522 = vunpack.c.l.b16 %v10036
      %v11523 = vunpack.c.l.b16 %v10037
      %v11524 = vunpack.c.l.b16 %v10038
      %v11525 = vunpack.c.l.b16 %v10039
      %v11526 = vunpack.c.l.b16 %v10040
      %v11527 = vunpack.c.l.b16 %v10041
      %v11528 = vunpack.c.l.b16 %v10042
      %v11529 = vunpack.c.l.b16 %v10043
      %v11530 = vunpack.c.l.b16 %v10044
      %v11531 = vunpack.c.l.b16 %v10045
      %v11532 = vunpack.c.l.b16 %v10046
      %v11533 = vunpack.c.l.b16 %v10047
      %v11534 = vunpack.c.l.b16 %v10048
      %v11535 = vunpack.c.l.b16 %v10049
      %v11536 = vunpack.c.l.b16 %v10050
      %v11537 = vunpack.c.l.b16 %v10051
      %v11538 = vunpack.c.l.b16 %v10052
      %v11539 = vunpack.c.l.b16 %v10053
      %v11540 = vunpack.c.l.b16 %v10054
      %v11541 = vunpack.c.l.b16 %v10055
      %v11542 = vunpack.c.l.b16 %v10056
      %v11543 = vunpack.c.l.b16 %v10057
      %v11544 = vunpack.c.l.b16 %v10058
      %v11545 = vunpack.c.l.b16 %v10059
      %v11546 = vunpack.c.l.b16 %v10060
      %v11547 = vunpack.c.l.b16 %v10061
      %v11548 = vunpack.c.l.b16 %v10062
      %v11549 = vunpack.c.l.b16 %v10063
      %v11550 = vunpack.c.l.b16 %v10064
      %v11551 = vunpack.c.l.b16 %v10065
      %v11552 = vunpack.c.l.b16 %v10066
      %v11553 = vunpack.c.l.b16 %v10067
      %v11554 = vunpack.c.l.b16 %v10068
      %v11555 = vunpack.c.l.b16 %v10069
      %v11556 = vunpack.c.l.b16 %v10070
      %v11557 = vunpack.c.l.b16 %v10071
      %v11558 = vunpack.c.l.b16 %v10072
      %v11559 = vunpack.c.l.b16 %v10073
      %v11560 = vunpack.c.l.b16 %v10074
      %v11561 = vunpack.c.l.b16 %v10075
      %v11562 = vunpack.c.l.b16 %v10076
      %v11563 = vunpack.c.l.b16 %v10077
      %v11564 = vunpack.c.l.b16 %v10078
      %v11565 = vunpack.c.l.b16 %v10079
      %v11566 = vunpack.c.l.b16 %v10080
      %v11567 = vunpack.c.l.b16 %v10081
      %v11568 = vunpack.c.l.b16 %v10082
      %v11569 = vunpack.c.l.b16 %v10083
      %v11570 = vunpack.c.l.b16 %v10084
      %v11571 = vunpack.c.l.b16 %v10085
      %v11572 = vunpack.c.l.b16 %v10086
      %v11573 = vunpack.c.l.b16 %v10087
      %v11574 = vunpack.c.l.b16 %v10088
      %v11575 = vunpack.c.l.b16 %v10089
      %v11576 = vunpack.c.l.b16 %v10090
      %v11577 = vunpack.c.l.b16 %v10091
      %v11578 = vunpack.c.l.b16 %v10092
      %v11579 = vunpack.c.l.b16 %v10093
      %v11580 = vunpack.c.l.b16 %v10094
      %v11581 = vunpack.c.l.b16 %v10095
      %v11582 = vunpack.c.l.b16 %v10096
      %v11583 = vunpack.c.l.b16 %v10097
      %v11584 = vunpack.c.l.b16 %v10098
      %v11585 = vunpack.c.l.b16 %v10099
      %v11586 = vunpack.c.l.b16 %v10100
      %v11587 = vunpack.c.l.b16 %v10101
      %v11588 = vunpack.c.l.b16 %v10102
      %v11589 = vunpack.c.l.b16 %v10103
      %v11590 = vunpack.c.l.b16 %v10104
      %v11591 = vunpack.c.l.b16 %v10105
      %v11592 = vunpack.c.l.b16 %v10106
      %v11593 = vunpack.c.l.b16 %v10107
      %v11594 = vunpack.c.l.b16 %v10108
      %v11595 = vunpack.c.l.b16 %v10109
      %v11596 = vunpack.c.l.b16 %v10110
      %v11597 = vunpack.c.l.b16 %v10111
      %v11598 = vunpack.c.l.b16 %v10112
      %v11599 = vunpack.c.l.b16 %v10113
      %v11600 = vunpack.c.l.b16 %v10114
      %v11601 = vunpack.c.l.b16 %v10115
      %v11602 = vunpack.c.l.b16 %v10116
      %v11603 = vunpack.c.l.b16 %v10117
      %v11604 = vunpack.c.l.b16 %v10118
      %v11605 = vunpack.c.l.b16 %v10119
      %v11606 = vunpack.c.l.b16 %v10120
      %v11607 = vunpack.c.l.b16 %v10121
      %v11608 = vunpack.c.l.b16 %v10122
      %v11609 = vunpack.c.l.b16 %v10123
      %v11610 = vunpack.c.l.b16 %v10124
      %v11611 = vunpack.c.l.b16 %v10125
      %v11612 = vunpack.c.l.b16 %v10126
      %v11613 = vunpack.c.l.b16 %v10127
      %v11614 = vunpack.c.l.b16 %v10128
      %v11615 = vunpack.c.l.b16 %v10129
      %v11616 = vunpack.c.l.b16 %v10130
      %v11617 = vunpack.c.l.b16 %v10131
      %v11618 = vunpack.c.l.b16 %v10132
      %v11619 = vunpack.c.l.b16 %v10133
      %v11620 = vunpack.c.l.b16 %v10134
      %v11621 = vunpack.c.l.b16 %v10135
      %v11622 = vunpack.c.l.b16 %v10136
      %v11623 = vunpack.c.l.b16 %v10137
      %v11624 = vunpack.c.l.b16 %v10138
      %v11625 = vunpack.c.l.b16 %v10139
      %v11626 = vunpack.c.l.b16 %v10140
      %v11627 = vunpack.c.l.b16 %v10141
      %v11628 = vunpack.c.l.b16 %v10142
      %v11629 = vunpack.c.l.b16 %v10143
      %v11630 = vunpack.c.l.b16 %v10144
      %v11631 = vunpack.c.l.b16 %v10145
      %v11632 = vunpack.c.l.b16 %v10146
      %v11633 = vunpack.c.l.b16 %v10147
      %v11634 = vunpack.c.l.b16 %v10148
      %v11635 = vunpack.c.l.b16 %v10149
      %v11636 = vunpack.c.l.b16 %v10150
      %v11637 = vunpack.c.l.b16 %v10151
      %v11638 = vunpack.c.l.b16 %v10152
      %v11639 = vunpack.c.l.b16 %v10153
      %v11640 = vunpack.c.l.b16 %v10154
      %v11641 = vunpack.c.l.b16 %v10155
      %v11642 = vunpack.c.l.b16 %v10156
      %v11643 = vunpack.c.l.b16 %v10157
      %v11644 = vunpack.c.l.b16 %v10158
      %v11645 = vunpack.c.l.b16 %v10159
      %v11646 = vunpack.c.l.b16 %v10160
      %v11647 = vunpack.c.l.b16 %v10161
      %v11648 = vunpack.c.l.b16 %v10162
      %v11649 = vunpack.c.l.b16 %v10163
      %v11650 = vunpack.c.l.b16 %v10164
      %v11651 = vunpack.c.l.b16 %v10165
      %v11652 = vunpack.c.l.b16 %v10166
      %v11653 = vunpack.c.l.b16 %v10167
      %v11654 = vunpack.c.l.b16 %v10168
      %v11655 = vunpack.c.l.b16 %v10169
      %v11656 = vunpack.c.l.b16 %v10170
      %v11657 = vunpack.c.l.b16 %v10171
      %v11658 = vunpack.c.l.b16 %v10172
      %v11659 = vunpack.c.l.b16 %v10173
      %v11660 = vunpack.c.l.b16 %v10174
      %v11661 = vunpack.c.l.b16 %v10175
      %v11662 = vpack.c.b16 %v11359, %v11358
      %v11663 = vpack.c.b16 %v11361, %v11360
      %v11664 = vpack.c.b16 %v11363, %v11362
      %v11665 = vpack.c.b16 %v11365, %v11364
      %v11666 = vpack.c.b16 %v11367, %v11366
      %v11667 = vpack.c.b16 %v11369, %v11368
      %v11668 = vpack.c.b16 %v11371, %v11370
      %v11669 = vpack.c.b16 %v11373, %v11372
      %v11670 = vpack.c.b16 %v11375, %v11374
      %v11671 = vpack.c.b16 %v11377, %v11376
      %v11672 = vpack.c.b16 %v11379, %v11378
      %v11673 = vpack.c.b16 %v11381, %v11380
      %v11674 = vpack.c.b16 %v11383, %v11382
      %v11675 = vpack.c.b16 %v11385, %v11384
      %v11676 = vpack.c.b16 %v11387, %v11386
      %v11677 = vpack.c.b16 %v11389, %v11388
      %v11678 = vpack.c.b16 %v11391, %v11390
      %v11679 = vpack.c.b16 %v11393, %v11392
      %v11680 = vpack.c.b16 %v11395, %v11394
      %v11681 = vpack.c.b16 %v11397, %v11396
      %v11682 = vpack.c.b16 %v11399, %v11398
      %v11683 = vpack.c.b16 %v11401, %v11400
      %v11684 = vpack.c.b16 %v11403, %v11402
      %v11685 = vpack.c.b16 %v11405, %v11404
      %v11686 = vpack.c.b16 %v11407, %v11406
      %v11687 = vpack.c.b16 %v11409, %v11408
      %v11688 = vpack.c.b16 %v11411, %v11410
      %v11689 = vpack.c.b16 %v11413, %v11412
      %v11690 = vpack.c.b16 %v11415, %v11414
      %v11691 = vpack.c.b16 %v11417, %v11416
      %v11692 = vpack.c.b16 %v11419, %v11418
      %v11693 = vpack.c.b16 %v11421, %v11420
      %v11694 = vpack.c.b16 %v11423, %v11422
      %v11695 = vpack.c.b16 %v11425, %v11424
      %v11696 = vpack.c.b16 %v11427, %v11426
      %v11697 = vpack.c.b16 %v11429, %v11428
      %v11698 = vpack.c.b16 %v11431, %v11430
      %v11699 = vpack.c.b16 %v11433, %v11432
      %v11700 = vpack.c.b16 %v11435, %v11434
      %v11701 = vpack.c.b16 %v11437, %v11436
      %v11702 = vpack.c.b16 %v11439, %v11438
      %v11703 = vpack.c.b16 %v11441, %v11440
      %v11704 = vpack.c.b16 %v11443, %v11442
      %v11705 = vpack.c.b16 %v11445, %v11444
      %v11706 = vpack.c.b16 %v11447, %v11446
      %v11707 = vpack.c.b16 %v11449, %v11448
      %v11708 = vpack.c.b16 %v11451, %v11450
      %v11709 = vpack.c.b16 %v11453, %v11452
      %v11710 = vpack.c.b16 %v11455, %v11454
      %v11711 = vpack.c.b16 %v11457, %v11456
      %v11712 = vpack.c.b16 %v11459, %v11458
      %v11713 = vpack.c.b16 %v11461, %v11460
      %v11714 = vpack.c.b16 %v11463, %v11462
      %v11715 = vpack.c.b16 %v11465, %v11464
      %v11716 = vpack.c.b16 %v11467, %v11466
      %v11717 = vpack.c.b16 %v11469, %v11468
      %v11718 = vpack.c.b16 %v11471, %v11470
      %v11719 = vpack.c.b16 %v11473, %v11472
      %v11720 = vpack.c.b16 %v11475, %v11474
      %v11721 = vpack.c.b16 %v11477, %v11476
      %v11722 = vpack.c.b16 %v11479, %v11478
      %v11723 = vpack.c.b16 %v11481, %v11480
      %v11724 = vpack.c.b16 %v11483, %v11482
      %v11725 = vpack.c.b16 %v11485, %v11484
      %v11726 = vpack.c.b16 %v11487, %v11486
      %v11727 = vpack.c.b16 %v11489, %v11488
      %v11728 = vpack.c.b16 %v11491, %v11490
      %v11729 = vpack.c.b16 %v11493, %v11492
      %v11730 = vpack.c.b16 %v11495, %v11494
      %v11731 = vpack.c.b16 %v11497, %v11496
      %v11732 = vpack.c.b16 %v11499, %v11498
      %v11733 = vpack.c.b16 %v11501, %v11500
      %v11734 = vpack.c.b16 %v11503, %v11502
      %v11735 = vpack.c.b16 %v11505, %v11504
      %v11736 = vpack.c.b16 %v11507, %v11506
      %v11737 = vpack.c.b16 %v11509, %v11508
      %v11738 = vpack.c.b16 %v11511, %v11510
      %v11739 = vpack.c.b16 %v11513, %v11512
      %v11740 = vpack.c.b16 %v11515, %v11514
      %v11741 = vpack.c.b16 %v11517, %v11516
      %v11742 = vpack.c.b16 %v11519, %v11518
      %v11743 = vpack.c.b16 %v11521, %v11520
      %v11744 = vpack.c.b16 %v11523, %v11522
      %v11745 = vpack.c.b16 %v11525, %v11524
      %v11746 = vpack.c.b16 %v11527, %v11526
      %v11747 = vpack.c.b16 %v11529, %v11528
      %v11748 = vpack.c.b16 %v11531, %v11530
      %v11749 = vpack.c.b16 %v11533, %v11532
      %v11750 = vpack.c.b16 %v11535, %v11534
      %v11751 = vpack.c.b16 %v11537, %v11536
      %v11752 = vpack.c.b16 %v11539, %v11538
      %v11753 = vpack.c.b16 %v11541, %v11540
      %v11754 = vpack.c.b16 %v11543, %v11542
      %v11755 = vpack.c.b16 %v11545, %v11544
      %v11756 = vpack.c.b16 %v11547, %v11546
      %v11757 = vpack.c.b16 %v11549, %v11548
      %v11758 = vpack.c.b16 %v11551, %v11550
      %v11759 = vpack.c.b16 %v11553, %v11552
      %v11760 = vpack.c.b16 %v11555, %v11554
      %v11761 = vpack.c.b16 %v11557, %v11556
      %v11762 = vpack.c.b16 %v11559, %v11558
      %v11763 = vpack.c.b16 %v11561, %v11560
      %v11764 = vpack.c.b16 %v11563, %v11562
      %v11765 = vpack.c.b16 %v11565, %v11564
      %v11766 = vpack.c.b16 %v11567, %v11566
      %v11767 = vpack.c.b16 %v11569, %v11568
      %v11768 = vpack.c.b16 %v11571, %v11570
      %v11769 = vpack.c.b16 %v11573, %v11572
      %v11770 = vpack.c.b16 %v11575, %v11574
      %v11771 = vpack.c.b16 %v11577, %v11576
      %v11772 = vpack.c.b16 %v11579, %v11578
      %v11773 = vpack.c.b16 %v11581, %v11580
      %v11774 = vpack.c.b16 %v11583, %v11582
      %v11775 = vpack.c.b16 %v11585, %v11584
      %v11776 = vpack.c.b16 %v11587, %v11586
      %v11777 = vpack.c.b16 %v11589, %v11588
      %v11778 = vpack.c.b16 %v11591, %v11590
      %v11779 = vpack.c.b16 %v11593, %v11592
      %v11780 = vpack.c.b16 %v11595, %v11594
      %v11781 = vpack.c.b16 %v11597, %v11596
      %v11782 = vpack.c.b16 %v11599, %v11598
      %v11783 = vpack.c.b16 %v11601, %v11600
      %v11784 = vpack.c.b16 %v11603, %v11602
      %v11785 = vpack.c.b16 %v11605, %v11604
      %v11786 = vpack.c.b16 %v11607, %v11606
      %v11787 = vpack.c.b16 %v11609, %v11608
      %v11788 = vpack.c.b16 %v11611, %v11610
      %v11789 = vpack.c.b16 %v11613, %v11612
      %v11790 = vpack.c.b16 %v11615, %v11614
      %v11791 = vpack.c.b16 %v11617, %v11616
      %v11792 = vpack.c.b16 %v11619, %v11618
      %v11793 = vpack.c.b16 %v11621, %v11620
      %v11794 = vpack.c.b16 %v11623, %v11622
      %v11795 = vpack.c.b16 %v11625, %v11624
      %v11796 = vpack.c.b16 %v11627, %v11626
      %v11797 = vpack.c.b16 %v11629, %v11628
      %v11798 = vpack.c.b16 %v11631, %v11630
      %v11799 = vpack.c.b16 %v11633, %v11632
      %v11800 = vpack.c.b16 %v11635, %v11634
      %v11801 = vpack.c.b16 %v11637, %v11636
      %v11802 = vpack.c.b16 %v11639, %v11638
      %v11803 = vpack.c.b16 %v11641, %v11640
      %v11804 = vpack.c.b16 %v11643, %v11642
      %v11805 = vpack.c.b16 %v11645, %v11644
      %v11806 = vpack.c.b16 %v11647, %v11646
      %v11807 = vpack.c.b16 %v11649, %v11648
      %v11808 = vpack.c.b16 %v11651, %v11650
      %v11809 = vpack.c.b16 %v11653, %v11652
      %v11810 = vpack.c.b16 %v11655, %v11654
      %v11811 = vpack.c.b16 %v11657, %v11656
      %v11812 = vpack.c.b16 %v11659, %v11658
      %v11813 = vpack.c.b16 %v11661, %v11660
      %11966 = vmatprep.subr.bf16.mxu0 0
      %11967 = vmatpush1.bf16.msra.mxu0 %v11662
      %11968 = vmatprep.subr.bf16.mxu0 0
      %11969 = vmatpush1.bf16.msra.mxu0 %v11663
      %11970 = vmatprep.subr.bf16.mxu0 0
      %11971 = vmatpush1.bf16.msra.mxu0 %v11664
      %11972 = vmatprep.subr.bf16.mxu0 0
      %11973 = vmatpush1.bf16.msra.mxu0 %v11665
      %11974 = vmatprep.subr.bf16.mxu0 0
      %11975 = vmatpush1.bf16.msra.mxu0 %v11666
      %11976 = vmatprep.subr.bf16.mxu0 0
      %11977 = vmatpush1.bf16.msra.mxu0 %v11667
      %11978 = vmatprep.subr.bf16.mxu0 0
      %11979 = vmatpush1.bf16.msra.mxu0 %v11668
      %11980 = vmatprep.subr.bf16.mxu0 0
      %11981 = vmatpush1.bf16.msra.mxu0 %v11669
      %11982 = vmatprep.subr.bf16.mxu0 0
      %11983 = vmatpush1.bf16.msra.mxu0 %v11670
      %11984 = vmatprep.subr.bf16.mxu0 0
      %11985 = vmatpush1.bf16.msra.mxu0 %v11671
      %11986 = vmatprep.subr.bf16.mxu0 0
      %11987 = vmatpush1.bf16.msra.mxu0 %v11672
      %11988 = vmatprep.subr.bf16.mxu0 0
      %11989 = vmatpush1.bf16.msra.mxu0 %v11673
      %11990 = vmatprep.subr.bf16.mxu0 0
      %11991 = vmatpush1.bf16.msra.mxu0 %v11674
      %11992 = vmatprep.subr.bf16.mxu0 0
      %11993 = vmatpush1.bf16.msra.mxu0 %v11675
      %11994 = vmatprep.subr.bf16.mxu0 0
      %11995 = vmatpush1.bf16.msra.mxu0 %v11676
      %11996 = vmatprep.subr.bf16.mxu0 0
      %11997 = vmatpush1.bf16.msra.mxu0 %v11677
      %11998 = vmatprep.mubr.bf16.mxu0 %v10281
      %11999 = vmatmul.mubr.bf16.gmra.mrb[0].mxu0 %v10280
      %v12000 = vpop.f32.mrb[0].mxu0
      %v12001 = vadd.f32 0.0, %v12000
      %v12002 = vpop.f32.mrb[0].mxu0
      %v12003 = vpop.f32.mrb[0].mxu0
      %v12004 = vadd.f32 0.0, %v12003
      %v12005 = vpop.f32.mrb[0].mxu0
      %12006 = vmatprep.mubr.bf16.mxu0 %v10367
      %12007 = vmatmul.mubr.bf16.gmra.mrb[0].mxu0 %v10366
      %v12008 = vpop.f32.mrb[0].mxu0
      %v12009 = vadd.f32 0.0, %v12008
      %v12010 = vpop.f32.mrb[0].mxu0
      %v12011 = vpop.f32.mrb[0].mxu0
      %v12012 = vadd.f32 0.0, %v12011
      %v12013 = vpop.f32.mrb[0].mxu0
      %12014 = vmatprep.mubr.bf16.mxu0 %v10445
      %12015 = vmatmul.mubr.bf16.gmra.mrb[0].mxu0 %v10444
      %v12016 = vpop.f32.mrb[0].mxu0
      %v12017 = vadd.f32 0.0, %v12016
      %v12018 = vpop.f32.mrb[0].mxu0
      %v12019 = vpop.f32.mrb[0].mxu0
      %v12020 = vadd.f32 0.0, %v12019
      %v12021 = vpop.f32.mrb[0].mxu0
      %12022 = vmatprep.mubr.bf16.mxu0 %v10523
      %12023 = vmatmul.mubr.bf16.gmra.mrb[0].mxu0 %v10522
      %v12024 = vpop.f32.mrb[0].mxu0
      %v12025 = vadd.f32 0.0, %v12024
      %v12026 = vpop.f32.mrb[0].mxu0
      %v12027 = vpop.f32.mrb[0].mxu0
      %v12028 = vadd.f32 0.0, %v12027
      %v12029 = vpop.f32.mrb[0].mxu0
      %12030 = vmatprep.mubr.bf16.mxu0 %v10601
      %12031 = vmatmul.mubr.bf16.gmra.mrb[0].mxu0 %v10600
      %v12032 = vpop.f32.mrb[0].mxu0
      %v12033 = vadd.f32 0.0, %v12032
      %v12034 = vpop.f32.mrb[0].mxu0
      %v12035 = vpop.f32.mrb[0].mxu0
      %v12036 = vadd.f32 0.0, %v12035
      %v12037 = vpop.f32.mrb[0].mxu0
      %12038 = vmatprep.mubr.bf16.mxu0 %v10697
      %12039 = vmatmul.mubr.bf16.gmra.mrb[0].mxu0 %v10696
      %v12040 = vpop.f32.mrb[0].mxu0
      %v12041 = vadd.f32 0.0, %v12040
      %v12042 = vpop.f32.mrb[0].mxu0
      %v12043 = vpop.f32.mrb[0].mxu0
      %v12044 = vadd.f32 0.0, %v12043
      %v12045 = vpop.f32.mrb[0].mxu0
      %12046 = vmatprep.mubr.bf16.mxu0 %v10783
      %12047 = vmatmul.mubr.bf16.gmra.mrb[0].mxu0 %v10782
      %v12048 = vpop.f32.mrb[0].mxu0
      %v12049 = vadd.f32 0.0, %v12048
      %v12050 = vpop.f32.mrb[0].mxu0
      %v12051 = vpop.f32.mrb[0].mxu0
      %v12052 = vadd.f32 0.0, %v12051
      %v12053 = vpop.f32.mrb[0].mxu0
      %12054 = vmatprep.mubr.bf16.mxu0 %v10861
      %12055 = vmatmul.mubr.bf16.gmra.mrb[0].mxu0 %v10860
      %v12056 = vpop.f32.mrb[0].mxu0
      %v12057 = vadd.f32 0.0, %v12056
      %v12058 = vpop.f32.mrb[0].mxu0
      %v12059 = vpop.f32.mrb[0].mxu0
      %v12060 = vadd.f32 0.0, %v12059
      %v12061 = vpop.f32.mrb[0].mxu0
      %12062 = vmatprep.mubr.bf16.mxu0 %v10939
      %12063 = vmatmul.mubr.bf16.gmra.mrb[0].mxu0 %v10938
      %v12064 = vpop.f32.mrb[0].mxu0
      %v12065 = vadd.f32 0.0, %v12064
      %v12066 = vpop.f32.mrb[0].mxu0
      %v12067 = vpop.f32.mrb[0].mxu0
      %v12068 = vadd.f32 0.0, %v12067
      %v12069 = vpop.f32.mrb[0].mxu0
      %12070 = vmatprep.mubr.bf16.mxu0 %v11017
      %12071 = vmatmul.mubr.bf16.gmra.mrb[0].mxu0 %v11016
      %v12072 = vpop.f32.mrb[0].mxu0
      %v12073 = vadd.f32 0.0, %v12072
      %v12074 = vpop.f32.mrb[0].mxu0
      %v12075 = vpop.f32.mrb[0].mxu0
      %v12076 = vadd.f32 0.0, %v12075
      %v12077 = vpop.f32.mrb[0].mxu0
      %12078 = vdwg.mxu0
      %12079 = vmatprep.subr.bf16.mxu0 0
      %12080 = vmatpush1.bf16.msra.mxu0 %v11678
      %12081 = vmatprep.subr.bf16.mxu0 0
      %12082 = vmatpush1.bf16.msra.mxu0 %v11679
      %12083 = vmatprep.subr.bf16.mxu0 0
      %12084 = vmatpush1.bf16.msra.mxu0 %v11680
      %12085 = vmatprep.subr.bf16.mxu0 0
      %12086 = vmatpush1.bf16.msra.mxu0 %v11681
      %12087 = vmatprep.subr.bf16.mxu0 0
      %12088 = vmatpush1.bf16.msra.mxu0 %v11682
      %12089 = vmatprep.subr.bf16.mxu0 0
      %12090 = vmatpush1.bf16.msra.mxu0 %v11683
      %12091 = vmatprep.subr.bf16.mxu0 0
      %12092 = vmatpush1.bf16.msra.mxu0 %v11684
      %12093 = vmatprep.subr.bf16.mxu0 0
      %12094 = vmatpush1.bf16.msra.mxu0 %v11685
      %12095 = vmatprep.subr.bf16.mxu0 0
      %12096 = vmatpush1.bf16.msra.mxu0 %v11686
      %12097 = vmatprep.subr.bf16.mxu0 0
      %12098 = vmatpush1.bf16.msra.mxu0 %v11687
      %12099 = vmatprep.subr.bf16.mxu0 0
      %12100 = vmatpush1.bf16.msra.mxu0 %v11688
      %12101 = vmatprep.subr.bf16.mxu0 0
      %12102 = vmatpush1.bf16.msra.mxu0 %v11689
      %12103 = vmatprep.subr.bf16.mxu0 0
      %12104 = vmatpush1.bf16.msra.mxu0 %v11690
      %12105 = vmatprep.subr.bf16.mxu0 0
      %12106 = vmatpush1.bf16.msra.mxu0 %v11691
      %12107 = vmatprep.subr.bf16.mxu0 0
      %12108 = vmatpush1.bf16.msra.mxu0 %v11692
      %12109 = vmatprep.subr.bf16.mxu0 0
      %12110 = vmatpush1.bf16.msra.mxu0 %v11693
      %12111 = vmatprep.mubr.bf16.mxu0 %v10283
      %12112 = vmatmul.mubr.bf16.gmra.mrb[0].mxu0 %v10282
      %v12113 = vpop.f32.mrb[0].mxu0
      %v12114 = vadd.f32 %v12001, %v12113
      %v12115 = vpop.f32.mrb[0].mxu0
      %v12116 = vpop.f32.mrb[0].mxu0
      %v12117 = vadd.f32 %v12004, %v12116
      %v12118 = vpop.f32.mrb[0].mxu0
      %12119 = vmatprep.mubr.bf16.mxu0 %v10369
      %12120 = vmatmul.mubr.bf16.gmra.mrb[0].mxu0 %v10368
      %v12121 = vpop.f32.mrb[0].mxu0
      %v12122 = vadd.f32 %v12009, %v12121
      %v12123 = vpop.f32.mrb[0].mxu0
      %v12124 = vpop.f32.mrb[0].mxu0
      %v12125 = vadd.f32 %v12012, %v12124
      %v12126 = vpop.f32.mrb[0].mxu0
      %12127 = vmatprep.mubr.bf16.mxu0 %v10447
      %12128 = vmatmul.mubr.bf16.gmra.mrb[0].mxu0 %v10446
      %v12129 = vpop.f32.mrb[0].mxu0
      %v12130 = vadd.f32 %v12017, %v12129
      %v12131 = vpop.f32.mrb[0].mxu0
      %v12132 = vpop.f32.mrb[0].mxu0
      %v12133 = vadd.f32 %v12020, %v12132
      %v12134 = vpop.f32.mrb[0].mxu0
      %12135 = vmatprep.mubr.bf16.mxu0 %v10525
      %12136 = vmatmul.mubr.bf16.gmra.mrb[0].mxu0 %v10524
      %v12137 = vpop.f32.mrb[0].mxu0
      %v12138 = vadd.f32 %v12025, %v12137
      %v12139 = vpop.f32.mrb[0].mxu0
      %v12140 = vpop.f32.mrb[0].mxu0
      %v12141 = vadd.f32 %v12028, %v12140
      %v12142 = vpop.f32.mrb[0].mxu0
      %12143 = vmatprep.mubr.bf16.mxu0 %v10603
      %12144 = vmatmul.mubr.bf16.gmra.mrb[0].mxu0 %v10602
      %v12145 = vpop.f32.mrb[0].mxu0
      %v12146 = vadd.f32 %v12033, %v12145
      %v12147 = vpop.f32.mrb[0].mxu0
      %v12148 = vpop.f32.mrb[0].mxu0
      %v12149 = vadd.f32 %v12036, %v12148
      %v12150 = vpop.f32.mrb[0].mxu0
      %12151 = vmatprep.mubr.bf16.mxu0 %v10699
      %12152 = vmatmul.mubr.bf16.gmra.mrb[0].mxu0 %v10698
      %v12153 = vpop.f32.mrb[0].mxu0
      %v12154 = vadd.f32 %v12041, %v12153
      %v12155 = vpop.f32.mrb[0].mxu0
      %v12156 = vpop.f32.mrb[0].mxu0
      %v12157 = vadd.f32 %v12044, %v12156
      %v12158 = vpop.f32.mrb[0].mxu0
      %12159 = vmatprep.mubr.bf16.mxu0 %v10785
      %12160 = vmatmul.mubr.bf16.gmra.mrb[0].mxu0 %v10784
      %v12161 = vpop.f32.mrb[0].mxu0
      %v12162 = vadd.f32 %v12049, %v12161
      %v12163 = vpop.f32.mrb[0].mxu0
      %v12164 = vpop.f32.mrb[0].mxu0
      %v12165 = vadd.f32 %v12052, %v12164
      %v12166 = vpop.f32.mrb[0].mxu0
      %12167 = vmatprep.mubr.bf16.mxu0 %v10863
      %12168 = vmatmul.mubr.bf16.gmra.mrb[0].mxu0 %v10862
      %v12169 = vpop.f32.mrb[0].mxu0
      %v12170 = vadd.f32 %v12057, %v12169
      %v12171 = vpop.f32.mrb[0].mxu0
      %v12172 = vpop.f32.mrb[0].mxu0
      %v12173 = vadd.f32 %v12060, %v12172
      %v12174 = vpop.f32.mrb[0].mxu0
      %12175 = vmatprep.mubr.bf16.mxu0 %v10941
      %12176 = vmatmul.mubr.bf16.gmra.mrb[0].mxu0 %v10940
      %v12177 = vpop.f32.mrb[0].mxu0
      %v12178 = vadd.f32 %v12065, %v12177
      %v12179 = vpop.f32.mrb[0].mxu0
      %v12180 = vpop.f32.mrb[0].mxu0
      %v12181 = vadd.f32 %v12068, %v12180
      %v12182 = vpop.f32.mrb[0].mxu0
      %12183 = vmatprep.mubr.bf16.mxu0 %v11019
      %12184 = vmatmul.mubr.bf16.gmra.mrb[0].mxu0 %v11018
      %v12185 = vpop.f32.mrb[0].mxu0
      %v12186 = vadd.f32 %v12073, %v12185
      %v12187 = vpop.f32.mrb[0].mxu0
      %v12188 = vpop.f32.mrb[0].mxu0
      %v12189 = vadd.f32 %v12076, %v12188
      %v12190 = vpop.f32.mrb[0].mxu0
      %12191 = vdwg.mxu0
      %12192 = vmatprep.subr.bf16.mxu0 0
      %12193 = vmatpush1.bf16.msra.mxu0 %v11694
      %12194 = vmatprep.subr.bf16.mxu0 0
      %12195 = vmatpush1.bf16.msra.mxu0 %v11695
      %12196 = vmatprep.subr.bf16.mxu0 0
      %12197 = vmatpush1.bf16.msra.mxu0 %v11696
      %12198 = vmatprep.subr.bf16.mxu0 0
      %12199 = vmatpush1.bf16.msra.mxu0 %v11697
      %12200 = vmatprep.subr.bf16.mxu0 0
      %12201 = vmatpush1.bf16.msra.mxu0 %v11698
      %12202 = vmatprep.subr.bf16.mxu0 0
      %12203 = vmatpush1.bf16.msra.mxu0 %v11699
      %12204 = vmatprep.subr.bf16.mxu0 0
      %12205 = vmatpush1.bf16.msra.mxu0 %v11700
      %12206 = vmatprep.subr.bf16.mxu0 0
      %12207 = vmatpush1.bf16.msra.mxu0 %v11701
      %12208 = vmatprep.subr.bf16.mxu0 0
      %12209 = vmatpush1.bf16.msra.mxu0 %v11702
      %12210 = vmatprep.subr.bf16.mxu0 0
      %12211 = vmatpush1.bf16.msra.mxu0 %v11703
      %12212 = vmatprep.subr.bf16.mxu0 0
      %12213 = vmatpush1.bf16.msra.mxu0 %v11704
      %12214 = vmatprep.subr.bf16.mxu0 0
      %12215 = vmatpush1.bf16.msra.mxu0 %v11705
      %12216 = vmatprep.subr.bf16.mxu0 0
      %12217 = vmatpush1.bf16.msra.mxu0 %v11706
      %12218 = vmatprep.subr.bf16.mxu0 0
      %12219 = vmatpush1.bf16.msra.mxu0 %v11707
      %12220 = vmatprep.subr.bf16.mxu0 0
      %12221 = vmatpush1.bf16.msra.mxu0 %v11708
      %12222 = vmatprep.subr.bf16.mxu0 0
      %12223 = vmatpush1.bf16.msra.mxu0 %v11709
      %12224 = vmatprep.mubr.bf16.mxu0 %v10285
      %12225 = vmatmul.mubr.bf16.gmra.mrb[0].mxu0 %v10284
      %v12226 = vpop.f32.mrb[0].mxu0
      %v12227 = vadd.f32 %v12114, %v12226
      %v12228 = vpop.f32.mrb[0].mxu0
      %v12229 = vpop.f32.mrb[0].mxu0
      %v12230 = vadd.f32 %v12117, %v12229
      %v12231 = vpop.f32.mrb[0].mxu0
      %12232 = vmatprep.mubr.bf16.mxu0 %v10371
      %12233 = vmatmul.mubr.bf16.gmra.mrb[0].mxu0 %v10370
      %v12234 = vpop.f32.mrb[0].mxu0
      %v12235 = vadd.f32 %v12122, %v12234
      %v12236 = vpop.f32.mrb[0].mxu0
      %v12237 = vpop.f32.mrb[0].mxu0
      %v12238 = vadd.f32 %v12125, %v12237
      %v12239 = vpop.f32.mrb[0].mxu0
      %12240 = vmatprep.mubr.bf16.mxu0 %v10449
      %12241 = vmatmul.mubr.bf16.gmra.mrb[0].mxu0 %v10448
      %v12242 = vpop.f32.mrb[0].mxu0
      %v12243 = vadd.f32 %v12130, %v12242
      %v12244 = vpop.f32.mrb[0].mxu0
      %v12245 = vpop.f32.mrb[0].mxu0
      %v12246 = vadd.f32 %v12133, %v12245
      %v12247 = vpop.f32.mrb[0].mxu0
      %12248 = vmatprep.mubr.bf16.mxu0 %v10527
      %12249 = vmatmul.mubr.bf16.gmra.mrb[0].mxu0 %v10526
      %v12250 = vpop.f32.mrb[0].mxu0
      %v12251 = vadd.f32 %v12138, %v12250
      %v12252 = vpop.f32.mrb[0].mxu0
      %v12253 = vpop.f32.mrb[0].mxu0
      %v12254 = vadd.f32 %v12141, %v12253
      %v12255 = vpop.f32.mrb[0].mxu0
      %12256 = vmatprep.mubr.bf16.mxu0 %v10605
      %12257 = vmatmul.mubr.bf16.gmra.mrb[0].mxu0 %v10604
      %v12258 = vpop.f32.mrb[0].mxu0
      %v12259 = vadd.f32 %v12146, %v12258
      %v12260 = vpop.f32.mrb[0].mxu0
      %v12261 = vpop.f32.mrb[0].mxu0
      %v12262 = vadd.f32 %v12149, %v12261
      %v12263 = vpop.f32.mrb[0].mxu0
      %12264 = vmatprep.mubr.bf16.mxu0 %v10701
      %12265 = vmatmul.mubr.bf16.gmra.mrb[0].mxu0 %v10700
      %v12266 = vpop.f32.mrb[0].mxu0
      %v12267 = vadd.f32 %v12154, %v12266
      %v12268 = vpop.f32.mrb[0].mxu0
      %v12269 = vpop.f32.mrb[0].mxu0
      %v12270 = vadd.f32 %v12157, %v12269
      %v12271 = vpop.f32.mrb[0].mxu0
      %12272 = vmatprep.mubr.bf16.mxu0 %v10787
      %12273 = vmatmul.mubr.bf16.gmra.mrb[0].mxu0 %v10786
      %v12274 = vpop.f32.mrb[0].mxu0
      %v12275 = vadd.f32 %v12162, %v12274
      %v12276 = vpop.f32.mrb[0].mxu0
      %v12277 = vpop.f32.mrb[0].mxu0
      %v12278 = vadd.f32 %v12165, %v12277
      %v12279 = vpop.f32.mrb[0].mxu0
      %12280 = vmatprep.mubr.bf16.mxu0 %v10865
      %12281 = vmatmul.mubr.bf16.gmra.mrb[0].mxu0 %v10864
      %v12282 = vpop.f32.mrb[0].mxu0
      %v12283 = vadd.f32 %v12170, %v12282
      %v12284 = vpop.f32.mrb[0].mxu0
      %v12285 = vpop.f32.mrb[0].mxu0
      %v12286 = vadd.f32 %v12173, %v12285
      %v12287 = vpop.f32.mrb[0].mxu0
      %12288 = vmatprep.mubr.bf16.mxu0 %v10943
      %12289 = vmatmul.mubr.bf16.gmra.mrb[0].mxu0 %v10942
      %v12290 = vpop.f32.mrb[0].mxu0
      %v12291 = vadd.f32 %v12178, %v12290
      %v12292 = vpop.f32.mrb[0].mxu0
      %v12293 = vpop.f32.mrb[0].mxu0
      %v12294 = vadd.f32 %v12181, %v12293
      %v12295 = vpop.f32.mrb[0].mxu0
      %12296 = vmatprep.mubr.bf16.mxu0 %v11021
      %12297 = vmatmul.mubr.bf16.gmra.mrb[0].mxu0 %v11020
      %v12298 = vpop.f32.mrb[0].mxu0
      %v12299 = vadd.f32 %v12186, %v12298
      %v12300 = vpop.f32.mrb[0].mxu0
      %v12301 = vpop.f32.mrb[0].mxu0
      %v12302 = vadd.f32 %v12189, %v12301
      %v12303 = vpop.f32.mrb[0].mxu0
      %12304 = vdwg.mxu0
      %12305 = vmatprep.subr.bf16.mxu0 0
      %12306 = vmatpush1.bf16.msra.mxu0 %v11710
      %12307 = vmatprep.subr.bf16.mxu0 0
      %12308 = vmatpush1.bf16.msra.mxu0 %v11711
      %12309 = vmatprep.subr.bf16.mxu0 0
      %12310 = vmatpush1.bf16.msra.mxu0 %v11712
      %12311 = vmatprep.subr.bf16.mxu0 0
      %12312 = vmatpush1.bf16.msra.mxu0 %v11713
      %12313 = vmatprep.subr.bf16.mxu0 0
      %12314 = vmatpush1.bf16.msra.mxu0 %v11714
      %12315 = vmatprep.subr.bf16.mxu0 0
      %12316 = vmatpush1.bf16.msra.mxu0 %v11715
      %12317 = vmatprep.subr.bf16.mxu0 0
      %12318 = vmatpush1.bf16.msra.mxu0 %v11716
      %12319 = vmatprep.subr.bf16.mxu0 0
      %12320 = vmatpush1.bf16.msra.mxu0 %v11717
      %12321 = vmatprep.subr.bf16.mxu0 0
      %12322 = vmatpush1.bf16.msra.mxu0 %v11718
      %12323 = vmatprep.subr.bf16.mxu0 0
      %12324 = vmatpush1.bf16.msra.mxu0 %v11719
      %12325 = vmatprep.subr.bf16.mxu0 0
      %12326 = vmatpush1.bf16.msra.mxu0 %v11720
      %12327 = vmatprep.subr.bf16.mxu0 0
      %12328 = vmatpush1.bf16.msra.mxu0 %v11721
      %12329 = vmatprep.subr.bf16.mxu0 0
      %12330 = vmatpush1.bf16.msra.mxu0 %v11722
      %12331 = vmatprep.subr.bf16.mxu0 0
      %12332 = vmatpush1.bf16.msra.mxu0 %v11723
      %12333 = vmatprep.subr.bf16.mxu0 0
      %12334 = vmatpush1.bf16.msra.mxu0 %v11724
      %12335 = vmatprep.subr.bf16.mxu0 0
      %12336 = vmatpush1.bf16.msra.mxu0 %v11725
      %12337 = vmatprep.mubr.bf16.mxu0 %v10287
      %12338 = vmatmul.mubr.bf16.gmra.mrb[0].mxu0 %v10286
      %v12339 = vpop.f32.mrb[0].mxu0
      %v12340 = vadd.f32 %v12227, %v12339
      %v12341 = vpop.f32.mrb[0].mxu0
      %v12342 = vpop.f32.mrb[0].mxu0
      %v12343 = vadd.f32 %v12230, %v12342
      %v12344 = vpop.f32.mrb[0].mxu0
      %12345 = vmatprep.mubr.bf16.mxu0 %v10373
      %12346 = vmatmul.mubr.bf16.gmra.mrb[0].mxu0 %v10372
      %v12347 = vpop.f32.mrb[0].mxu0
      %v12348 = vadd.f32 %v12235, %v12347
      %v12349 = vpop.f32.mrb[0].mxu0
      %v12350 = vpop.f32.mrb[0].mxu0
      %v12351 = vadd.f32 %v12238, %v12350
      %v12352 = vpop.f32.mrb[0].mxu0
      %12353 = vmatprep.mubr.bf16.mxu0 %v10451
      %12354 = vmatmul.mubr.bf16.gmra.mrb[0].mxu0 %v10450
      %v12355 = vpop.f32.mrb[0].mxu0
      %v12356 = vadd.f32 %v12243, %v12355
      %v12357 = vpop.f32.mrb[0].mxu0
      %v12358 = vpop.f32.mrb[0].mxu0
      %v12359 = vadd.f32 %v12246, %v12358
      %v12360 = vpop.f32.mrb[0].mxu0
      %12361 = vmatprep.mubr.bf16.mxu0 %v10529
      %12362 = vmatmul.mubr.bf16.gmra.mrb[0].mxu0 %v10528
      %v12363 = vpop.f32.mrb[0].mxu0
      %v12364 = vadd.f32 %v12251, %v12363
      %v12365 = vpop.f32.mrb[0].mxu0
      %v12366 = vpop.f32.mrb[0].mxu0
      %v12367 = vadd.f32 %v12254, %v12366
      %v12368 = vpop.f32.mrb[0].mxu0
      %12369 = vmatprep.mubr.bf16.mxu0 %v10607
      %12370 = vmatmul.mubr.bf16.gmra.mrb[0].mxu0 %v10606
      %v12371 = vpop.f32.mrb[0].mxu0
      %v12372 = vadd.f32 %v12259, %v12371
      %v12373 = vpop.f32.mrb[0].mxu0
      %v12374 = vpop.f32.mrb[0].mxu0
      %v12375 = vadd.f32 %v12262, %v12374
      %v12376 = vpop.f32.mrb[0].mxu0
      %12377 = vmatprep.mubr.bf16.mxu0 %v10703
      %12378 = vmatmul.mubr.bf16.gmra.mrb[0].mxu0 %v10702
      %v12379 = vpop.f32.mrb[0].mxu0
      %v12380 = vadd.f32 %v12267, %v12379
      %v12381 = vpop.f32.mrb[0].mxu0
      %v12382 = vpop.f32.mrb[0].mxu0
      %v12383 = vadd.f32 %v12270, %v12382
      %v12384 = vpop.f32.mrb[0].mxu0
      %12385 = vmatprep.mubr.bf16.mxu0 %v10789
      %12386 = vmatmul.mubr.bf16.gmra.mrb[0].mxu0 %v10788
      %v12387 = vpop.f32.mrb[0].mxu0
      %v12388 = vadd.f32 %v12275, %v12387
      %v12389 = vpop.f32.mrb[0].mxu0
      %v12390 = vpop.f32.mrb[0].mxu0
      %v12391 = vadd.f32 %v12278, %v12390
      %v12392 = vpop.f32.mrb[0].mxu0
      %12393 = vmatprep.mubr.bf16.mxu0 %v10867
      %12394 = vmatmul.mubr.bf16.gmra.mrb[0].mxu0 %v10866
      %v12395 = vpop.f32.mrb[0].mxu0
      %v12396 = vadd.f32 %v12283, %v12395
      %v12397 = vpop.f32.mrb[0].mxu0
      %v12398 = vpop.f32.mrb[0].mxu0
      %v12399 = vadd.f32 %v12286, %v12398
      %v12400 = vpop.f32.mrb[0].mxu0
      %12401 = vmatprep.mubr.bf16.mxu0 %v10945
      %12402 = vmatmul.mubr.bf16.gmra.mrb[0].mxu0 %v10944
      %v12403 = vpop.f32.mrb[0].mxu0
      %v12404 = vadd.f32 %v12291, %v12403
      %v12405 = vpop.f32.mrb[0].mxu0
      %v12406 = vpop.f32.mrb[0].mxu0
      %v12407 = vadd.f32 %v12294, %v12406
      %v12408 = vpop.f32.mrb[0].mxu0
      %12409 = vmatprep.mubr.bf16.mxu0 %v11023
      %12410 = vmatmul.mubr.bf16.gmra.mrb[0].mxu0 %v11022
      %v12411 = vpop.f32.mrb[0].mxu0
      %v12412 = vadd.f32 %v12299, %v12411
      %v12413 = vpop.f32.mrb[0].mxu0
      %v12414 = vpop.f32.mrb[0].mxu0
      %v12415 = vadd.f32 %v12302, %v12414
      %v12416 = vpop.f32.mrb[0].mxu0
      %12417 = vdwg.mxu0
      %12418 = vmatprep.subr.bf16.mxu0 0
      %12419 = vmatpush1.bf16.msra.mxu0 %v11726
      %12420 = vmatprep.subr.bf16.mxu0 0
      %12421 = vmatpush1.bf16.msra.mxu0 %v11727
      %12422 = vmatprep.subr.bf16.mxu0 0
      %12423 = vmatpush1.bf16.msra.mxu0 %v11728
      %12424 = vmatprep.subr.bf16.mxu0 0
      %12425 = vmatpush1.bf16.msra.mxu0 %v11729
      %12426 = vmatprep.subr.bf16.mxu0 0
      %12427 = vmatpush1.bf16.msra.mxu0 %v11730
      %12428 = vmatprep.subr.bf16.mxu0 0
      %12429 = vmatpush1.bf16.msra.mxu0 %v11731
      %12430 = vmatprep.subr.bf16.mxu0 0
      %12431 = vmatpush1.bf16.msra.mxu0 %v11732
      %12432 = vmatprep.subr.bf16.mxu0 0
      %12433 = vmatpush1.bf16.msra.mxu0 %v11733
      %12434 = vmatprep.subr.bf16.mxu0 0
      %12435 = vmatpush1.bf16.msra.mxu0 %v11734
      %12436 = vmatprep.subr.bf16.mxu0 0
      %12437 = vmatpush1.bf16.msra.mxu0 %v11735
      %12438 = vmatprep.subr.bf16.mxu0 0
      %12439 = vmatpush1.bf16.msra.mxu0 %v11736
      %12440 = vmatprep.subr.bf16.mxu0 0
      %12441 = vmatpush1.bf16.msra.mxu0 %v11737
      %12442 = vmatprep.subr.bf16.mxu0 0
      %12443 = vmatpush1.bf16.msra.mxu0 %v11738
      %12444 = vmatprep.subr.bf16.mxu0 0
      %12445 = vmatpush1.bf16.msra.mxu0 %v11739
      %12446 = vmatprep.subr.bf16.mxu0 0
      %12447 = vmatpush1.bf16.msra.mxu0 %v11740
      %12448 = vmatprep.subr.bf16.mxu0 0
      %12449 = vmatpush1.bf16.msra.mxu0 %v11741
      %12450 = vmatprep.mubr.bf16.mxu0 %v10289
      %12451 = vmatmul.mubr.bf16.gmra.mrb[0].mxu0 %v10288
      %v12452 = vpop.f32.mrb[0].mxu0
      %v12453 = vadd.f32 %v12340, %v12452
      %v12454 = vpop.f32.mrb[0].mxu0
      %v12455 = vpop.f32.mrb[0].mxu0
      %v12456 = vadd.f32 %v12343, %v12455
      %v12457 = vpop.f32.mrb[0].mxu0
      %12458 = vmatprep.mubr.bf16.mxu0 %v10375
      %12459 = vmatmul.mubr.bf16.gmra.mrb[0].mxu0 %v10374
      %v12460 = vpop.f32.mrb[0].mxu0
      %v12461 = vadd.f32 %v12348, %v12460
      %v12462 = vpop.f32.mrb[0].mxu0
      %v12463 = vpop.f32.mrb[0].mxu0
      %v12464 = vadd.f32 %v12351, %v12463
      %v12465 = vpop.f32.mrb[0].mxu0
      %12466 = vmatprep.mubr.bf16.mxu0 %v10453
      %12467 = vmatmul.mubr.bf16.gmra.mrb[0].mxu0 %v10452
      %v12468 = vpop.f32.mrb[0].mxu0
      %v12469 = vadd.f32 %v12356, %v12468
      %v12470 = vpop.f32.mrb[0].mxu0
      %v12471 = vpop.f32.mrb[0].mxu0
      %v12472 = vadd.f32 %v12359, %v12471
      %v12473 = vpop.f32.mrb[0].mxu0
      %12474 = vmatprep.mubr.bf16.mxu0 %v10531
      %12475 = vmatmul.mubr.bf16.gmra.mrb[0].mxu0 %v10530
      %v12476 = vpop.f32.mrb[0].mxu0
      %v12477 = vadd.f32 %v12364, %v12476
      %v12478 = vpop.f32.mrb[0].mxu0
      %v12479 = vpop.f32.mrb[0].mxu0
      %v12480 = vadd.f32 %v12367, %v12479
      %v12481 = vpop.f32.mrb[0].mxu0
      %12482 = vmatprep.mubr.bf16.mxu0 %v10609
      %12483 = vmatmul.mubr.bf16.gmra.mrb[0].mxu0 %v10608
      %v12484 = vpop.f32.mrb[0].mxu0
      %v12485 = vadd.f32 %v12372, %v12484
      %v12486 = vpop.f32.mrb[0].mxu0
      %v12487 = vpop.f32.mrb[0].mxu0
      %v12488 = vadd.f32 %v12375, %v12487
      %v12489 = vpop.f32.mrb[0].mxu0
      %12490 = vmatprep.mubr.bf16.mxu0 %v10705
      %12491 = vmatmul.mubr.bf16.gmra.mrb[0].mxu0 %v10704
      %v12492 = vpop.f32.mrb[0].mxu0
      %v12493 = vadd.f32 %v12380, %v12492
      %v12494 = vpop.f32.mrb[0].mxu0
      %v12495 = vpop.f32.mrb[0].mxu0
      %v12496 = vadd.f32 %v12383, %v12495
      %v12497 = vpop.f32.mrb[0].mxu0
      %12498 = vmatprep.mubr.bf16.mxu0 %v10791
      %12499 = vmatmul.mubr.bf16.gmra.mrb[0].mxu0 %v10790
      %v12500 = vpop.f32.mrb[0].mxu0
      %v12501 = vadd.f32 %v12388, %v12500
      %v12502 = vpop.f32.mrb[0].mxu0
      %v12503 = vpop.f32.mrb[0].mxu0
      %v12504 = vadd.f32 %v12391, %v12503
      %v12505 = vpop.f32.mrb[0].mxu0
      %12506 = vmatprep.mubr.bf16.mxu0 %v10869
      %12507 = vmatmul.mubr.bf16.gmra.mrb[0].mxu0 %v10868
      %v12508 = vpop.f32.mrb[0].mxu0
      %v12509 = vadd.f32 %v12396, %v12508
      %v12510 = vpop.f32.mrb[0].mxu0
      %v12511 = vpop.f32.mrb[0].mxu0
      %v12512 = vadd.f32 %v12399, %v12511
      %v12513 = vpop.f32.mrb[0].mxu0
      %12514 = vmatprep.mubr.bf16.mxu0 %v10947
      %12515 = vmatmul.mubr.bf16.gmra.mrb[0].mxu0 %v10946
      %v12516 = vpop.f32.mrb[0].mxu0
      %v12517 = vadd.f32 %v12404, %v12516
      %v12518 = vpop.f32.mrb[0].mxu0
      %v12519 = vpop.f32.mrb[0].mxu0
      %v12520 = vadd.f32 %v12407, %v12519
      %v12521 = vpop.f32.mrb[0].mxu0
      %12522 = vmatprep.mubr.bf16.mxu0 %v11025
      %12523 = vmatmul.mubr.bf16.gmra.mrb[0].mxu0 %v11024
      %v12524 = vpop.f32.mrb[0].mxu0
      %v12525 = vadd.f32 %v12412, %v12524
      %v12526 = vpop.f32.mrb[0].mxu0
      %v12527 = vpop.f32.mrb[0].mxu0
      %v12528 = vadd.f32 %v12415, %v12527
      %v12529 = vpop.f32.mrb[0].mxu0
      %12530 = vdwg.mxu0
      %12531 = vmatprep.subr.bf16.mxu0 0
      %12532 = vmatpush1.bf16.msra.mxu0 %v11742
      %12533 = vmatprep.subr.bf16.mxu0 0
      %12534 = vmatpush1.bf16.msra.mxu0 %v11743
      %12535 = vmatprep.subr.bf16.mxu0 0
      %12536 = vmatpush1.bf16.msra.mxu0 %v11744
      %12537 = vmatprep.subr.bf16.mxu0 0
      %12538 = vmatpush1.bf16.msra.mxu0 %v11745
      %12539 = vmatprep.subr.bf16.mxu0 0
      %12540 = vmatpush1.bf16.msra.mxu0 %v11746
      %12541 = vmatprep.subr.bf16.mxu0 0
      %12542 = vmatpush1.bf16.msra.mxu0 %v11747
      %12543 = vmatprep.subr.bf16.mxu0 0
      %12544 = vmatpush1.bf16.msra.mxu0 %v11748
      %12545 = vmatprep.subr.bf16.mxu0 0
      %12546 = vmatpush1.bf16.msra.mxu0 %v11749
      %12547 = vmatprep.subr.bf16.mxu0 0
      %12548 = vmatpush1.bf16.msra.mxu0 %v11750
      %12549 = vmatprep.subr.bf16.mxu0 0
      %12550 = vmatpush1.bf16.msra.mxu0 %v11751
      %12551 = vmatprep.subr.bf16.mxu0 0
      %12552 = vmatpush1.bf16.msra.mxu0 %v11752
      %12553 = vmatprep.subr.bf16.mxu0 0
      %12554 = vmatpush1.bf16.msra.mxu0 %v11753
      %12555 = vmatprep.subr.bf16.mxu0 0
      %12556 = vmatpush1.bf16.msra.mxu0 %v11754
      %12557 = vmatprep.subr.bf16.mxu0 0
      %12558 = vmatpush1.bf16.msra.mxu0 %v11755
      %12559 = vmatprep.subr.bf16.mxu0 0
      %12560 = vmatpush1.bf16.msra.mxu0 %v11756
      %12561 = vmatprep.subr.bf16.mxu0 0
      %12562 = vmatpush1.bf16.msra.mxu0 %v11757
      %12563 = vmatprep.mubr.bf16.mxu0 %v10291
      %12564 = vmatmul.mubr.bf16.gmra.mrb[0].mxu0 %v10290
      %v12565 = vpop.f32.mrb[0].mxu0
      %v12566 = vadd.f32 %v12453, %v12565
      %v12567 = vpop.f32.mrb[0].mxu0
      %v12568 = vpop.f32.mrb[0].mxu0
      %v12569 = vadd.f32 %v12456, %v12568
      %v12570 = vpop.f32.mrb[0].mxu0
      %12571 = vmatprep.mubr.bf16.mxu0 %v10377
      %12572 = vmatmul.mubr.bf16.gmra.mrb[0].mxu0 %v10376
      %v12573 = vpop.f32.mrb[0].mxu0
      %v12574 = vadd.f32 %v12461, %v12573
      %v12575 = vpop.f32.mrb[0].mxu0
      %v12576 = vpop.f32.mrb[0].mxu0
      %v12577 = vadd.f32 %v12464, %v12576
      %v12578 = vpop.f32.mrb[0].mxu0
      %12579 = vmatprep.mubr.bf16.mxu0 %v10455
      %12580 = vmatmul.mubr.bf16.gmra.mrb[0].mxu0 %v10454
      %v12581 = vpop.f32.mrb[0].mxu0
      %v12582 = vadd.f32 %v12469, %v12581
      %v12583 = vpop.f32.mrb[0].mxu0
      %v12584 = vpop.f32.mrb[0].mxu0
      %v12585 = vadd.f32 %v12472, %v12584
      %v12586 = vpop.f32.mrb[0].mxu0
      %12587 = vmatprep.mubr.bf16.mxu0 %v10533
      %12588 = vmatmul.mubr.bf16.gmra.mrb[0].mxu0 %v10532
      %v12589 = vpop.f32.mrb[0].mxu0
      %v12590 = vadd.f32 %v12477, %v12589
      %v12591 = vpop.f32.mrb[0].mxu0
      %v12592 = vpop.f32.mrb[0].mxu0
      %v12593 = vadd.f32 %v12480, %v12592
      %v12594 = vpop.f32.mrb[0].mxu0
      %12595 = vmatprep.mubr.bf16.mxu0 %v10611
      %12596 = vmatmul.mubr.bf16.gmra.mrb[0].mxu0 %v10610
      %v12597 = vpop.f32.mrb[0].mxu0
      %v12598 = vadd.f32 %v12485, %v12597
      %v12599 = vpop.f32.mrb[0].mxu0
      %v12600 = vpop.f32.mrb[0].mxu0
      %v12601 = vadd.f32 %v12488, %v12600
      %v12602 = vpop.f32.mrb[0].mxu0
      %12603 = vmatprep.mubr.bf16.mxu0 %v10707
      %12604 = vmatmul.mubr.bf16.gmra.mrb[0].mxu0 %v10706
      %v12605 = vpop.f32.mrb[0].mxu0
      %v12606 = vadd.f32 %v12493, %v12605
      %v12607 = vpop.f32.mrb[0].mxu0
      %v12608 = vpop.f32.mrb[0].mxu0
      %v12609 = vadd.f32 %v12496, %v12608
      %v12610 = vpop.f32.mrb[0].mxu0
      %12611 = vmatprep.mubr.bf16.mxu0 %v10793
      %12612 = vmatmul.mubr.bf16.gmra.mrb[0].mxu0 %v10792
      %v12613 = vpop.f32.mrb[0].mxu0
      %v12614 = vadd.f32 %v12501, %v12613
      %v12615 = vpop.f32.mrb[0].mxu0
      %v12616 = vpop.f32.mrb[0].mxu0
      %v12617 = vadd.f32 %v12504, %v12616
      %v12618 = vpop.f32.mrb[0].mxu0
      %12619 = vmatprep.mubr.bf16.mxu0 %v10871
      %12620 = vmatmul.mubr.bf16.gmra.mrb[0].mxu0 %v10870
      %v12621 = vpop.f32.mrb[0].mxu0
      %v12622 = vadd.f32 %v12509, %v12621
      %v12623 = vpop.f32.mrb[0].mxu0
      %v12624 = vpop.f32.mrb[0].mxu0
      %v12625 = vadd.f32 %v12512, %v12624
      %v12626 = vpop.f32.mrb[0].mxu0
      %12627 = vmatprep.mubr.bf16.mxu0 %v10949
      %12628 = vmatmul.mubr.bf16.gmra.mrb[0].mxu0 %v10948
      %v12629 = vpop.f32.mrb[0].mxu0
      %v12630 = vadd.f32 %v12517, %v12629
      %v12631 = vpop.f32.mrb[0].mxu0
      %v12632 = vpop.f32.mrb[0].mxu0
      %v12633 = vadd.f32 %v12520, %v12632
      %v12634 = vpop.f32.mrb[0].mxu0
      %12635 = vmatprep.mubr.bf16.mxu0 %v11027
      %12636 = vmatmul.mubr.bf16.gmra.mrb[0].mxu0 %v11026
      %v12637 = vpop.f32.mrb[0].mxu0
      %v12638 = vadd.f32 %v12525, %v12637
      %v12639 = vpop.f32.mrb[0].mxu0
      %v12640 = vpop.f32.mrb[0].mxu0
      %v12641 = vadd.f32 %v12528, %v12640
      %v12642 = vpop.f32.mrb[0].mxu0
      %12643 = vdwg.mxu0
      %12644 = vmatprep.subr.bf16.mxu0 0
      %12645 = vmatpush1.bf16.msra.mxu0 %v11758
      %12646 = vmatprep.subr.bf16.mxu0 0
      %12647 = vmatpush1.bf16.msra.mxu0 %v11759
      %12648 = vmatprep.subr.bf16.mxu0 0
      %12649 = vmatpush1.bf16.msra.mxu0 %v11760
      %12650 = vmatprep.subr.bf16.mxu0 0
      %12651 = vmatpush1.bf16.msra.mxu0 %v11761
      %12652 = vmatprep.subr.bf16.mxu0 0
      %12653 = vmatpush1.bf16.msra.mxu0 %v11762
      %12654 = vmatprep.subr.bf16.mxu0 0
      %12655 = vmatpush1.bf16.msra.mxu0 %v11763
      %12656 = vmatprep.subr.bf16.mxu0 0
      %12657 = vmatpush1.bf16.msra.mxu0 %v11764
      %12658 = vmatprep.subr.bf16.mxu0 0
      %12659 = vmatpush1.bf16.msra.mxu0 %v11765
      %12660 = vmatprep.subr.bf16.mxu0 0
      %12661 = vmatpush1.bf16.msra.mxu0 %v11766
      %12662 = vmatprep.subr.bf16.mxu0 0
      %12663 = vmatpush1.bf16.msra.mxu0 %v11767
      %12664 = vmatprep.subr.bf16.mxu0 0
      %12665 = vmatpush1.bf16.msra.mxu0 %v11768
      %12666 = vmatprep.subr.bf16.mxu0 0
      %12667 = vmatpush1.bf16.msra.mxu0 %v11769
      %12668 = vmatprep.subr.bf16.mxu0 0
      %12669 = vmatpush1.bf16.msra.mxu0 %v11770
      %12670 = vmatprep.subr.bf16.mxu0 0
      %12671 = vmatpush1.bf16.msra.mxu0 %v11771
      %12672 = vmatprep.subr.bf16.mxu0 0
      %12673 = vmatpush1.bf16.msra.mxu0 %v11772
      %12674 = vmatprep.subr.bf16.mxu0 0
      %12675 = vmatpush1.bf16.msra.mxu0 %v11773
      %12676 = vmatprep.mubr.bf16.mxu0 %v10293
      %12677 = vmatmul.mubr.bf16.gmra.mrb[0].mxu0 %v10292
      %v12678 = vpop.f32.mrb[0].mxu0
      %v12679 = vadd.f32 %v12566, %v12678
      %v12680 = vpop.f32.mrb[0].mxu0
      %v12681 = vpop.f32.mrb[0].mxu0
      %v12682 = vadd.f32 %v12569, %v12681
      %v12683 = vpop.f32.mrb[0].mxu0
      %12684 = vmatprep.mubr.bf16.mxu0 %v10379
      %12685 = vmatmul.mubr.bf16.gmra.mrb[0].mxu0 %v10378
      %v12686 = vpop.f32.mrb[0].mxu0
      %v12687 = vadd.f32 %v12574, %v12686
      %v12688 = vpop.f32.mrb[0].mxu0
      %v12689 = vpop.f32.mrb[0].mxu0
      %v12690 = vadd.f32 %v12577, %v12689
      %v12691 = vpop.f32.mrb[0].mxu0
      %12692 = vmatprep.mubr.bf16.mxu0 %v10457
      %12693 = vmatmul.mubr.bf16.gmra.mrb[0].mxu0 %v10456
      %v12694 = vpop.f32.mrb[0].mxu0
      %v12695 = vadd.f32 %v12582, %v12694
      %v12696 = vpop.f32.mrb[0].mxu0
      %v12697 = vpop.f32.mrb[0].mxu0
      %v12698 = vadd.f32 %v12585, %v12697
      %v12699 = vpop.f32.mrb[0].mxu0
      %12700 = vmatprep.mubr.bf16.mxu0 %v10535
      %12701 = vmatmul.mubr.bf16.gmra.mrb[0].mxu0 %v10534
      %v12702 = vpop.f32.mrb[0].mxu0
      %v12703 = vadd.f32 %v12590, %v12702
      %v12704 = vpop.f32.mrb[0].mxu0
      %v12705 = vpop.f32.mrb[0].mxu0
      %v12706 = vadd.f32 %v12593, %v12705
      %v12707 = vpop.f32.mrb[0].mxu0
      %12708 = vmatprep.mubr.bf16.mxu0 %v10613
      %12709 = vmatmul.mubr.bf16.gmra.mrb[0].mxu0 %v10612
      %v12710 = vpop.f32.mrb[0].mxu0
      %v12711 = vadd.f32 %v12598, %v12710
      %v12712 = vpop.f32.mrb[0].mxu0
      %v12713 = vpop.f32.mrb[0].mxu0
      %v12714 = vadd.f32 %v12601, %v12713
      %v12715 = vpop.f32.mrb[0].mxu0
      %12716 = vmatprep.mubr.bf16.mxu0 %v10709
      %12717 = vmatmul.mubr.bf16.gmra.mrb[0].mxu0 %v10708
      %v12718 = vpop.f32.mrb[0].mxu0
      %v12719 = vadd.f32 %v12606, %v12718
      %v12720 = vpop.f32.mrb[0].mxu0
      %v12721 = vpop.f32.mrb[0].mxu0
      %v12722 = vadd.f32 %v12609, %v12721
      %v12723 = vpop.f32.mrb[0].mxu0
      %12724 = vmatprep.mubr.bf16.mxu0 %v10795
      %12725 = vmatmul.mubr.bf16.gmra.mrb[0].mxu0 %v10794
      %v12726 = vpop.f32.mrb[0].mxu0
      %v12727 = vadd.f32 %v12614, %v12726
      %v12728 = vpop.f32.mrb[0].mxu0
      %v12729 = vpop.f32.mrb[0].mxu0
      %v12730 = vadd.f32 %v12617, %v12729
      %v12731 = vpop.f32.mrb[0].mxu0
      %12732 = vmatprep.mubr.bf16.mxu0 %v10873
      %12733 = vmatmul.mubr.bf16.gmra.mrb[0].mxu0 %v10872
      %v12734 = vpop.f32.mrb[0].mxu0
      %v12735 = vadd.f32 %v12622, %v12734
      %v12736 = vpop.f32.mrb[0].mxu0
      %v12737 = vpop.f32.mrb[0].mxu0
      %v12738 = vadd.f32 %v12625, %v12737
      %v12739 = vpop.f32.mrb[0].mxu0
      %12740 = vmatprep.mubr.bf16.mxu0 %v10951
      %12741 = vmatmul.mubr.bf16.gmra.mrb[0].mxu0 %v10950
      %v12742 = vpop.f32.mrb[0].mxu0
      %v12743 = vadd.f32 %v12630, %v12742
      %v12744 = vpop.f32.mrb[0].mxu0
      %v12745 = vpop.f32.mrb[0].mxu0
      %v12746 = vadd.f32 %v12633, %v12745
      %v12747 = vpop.f32.mrb[0].mxu0
      %12748 = vmatprep.mubr.bf16.mxu0 %v11029
      %12749 = vmatmul.mubr.bf16.gmra.mrb[0].mxu0 %v11028
      %v12750 = vpop.f32.mrb[0].mxu0
      %v12751 = vadd.f32 %v12638, %v12750
      %v12752 = vpop.f32.mrb[0].mxu0
      %v12753 = vpop.f32.mrb[0].mxu0
      %v12754 = vadd.f32 %v12641, %v12753
      %v12755 = vpop.f32.mrb[0].mxu0
      %12756 = vdwg.mxu0
      %12757 = vmatprep.subr.bf16.mxu0 0
      %12758 = vmatpush1.bf16.msra.mxu0 %v11774
      %12759 = vmatprep.subr.bf16.mxu0 0
      %12760 = vmatpush1.bf16.msra.mxu0 %v11775
      %12761 = vmatprep.subr.bf16.mxu0 0
      %12762 = vmatpush1.bf16.msra.mxu0 %v11776
      %12763 = vmatprep.subr.bf16.mxu0 0
      %12764 = vmatpush1.bf16.msra.mxu0 %v11777
      %12765 = vmatprep.subr.bf16.mxu0 0
      %12766 = vmatpush1.bf16.msra.mxu0 %v11778
      %12767 = vmatprep.subr.bf16.mxu0 0
      %12768 = vmatpush1.bf16.msra.mxu0 %v11779
      %12769 = vmatprep.subr.bf16.mxu0 0
      %12770 = vmatpush1.bf16.msra.mxu0 %v11780
      %12771 = vmatprep.subr.bf16.mxu0 0
      %12772 = vmatpush1.bf16.msra.mxu0 %v11781
      %12773 = vmatprep.subr.bf16.mxu0 0
      %12774 = vmatpush1.bf16.msra.mxu0 %v11782
      %12775 = vmatprep.subr.bf16.mxu0 0
      %12776 = vmatpush1.bf16.msra.mxu0 %v11783
      %12777 = vmatprep.subr.bf16.mxu0 0
      %12778 = vmatpush1.bf16.msra.mxu0 %v11784
      %12779 = vmatprep.subr.bf16.mxu0 0
      %12780 = vmatpush1.bf16.msra.mxu0 %v11785
      %12781 = vmatprep.subr.bf16.mxu0 0
      %12782 = vmatpush1.bf16.msra.mxu0 %v11786
      %12783 = vmatprep.subr.bf16.mxu0 0
      %12784 = vmatpush1.bf16.msra.mxu0 %v11787
      %12785 = vmatprep.subr.bf16.mxu0 0
      %12786 = vmatpush1.bf16.msra.mxu0 %v11788
      %12787 = vmatprep.subr.bf16.mxu0 0
      %12788 = vmatpush1.bf16.msra.mxu0 %v11789
      %12789 = vmatprep.mubr.bf16.mxu0 %v10295
      %12790 = vmatmul.mubr.bf16.gmra.mrb[0].mxu0 %v10294
      %v12791 = vpop.f32.mrb[0].mxu0
      %v12792 = vadd.f32 %v12679, %v12791
      %v12793 = vpop.f32.mrb[0].mxu0
      %v12794 = vpop.f32.mrb[0].mxu0
      %v12795 = vadd.f32 %v12682, %v12794
      %v12796 = vpop.f32.mrb[0].mxu0
      %12797 = vmatprep.mubr.bf16.mxu0 %v10381
      %12798 = vmatmul.mubr.bf16.gmra.mrb[0].mxu0 %v10380
      %v12799 = vpop.f32.mrb[0].mxu0
      %v12800 = vadd.f32 %v12687, %v12799
      %v12801 = vpop.f32.mrb[0].mxu0
      %v12802 = vpop.f32.mrb[0].mxu0
      %v12803 = vadd.f32 %v12690, %v12802
      %v12804 = vpop.f32.mrb[0].mxu0
      %12805 = vmatprep.mubr.bf16.mxu0 %v10459
      %12806 = vmatmul.mubr.bf16.gmra.mrb[0].mxu0 %v10458
      %v12807 = vpop.f32.mrb[0].mxu0
      %v12808 = vadd.f32 %v12695, %v12807
      %v12809 = vpop.f32.mrb[0].mxu0
      %v12810 = vpop.f32.mrb[0].mxu0
      %v12811 = vadd.f32 %v12698, %v12810
      %v12812 = vpop.f32.mrb[0].mxu0
      %12813 = vmatprep.mubr.bf16.mxu0 %v10537
      %12814 = vmatmul.mubr.bf16.gmra.mrb[0].mxu0 %v10536
      %v12815 = vpop.f32.mrb[0].mxu0
      %v12816 = vadd.f32 %v12703, %v12815
      %v12817 = vpop.f32.mrb[0].mxu0
      %v12818 = vpop.f32.mrb[0].mxu0
      %v12819 = vadd.f32 %v12706, %v12818
      %v12820 = vpop.f32.mrb[0].mxu0
      %12821 = vmatprep.mubr.bf16.mxu0 %v10615
      %12822 = vmatmul.mubr.bf16.gmra.mrb[0].mxu0 %v10614
      %v12823 = vpop.f32.mrb[0].mxu0
      %v12824 = vadd.f32 %v12711, %v12823
      %v12825 = vpop.f32.mrb[0].mxu0
      %v12826 = vpop.f32.mrb[0].mxu0
      %v12827 = vadd.f32 %v12714, %v12826
      %v12828 = vpop.f32.mrb[0].mxu0
      %12829 = vmatprep.mubr.bf16.mxu0 %v10711
      %12830 = vmatmul.mubr.bf16.gmra.mrb[0].mxu0 %v10710
      %v12831 = vpop.f32.mrb[0].mxu0
      %v12832 = vadd.f32 %v12719, %v12831
      %v12833 = vpop.f32.mrb[0].mxu0
      %v12834 = vpop.f32.mrb[0].mxu0
      %v12835 = vadd.f32 %v12722, %v12834
      %v12836 = vpop.f32.mrb[0].mxu0
      %12837 = vmatprep.mubr.bf16.mxu0 %v10797
      %12838 = vmatmul.mubr.bf16.gmra.mrb[0].mxu0 %v10796
      %v12839 = vpop.f32.mrb[0].mxu0
      %v12840 = vadd.f32 %v12727, %v12839
      %v12841 = vpop.f32.mrb[0].mxu0
      %v12842 = vpop.f32.mrb[0].mxu0
      %v12843 = vadd.f32 %v12730, %v12842
      %v12844 = vpop.f32.mrb[0].mxu0
      %12845 = vmatprep.mubr.bf16.mxu0 %v10875
      %12846 = vmatmul.mubr.bf16.gmra.mrb[0].mxu0 %v10874
      %v12847 = vpop.f32.mrb[0].mxu0
      %v12848 = vadd.f32 %v12735, %v12847
      %v12849 = vpop.f32.mrb[0].mxu0
      %v12850 = vpop.f32.mrb[0].mxu0
      %v12851 = vadd.f32 %v12738, %v12850
      %v12852 = vpop.f32.mrb[0].mxu0
      %12853 = vmatprep.mubr.bf16.mxu0 %v10953
      %12854 = vmatmul.mubr.bf16.gmra.mrb[0].mxu0 %v10952
      %v12855 = vpop.f32.mrb[0].mxu0
      %v12856 = vadd.f32 %v12743, %v12855
      %v12857 = vpop.f32.mrb[0].mxu0
      %v12858 = vpop.f32.mrb[0].mxu0
      %v12859 = vadd.f32 %v12746, %v12858
      %v12860 = vpop.f32.mrb[0].mxu0
      %12861 = vmatprep.mubr.bf16.mxu0 %v11031
      %12862 = vmatmul.mubr.bf16.gmra.mrb[0].mxu0 %v11030
      %v12863 = vpop.f32.mrb[0].mxu0
      %v12864 = vadd.f32 %v12751, %v12863
      %v12865 = vpop.f32.mrb[0].mxu0
      %v12866 = vpop.f32.mrb[0].mxu0
      %v12867 = vadd.f32 %v12754, %v12866
      %v12868 = vpop.f32.mrb[0].mxu0
      %12869 = vdwg.mxu0
      %12870 = vmatprep.subr.bf16.mxu0 0
      %12871 = vmatpush1.bf16.msra.mxu0 %v11790
      %12872 = vmatprep.subr.bf16.mxu0 0
      %12873 = vmatpush1.bf16.msra.mxu0 %v11791
      %12874 = vmatprep.subr.bf16.mxu0 0
      %12875 = vmatpush1.bf16.msra.mxu0 %v11792
      %12876 = vmatprep.subr.bf16.mxu0 0
      %12877 = vmatpush1.bf16.msra.mxu0 %v11793
      %12878 = vmatprep.subr.bf16.mxu0 0
      %12879 = vmatpush1.bf16.msra.mxu0 %v11794
      %12880 = vmatprep.subr.bf16.mxu0 0
      %12881 = vmatpush1.bf16.msra.mxu0 %v11795
      %12882 = vmatprep.subr.bf16.mxu0 0
      %12883 = vmatpush1.bf16.msra.mxu0 %v11796
      %12884 = vmatprep.subr.bf16.mxu0 0
      %12885 = vmatpush1.bf16.msra.mxu0 %v11797
      %12886 = vmatprep.subr.bf16.mxu0 0
      %12887 = vmatpush1.bf16.msra.mxu0 %v11798
      %12888 = vmatprep.subr.bf16.mxu0 0
      %12889 = vmatpush1.bf16.msra.mxu0 %v11799
      %12890 = vmatprep.subr.bf16.mxu0 0
      %12891 = vmatpush1.bf16.msra.mxu0 %v11800
      %12892 = vmatprep.subr.bf16.mxu0 0
      %12893 = vmatpush1.bf16.msra.mxu0 %v11801
      %12894 = vmatprep.subr.bf16.mxu0 0
      %12895 = vmatpush1.bf16.msra.mxu0 %v11802
      %12896 = vmatprep.subr.bf16.mxu0 0
      %12897 = vmatpush1.bf16.msra.mxu0 %v11803
      %12898 = vmatprep.subr.bf16.mxu0 0
      %12899 = vmatpush1.bf16.msra.mxu0 %v11804
      %12900 = vmatprep.subr.bf16.mxu0 0
      %12901 = vmatpush1.bf16.msra.mxu0 %v11805
      %12902 = vmatprep.mubr.bf16.mxu0 %v10297
      %12903 = vmatmul.mubr.bf16.gmra.mrb[0].mxu0 %v10296
      %v12904 = vpop.f32.mrb[0].mxu0
      %v12905 = vadd.f32 %v12792, %v12904
      %v12906 = vpop.f32.mrb[0].mxu0
      %v12907 = vpop.f32.mrb[0].mxu0
      %v12908 = vadd.f32 %v12795, %v12907
      %v12909 = vpop.f32.mrb[0].mxu0
      %12910 = vmatprep.mubr.bf16.mxu0 %v10383
      %12911 = vmatmul.mubr.bf16.gmra.mrb[0].mxu0 %v10382
      %v12912 = vpop.f32.mrb[0].mxu0
      %v12913 = vadd.f32 %v12800, %v12912
      %v12914 = vpop.f32.mrb[0].mxu0
      %v12915 = vpop.f32.mrb[0].mxu0
      %v12916 = vadd.f32 %v12803, %v12915
      %v12917 = vpop.f32.mrb[0].mxu0
      %12918 = vmatprep.mubr.bf16.mxu0 %v10461
      %12919 = vmatmul.mubr.bf16.gmra.mrb[0].mxu0 %v10460
      %v12920 = vpop.f32.mrb[0].mxu0
      %v12921 = vadd.f32 %v12808, %v12920
      %v12922 = vpop.f32.mrb[0].mxu0
      %v12923 = vpop.f32.mrb[0].mxu0
      %v12924 = vadd.f32 %v12811, %v12923
      %v12925 = vpop.f32.mrb[0].mxu0
      %12926 = vmatprep.mubr.bf16.mxu0 %v10539
      %12927 = vmatmul.mubr.bf16.gmra.mrb[0].mxu0 %v10538
      %v12928 = vpop.f32.mrb[0].mxu0
      %v12929 = vadd.f32 %v12816, %v12928
      %v12930 = vpop.f32.mrb[0].mxu0
      %v12931 = vpop.f32.mrb[0].mxu0
      %v12932 = vadd.f32 %v12819, %v12931
      %v12933 = vpop.f32.mrb[0].mxu0
      %12934 = vmatprep.mubr.bf16.mxu0 %v10617
      %12935 = vmatmul.mubr.bf16.gmra.mrb[0].mxu0 %v10616
      %v12936 = vpop.f32.mrb[0].mxu0
      %v12937 = vadd.f32 %v12824, %v12936
      %v12938 = vpop.f32.mrb[0].mxu0
      %v12939 = vpop.f32.mrb[0].mxu0
      %v12940 = vadd.f32 %v12827, %v12939
      %v12941 = vpop.f32.mrb[0].mxu0
      %12942 = vmatprep.mubr.bf16.mxu0 %v10713
      %12943 = vmatmul.mubr.bf16.gmra.mrb[0].mxu0 %v10712
      %v12944 = vpop.f32.mrb[0].mxu0
      %v12945 = vadd.f32 %v12832, %v12944
      %v12946 = vpop.f32.mrb[0].mxu0
      %v12947 = vpop.f32.mrb[0].mxu0
      %v12948 = vadd.f32 %v12835, %v12947
      %v12949 = vpop.f32.mrb[0].mxu0
      %12950 = vmatprep.mubr.bf16.mxu0 %v10799
      %12951 = vmatmul.mubr.bf16.gmra.mrb[0].mxu0 %v10798
      %v12952 = vpop.f32.mrb[0].mxu0
      %v12953 = vadd.f32 %v12840, %v12952
      %v12954 = vpop.f32.mrb[0].mxu0
      %v12955 = vpop.f32.mrb[0].mxu0
      %v12956 = vadd.f32 %v12843, %v12955
      %v12957 = vpop.f32.mrb[0].mxu0
      %12958 = vmatprep.mubr.bf16.mxu0 %v10877
      %12959 = vmatmul.mubr.bf16.gmra.mrb[0].mxu0 %v10876
      %v12960 = vpop.f32.mrb[0].mxu0
      %v12961 = vadd.f32 %v12848, %v12960
      %v12962 = vpop.f32.mrb[0].mxu0
      %v12963 = vpop.f32.mrb[0].mxu0
      %v12964 = vadd.f32 %v12851, %v12963
      %v12965 = vpop.f32.mrb[0].mxu0
      %12966 = vmatprep.mubr.bf16.mxu0 %v10955
      %12967 = vmatmul.mubr.bf16.gmra.mrb[0].mxu0 %v10954
      %v12968 = vpop.f32.mrb[0].mxu0
      %v12969 = vadd.f32 %v12856, %v12968
      %v12970 = vpop.f32.mrb[0].mxu0
      %v12971 = vpop.f32.mrb[0].mxu0
      %v12972 = vadd.f32 %v12859, %v12971
      %v12973 = vpop.f32.mrb[0].mxu0
      %12974 = vmatprep.mubr.bf16.mxu0 %v11033
      %12975 = vmatmul.mubr.bf16.gmra.mrb[0].mxu0 %v11032
      %v12976 = vpop.f32.mrb[0].mxu0
      %v12977 = vadd.f32 %v12864, %v12976
      %v12978 = vpop.f32.mrb[0].mxu0
      %v12979 = vpop.f32.mrb[0].mxu0
      %v12980 = vadd.f32 %v12867, %v12979
      %v12981 = vpop.f32.mrb[0].mxu0
      %12982 = vdwg.mxu0
      %12983 = vmatprep.subr.bf16.mxu0 0
      %12984 = vmatpush1.bf16.msra.mxu0 %v11806
      %12985 = vmatprep.subr.bf16.mxu0 0
      %12986 = vmatpush1.bf16.msra.mxu0 %v11807
      %12987 = vmatprep.subr.bf16.mxu0 0
      %12988 = vmatpush1.bf16.msra.mxu0 %v11808
      %12989 = vmatprep.subr.bf16.mxu0 0
      %12990 = vmatpush1.bf16.msra.mxu0 %v11809
      %12991 = vmatprep.subr.bf16.mxu0 0
      %12992 = vmatpush1.bf16.msra.mxu0 %v11810
      %12993 = vmatprep.subr.bf16.mxu0 0
      %12994 = vmatpush1.bf16.msra.mxu0 %v11811
      %12995 = vmatprep.subr.bf16.mxu0 0
      %12996 = vmatpush1.bf16.msra.mxu0 %v11812
      %12997 = vmatprep.subr.bf16.mxu0 0
      %12998 = vmatpush1.bf16.msra.mxu0 %v11813
      %12999 = vmatprep.subr.bf16.mxu0 0
      %13000 = vmatpush1.bf16.msra.mxu0 0
      %13001 = vmatprep.subr.bf16.mxu0 0
      %13002 = vmatpush1.bf16.msra.mxu0 0
      %13003 = vmatprep.subr.bf16.mxu0 0
      %13004 = vmatpush1.bf16.msra.mxu0 0
      %13005 = vmatprep.subr.bf16.mxu0 0
      %13006 = vmatpush1.bf16.msra.mxu0 0
      %13007 = vmatprep.subr.bf16.mxu0 0
      %13008 = vmatpush1.bf16.msra.mxu0 0
      %13009 = vmatprep.subr.bf16.mxu0 0
      %13010 = vmatpush1.bf16.msra.mxu0 0
      %13011 = vmatprep.subr.bf16.mxu0 0
      %13012 = vmatpush1.bf16.msra.mxu0 0
      %13013 = vmatprep.subr.bf16.mxu0 0
      %13014 = vmatpush1.bf16.msra.mxu0 0
      %13015 = vmatprep.mubr.bf16.mxu0 0
      %13016 = vmatmul.mubr.bf16.gmra.mrb[0].mxu0 %v10298
      %v13017 = vpop.f32.mrb[0].mxu0
      %v13018 = vadd.f32 %v12905, %v13017
      %v13019 = vpop.f32.mrb[0].mxu0
      %v13020 = vpop.f32.mrb[0].mxu0
      %v13021 = vadd.f32 %v12908, %v13020
      %v13022 = vpop.f32.mrb[0].mxu0
      %13023 = vmatprep.mubr.bf16.mxu0 0
      %13024 = vmatmul.mubr.bf16.gmra.mrb[0].mxu0 %v10384
      %v13025 = vpop.f32.mrb[0].mxu0
      %v13026 = vadd.f32 %v12913, %v13025
      %v13027 = vpop.f32.mrb[0].mxu0
      %v13028 = vpop.f32.mrb[0].mxu0
      %v13029 = vadd.f32 %v12916, %v13028
      %v13030 = vpop.f32.mrb[0].mxu0
      %13031 = vmatprep.mubr.bf16.mxu0 0
      %13032 = vmatmul.mubr.bf16.gmra.mrb[0].mxu0 %v10462
      %v13033 = vpop.f32.mrb[0].mxu0
      %v13034 = vadd.f32 %v12921, %v13033
      %v13035 = vpop.f32.mrb[0].mxu0
      %v13036 = vpop.f32.mrb[0].mxu0
      %v13037 = vadd.f32 %v12924, %v13036
      %v13038 = vpop.f32.mrb[0].mxu0
      %13039 = vmatprep.mubr.bf16.mxu0 0
      %13040 = vmatmul.mubr.bf16.gmra.mrb[0].mxu0 %v10540
      %v13041 = vpop.f32.mrb[0].mxu0
      %v13042 = vadd.f32 %v12929, %v13041
      %v13043 = vpop.f32.mrb[0].mxu0
      %v13044 = vpop.f32.mrb[0].mxu0
      %v13045 = vadd.f32 %v12932, %v13044
      %v13046 = vpop.f32.mrb[0].mxu0
      %13047 = vmatprep.mubr.bf16.mxu0 0
      %13048 = vmatmul.mubr.bf16.gmra.mrb[0].mxu0 %v10618
      %v13049 = vpop.f32.mrb[0].mxu0
      %v13050 = vadd.f32 %v12937, %v13049
      %v13051 = vpop.f32.mrb[0].mxu0
      %v13052 = vpop.f32.mrb[0].mxu0
      %v13053 = vadd.f32 %v12940, %v13052
      %v13054 = vpop.f32.mrb[0].mxu0
      %13055 = vmatprep.mubr.bf16.mxu0 0
      %13056 = vmatmul.mubr.bf16.gmra.mrb[0].mxu0 %v10714
      %v13057 = vpop.f32.mrb[0].mxu0
      %v13058 = vadd.f32 %v12945, %v13057
      %v13059 = vpop.f32.mrb[0].mxu0
      %v13060 = vpop.f32.mrb[0].mxu0
      %v13061 = vadd.f32 %v12948, %v13060
      %v13062 = vpop.f32.mrb[0].mxu0
      %13063 = vmatprep.mubr.bf16.mxu0 0
      %13064 = vmatmul.mubr.bf16.gmra.mrb[0].mxu0 %v10800
      %v13065 = vpop.f32.mrb[0].mxu0
      %v13066 = vadd.f32 %v12953, %v13065
      %v13067 = vpop.f32.mrb[0].mxu0
      %v13068 = vpop.f32.mrb[0].mxu0
      %v13069 = vadd.f32 %v12956, %v13068
      %v13070 = vpop.f32.mrb[0].mxu0
      %13071 = vmatprep.mubr.bf16.mxu0 0
      %13072 = vmatmul.mubr.bf16.gmra.mrb[0].mxu0 %v10878
      %v13073 = vpop.f32.mrb[0].mxu0
      %v13074 = vadd.f32 %v12961, %v13073
      %v13075 = vpop.f32.mrb[0].mxu0
      %v13076 = vpop.f32.mrb[0].mxu0
      %v13077 = vadd.f32 %v12964, %v13076
      %v13078 = vpop.f32.mrb[0].mxu0
      %13079 = vmatprep.mubr.bf16.mxu0 0
      %13080 = vmatmul.mubr.bf16.gmra.mrb[0].mxu0 %v10956
      %v13081 = vpop.f32.mrb[0].mxu0
      %v13082 = vadd.f32 %v12969, %v13081
      %v13083 = vpop.f32.mrb[0].mxu0
      %v13084 = vpop.f32.mrb[0].mxu0
      %v13085 = vadd.f32 %v12972, %v13084
      %v13086 = vpop.f32.mrb[0].mxu0
      %13087 = vmatprep.mubr.bf16.mxu0 0
      %13088 = vmatmul.mubr.bf16.gmra.mrb[0].mxu0 %v11034
      %v13089 = vpop.f32.mrb[0].mxu0
      %v13090 = vadd.f32 %v12977, %v13089
      %v13091 = vpop.f32.mrb[0].mxu0
      %v13092 = vpop.f32.mrb[0].mxu0
      %v13093 = vadd.f32 %v12980, %v13092
      %v13094 = vpop.f32.mrb[0].mxu0
      %13095 = vdwg.mxu0
      %v13096 = vadd.f32 %v9852, %v13018
      %v13097 = vadd.f32 %v9853, %v13021
      %v13098 = vadd.f32 %v9854, %v13026
      %v13099 = vadd.f32 %v9855, %v13029
      %v13100 = vadd.f32 %v9856, %v13034
      %v13101 = vadd.f32 %v9857, %v13037
      %v13102 = vadd.f32 %v9858, %v13042
      %v13103 = vadd.f32 %v9859, %v13045
      %v13104 = vadd.f32 %v9860, %v13050
      %v13105 = vadd.f32 %v9861, %v13053
      %v13106 = vadd.f32 %v9862, %v13058
      %v13107 = vadd.f32 %v9863, %v13061
      %v13108 = vadd.f32 %v9864, %v13066
      %v13109 = vadd.f32 %v9865, %v13069
      %v13110 = vadd.f32 %v9866, %v13074
      %v13111 = vadd.f32 %v9867, %v13077
      %v13112 = vadd.f32 %v9868, %v13082
      %v13113 = vadd.f32 %v9869, %v13085
      %v13114 = vadd.f32 %v9870, %v13090
      %v13115 = vadd.f32 %v9871, %v13093
      %p13116 = scmp.eq.s32.totalorder %s14, 0
      // Predicated region
      $region33: #{conv1d_tanh.1} parent=31 // pred_check
        %p13117 = pneg %p13116
      $region34: #{conv1d_tanh.1} parent=31 // pred_check_branch
        %13119 = sbr.rel (%p13117) target = $region36
      $region35: #{conv1d_tanh.1} parent=31 // pred_region
        %vm13120 = vcmask 793600
        %13121 = vst.msk [vmem:[%s3] sm:$0xff] %vm13120, %v13096
        %13122 = vst.msk [vmem:[%s3 + $0x8] sm:$0xff] %vm13120, %v13097
        %13123 = vst.msk [vmem:[%s3 + $0x10] sm:$0xff] %vm13120, %v13098
        %13124 = vst.msk [vmem:[%s3 + $0x18] sm:$0xff] %vm13120, %v13099
        %13125 = vst.msk [vmem:[%s3 + $0x20] sm:$0xff] %vm13120, %v13100
        %13126 = vst.msk [vmem:[%s3 + $0x28] sm:$0xff] %vm13120, %v13101
        %13127 = vst.msk [vmem:[%s3 + $0x30] sm:$0xff] %vm13120, %v13102
        %13128 = vst.msk [vmem:[%s3 + $0x38] sm:$0xff] %vm13120, %v13103
        %13129 = vst.msk [vmem:[%s3 + $0x40] sm:$0xff] %vm13120, %v13104
        %13130 = vst.msk [vmem:[%s3 + $0x48] sm:$0xff] %vm13120, %v13105
        %13131 = vst.msk [vmem:[%s3 + $0x50] sm:$0xff] %vm13120, %v13106
        %13132 = vst.msk [vmem:[%s3 + $0x58] sm:$0xff] %vm13120, %v13107
        %13133 = vst.msk [vmem:[%s3 + $0x60] sm:$0xff] %vm13120, %v13108
        %13134 = vst.msk [vmem:[%s3 + $0x68] sm:$0xff] %vm13120, %v13109
        %13135 = vst.msk [vmem:[%s3 + $0x70] sm:$0xff] %vm13120, %v13110
        %13136 = vst.msk [vmem:[%s3 + $0x78] sm:$0xff] %vm13120, %v13111
        %13137 = vst.msk [vmem:[%s3 + $0x80] sm:$0xff] %vm13120, %v13112
        %13138 = vst.msk [vmem:[%s3 + $0x88] sm:$0xff] %vm13120, %v13113
        %13139 = vst.msk [vmem:[%s3 + $0x90] sm:$0xff] %vm13120, %v13114
        %13140 = vst.msk [vmem:[%s3 + $0x98] sm:$0xff] %vm13120, %v13115
      $region36: #{conv1d_tanh.1} parent=31 // pred_fallthru
        _
      %p13141 = scmp.gt.s32.totalorder %s14, 0
      // Predicated region
      $region37: #{conv1d_tanh.1} parent=31 // pred_check
        %p13142 = pneg %p13141
      $region38: #{conv1d_tanh.1} parent=31 // pred_check_branch
        %13144 = sbr.rel (%p13142) target = $region40
      $region39: #{conv1d_tanh.1} parent=31 // pred_region
        %v13145 = vld [vmem:[%s3] sm:$0xff]
        %v13146 = vld [vmem:[%s3 + $0x8] sm:$0xff]
        %v13147 = vld [vmem:[%s3 + $0x10] sm:$0xff]
        %v13148 = vld [vmem:[%s3 + $0x18] sm:$0xff]
        %v13149 = vld [vmem:[%s3 + $0x20] sm:$0xff]
        %v13150 = vld [vmem:[%s3 + $0x28] sm:$0xff]
        %v13151 = vld [vmem:[%s3 + $0x30] sm:$0xff]
        %v13152 = vld [vmem:[%s3 + $0x38] sm:$0xff]
        %v13153 = vld [vmem:[%s3 + $0x40] sm:$0xff]
        %v13154 = vld [vmem:[%s3 + $0x48] sm:$0xff]
        %v13155 = vld [vmem:[%s3 + $0x50] sm:$0xff]
        %v13156 = vld [vmem:[%s3 + $0x58] sm:$0xff]
        %v13157 = vld [vmem:[%s3 + $0x60] sm:$0xff]
        %v13158 = vld [vmem:[%s3 + $0x68] sm:$0xff]
        %v13159 = vld [vmem:[%s3 + $0x70] sm:$0xff]
        %v13160 = vld [vmem:[%s3 + $0x78] sm:$0xff]
        %v13161 = vld [vmem:[%s3 + $0x80] sm:$0xff]
        %v13162 = vld [vmem:[%s3 + $0x88] sm:$0xff]
        %v13163 = vld [vmem:[%s3 + $0x90] sm:$0xff]
        %v13164 = vld [vmem:[%s3 + $0x98] sm:$0xff]
        %v13165 = vadd.f32 %v13145, %v13096
        %v13166 = vadd.f32 %v13146, %v13097
        %v13167 = vadd.f32 %v13147, %v13098
        %v13168 = vadd.f32 %v13148, %v13099
        %v13169 = vadd.f32 %v13149, %v13100
        %v13170 = vadd.f32 %v13150, %v13101
        %v13171 = vadd.f32 %v13151, %v13102
        %v13172 = vadd.f32 %v13152, %v13103
        %v13173 = vadd.f32 %v13153, %v13104
        %v13174 = vadd.f32 %v13154, %v13105
        %v13175 = vadd.f32 %v13155, %v13106
        %v13176 = vadd.f32 %v13156, %v13107
        %v13177 = vadd.f32 %v13157, %v13108
        %v13178 = vadd.f32 %v13158, %v13109
        %v13179 = vadd.f32 %v13159, %v13110
        %v13180 = vadd.f32 %v13160, %v13111
        %v13181 = vadd.f32 %v13161, %v13112
        %v13182 = vadd.f32 %v13162, %v13113
        %v13183 = vadd.f32 %v13163, %v13114
        %v13184 = vadd.f32 %v13164, %v13115
        %vm13185 = vcmask 793600
        %13186 = vst.msk [vmem:[%s3] sm:$0xff] %vm13185, %v13165
        %13187 = vst.msk [vmem:[%s3 + $0x8] sm:$0xff] %vm13185, %v13166
        %13188 = vst.msk [vmem:[%s3 + $0x10] sm:$0xff] %vm13185, %v13167
        %13189 = vst.msk [vmem:[%s3 + $0x18] sm:$0xff] %vm13185, %v13168
        %13190 = vst.msk [vmem:[%s3 + $0x20] sm:$0xff] %vm13185, %v13169
        %13191 = vst.msk [vmem:[%s3 + $0x28] sm:$0xff] %vm13185, %v13170
        %13192 = vst.msk [vmem:[%s3 + $0x30] sm:$0xff] %vm13185, %v13171
        %13193 = vst.msk [vmem:[%s3 + $0x38] sm:$0xff] %vm13185, %v13172
        %13194 = vst.msk [vmem:[%s3 + $0x40] sm:$0xff] %vm13185, %v13173
        %13195 = vst.msk [vmem:[%s3 + $0x48] sm:$0xff] %vm13185, %v13174
        %13196 = vst.msk [vmem:[%s3 + $0x50] sm:$0xff] %vm13185, %v13175
        %13197 = vst.msk [vmem:[%s3 + $0x58] sm:$0xff] %vm13185, %v13176
        %13198 = vst.msk [vmem:[%s3 + $0x60] sm:$0xff] %vm13185, %v13177
        %13199 = vst.msk [vmem:[%s3 + $0x68] sm:$0xff] %vm13185, %v13178
        %13200 = vst.msk [vmem:[%s3 + $0x70] sm:$0xff] %vm13185, %v13179
        %13201 = vst.msk [vmem:[%s3 + $0x78] sm:$0xff] %vm13185, %v13180
        %13202 = vst.msk [vmem:[%s3 + $0x80] sm:$0xff] %vm13185, %v13181
        %13203 = vst.msk [vmem:[%s3 + $0x88] sm:$0xff] %vm13185, %v13182
        %13204 = vst.msk [vmem:[%s3 + $0x90] sm:$0xff] %vm13185, %v13183
        %13205 = vst.msk [vmem:[%s3 + $0x98] sm:$0xff] %vm13185, %v13184
      $region40: #{conv1d_tanh.1} parent=31 // pred_fallthru
        _
      %p13206 = scmp.eq.s32.totalorder %s14, 2
      // Predicated region
      $region41: #{conv1d_tanh.1} parent=31 // pred_check
        %p13207 = pneg %p13206
      $region42: #{conv1d_tanh.1} parent=31 // pred_check_branch
        %13209 = sbr.rel (%p13207) target = $region44
      $region43: #{conv1d_tanh.1} parent=31 // pred_region
        %v13210 = vld [vmem:[%s3] sm:$0xff]
        %v13211 = vld [vmem:[%s3 + $0x8] sm:$0xff]
        %v13212 = vld [vmem:[%s3 + $0x10] sm:$0xff]
        %v13213 = vld [vmem:[%s3 + $0x18] sm:$0xff]
        %v13214 = vld [vmem:[%s3 + $0x20] sm:$0xff]
        %v13215 = vld [vmem:[%s3 + $0x28] sm:$0xff]
        %v13216 = vld [vmem:[%s3 + $0x30] sm:$0xff]
        %v13217 = vld [vmem:[%s3 + $0x38] sm:$0xff]
        %v13218 = vld [vmem:[%s3 + $0x40] sm:$0xff]
        %v13219 = vld [vmem:[%s3 + $0x48] sm:$0xff]
        %v13220 = vld [vmem:[%s3 + $0x50] sm:$0xff]
        %v13221 = vld [vmem:[%s3 + $0x58] sm:$0xff]
        %v13222 = vld [vmem:[%s3 + $0x60] sm:$0xff]
        %v13223 = vld [vmem:[%s3 + $0x68] sm:$0xff]
        %v13224 = vld [vmem:[%s3 + $0x70] sm:$0xff]
        %v13225 = vld [vmem:[%s3 + $0x78] sm:$0xff]
        %v13226 = vld [vmem:[%s3 + $0x80] sm:$0xff]
        %v13227 = vld [vmem:[%s3 + $0x88] sm:$0xff]
        %v13228 = vld [vmem:[%s3 + $0x90] sm:$0xff]
        %v13229 = vld [vmem:[%s3 + $0x98] sm:$0xff]
        %v13230 = vld [vmem:[%s2] sm:$0x1]
        %v13232 = vlaneseq
        %v13233 = vshrl.u32 %v13232, 7
        %v13234 = vsub.s32 0, %v13233
        %v13235 = vrot.slane %v13230, %v13234
        %v13237 = vadd.f32 %v13210, %v13235
        %v13238 = vadd.f32 %v13211, %v13235
        %v13239 = vadd.f32 %v13212, %v13235
        %v13240 = vadd.f32 %v13213, %v13235
        %v13241 = vadd.f32 %v13214, %v13235
        %v13242 = vadd.f32 %v13215, %v13235
        %v13243 = vadd.f32 %v13216, %v13235
        %v13244 = vadd.f32 %v13217, %v13235
        %v13245 = vadd.f32 %v13218, %v13235
        %v13246 = vadd.f32 %v13219, %v13235
        %v13247 = vadd.f32 %v13220, %v13235
        %v13248 = vadd.f32 %v13221, %v13235
        %v13249 = vadd.f32 %v13222, %v13235
        %v13250 = vadd.f32 %v13223, %v13235
        %v13251 = vadd.f32 %v13224, %v13235
        %v13252 = vadd.f32 %v13225, %v13235
        %v13253 = vadd.f32 %v13226, %v13235
        %v13254 = vadd.f32 %v13227, %v13235
        %v13255 = vadd.f32 %v13228, %v13235
        %v13256 = vadd.f32 %v13229, %v13235
        %v13257 = vtanh.pop %v13237
        %v13258 = vtanh.pop %v13238
        %v13259 = vtanh.pop %v13239
        %v13260 = vtanh.pop %v13240
        %v13261 = vtanh.pop %v13241
        %v13262 = vtanh.pop %v13242
        %v13263 = vtanh.pop %v13243
        %v13264 = vtanh.pop %v13244
        %v13265 = vtanh.pop %v13245
        %v13266 = vtanh.pop %v13246
        %v13267 = vtanh.pop %v13247
        %v13268 = vtanh.pop %v13248
        %v13269 = vtanh.pop %v13249
        %v13270 = vtanh.pop %v13250
        %v13271 = vtanh.pop %v13251
        %v13272 = vtanh.pop %v13252
        %v13273 = vtanh.pop %v13253
        %v13274 = vtanh.pop %v13254
        %v13275 = vtanh.pop %v13255
        %v13276 = vtanh.pop %v13256
        %vm13277 = vcmask 793600
        %13278 = vst.msk [vmem:[%s3] sm:$0xff] %vm13277, %v13257
        %13279 = vst.msk [vmem:[%s3 + $0x8] sm:$0xff] %vm13277, %v13258
        %13280 = vst.msk [vmem:[%s3 + $0x10] sm:$0xff] %vm13277, %v13259
        %13281 = vst.msk [vmem:[%s3 + $0x18] sm:$0xff] %vm13277, %v13260
        %13282 = vst.msk [vmem:[%s3 + $0x20] sm:$0xff] %vm13277, %v13261
        %13283 = vst.msk [vmem:[%s3 + $0x28] sm:$0xff] %vm13277, %v13262
        %13284 = vst.msk [vmem:[%s3 + $0x30] sm:$0xff] %vm13277, %v13263
        %13285 = vst.msk [vmem:[%s3 + $0x38] sm:$0xff] %vm13277, %v13264
        %13286 = vst.msk [vmem:[%s3 + $0x40] sm:$0xff] %vm13277, %v13265
        %13287 = vst.msk [vmem:[%s3 + $0x48] sm:$0xff] %vm13277, %v13266
        %13288 = vst.msk [vmem:[%s3 + $0x50] sm:$0xff] %vm13277, %v13267
        %13289 = vst.msk [vmem:[%s3 + $0x58] sm:$0xff] %vm13277, %v13268
        %13290 = vst.msk [vmem:[%s3 + $0x60] sm:$0xff] %vm13277, %v13269
        %13291 = vst.msk [vmem:[%s3 + $0x68] sm:$0xff] %vm13277, %v13270
        %13292 = vst.msk [vmem:[%s3 + $0x70] sm:$0xff] %vm13277, %v13271
        %13293 = vst.msk [vmem:[%s3 + $0x78] sm:$0xff] %vm13277, %v13272
        %13294 = vst.msk [vmem:[%s3 + $0x80] sm:$0xff] %vm13277, %v13273
        %13295 = vst.msk [vmem:[%s3 + $0x88] sm:$0xff] %vm13277, %v13274
        %13296 = vst.msk [vmem:[%s3 + $0x90] sm:$0xff] %vm13277, %v13275
        %13297 = vst.msk [vmem:[%s3 + $0x98] sm:$0xff] %vm13277, %v13276
      $region44: #{conv1d_tanh.1} parent=31 // pred_fallthru
        _
      // Predicated region
      $region45: #{conv1d_tanh.1} parent=31 // pred_check
        %p13298 = pneg %p100
      $region46: #{conv1d_tanh.1} parent=31 // pred_check_branch
        %13300 = sbr.rel (%p13298) target = $region48
      $region47: #{conv1d_tanh.1} parent=31 // pred_region
        _
      $region48: #{conv1d_tanh.1} parent=31 // pred_fallthru
        _
      // Predicated region
      $region49: #{conv1d_tanh.1} parent=31 // pred_check
        %p13301 = pneg %p100
      $region50: #{conv1d_tanh.1} parent=31 // pred_check_branch
        %13303 = sbr.rel (%p13301) target = $region52
      $region51: #{conv1d_tanh.1} parent=31 // pred_region
        _
      $region52: #{conv1d_tanh.1} parent=31 // pred_fallthru
        _
    $region32: #{conv1d_tanh.1} parent=5 // pred_fallthru
      _
    %p13304 = scmp.le.s32.totalorder 2, %s9
    // Predicated region
    $region53: #{conv1d_tanh.1} parent=5 // pred_check
      %p13305 = pneg %p13304
    $region54: #{conv1d_tanh.1} parent=5 // pred_check_branch
      %13307 = sbr.rel (%p13305) target = $region56
    $region55: #{conv1d_tanh.1} parent=5 // pred_region
      %s13308 = ssub.s32 %s9, 2
    $region56: #{conv1d_tanh.1} parent=5 // pred_fallthru
      _
  $region6: #{conv1d_tanh.1} parent=0 // loop_footer
    %s13 = sadd.s32 1, %s9
  $region7: #{conv1d_tanh.1} parent=0 // loop_footer_branch
    %8 = sbr.rel target = $region3
  $region8: #{conv1d_tanh.1} parent=0 // loop_exit
    _

</llo_original>
